<compile_context>
chip_gen: v7x
topology: tpu7x:2x2x1
jax: 0.10.0
libtpu: 0.0.40
codegen_flags: <defaults>
</compile_context>

<pallas_src>
import jax
import jax.numpy as jnp
from jax import lax
from jax.experimental import pallas as pl
from jax.experimental.pallas import tpu as pltpu


def _round_up(x, m):
    return (x + m - 1) // m * m


def _vmem_limit_bytes():
    # Generation-aware VMEM cap: ~3/4 of physical (96 MiB on v5e/v6e,
    # 48 MiB on v7x); falls back to a v7x-safe 48 MiB if the query fails.
    try:
        cap = int(pltpu.get_tpu_info().vmem_capacity_bytes)
        return min(cap * 3 // 4, 96 * 1024 * 1024)
    except Exception:
        return 48 * 1024 * 1024


# ---------------------------------------------------------------------------
# Fused Pallas kernel: one 3x3 conv (pad=1, stride=1) + bias + ReLU layer per
# grid step along the layer axis; activations stay in VMEM across layers.
# ---------------------------------------------------------------------------
def _conv_layer_kernel(x_ref, w_ref, b_ref, o_ref, buf):
    # Grid: (roi_blocks, L); the layer axis is innermost ("arbitrary").
    # x_ref : (RB, H, W, CP)      bf16  pooled ROI block (channel padded);
    #                                   block index constant in l -> one DMA/ROI block
    # w_ref : (1, 9, CP, CP)      bf16  weights of the CURRENT layer, tap-major
    # b_ref : (1, 1, CP)          f32   bias of the current layer
    # o_ref : (RB*H*W, CP)        bf16  final activations (written at last layer)
    # buf   : (RB, H+2, W+2, CP)  bf16  VMEM activation buffer with zero spatial halo
    RB, H, W, CP = x_ref.shape
    M = RB * H * W
    l = pl.program_id(1)
    n_layers = pl.num_programs(1)

    # Per-ROI-block init (runs on whatever core owns this ROI block -> safe
    # under megacore sharding of the "parallel" ROI axis).  Zero the whole
    # buffer once to establish the zero halo; the interior is overwritten
    # every layer, so the halo stays zero for all later layer steps.
    @pl.when(l == 0)
    def _init():
        buf[...] = jnp.zeros_like(buf)
        buf[:, 1:H + 1, 1:W + 1, :] = x_ref[...]

    # Load the padded activations once (value load precedes the store below,
    # so writing the layer result back into the same buffer is safe).
    x = buf[...]                                         # (RB, H+2, W+2, CP) bf16

    # 9 accumulating per-tap MXU dots (no im2col concat slab).
    # Note: per-tap K = CP; for v6e/v7x's 256-deep MXU, CP >= 256 production
    # configs (or pairing taps) keep the MXU fully fed.
    acc = None
    for t in range(9):                                   # static -> unrolled
        kh, kw = t // 3, t % 3
        tap = x[:, kh:kh + H, kw:kw + W, :].reshape(M, CP)     # bf16
        d = jnp.dot(tap, w_ref[0, t], preferred_element_type=jnp.float32)
        acc = d if acc is None else acc + d
    acc = jnp.maximum(acc + b_ref[0], 0.0)               # bias + ReLU in f32

    @pl.when(l < n_layers - 1)
    def _store_mid():
        # TODO(synk): offset-1 interior writes are masked/partial stores on the
        # sublane axis (W+2 = 10); a roll+mask tap scheme would remove them
        # (matters most for v5e's single vector-store slot).
        buf[:, 1:H + 1, 1:W + 1, :] = (
            acc.reshape(RB, H, W, CP).astype(buf.dtype))

    @pl.when(l == n_layers - 1)
    def _store_last():
        o_ref[...] = acc.astype(o_ref.dtype)             # lane-dense bf16 store


def conv_stack_pallas(x_nhwc, w_stack, b_stack, out_channels, *, roi_block=32):
    """x_nhwc: (R, H, W, CP) channel-padded bf16 pooled ROIs -> (R, H, W, Cout) bf16."""
    R, H, W, CP = x_nhwc.shape
    L = w_stack.shape[0]
    x_nhwc = x_nhwc.astype(jnp.bfloat16)

    rb = min(roi_block, _round_up(max(R, 1), 8))
    r_pad = _round_up(max(R, 1), rb)
    if r_pad != R:
        x_nhwc = jnp.pad(x_nhwc, ((0, r_pad - R), (0, 0), (0, 0), (0, 0)))

    out = pl.pallas_call(
        _conv_layer_kernel,
        out_shape=jax.ShapeDtypeStruct((r_pad * H * W, CP), jnp.bfloat16),
        grid=(r_pad // rb, L),
        in_specs=[
            pl.BlockSpec((rb, H, W, CP), lambda r, l: (r, 0, 0, 0)),
            pl.BlockSpec((1, 9, CP, CP), lambda r, l: (l, 0, 0, 0)),
            pl.BlockSpec((1, 1, CP), lambda r, l: (l, 0, 0)),
        ],
        out_specs=pl.BlockSpec((rb * H * W, CP), lambda r, l: (r, 0)),
        scratch_shapes=[
            pltpu.VMEM((rb, H + 2, W + 2, CP), jnp.bfloat16),
        ],
        compiler_params=pltpu.CompilerParams(
            # ROI axis sharded across TensorCores (v7x); layer axis sequential.
            dimension_semantics=("parallel", "arbitrary"),
            vmem_limit_bytes=_vmem_limit_bytes(),
        ),
    )(x_nhwc, w_stack, b_stack)

    return out.reshape(r_pad, H, W, CP)[:R, :, :, :out_channels]


# ---------------------------------------------------------------------------
# ROIAlign pooler (glue: data-dependent bilinear gather, kept in plain JAX)
# ---------------------------------------------------------------------------
def _bilinear_sample(img, y, x):
    Hf, Wf = img.shape
    valid = (y > -1.0) & (y < Hf) & (x > -1.0) & (x < Wf)
    y = jnp.clip(y, 0.0, Hf - 1)
    x = jnp.clip(x, 0.0, Wf - 1)
    y0 = jnp.floor(y).astype(jnp.int32)
    x0 = jnp.floor(x).astype(jnp.int32)
    y1 = jnp.minimum(y0 + 1, Hf - 1)
    x1 = jnp.minimum(x0 + 1, Wf - 1)
    ly = y - y0.astype(jnp.float32)
    lx = x - x0.astype(jnp.float32)
    hy, hx = 1.0 - ly, 1.0 - lx
    val = (hy * hx * img[y0, x0] + hy * lx * img[y0, x1]
           + ly * hx * img[y1, x0] + ly * lx * img[y1, x1])
    return jnp.where(valid, val, 0.0)


def roi_align_nhwc(feat_nchw, boxes, box_batch_idx, out_size, spatial_scale,
                   sampling_ratio):
    """feat: (N,C,Hf,Wf); boxes: (R,4) xyxy image coords -> (R,out,out,C)."""
    sr = sampling_ratio
    # TODO(synk): sampling_ratio=-1 (adaptive ceil(roi_size/out_size)) and the
    # aligned=True (-0.5 offset) convention are not implemented.

    def one_roi(box, bidx):
        img = feat_nchw[bidx]                                  # (C, Hf, Wf)
        x1, y1, x2, y2 = box * spatial_scale
        roi_w = jnp.maximum(x2 - x1, 1.0)
        roi_h = jnp.maximum(y2 - y1, 1.0)
        bin_w = roi_w / out_size
        bin_h = roi_h / out_size
        pidx = jnp.arange(out_size, dtype=jnp.float32)
        sidx = jnp.arange(sr, dtype=jnp.float32)
        ys = y1 + pidx[:, None] * bin_h + (sidx[None, :] + 0.5) * bin_h / sr
        xs = x1 + pidx[:, None] * bin_w + (sidx[None, :] + 0.5) * bin_w / sr
        yy = jnp.broadcast_to(ys[:, :, None, None], (out_size, sr, out_size, sr))
        xx = jnp.broadcast_to(xs[None, None, :, :], (out_size, sr, out_size, sr))

        def per_channel(ch):
            vals = _bilinear_sample(ch, yy, xx)                # (P, sr, P, sr)
            return vals.mean(axis=(1, 3))                      # (P, P)

        return jax.vmap(per_channel, out_axes=-1)(img)         # (P, P, C)

    return jax.vmap(one_roi)(boxes, box_batch_idx)              # (R, P, P, C)


# ---------------------------------------------------------------------------
# The feature extractor (pooler + fused conv_fcn stack)
# ---------------------------------------------------------------------------
class KeypointFeatureExtractorPallas:
    n_dim = 4  # output is (num_rois, out_channels, P, P)

    def __init__(self, in_channels, conv_layers=(32, 32), resolution=8,
                 spatial_scale=0.5, sampling_ratio=2, roi_block=32, key=None):
        self.resolution = resolution
        self.spatial_scale = spatial_scale
        self.sampling_ratio = sampling_ratio
        self.roi_block = roi_block

        # Raw f32 parameters (PyTorch-equivalent init: kaiming fan_out, bias 0).
        self.weights, self.biases = [], []
        next_c = in_channels
        for c in conv_layers:
            key, sub = jax.random.split(key)
            fan_out = c * 3 * 3
            std = (2.0 / fan_out) ** 0.5
            self.weights.append(
                std * jax.random.normal(sub, (3, 3, next_c, c), jnp.float32))
            self.biases.append(jnp.zeros((c,), jnp.float32))
            next_c = c
        self.out_channels = next_c

        # Packed, channel-padded (lane-dense) weight/bias stacks for the kernel.
        # Layout (L, 9, CP, CP): tap-major so each tap's weight is a static
        # tile-aligned (CP, CP) slice for the per-tap accumulating dots.
        self.c_pad = _round_up(max([in_channels] + list(conv_layers)), 128)
        cp = self.c_pad
        w_stack, b_stack = [], []
        for w, b in zip(self.weights, self.biases):
            cin, cout = w.shape[2], w.shape[3]
            wp = jnp.pad(w, ((0, 0), (0, 0), (0, cp - cin), (0, cp - cout)))
            w_stack.append(wp.reshape(9, cp, cp))
            b_stack.append(jnp.pad(b, (0, cp - cout)).reshape(1, cp))
        self.w_stack = jnp.stack(w_stack).astype(jnp.bfloat16)   # (L, 9, CP, CP)
        self.b_stack = jnp.stack(b_stack).astype(jnp.float32)    # (L, 1, CP)

    def __call__(self, x, proposals):
        # x: list of NCHW feature maps (single FPN level here)
        # proposals: list of per-image (n_i, 4) xyxy boxes in image coordinates
        rois = jnp.concatenate(proposals, axis=0)
        batch_idx = jnp.concatenate([
            jnp.full((p.shape[0],), i, jnp.int32)
            for i, p in enumerate(proposals)])
        # ROIAlign emits NHWC directly; channel pad + bf16 cast fused into a
        # single XLA pass before the Pallas kernel.
        pooled = roi_align_nhwc(x[0], rois, batch_idx, self.resolution,
                                self.spatial_scale, self.sampling_ratio)
        h = jnp.pad(pooled, ((0, 0), (0, 0), (0, 0),
                             (0, self.c_pad - pooled.shape[-1]))
                    ).astype(jnp.bfloat16)
        out = conv_stack_pallas(h, self.w_stack, self.b_stack,
                                self.out_channels, roi_block=self.roi_block)
        return jnp.transpose(out, (0, 3, 1, 2))                 # NHWC -> NCHW (bf16)


# Reference conv stack (XLA conv, same bf16 inputs / f32 accumulation) for a
# correctness cross-check of the fused Pallas path.
def _conv_stack_ref(pooled_nchw, weights, biases):
    h = jnp.transpose(pooled_nchw, (0, 2, 3, 1))
    for w, b in zip(weights, biases):
        y = lax.conv_general_dilated(
            h.astype(jnp.bfloat16), w.astype(jnp.bfloat16),
            window_strides=(1, 1), padding="SAME",
            dimension_numbers=("NHWC", "HWIO", "NHWC"),
            preferred_element_type=jnp.float32)
        h = jnp.maximum(y + b, 0.0)
    return jnp.transpose(h, (0, 3, 1, 2))


if __name__ == "__main__":
    key = jax.random.PRNGKey(0)
    key, kfeat, kparams = jax.random.split(key, 3)

    # Backbone feature map: batch=2, channels=4, spatial 16x16 (NCHW),
    # corresponding to 32x32 images (spatial_scale = 0.5).
    feats = jax.random.normal(kfeat, (2, 4, 16, 16), jnp.float32)

    # Proposals: 3 boxes per image, xyxy in image coordinates.
    proposals = [
        jnp.array([[2., 3., 20., 18.],
                   [5., 1., 30., 28.],
                   [0., 0., 15., 15.]], jnp.float32),
        jnp.array([[4., 4., 28., 30.],
                   [10., 6., 26., 20.],
                   [1., 8., 12., 31.]], jnp.float32),
    ]

    extractor = KeypointFeatureExtractorPallas(
        in_channels=4, conv_layers=(32, 32), resolution=8,
        spatial_scale=0.5, sampling_ratio=2, roi_block=32, key=kparams)

    out = extractor([feats], proposals)
    out = jax.block_until_ready(out)
    assert out.shape == (6, extractor.out_channels, 8, 8), out.shape

    # Cross-check the fused Pallas conv stack against XLA's conv.
    rois = jnp.concatenate(proposals, axis=0)
    bidx = jnp.concatenate(
        [jnp.zeros((3,), jnp.int32), jnp.ones((3,), jnp.int32)])
    pooled = roi_align_nhwc(feats, rois, bidx, 8, 0.5, 2)
    pooled_nchw = jnp.transpose(pooled, (0, 3, 1, 2))
    ref = jax.block_until_ready(
        _conv_stack_ref(pooled_nchw, extractor.weights, extractor.biases))
    err = float(jnp.max(jnp.abs(out.astype(jnp.float32) - ref)))
    assert jnp.allclose(out.astype(jnp.float32), ref, atol=2e-2, rtol=2e-2), err

    print("KERNEL_OK")
</pallas_src>

<mosaic_0001>
module attributes {stable_mosaic.version = 11 : i64} {
  func.func @_conv_layer_kernel(%arg0: i32, %arg1: i32, %arg2: memref<8x8x8x128xbf16, #tpu.memory_space<vmem>>, %arg3: memref<1x9x128x128xbf16, #tpu.memory_space<vmem>>, %arg4: memref<1x1x128xf32, #tpu.memory_space<vmem>>, %arg5: memref<512x128xbf16, #tpu.memory_space<vmem>>, %arg6: memref<8x10x10x128xbf16, #tpu.memory_space<vmem>>) attributes {dimension_semantics = [#tpu.dimension_semantics<parallel>, #tpu.dimension_semantics<arbitrary>], iteration_bounds = array<i64: 1, 2>, scalar_prefetch = 0 : i64, scratch_operands = 1 : i64, tpu.core_type = #tpu.core_type<tc>, window_params = [{transform_indices = @transform_0, window_bounds = array<i64: 8, 8, 8, 128>}, {transform_indices = @transform_1, window_bounds = array<i64: 1, 9, 128, 128>}, {transform_indices = @transform_2, window_bounds = array<i64: 1, 1, 128>}, {transform_indices = @transform_3, window_bounds = array<i64: 512, 128>}]} {
    %c0_i32 = arith.constant 0 : i32
    %0 = arith.cmpi eq, %arg1, %c0_i32 : i32
    %1 = arith.extui %0 : i1 to i32
    %c0_i32_0 = arith.constant 0 : i32
    %2 = arith.cmpi ne, %1, %c0_i32_0 : i32
    scf.if %2 {
      %cst_47 = arith.constant 0.000000e+00 : bf16
      %69 = vector.broadcast %cst_47 : bf16 to vector<8x10x10x128xbf16>
      %c0_48 = arith.constant 0 : index
      %c0_49 = arith.constant 0 : index
      %c0_50 = arith.constant 0 : index
      %c0_51 = arith.constant 0 : index
      %70 = vector.load %arg6[%c0_48, %c0_49, %c0_50, %c0_51] : memref<8x10x10x128xbf16, #tpu.memory_space<vmem>>, vector<8x10x10x128xbf16>
      tpu.vector_store %arg6[%c0_48, %c0_49, %c0_50, %c0_51], %69 {strides = array<i32>} : memref<8x10x10x128xbf16, #tpu.memory_space<vmem>>, vector<8x10x10x128xbf16>,
      %c0_52 = arith.constant 0 : index
      %c0_53 = arith.constant 0 : index
      %c0_54 = arith.constant 0 : index
      %c0_55 = arith.constant 0 : index
      %71 = vector.load %arg2[%c0_52, %c0_53, %c0_54, %c0_55] : memref<8x8x8x128xbf16, #tpu.memory_space<vmem>>, vector<8x8x8x128xbf16>
      %c0_56 = arith.constant 0 : index
      %c1_57 = arith.constant 1 : index
      %c1_58 = arith.constant 1 : index
      %c0_59 = arith.constant 0 : index
      %72 = vector.load %arg6[%c0_56, %c1_57, %c1_58, %c0_59] : memref<8x10x10x128xbf16, #tpu.memory_space<vmem>>, vector<8x8x8x128xbf16>
      tpu.vector_store %arg6[%c0_56, %c1_57, %c1_58, %c0_59], %71 {strides = array<i32>} : memref<8x10x10x128xbf16, #tpu.memory_space<vmem>>, vector<8x8x8x128xbf16>,
    } else {
    }
    %c0 = arith.constant 0 : index
    %c0_1 = arith.constant 0 : index
    %c0_2 = arith.constant 0 : index
    %c0_3 = arith.constant 0 : index
    %3 = vector.load %arg6[%c0, %c0_1, %c0_2, %c0_3] : memref<8x10x10x128xbf16, #tpu.memory_space<vmem>>, vector<8x10x10x128xbf16>
    %4 = vector.extract_strided_slice %3 {offsets = [0, 0, 0, 0], sizes = [8, 8, 8, 128], strides = [1, 1, 1, 1]} : vector<8x10x10x128xbf16> to vector<8x8x8x128xbf16>
    %5 = vector.shape_cast %4 : vector<8x8x8x128xbf16> to vector<512x128xbf16>
    %c0_4 = arith.constant 0 : index
    %c0_5 = arith.constant 0 : index
    %c0_6 = arith.constant 0 : index
    %c0_7 = arith.constant 0 : index
    %6 = vector.load %arg3[%c0_4, %c0_5, %c0_6, %c0_7] : memref<1x9x128x128xbf16, #tpu.memory_space<vmem>>, vector<1x1x128x128xbf16>
    %7 = vector.shape_cast %6 : vector<1x1x128x128xbf16> to vector<128x128xbf16>
    %cst = arith.constant dense<0.000000e+00> : vector<512x128xf32>
    %8 = tpu.matmul %5, %7, %cst {dimension_numbers = #tpu.dot_dimension_numbers<[1], [0], [0], [1], [0, 0, 1, 1], [], []>} : vector<512x128xbf16>, vector<128x128xbf16>, vector<512x128xf32> -> vector<512x128xf32>
    %9 = vector.extract_strided_slice %3 {offsets = [0, 0, 1, 0], sizes = [8, 8, 8, 128], strides = [1, 1, 1, 1]} : vector<8x10x10x128xbf16> to vector<8x8x8x128xbf16>
    %10 = vector.shape_cast %9 : vector<8x8x8x128xbf16> to vector<512x128xbf16>
    %c0_8 = arith.constant 0 : index
    %c1 = arith.constant 1 : index
    %c0_9 = arith.constant 0 : index
    %c0_10 = arith.constant 0 : index
    %11 = vector.load %arg3[%c0_8, %c1, %c0_9, %c0_10] : memref<1x9x128x128xbf16, #tpu.memory_space<vmem>>, vector<1x1x128x128xbf16>
    %12 = vector.shape_cast %11 : vector<1x1x128x128xbf16> to vector<128x128xbf16>
    %cst_11 = arith.constant dense<0.000000e+00> : vector<512x128xf32>
    %13 = tpu.matmul %10, %12, %cst_11 {dimension_numbers = #tpu.dot_dimension_numbers<[1], [0], [0], [1], [0, 0, 1, 1], [], []>} : vector<512x128xbf16>, vector<128x128xbf16>, vector<512x128xf32> -> vector<512x128xf32>
    %14 = arith.addf %8, %13 : vector<512x128xf32>
    %15 = vector.extract_strided_slice %3 {offsets = [0, 0, 2, 0], sizes = [8, 8, 8, 128], strides = [1, 1, 1, 1]} : vector<8x10x10x128xbf16> to vector<8x8x8x128xbf16>
    %16 = vector.shape_cast %15 : vector<8x8x8x128xbf16> to vector<512x128xbf16>
    %c0_12 = arith.constant 0 : index
    %c2 = arith.constant 2 : index
    %c0_13 = arith.constant 0 : index
    %c0_14 = arith.constant 0 : index
    %17 = vector.load %arg3[%c0_12, %c2, %c0_13, %c0_14] : memref<1x9x128x128xbf16, #tpu.memory_space<vmem>>, vector<1x1x128x128xbf16>
    %18 = vector.shape_cast %17 : vector<1x1x128x128xbf16> to vector<128x128xbf16>
    %cst_15 = arith.constant dense<0.000000e+00> : vector<512x128xf32>
    %19 = tpu.matmul %16, %18, %cst_15 {dimension_numbers = #tpu.dot_dimension_numbers<[1], [0], [0], [1], [0, 0, 1, 1], [], []>} : vector<512x128xbf16>, vector<128x128xbf16>, vector<512x128xf32> -> vector<512x128xf32>
    %20 = arith.addf %14, %19 : vector<512x128xf32>
    %21 = vector.extract_strided_slice %3 {offsets = [0, 1, 0, 0], sizes = [8, 8, 8, 128], strides = [1, 1, 1, 1]} : vector<8x10x10x128xbf16> to vector<8x8x8x128xbf16>
    %22 = vector.shape_cast %21 : vector<8x8x8x128xbf16> to vector<512x128xbf16>
    %c0_16 = arith.constant 0 : index
    %c3 = arith.constant 3 : index
    %c0_17 = arith.constant 0 : index
    %c0_18 = arith.constant 0 : index
    %23 = vector.load %arg3[%c0_16, %c3, %c0_17, %c0_18] : memref<1x9x128x128xbf16, #tpu.memory_space<vmem>>, vector<1x1x128x128xbf16>
    %24 = vector.shape_cast %23 : vector<1x1x128x128xbf16> to vector<128x128xbf16>
    %cst_19 = arith.constant dense<0.000000e+00> : vector<512x128xf32>
    %25 = tpu.matmul %22, %24, %cst_19 {dimension_numbers = #tpu.dot_dimension_numbers<[1], [0], [0], [1], [0, 0, 1, 1], [], []>} : vector<512x128xbf16>, vector<128x128xbf16>, vector<512x128xf32> -> vector<512x128xf32>
    %26 = arith.addf %20, %25 : vector<512x128xf32>
    %27 = vector.extract_strided_slice %3 {offsets = [0, 1, 1, 0], sizes = [8, 8, 8, 128], strides = [1, 1, 1, 1]} : vector<8x10x10x128xbf16> to vector<8x8x8x128xbf16>
    %28 = vector.shape_cast %27 : vector<8x8x8x128xbf16> to vector<512x128xbf16>
    %c0_20 = arith.constant 0 : index
    %c4 = arith.constant 4 : index
    %c0_21 = arith.constant 0 : index
    %c0_22 = arith.constant 0 : index
    %29 = vector.load %arg3[%c0_20, %c4, %c0_21, %c0_22] : memref<1x9x128x128xbf16, #tpu.memory_space<vmem>>, vector<1x1x128x128xbf16>
    %30 = vector.shape_cast %29 : vector<1x1x128x128xbf16> to vector<128x128xbf16>
    %cst_23 = arith.constant dense<0.000000e+00> : vector<512x128xf32>
    %31 = tpu.matmul %28, %30, %cst_23 {dimension_numbers = #tpu.dot_dimension_numbers<[1], [0], [0], [1], [0, 0, 1, 1], [], []>} : vector<512x128xbf16>, vector<128x128xbf16>, vector<512x128xf32> -> vector<512x128xf32>
    %32 = arith.addf %26, %31 : vector<512x128xf32>
    %33 = vector.extract_strided_slice %3 {offsets = [0, 1, 2, 0], sizes = [8, 8, 8, 128], strides = [1, 1, 1, 1]} : vector<8x10x10x128xbf16> to vector<8x8x8x128xbf16>
    %34 = vector.shape_cast %33 : vector<8x8x8x128xbf16> to vector<512x128xbf16>
    %c0_24 = arith.constant 0 : index
    %c5 = arith.constant 5 : index
    %c0_25 = arith.constant 0 : index
    %c0_26 = arith.constant 0 : index
    %35 = vector.load %arg3[%c0_24, %c5, %c0_25, %c0_26] : memref<1x9x128x128xbf16, #tpu.memory_space<vmem>>, vector<1x1x128x128xbf16>
    %36 = vector.shape_cast %35 : vector<1x1x128x128xbf16> to vector<128x128xbf16>
    %cst_27 = arith.constant dense<0.000000e+00> : vector<512x128xf32>
    %37 = tpu.matmul %34, %36, %cst_27 {dimension_numbers = #tpu.dot_dimension_numbers<[1], [0], [0], [1], [0, 0, 1, 1], [], []>} : vector<512x128xbf16>, vector<128x128xbf16>, vector<512x128xf32> -> vector<512x128xf32>
    %38 = arith.addf %32, %37 : vector<512x128xf32>
    %39 = vector.extract_strided_slice %3 {offsets = [0, 2, 0, 0], sizes = [8, 8, 8, 128], strides = [1, 1, 1, 1]} : vector<8x10x10x128xbf16> to vector<8x8x8x128xbf16>
    %40 = vector.shape_cast %39 : vector<8x8x8x128xbf16> to vector<512x128xbf16>
    %c0_28 = arith.constant 0 : index
    %c6 = arith.constant 6 : index
    %c0_29 = arith.constant 0 : index
    %c0_30 = arith.constant 0 : index
    %41 = vector.load %arg3[%c0_28, %c6, %c0_29, %c0_30] : memref<1x9x128x128xbf16, #tpu.memory_space<vmem>>, vector<1x1x128x128xbf16>
    %42 = vector.shape_cast %41 : vector<1x1x128x128xbf16> to vector<128x128xbf16>
    %cst_31 = arith.constant dense<0.000000e+00> : vector<512x128xf32>
    %43 = tpu.matmul %40, %42, %cst_31 {dimension_numbers = #tpu.dot_dimension_numbers<[1], [0], [0], [1], [0, 0, 1, 1], [], []>} : vector<512x128xbf16>, vector<128x128xbf16>, vector<512x128xf32> -> vector<512x128xf32>
    %44 = arith.addf %38, %43 : vector<512x128xf32>
    %45 = vector.extract_strided_slice %3 {offsets = [0, 2, 1, 0], sizes = [8, 8, 8, 128], strides = [1, 1, 1, 1]} : vector<8x10x10x128xbf16> to vector<8x8x8x128xbf16>
    %46 = vector.shape_cast %45 : vector<8x8x8x128xbf16> to vector<512x128xbf16>
    %c0_32 = arith.constant 0 : index
    %c7 = arith.constant 7 : index
    %c0_33 = arith.constant 0 : index
    %c0_34 = arith.constant 0 : index
    %47 = vector.load %arg3[%c0_32, %c7, %c0_33, %c0_34] : memref<1x9x128x128xbf16, #tpu.memory_space<vmem>>, vector<1x1x128x128xbf16>
    %48 = vector.shape_cast %47 : vector<1x1x128x128xbf16> to vector<128x128xbf16>
    %cst_35 = arith.constant dense<0.000000e+00> : vector<512x128xf32>
    %49 = tpu.matmul %46, %48, %cst_35 {dimension_numbers = #tpu.dot_dimension_numbers<[1], [0], [0], [1], [0, 0, 1, 1], [], []>} : vector<512x128xbf16>, vector<128x128xbf16>, vector<512x128xf32> -> vector<512x128xf32>
    %50 = arith.addf %44, %49 : vector<512x128xf32>
    %51 = vector.extract_strided_slice %3 {offsets = [0, 2, 2, 0], sizes = [8, 8, 8, 128], strides = [1, 1, 1, 1]} : vector<8x10x10x128xbf16> to vector<8x8x8x128xbf16>
    %52 = vector.shape_cast %51 : vector<8x8x8x128xbf16> to vector<512x128xbf16>
    %c0_36 = arith.constant 0 : index
    %c8 = arith.constant 8 : index
    %c0_37 = arith.constant 0 : index
    %c0_38 = arith.constant 0 : index
    %53 = vector.load %arg3[%c0_36, %c8, %c0_37, %c0_38] : memref<1x9x128x128xbf16, #tpu.memory_space<vmem>>, vector<1x1x128x128xbf16>
    %54 = vector.shape_cast %53 : vector<1x1x128x128xbf16> to vector<128x128xbf16>
    %cst_39 = arith.constant dense<0.000000e+00> : vector<512x128xf32>
    %55 = tpu.matmul %52, %54, %cst_39 {dimension_numbers = #tpu.dot_dimension_numbers<[1], [0], [0], [1], [0, 0, 1, 1], [], []>} : vector<512x128xbf16>, vector<128x128xbf16>, vector<512x128xf32> -> vector<512x128xf32>
    %56 = arith.addf %50, %55 : vector<512x128xf32>
    %c0_40 = arith.constant 0 : index
    %c0_41 = arith.constant 0 : index
    %c0_42 = arith.constant 0 : index
    %57 = vector.load %arg4[%c0_40, %c0_41, %c0_42] : memref<1x1x128xf32, #tpu.memory_space<vmem>>, vector<1x1x128xf32>
    %58 = vector.shape_cast %57 : vector<1x1x128xf32> to vector<1x128xf32>
    %59 = vector.broadcast %58 : vector<1x128xf32> to vector<512x128xf32>
    %60 = arith.addf %56, %59 : vector<512x128xf32>
    %cst_43 = arith.constant 0.000000e+00 : f32
    %61 = vector.broadcast %cst_43 : f32 to vector<512x128xf32>
    %62 = arith.maximumf %60, %61 : vector<512x128xf32>
    %c1_i32 = arith.constant 1 : i32
    %63 = arith.cmpi slt, %arg1, %c1_i32 : i32
    %64 = arith.extui %63 : i1 to i32
    %c0_i32_44 = arith.constant 0 : i32
    %65 = arith.cmpi ne, %64, %c0_i32_44 : i32
    scf.if %65 {
      %69 = vector.shape_cast %62 : vector<512x128xf32> to vector<8x8x8x128xf32>
      %70 = arith.truncf %69 : vector<8x8x8x128xf32> to vector<8x8x8x128xbf16>
      %c0_47 = arith.constant 0 : index
      %c1_48 = arith.constant 1 : index
      %c1_49 = arith.constant 1 : index
      %c0_50 = arith.constant 0 : index
      %71 = vector.load %arg6[%c0_47, %c1_48, %c1_49, %c0_50] : memref<8x10x10x128xbf16, #tpu.memory_space<vmem>>, vector<8x8x8x128xbf16>
      tpu.vector_store %arg6[%c0_47, %c1_48, %c1_49, %c0_50], %70 {strides = array<i32>} : memref<8x10x10x128xbf16, #tpu.memory_space<vmem>>, vector<8x8x8x128xbf16>,
    } else {
    }
    %c1_i32_45 = arith.constant 1 : i32
    %66 = arith.cmpi eq, %arg1, %c1_i32_45 : i32
    %67 = arith.extui %66 : i1 to i32
    %c0_i32_46 = arith.constant 0 : i32
    %68 = arith.cmpi ne, %67, %c0_i32_46 : i32
    scf.if %68 {
      %69 = arith.truncf %62 : vector<512x128xf32> to vector<512x128xbf16>
      %c0_47 = arith.constant 0 : index
      %c0_48 = arith.constant 0 : index
      %70 = vector.load %arg5[%c0_47, %c0_48] : memref<512x128xbf16, #tpu.memory_space<vmem>>, vector<512x128xbf16>
      tpu.vector_store %arg5[%c0_47, %c0_48], %69 {strides = array<i32>} : memref<512x128xbf16, #tpu.memory_space<vmem>>, vector<512x128xbf16>,
    } else {
    }
    return
  }
  func.func @transform_0(%arg0: i32, %arg1: i32) -> (i32, i32, i32, i32) {
    %c0_i32 = arith.constant 0 : i32
    %c0_i32_0 = arith.constant 0 : i32
    %c0_i32_1 = arith.constant 0 : i32
    %c0_i32_2 = arith.constant 0 : i32
    return %arg0, %c0_i32, %c0_i32_0, %c0_i32_1 : i32, i32, i32, i32
  }
  func.func @transform_1(%arg0: i32, %arg1: i32) -> (i32, i32, i32, i32) {
    %c0_i32 = arith.constant 0 : i32
    %c0_i32_0 = arith.constant 0 : i32
    %c0_i32_1 = arith.constant 0 : i32
    %c0_i32_2 = arith.constant 0 : i32
    return %arg1, %c0_i32, %c0_i32_0, %c0_i32_1 : i32, i32, i32, i32
  }
  func.func @transform_2(%arg0: i32, %arg1: i32) -> (i32, i32, i32) {
    %c0_i32 = arith.constant 0 : i32
    %c0_i32_0 = arith.constant 0 : i32
    %c0_i32_1 = arith.constant 0 : i32
    return %arg1, %c0_i32, %c0_i32_0 : i32, i32, i32
  }
  func.func @transform_3(%arg0: i32, %arg1: i32) -> (i32, i32) {
    %c0_i32 = arith.constant 0 : i32
    %c0_i32_0 = arith.constant 0 : i32
    return %arg0, %c0_i32 : i32, i32
  }
}

</mosaic_0001>

<llo_original>
// kernel: tpu_custom_call.1
$region0: #{tpu_custom_call.1}
  #allocation0 [shape = 'u32[]', space=smem, size = 0x4, offset = 0x4, fixed_abs, tag = 'smem constant byte address 0x4 - core index']
  #allocation1 [shape = 'u32[144,128]{1,0:T(1,128)}', space=vmem, size = 0x12000, scoped, tag = 'internal scratch']
  #allocation2 [shape = 'bf16[8,10,10,128]{3,2,1,0:T(8,128)(2,1)}', space=vmem, size = 0x50000, scoped, tag = 'scratch operand']
  %s0 = inlined_call_operand.hbm [shape: bf16[8,8,8,128], index: 0, kind: input, shape index: {}]
  %s1 = inlined_call_operand.hbm [shape: bf16[2,9,128,128], index: 1, kind: input, shape index: {}]
  %s2 = inlined_call_operand.vmem [shape: f32[2,1,128], index: 2, kind: input, shape index: {}]
  %s3 = inlined_call_operand.hbm [shape: bf16[512,128], index: 3, kind: output, shape index: {}]
  %s4 = sld [smem:[#allocation0]]
  $region65: #{tpu_custom_call.1} parent=0
    _
  %s6 = ssub.s32 1, %s4
  %s7 = scalar_select 0, %s6, %s4
  $region1: #{tpu_custom_call.1} parent=0
    #allocation3 [shape = 'u8[131072]{0}', space=vmem, size = 0x20000, scoped, tag = 'input window, operand 0, single buffered']
    #allocation4 [shape = 's32[2]{0}', space=sflag, size = 0x8, scoped, tag = 'scoped memory for tpu_custom_call.1']
    #allocation5 [shape = 's32[2]{0}', space=sflag, size = 0x8, scoped, tag = 'scoped memory for tpu_custom_call.1']
    #allocation6 [shape = 'u8[589824]{0}', space=vmem, size = 0x90000, scoped, tag = 'input window, operand 1']
    #allocation7 [shape = 's32[2]{0}', space=sflag, size = 0x8, scoped, tag = 'scoped memory for tpu_custom_call.1']
    #allocation8 [shape = 'u8[131072]{0}', space=vmem, size = 0x20000, scoped, tag = 'output window, operand 0, single buffered']
    %8 = vsyncpa [#allocation4], 0
    %9 = vsyncpa [#allocation7], 0
    %s10 = scalar_lea.sflag [#allocation7], 1
    %11 = vsyncpa %s10, 0
    %12 = vsyncpa [#allocation5], 0
    loop: start=0, step=1, limit=4
    $region2: #{tpu_custom_call.1} parent=1 // loop_pre_header
      _
    $region3: #{tpu_custom_call.1} parent=1 // loop_header
      %s14 = sphi 0, %s18
      %p15 = scmp.ge.s32.totalorder %s14, 4
      %s21 = sphi 0, %s33
      %s22 = sphi 0, %s29
      %s23 = sphi 0, %s21
      %s24 = sphi 0, %s22
      %s25 = sphi 0, %s23
      %s26 = sphi 0, %s24
      %s36 = sphi 0, %s38
      %s39 = sphi 0, %s36
      %s40 = sphi 0, %s39
      %s56 = sphi 0, %s40
      %s62 = sphi 0, %s64
      %s65 = sphi 0, %s62
      %s66 = sphi 0, %s65
      %s82 = sphi 0, %s66
      %s88 = sphi 0, %s90
      %s91 = sphi 0, %s88
      %s92 = sphi 0, %s91
      %s108 = sphi 0, %s92
      %s114 = sphi 0, %s116
      %s117 = sphi 0, %s114
      %s118 = sphi 0, %s117
      %s134 = sphi 0, %s118
    $region4: #{tpu_custom_call.1} parent=1 // loop_header_branch
      %17 = sbr.rel (%p15) target = $region8
    $region5: #{tpu_custom_call.1} parent=1 // loop_body
      %s19 = ssub.s32 %s14, 1
      %s20 = ssub.s32 %s14, 2
      %s27 = sadd.s32 1, %s22
      %p28 = scmp.ge.s32.totalorder %s27, 2
      %s29 = scalar_select %p28, 0, %s27
      %s30 = sadd.s32 1, %s21
      %s31 = scalar_select %p28, %s30, %s21
      %p32 = scmp.ge.s32.totalorder %s31, 1
      %s33 = scalar_select %p32, 0, %s31
      %s34 = ssub.s32 %s21, %s33
      %p35 = scmp.eq.s32.totalorder %s34, 0
      %s37 = sadd.s32 %s36, 1
      %s38 = scalar_select %p35, %s36, %s37
      %p41 = pneg %p35
      %p42 = scmp.eq.s32.totalorder %s14, 1
      %p43 = por %p41, %p42
      %p44 = scmp.ne.s32.totalorder %s36, %s39
      %p45 = scmp.eq.s32.totalorder %s14, 0
      %p46 = por %p44, %p45
      %p47 = scmp.ne.s32.totalorder %s36, %s39
      %p48 = scmp.eq.s32.totalorder %s19, 1
      %p49 = por %p47, %p48
      %p50 = scmp.ne.s32.totalorder %s39, %s40
      %p51 = scmp.eq.s32.totalorder %s19, 0
      %p52 = por %p50, %p51
      %p53 = scmp.ne.s32.totalorder %s39, %s40
      %p54 = scmp.eq.s32.totalorder %s20, 1
      %p55 = por %p53, %p54
      %p57 = scmp.ne.s32.totalorder %s40, %s56
      %p58 = scmp.eq.s32.totalorder %s20, 0
      %p59 = por %p57, %p58
      %s60 = ssub.s32 %s22, %s29
      %p61 = scmp.eq.s32.totalorder %s60, 0
      %s63 = sadd.s32 %s62, 1
      %s64 = scalar_select %p61, %s62, %s63
      %p67 = pneg %p61
      %p68 = scmp.eq.s32.totalorder %s14, 1
      %p69 = por %p67, %p68
      %p70 = scmp.ne.s32.totalorder %s62, %s65
      %p71 = scmp.eq.s32.totalorder %s14, 0
      %p72 = por %p70, %p71
      %p73 = scmp.ne.s32.totalorder %s62, %s65
      %p74 = scmp.eq.s32.totalorder %s19, 1
      %p75 = por %p73, %p74
      %p76 = scmp.ne.s32.totalorder %s65, %s66
      %p77 = scmp.eq.s32.totalorder %s19, 0
      %p78 = por %p76, %p77
      %p79 = scmp.ne.s32.totalorder %s65, %s66
      %p80 = scmp.eq.s32.totalorder %s20, 1
      %p81 = por %p79, %p80
      %p83 = scmp.ne.s32.totalorder %s66, %s82
      %p84 = scmp.eq.s32.totalorder %s20, 0
      %p85 = por %p83, %p84
      %s86 = ssub.s32 %s22, %s29
      %p87 = scmp.eq.s32.totalorder %s86, 0
      %s89 = sadd.s32 %s88, 1
      %s90 = scalar_select %p87, %s88, %s89
      %p93 = pneg %p87
      %p94 = scmp.eq.s32.totalorder %s14, 1
      %p95 = por %p93, %p94
      %p96 = scmp.ne.s32.totalorder %s88, %s91
      %p97 = scmp.eq.s32.totalorder %s14, 0
      %p98 = por %p96, %p97
      %p99 = scmp.ne.s32.totalorder %s88, %s91
      %p100 = scmp.eq.s32.totalorder %s19, 1
      %p101 = por %p99, %p100
      %p102 = scmp.ne.s32.totalorder %s91, %s92
      %p103 = scmp.eq.s32.totalorder %s19, 0
      %p104 = por %p102, %p103
      %p105 = scmp.ne.s32.totalorder %s91, %s92
      %p106 = scmp.eq.s32.totalorder %s20, 1
      %p107 = por %p105, %p106
      %p109 = scmp.ne.s32.totalorder %s92, %s108
      %p110 = scmp.eq.s32.totalorder %s20, 0
      %p111 = por %p109, %p110
      %s112 = ssub.s32 %s21, %s33
      %p113 = scmp.eq.s32.totalorder %s112, 0
      %s115 = sadd.s32 %s114, 1
      %s116 = scalar_select %p113, %s114, %s115
      %p119 = pneg %p113
      %p120 = scmp.eq.s32.totalorder %s14, 1
      %p121 = por %p119, %p120
      %p122 = scmp.ne.s32.totalorder %s114, %s117
      %p123 = scmp.eq.s32.totalorder %s14, 0
      %p124 = por %p122, %p123
      %p125 = scmp.ne.s32.totalorder %s114, %s117
      %p126 = scmp.eq.s32.totalorder %s19, 1
      %p127 = por %p125, %p126
      %p128 = scmp.ne.s32.totalorder %s117, %s118
      %p129 = scmp.eq.s32.totalorder %s19, 0
      %p130 = por %p128, %p129
      %p131 = scmp.ne.s32.totalorder %s117, %s118
      %p132 = scmp.eq.s32.totalorder %s20, 1
      %p133 = por %p131, %p132
      %p135 = scmp.ne.s32.totalorder %s118, %s134
      %p136 = scmp.eq.s32.totalorder %s20, 0
      %p137 = por %p135, %p136
      %p138 = scmp.le.s32.totalorder 1, %s14
      %p139 = scmp.lt.s32.totalorder %s14, 3
      %p140 = pnand %p138, %p139
      %p141 = pneg %p140
      // Predicated region
      $region9: #{tpu_custom_call.1} parent=5 // pred_check
        _
      $region10: #{tpu_custom_call.1} parent=5 // pred_check_branch
        %143 = sbr.rel (%p140) target = $region12
      $region11: #{tpu_custom_call.1} parent=5 // pred_region
        %s144 = ssub.s32 %s14, 1
        // Predicated region
        $region13: #{tpu_custom_call.1} parent=11 // pred_check
          %p145 = pneg %p52
        $region14: #{tpu_custom_call.1} parent=11 // pred_check_branch
          %147 = sbr.rel (%p145) target = $region16
        $region15: #{tpu_custom_call.1} parent=11 // pred_region
          %s148 = smul.u32 8, %s23
          %s150 = ssub.s32 4096, 4096
          %151 = vsyncadd [#allocation4], %s150
          %s152 = smul.addr %s148, 8
          %s153 = smul.addr %s152, 64
          %s154 = scalar_lea.hbm %s0, %s153
          %s155 = sshll.u32 [#allocation3], 4
          %s156 = int_to_ptr.vmem [resolvable:$true] %s155
          %161 = dma.hbm_to_vmem [thread:$0]  %s154, 4096, %s156, [#allocation4], 64, 64, 4
        $region16: #{tpu_custom_call.1} parent=11 // pred_fallthru
          _
      $region12: #{tpu_custom_call.1} parent=5 // pred_fallthru
        _
      %p162 = scmp.lt.s32.totalorder %s14, 2
      // Predicated region
      $region17: #{tpu_custom_call.1} parent=5 // pred_check
        %p163 = pneg %p162
      $region18: #{tpu_custom_call.1} parent=5 // pred_check_branch
        %165 = sbr.rel (%p163) target = $region20
      $region19: #{tpu_custom_call.1} parent=5 // pred_region
        // Predicated region
        $region21: #{tpu_custom_call.1} parent=19 // pred_check
          %p166 = pneg %p72
        $region22: #{tpu_custom_call.1} parent=19 // pred_check_branch
          %168 = sbr.rel (%p166) target = $region24
        $region23: #{tpu_custom_call.1} parent=19 // pred_region
          %s169 = sand.u32 %s62, 1
          %s170 = scalar_lea.sflag [#allocation7], %s169
          %s171 = sand.u32 %s62, 1
          %s172 = smul.addr %s171, 576
          %s173 = scalar_lea.vmem [#allocation6], %s172
          %s175 = ssub.s32 9216, 9216
          %176 = vsyncadd %s170, %s175
          %s177 = smul.addr %s22, 144
          %s178 = smul.addr %s177, 64
          %s179 = scalar_lea.hbm %s1, %s178
          %s180 = sshll.u32 %s173, 4
          %s181 = int_to_ptr.vmem [resolvable:$true] %s180
          %186 = dma.hbm_to_vmem [thread:$0]  %s179, 9216, %s181, %s170, 64, 64, 4
        $region24: #{tpu_custom_call.1} parent=19 // pred_fallthru
          _
        // Predicated region
        $region25: #{tpu_custom_call.1} parent=19 // pred_check
          %p187 = pneg %p98
        $region26: #{tpu_custom_call.1} parent=19 // pred_check_branch
          %189 = sbr.rel (%p187) target = $region28
        $region27: #{tpu_custom_call.1} parent=19 // pred_region
          %p190 = scmp.lt.s32.totalorder %s22, 1
          %s191 = scalar_select %p190, %s22, 1
          %s192 = scalar_lea.vmem %s2, %s191
        $region28: #{tpu_custom_call.1} parent=19 // pred_fallthru
          _
      $region20: #{tpu_custom_call.1} parent=5 // pred_fallthru
        _
      %p193 = scmp.le.s32.totalorder 1, %s14
      %p194 = scmp.lt.s32.totalorder %s14, 3
      %p195 = pnand %p193, %p194
      %p196 = pneg %p195
      // Predicated region
      $region29: #{tpu_custom_call.1} parent=5 // pred_check
        _
      $region30: #{tpu_custom_call.1} parent=5 // pred_check_branch
        %198 = sbr.rel (%p195) target = $region32
      $region31: #{tpu_custom_call.1} parent=5 // pred_region
        %s199 = ssub.s32 %s14, 1
        // Predicated region
        $region33: #{tpu_custom_call.1} parent=31 // pred_check
          %p200 = pneg %p52
        $region34: #{tpu_custom_call.1} parent=31 // pred_check_branch
          %202 = sbr.rel (%p200) target = $region36
        $region35: #{tpu_custom_call.1} parent=31 // pred_region
          %203 = dma.done [#allocation4], 4096
        $region36: #{tpu_custom_call.1} parent=31 // pred_fallthru
          _
        %s204 = sand.u32 %s65, 1
        %s205 = scalar_lea.sflag [#allocation7], %s204
        %s206 = sand.u32 %s65, 1
        %s207 = smul.addr %s206, 576
        %s208 = scalar_lea.vmem [#allocation6], %s207
        // Predicated region
        $region37: #{tpu_custom_call.1} parent=31 // pred_check
          %p209 = pneg %p78
        $region38: #{tpu_custom_call.1} parent=31 // pred_check_branch
          %211 = sbr.rel (%p209) target = $region40
        $region39: #{tpu_custom_call.1} parent=31 // pred_region
          %212 = dma.done %s205, 9216
        $region40: #{tpu_custom_call.1} parent=31 // pred_fallthru
          _
        %p213 = pneg %p52
        %p214 = pneg %p49
        %s215 = sand.u32 %s65, 1
        %s216 = scalar_lea.sflag [#allocation7], %s215
        %s217 = sand.u32 %s65, 1
        %s218 = smul.addr %s217, 576
        %s219 = scalar_lea.vmem [#allocation6], %s218
        %p220 = pneg %p78
        %p221 = pneg %p75
        %p222 = scmp.lt.s32.totalorder %s24, 1
        %s223 = scalar_select %p222, %s24, 1
        %s224 = scalar_lea.vmem %s2, %s223
        %p225 = pneg %p104
        %p226 = pneg %p101
        %p227 = pneg %p130
        %p228 = pneg %p127
        %s229 = smul.u32 8, %s23
        %p230 = scmp.lt.s32.totalorder %s24, 1
        %s231 = scalar_select %p230, %s24, 1
        %s232 = scalar_lea.vmem %s2, %s231
        %s233 = smul.u32 64, %s23
        %p235 = scmp.eq.s32.totalorder %s24, 0
        // Predicated region
        $region41: #{tpu_custom_call.1} parent=31 // pred_check
          %p236 = pneg %p235
        $region42: #{tpu_custom_call.1} parent=31 // pred_check_branch
          %238 = sbr.rel (%p236) target = $region44
        $region43: #{tpu_custom_call.1} parent=31 // pred_region
          %239 = vst [vmem:[#allocation2] sm:$0xf] 0
          %240 = vst [vmem:[#allocation2 + $0x4] sm:$0x1] 0
          %241 = vst [vmem:[#allocation2 + $0x8] sm:$0xf] 0
          %242 = vst [vmem:[#allocation2 + $0xc] sm:$0x1] 0
          %243 = vst [vmem:[#allocation2 + $0x10] sm:$0xf] 0
          %244 = vst [vmem:[#allocation2 + $0x14] sm:$0x1] 0
          %245 = vst [vmem:[#allocation2 + $0x18] sm:$0xf] 0
          %246 = vst [vmem:[#allocation2 + $0x1c] sm:$0x1] 0
          %247 = vst [vmem:[#allocation2 + $0x20] sm:$0xf] 0
          %248 = vst [vmem:[#allocation2 + $0x24] sm:$0x1] 0
          %249 = vst [vmem:[#allocation2 + $0x28] sm:$0xf] 0
          %250 = vst [vmem:[#allocation2 + $0x2c] sm:$0x1] 0
          %251 = vst [vmem:[#allocation2 + $0x30] sm:$0xf] 0
          %252 = vst [vmem:[#allocation2 + $0x34] sm:$0x1] 0
          %253 = vst [vmem:[#allocation2 + $0x38] sm:$0xf] 0
          %254 = vst [vmem:[#allocation2 + $0x3c] sm:$0x1] 0
          %255 = vst [vmem:[#allocation2 + $0x40] sm:$0xf] 0
          %256 = vst [vmem:[#allocation2 + $0x44] sm:$0x1] 0
          %257 = vst [vmem:[#allocation2 + $0x48] sm:$0xf] 0
          %258 = vst [vmem:[#allocation2 + $0x4c] sm:$0x1] 0
          %259 = vst [vmem:[#allocation2 + $0x50] sm:$0xf] 0
          %260 = vst [vmem:[#allocation2 + $0x54] sm:$0x1] 0
          %261 = vst [vmem:[#allocation2 + $0x58] sm:$0xf] 0
          %262 = vst [vmem:[#allocation2 + $0x5c] sm:$0x1] 0
          %263 = vst [vmem:[#allocation2 + $0x60] sm:$0xf] 0
          %264 = vst [vmem:[#allocation2 + $0x64] sm:$0x1] 0
          %265 = vst [vmem:[#allocation2 + $0x68] sm:$0xf] 0
          %266 = vst [vmem:[#allocation2 + $0x6c] sm:$0x1] 0
          %267 = vst [vmem:[#allocation2 + $0x70] sm:$0xf] 0
          %268 = vst [vmem:[#allocation2 + $0x74] sm:$0x1] 0
          %269 = vst [vmem:[#allocation2 + $0x78] sm:$0xf] 0
          %270 = vst [vmem:[#allocation2 + $0x7c] sm:$0x1] 0
          %271 = vst [vmem:[#allocation2 + $0x80] sm:$0xf] 0
          %272 = vst [vmem:[#allocation2 + $0x84] sm:$0x1] 0
          %273 = vst [vmem:[#allocation2 + $0x88] sm:$0xf] 0
          %274 = vst [vmem:[#allocation2 + $0x8c] sm:$0x1] 0
          %275 = vst [vmem:[#allocation2 + $0x90] sm:$0xf] 0
          %276 = vst [vmem:[#allocation2 + $0x94] sm:$0x1] 0
          %277 = vst [vmem:[#allocation2 + $0x98] sm:$0xf] 0
          %278 = vst [vmem:[#allocation2 + $0x9c] sm:$0x1] 0
          %279 = vst [vmem:[#allocation2 + $0xa0] sm:$0xf] 0
          %280 = vst [vmem:[#allocation2 + $0xa4] sm:$0x1] 0
          %281 = vst [vmem:[#allocation2 + $0xa8] sm:$0xf] 0
          %282 = vst [vmem:[#allocation2 + $0xac] sm:$0x1] 0
          %283 = vst [vmem:[#allocation2 + $0xb0] sm:$0xf] 0
          %284 = vst [vmem:[#allocation2 + $0xb4] sm:$0x1] 0
          %285 = vst [vmem:[#allocation2 + $0xb8] sm:$0xf] 0
          %286 = vst [vmem:[#allocation2 + $0xbc] sm:$0x1] 0
          %287 = vst [vmem:[#allocation2 + $0xc0] sm:$0xf] 0
          %288 = vst [vmem:[#allocation2 + $0xc4] sm:$0x1] 0
          %289 = vst [vmem:[#allocation2 + $0xc8] sm:$0xf] 0
          %290 = vst [vmem:[#allocation2 + $0xcc] sm:$0x1] 0
          %291 = vst [vmem:[#allocation2 + $0xd0] sm:$0xf] 0
          %292 = vst [vmem:[#allocation2 + $0xd4] sm:$0x1] 0
          %293 = vst [vmem:[#allocation2 + $0xd8] sm:$0xf] 0
          %294 = vst [vmem:[#allocation2 + $0xdc] sm:$0x1] 0
          %295 = vst [vmem:[#allocation2 + $0xe0] sm:$0xf] 0
          %296 = vst [vmem:[#allocation2 + $0xe4] sm:$0x1] 0
          %297 = vst [vmem:[#allocation2 + $0xe8] sm:$0xf] 0
          %298 = vst [vmem:[#allocation2 + $0xec] sm:$0x1] 0
          %299 = vst [vmem:[#allocation2 + $0xf0] sm:$0xf] 0
          %300 = vst [vmem:[#allocation2 + $0xf4] sm:$0x1] 0
          %301 = vst [vmem:[#allocation2 + $0xf8] sm:$0xf] 0
          %302 = vst [vmem:[#allocation2 + $0xfc] sm:$0x1] 0
          %303 = vst [vmem:[#allocation2 + $0x100] sm:$0xf] 0
          %304 = vst [vmem:[#allocation2 + $0x104] sm:$0x1] 0
          %305 = vst [vmem:[#allocation2 + $0x108] sm:$0xf] 0
          %306 = vst [vmem:[#allocation2 + $0x10c] sm:$0x1] 0
          %307 = vst [vmem:[#allocation2 + $0x110] sm:$0xf] 0
          %308 = vst [vmem:[#allocation2 + $0x114] sm:$0x1] 0
          %309 = vst [vmem:[#allocation2 + $0x118] sm:$0xf] 0
          %310 = vst [vmem:[#allocation2 + $0x11c] sm:$0x1] 0
          %311 = vst [vmem:[#allocation2 + $0x120] sm:$0xf] 0
          %312 = vst [vmem:[#allocation2 + $0x124] sm:$0x1] 0
          %313 = vst [vmem:[#allocation2 + $0x128] sm:$0xf] 0
          %314 = vst [vmem:[#allocation2 + $0x12c] sm:$0x1] 0
          %315 = vst [vmem:[#allocation2 + $0x130] sm:$0xf] 0
          %316 = vst [vmem:[#allocation2 + $0x134] sm:$0x1] 0
          %317 = vst [vmem:[#allocation2 + $0x138] sm:$0xf] 0
          %318 = vst [vmem:[#allocation2 + $0x13c] sm:$0x1] 0
          %319 = vst [vmem:[#allocation2 + $0x140] sm:$0xf] 0
          %320 = vst [vmem:[#allocation2 + $0x144] sm:$0x1] 0
          %321 = vst [vmem:[#allocation2 + $0x148] sm:$0xf] 0
          %322 = vst [vmem:[#allocation2 + $0x14c] sm:$0x1] 0
          %323 = vst [vmem:[#allocation2 + $0x150] sm:$0xf] 0
          %324 = vst [vmem:[#allocation2 + $0x154] sm:$0x1] 0
          %325 = vst [vmem:[#allocation2 + $0x158] sm:$0xf] 0
          %326 = vst [vmem:[#allocation2 + $0x15c] sm:$0x1] 0
          %327 = vst [vmem:[#allocation2 + $0x160] sm:$0xf] 0
          %328 = vst [vmem:[#allocation2 + $0x164] sm:$0x1] 0
          %329 = vst [vmem:[#allocation2 + $0x168] sm:$0xf] 0
          %330 = vst [vmem:[#allocation2 + $0x16c] sm:$0x1] 0
          %331 = vst [vmem:[#allocation2 + $0x170] sm:$0xf] 0
          %332 = vst [vmem:[#allocation2 + $0x174] sm:$0x1] 0
          %333 = vst [vmem:[#allocation2 + $0x178] sm:$0xf] 0
          %334 = vst [vmem:[#allocation2 + $0x17c] sm:$0x1] 0
          %335 = vst [vmem:[#allocation2 + $0x180] sm:$0xf] 0
          %336 = vst [vmem:[#allocation2 + $0x184] sm:$0x1] 0
          %337 = vst [vmem:[#allocation2 + $0x188] sm:$0xf] 0
          %338 = vst [vmem:[#allocation2 + $0x18c] sm:$0x1] 0
          %339 = vst [vmem:[#allocation2 + $0x190] sm:$0xf] 0
          %340 = vst [vmem:[#allocation2 + $0x194] sm:$0x1] 0
          %341 = vst [vmem:[#allocation2 + $0x198] sm:$0xf] 0
          %342 = vst [vmem:[#allocation2 + $0x19c] sm:$0x1] 0
          %343 = vst [vmem:[#allocation2 + $0x1a0] sm:$0xf] 0
          %344 = vst [vmem:[#allocation2 + $0x1a4] sm:$0x1] 0
          %345 = vst [vmem:[#allocation2 + $0x1a8] sm:$0xf] 0
          %346 = vst [vmem:[#allocation2 + $0x1ac] sm:$0x1] 0
          %347 = vst [vmem:[#allocation2 + $0x1b0] sm:$0xf] 0
          %348 = vst [vmem:[#allocation2 + $0x1b4] sm:$0x1] 0
          %349 = vst [vmem:[#allocation2 + $0x1b8] sm:$0xf] 0
          %350 = vst [vmem:[#allocation2 + $0x1bc] sm:$0x1] 0
          %351 = vst [vmem:[#allocation2 + $0x1c0] sm:$0xf] 0
          %352 = vst [vmem:[#allocation2 + $0x1c4] sm:$0x1] 0
          %353 = vst [vmem:[#allocation2 + $0x1c8] sm:$0xf] 0
          %354 = vst [vmem:[#allocation2 + $0x1cc] sm:$0x1] 0
          %355 = vst [vmem:[#allocation2 + $0x1d0] sm:$0xf] 0
          %356 = vst [vmem:[#allocation2 + $0x1d4] sm:$0x1] 0
          %357 = vst [vmem:[#allocation2 + $0x1d8] sm:$0xf] 0
          %358 = vst [vmem:[#allocation2 + $0x1dc] sm:$0x1] 0
          %359 = vst [vmem:[#allocation2 + $0x1e0] sm:$0xf] 0
          %360 = vst [vmem:[#allocation2 + $0x1e4] sm:$0x1] 0
          %361 = vst [vmem:[#allocation2 + $0x1e8] sm:$0xf] 0
          %362 = vst [vmem:[#allocation2 + $0x1ec] sm:$0x1] 0
          %363 = vst [vmem:[#allocation2 + $0x1f0] sm:$0xf] 0
          %364 = vst [vmem:[#allocation2 + $0x1f4] sm:$0x1] 0
          %365 = vst [vmem:[#allocation2 + $0x1f8] sm:$0xf] 0
          %366 = vst [vmem:[#allocation2 + $0x1fc] sm:$0x1] 0
          %367 = vst [vmem:[#allocation2 + $0x200] sm:$0xf] 0
          %368 = vst [vmem:[#allocation2 + $0x204] sm:$0x1] 0
          %369 = vst [vmem:[#allocation2 + $0x208] sm:$0xf] 0
          %370 = vst [vmem:[#allocation2 + $0x20c] sm:$0x1] 0
          %371 = vst [vmem:[#allocation2 + $0x210] sm:$0xf] 0
          %372 = vst [vmem:[#allocation2 + $0x214] sm:$0x1] 0
          %373 = vst [vmem:[#allocation2 + $0x218] sm:$0xf] 0
          %374 = vst [vmem:[#allocation2 + $0x21c] sm:$0x1] 0
          %375 = vst [vmem:[#allocation2 + $0x220] sm:$0xf] 0
          %376 = vst [vmem:[#allocation2 + $0x224] sm:$0x1] 0
          %377 = vst [vmem:[#allocation2 + $0x228] sm:$0xf] 0
          %378 = vst [vmem:[#allocation2 + $0x22c] sm:$0x1] 0
          %379 = vst [vmem:[#allocation2 + $0x230] sm:$0xf] 0
          %380 = vst [vmem:[#allocation2 + $0x234] sm:$0x1] 0
          %381 = vst [vmem:[#allocation2 + $0x238] sm:$0xf] 0
          %382 = vst [vmem:[#allocation2 + $0x23c] sm:$0x1] 0
          %383 = vst [vmem:[#allocation2 + $0x240] sm:$0xf] 0
          %384 = vst [vmem:[#allocation2 + $0x244] sm:$0x1] 0
          %385 = vst [vmem:[#allocation2 + $0x248] sm:$0xf] 0
          %386 = vst [vmem:[#allocation2 + $0x24c] sm:$0x1] 0
          %387 = vst [vmem:[#allocation2 + $0x250] sm:$0xf] 0
          %388 = vst [vmem:[#allocation2 + $0x254] sm:$0x1] 0
          %389 = vst [vmem:[#allocation2 + $0x258] sm:$0xf] 0
          %390 = vst [vmem:[#allocation2 + $0x25c] sm:$0x1] 0
          %391 = vst [vmem:[#allocation2 + $0x260] sm:$0xf] 0
          %392 = vst [vmem:[#allocation2 + $0x264] sm:$0x1] 0
          %393 = vst [vmem:[#allocation2 + $0x268] sm:$0xf] 0
          %394 = vst [vmem:[#allocation2 + $0x26c] sm:$0x1] 0
          %395 = vst [vmem:[#allocation2 + $0x270] sm:$0xf] 0
          %396 = vst [vmem:[#allocation2 + $0x274] sm:$0x1] 0
          %397 = vst [vmem:[#allocation2 + $0x278] sm:$0xf] 0
          %398 = vst [vmem:[#allocation2 + $0x27c] sm:$0x1] 0
          %v399 = vld [vmem:[#allocation3] sm:$0xf]
          %v400 = vld [vmem:[#allocation3 + $0x4] sm:$0xf]
          %v401 = vld [vmem:[#allocation3 + $0x8] sm:$0xf]
          %v402 = vld [vmem:[#allocation3 + $0xc] sm:$0xf]
          %v403 = vld [vmem:[#allocation3 + $0x10] sm:$0xf]
          %v404 = vld [vmem:[#allocation3 + $0x14] sm:$0xf]
          %v405 = vld [vmem:[#allocation3 + $0x18] sm:$0xf]
          %v406 = vld [vmem:[#allocation3 + $0x1c] sm:$0xf]
          %v407 = vld [vmem:[#allocation3 + $0x20] sm:$0xf]
          %v408 = vld [vmem:[#allocation3 + $0x24] sm:$0xf]
          %v409 = vld [vmem:[#allocation3 + $0x28] sm:$0xf]
          %v410 = vld [vmem:[#allocation3 + $0x2c] sm:$0xf]
          %v411 = vld [vmem:[#allocation3 + $0x30] sm:$0xf]
          %v412 = vld [vmem:[#allocation3 + $0x34] sm:$0xf]
          %v413 = vld [vmem:[#allocation3 + $0x38] sm:$0xf]
          %v414 = vld [vmem:[#allocation3 + $0x3c] sm:$0xf]
          %v415 = vld [vmem:[#allocation3 + $0x40] sm:$0xf]
          %v416 = vld [vmem:[#allocation3 + $0x44] sm:$0xf]
          %v417 = vld [vmem:[#allocation3 + $0x48] sm:$0xf]
          %v418 = vld [vmem:[#allocation3 + $0x4c] sm:$0xf]
          %v419 = vld [vmem:[#allocation3 + $0x50] sm:$0xf]
          %v420 = vld [vmem:[#allocation3 + $0x54] sm:$0xf]
          %v421 = vld [vmem:[#allocation3 + $0x58] sm:$0xf]
          %v422 = vld [vmem:[#allocation3 + $0x5c] sm:$0xf]
          %v423 = vld [vmem:[#allocation3 + $0x60] sm:$0xf]
          %v424 = vld [vmem:[#allocation3 + $0x64] sm:$0xf]
          %v425 = vld [vmem:[#allocation3 + $0x68] sm:$0xf]
          %v426 = vld [vmem:[#allocation3 + $0x6c] sm:$0xf]
          %v427 = vld [vmem:[#allocation3 + $0x70] sm:$0xf]
          %v428 = vld [vmem:[#allocation3 + $0x74] sm:$0xf]
          %v429 = vld [vmem:[#allocation3 + $0x78] sm:$0xf]
          %v430 = vld [vmem:[#allocation3 + $0x7c] sm:$0xf]
          %v431 = vld [vmem:[#allocation3 + $0x80] sm:$0xf]
          %v432 = vld [vmem:[#allocation3 + $0x84] sm:$0xf]
          %v433 = vld [vmem:[#allocation3 + $0x88] sm:$0xf]
          %v434 = vld [vmem:[#allocation3 + $0x8c] sm:$0xf]
          %v435 = vld [vmem:[#allocation3 + $0x90] sm:$0xf]
          %v436 = vld [vmem:[#allocation3 + $0x94] sm:$0xf]
          %v437 = vld [vmem:[#allocation3 + $0x98] sm:$0xf]
          %v438 = vld [vmem:[#allocation3 + $0x9c] sm:$0xf]
          %v439 = vld [vmem:[#allocation3 + $0xa0] sm:$0xf]
          %v440 = vld [vmem:[#allocation3 + $0xa4] sm:$0xf]
          %v441 = vld [vmem:[#allocation3 + $0xa8] sm:$0xf]
          %v442 = vld [vmem:[#allocation3 + $0xac] sm:$0xf]
          %v443 = vld [vmem:[#allocation3 + $0xb0] sm:$0xf]
          %v444 = vld [vmem:[#allocation3 + $0xb4] sm:$0xf]
          %v445 = vld [vmem:[#allocation3 + $0xb8] sm:$0xf]
          %v446 = vld [vmem:[#allocation3 + $0xbc] sm:$0xf]
          %v447 = vld [vmem:[#allocation3 + $0xc0] sm:$0xf]
          %v448 = vld [vmem:[#allocation3 + $0xc4] sm:$0xf]
          %v449 = vld [vmem:[#allocation3 + $0xc8] sm:$0xf]
          %v450 = vld [vmem:[#allocation3 + $0xcc] sm:$0xf]
          %v451 = vld [vmem:[#allocation3 + $0xd0] sm:$0xf]
          %v452 = vld [vmem:[#allocation3 + $0xd4] sm:$0xf]
          %v453 = vld [vmem:[#allocation3 + $0xd8] sm:$0xf]
          %v454 = vld [vmem:[#allocation3 + $0xdc] sm:$0xf]
          %v455 = vld [vmem:[#allocation3 + $0xe0] sm:$0xf]
          %v456 = vld [vmem:[#allocation3 + $0xe4] sm:$0xf]
          %v457 = vld [vmem:[#allocation3 + $0xe8] sm:$0xf]
          %v458 = vld [vmem:[#allocation3 + $0xec] sm:$0xf]
          %v459 = vld [vmem:[#allocation3 + $0xf0] sm:$0xf]
          %v460 = vld [vmem:[#allocation3 + $0xf4] sm:$0xf]
          %v461 = vld [vmem:[#allocation3 + $0xf8] sm:$0xf]
          %v462 = vld [vmem:[#allocation3 + $0xfc] sm:$0xf]
          %v464 = vshrl.u32 %v399, 16
          %v466 = vrot.slane %v464, 7
          %v467 = vshll.u32 %v399, 16
          %v469 = vor.u32 %v466, %v467
          %v470 = vrot.slane %v466, 4
          %v472 = vshrl.u32 %v400, 16
          %v474 = vrot.slane %v472, 7
          %v475 = vshll.u32 %v400, 16
          %v477 = vor.u32 %v474, %v475
          %v478 = vrot.slane %v474, 4
          %v480 = vshrl.u32 %v401, 16
          %v482 = vrot.slane %v480, 7
          %v483 = vshll.u32 %v401, 16
          %v485 = vor.u32 %v482, %v483
          %v486 = vrot.slane %v482, 4
          %v488 = vshrl.u32 %v402, 16
          %v490 = vrot.slane %v488, 7
          %v491 = vshll.u32 %v402, 16
          %v493 = vor.u32 %v490, %v491
          %v494 = vrot.slane %v490, 4
          %v496 = vshrl.u32 %v403, 16
          %v498 = vrot.slane %v496, 7
          %v499 = vshll.u32 %v403, 16
          %v501 = vor.u32 %v498, %v499
          %v502 = vrot.slane %v498, 4
          %v504 = vshrl.u32 %v404, 16
          %v506 = vrot.slane %v504, 7
          %v507 = vshll.u32 %v404, 16
          %v509 = vor.u32 %v506, %v507
          %v510 = vrot.slane %v506, 4
          %v512 = vshrl.u32 %v405, 16
          %v514 = vrot.slane %v512, 7
          %v515 = vshll.u32 %v405, 16
          %v517 = vor.u32 %v514, %v515
          %v518 = vrot.slane %v514, 4
          %v520 = vshrl.u32 %v406, 16
          %v522 = vrot.slane %v520, 7
          %v523 = vshll.u32 %v406, 16
          %v525 = vor.u32 %v522, %v523
          %v526 = vrot.slane %v522, 4
          %v528 = vshrl.u32 %v407, 16
          %v530 = vrot.slane %v528, 7
          %v531 = vshll.u32 %v407, 16
          %v533 = vor.u32 %v530, %v531
          %v534 = vrot.slane %v530, 4
          %v536 = vshrl.u32 %v408, 16
          %v538 = vrot.slane %v536, 7
          %v539 = vshll.u32 %v408, 16
          %v541 = vor.u32 %v538, %v539
          %v542 = vrot.slane %v538, 4
          %v544 = vshrl.u32 %v409, 16
          %v546 = vrot.slane %v544, 7
          %v547 = vshll.u32 %v409, 16
          %v549 = vor.u32 %v546, %v547
          %v550 = vrot.slane %v546, 4
          %v552 = vshrl.u32 %v410, 16
          %v554 = vrot.slane %v552, 7
          %v555 = vshll.u32 %v410, 16
          %v557 = vor.u32 %v554, %v555
          %v558 = vrot.slane %v554, 4
          %v560 = vshrl.u32 %v411, 16
          %v562 = vrot.slane %v560, 7
          %v563 = vshll.u32 %v411, 16
          %v565 = vor.u32 %v562, %v563
          %v566 = vrot.slane %v562, 4
          %v568 = vshrl.u32 %v412, 16
          %v570 = vrot.slane %v568, 7
          %v571 = vshll.u32 %v412, 16
          %v573 = vor.u32 %v570, %v571
          %v574 = vrot.slane %v570, 4
          %v576 = vshrl.u32 %v413, 16
          %v578 = vrot.slane %v576, 7
          %v579 = vshll.u32 %v413, 16
          %v581 = vor.u32 %v578, %v579
          %v582 = vrot.slane %v578, 4
          %v584 = vshrl.u32 %v414, 16
          %v586 = vrot.slane %v584, 7
          %v587 = vshll.u32 %v414, 16
          %v589 = vor.u32 %v586, %v587
          %v590 = vrot.slane %v586, 4
          %v592 = vshrl.u32 %v415, 16
          %v594 = vrot.slane %v592, 7
          %v595 = vshll.u32 %v415, 16
          %v597 = vor.u32 %v594, %v595
          %v598 = vrot.slane %v594, 4
          %v600 = vshrl.u32 %v416, 16
          %v602 = vrot.slane %v600, 7
          %v603 = vshll.u32 %v416, 16
          %v605 = vor.u32 %v602, %v603
          %v606 = vrot.slane %v602, 4
          %v608 = vshrl.u32 %v417, 16
          %v610 = vrot.slane %v608, 7
          %v611 = vshll.u32 %v417, 16
          %v613 = vor.u32 %v610, %v611
          %v614 = vrot.slane %v610, 4
          %v616 = vshrl.u32 %v418, 16
          %v618 = vrot.slane %v616, 7
          %v619 = vshll.u32 %v418, 16
          %v621 = vor.u32 %v618, %v619
          %v622 = vrot.slane %v618, 4
          %v624 = vshrl.u32 %v419, 16
          %v626 = vrot.slane %v624, 7
          %v627 = vshll.u32 %v419, 16
          %v629 = vor.u32 %v626, %v627
          %v630 = vrot.slane %v626, 4
          %v632 = vshrl.u32 %v420, 16
          %v634 = vrot.slane %v632, 7
          %v635 = vshll.u32 %v420, 16
          %v637 = vor.u32 %v634, %v635
          %v638 = vrot.slane %v634, 4
          %v640 = vshrl.u32 %v421, 16
          %v642 = vrot.slane %v640, 7
          %v643 = vshll.u32 %v421, 16
          %v645 = vor.u32 %v642, %v643
          %v646 = vrot.slane %v642, 4
          %v648 = vshrl.u32 %v422, 16
          %v650 = vrot.slane %v648, 7
          %v651 = vshll.u32 %v422, 16
          %v653 = vor.u32 %v650, %v651
          %v654 = vrot.slane %v650, 4
          %v656 = vshrl.u32 %v423, 16
          %v658 = vrot.slane %v656, 7
          %v659 = vshll.u32 %v423, 16
          %v661 = vor.u32 %v658, %v659
          %v662 = vrot.slane %v658, 4
          %v664 = vshrl.u32 %v424, 16
          %v666 = vrot.slane %v664, 7
          %v667 = vshll.u32 %v424, 16
          %v669 = vor.u32 %v666, %v667
          %v670 = vrot.slane %v666, 4
          %v672 = vshrl.u32 %v425, 16
          %v674 = vrot.slane %v672, 7
          %v675 = vshll.u32 %v425, 16
          %v677 = vor.u32 %v674, %v675
          %v678 = vrot.slane %v674, 4
          %v680 = vshrl.u32 %v426, 16
          %v682 = vrot.slane %v680, 7
          %v683 = vshll.u32 %v426, 16
          %v685 = vor.u32 %v682, %v683
          %v686 = vrot.slane %v682, 4
          %v688 = vshrl.u32 %v427, 16
          %v690 = vrot.slane %v688, 7
          %v691 = vshll.u32 %v427, 16
          %v693 = vor.u32 %v690, %v691
          %v694 = vrot.slane %v690, 4
          %v696 = vshrl.u32 %v428, 16
          %v698 = vrot.slane %v696, 7
          %v699 = vshll.u32 %v428, 16
          %v701 = vor.u32 %v698, %v699
          %v702 = vrot.slane %v698, 4
          %v704 = vshrl.u32 %v429, 16
          %v706 = vrot.slane %v704, 7
          %v707 = vshll.u32 %v429, 16
          %v709 = vor.u32 %v706, %v707
          %v710 = vrot.slane %v706, 4
          %v712 = vshrl.u32 %v430, 16
          %v714 = vrot.slane %v712, 7
          %v715 = vshll.u32 %v430, 16
          %v717 = vor.u32 %v714, %v715
          %v718 = vrot.slane %v714, 4
          %v720 = vshrl.u32 %v431, 16
          %v722 = vrot.slane %v720, 7
          %v723 = vshll.u32 %v431, 16
          %v725 = vor.u32 %v722, %v723
          %v726 = vrot.slane %v722, 4
          %v728 = vshrl.u32 %v432, 16
          %v730 = vrot.slane %v728, 7
          %v731 = vshll.u32 %v432, 16
          %v733 = vor.u32 %v730, %v731
          %v734 = vrot.slane %v730, 4
          %v736 = vshrl.u32 %v433, 16
          %v738 = vrot.slane %v736, 7
          %v739 = vshll.u32 %v433, 16
          %v741 = vor.u32 %v738, %v739
          %v742 = vrot.slane %v738, 4
          %v744 = vshrl.u32 %v434, 16
          %v746 = vrot.slane %v744, 7
          %v747 = vshll.u32 %v434, 16
          %v749 = vor.u32 %v746, %v747
          %v750 = vrot.slane %v746, 4
          %v752 = vshrl.u32 %v435, 16
          %v754 = vrot.slane %v752, 7
          %v755 = vshll.u32 %v435, 16
          %v757 = vor.u32 %v754, %v755
          %v758 = vrot.slane %v754, 4
          %v760 = vshrl.u32 %v436, 16
          %v762 = vrot.slane %v760, 7
          %v763 = vshll.u32 %v436, 16
          %v765 = vor.u32 %v762, %v763
          %v766 = vrot.slane %v762, 4
          %v768 = vshrl.u32 %v437, 16
          %v770 = vrot.slane %v768, 7
          %v771 = vshll.u32 %v437, 16
          %v773 = vor.u32 %v770, %v771
          %v774 = vrot.slane %v770, 4
          %v776 = vshrl.u32 %v438, 16
          %v778 = vrot.slane %v776, 7
          %v779 = vshll.u32 %v438, 16
          %v781 = vor.u32 %v778, %v779
          %v782 = vrot.slane %v778, 4
          %v784 = vshrl.u32 %v439, 16
          %v786 = vrot.slane %v784, 7
          %v787 = vshll.u32 %v439, 16
          %v789 = vor.u32 %v786, %v787
          %v790 = vrot.slane %v786, 4
          %v792 = vshrl.u32 %v440, 16
          %v794 = vrot.slane %v792, 7
          %v795 = vshll.u32 %v440, 16
          %v797 = vor.u32 %v794, %v795
          %v798 = vrot.slane %v794, 4
          %v800 = vshrl.u32 %v441, 16
          %v802 = vrot.slane %v800, 7
          %v803 = vshll.u32 %v441, 16
          %v805 = vor.u32 %v802, %v803
          %v806 = vrot.slane %v802, 4
          %v808 = vshrl.u32 %v442, 16
          %v810 = vrot.slane %v808, 7
          %v811 = vshll.u32 %v442, 16
          %v813 = vor.u32 %v810, %v811
          %v814 = vrot.slane %v810, 4
          %v816 = vshrl.u32 %v443, 16
          %v818 = vrot.slane %v816, 7
          %v819 = vshll.u32 %v443, 16
          %v821 = vor.u32 %v818, %v819
          %v822 = vrot.slane %v818, 4
          %v824 = vshrl.u32 %v444, 16
          %v826 = vrot.slane %v824, 7
          %v827 = vshll.u32 %v444, 16
          %v829 = vor.u32 %v826, %v827
          %v830 = vrot.slane %v826, 4
          %v832 = vshrl.u32 %v445, 16
          %v834 = vrot.slane %v832, 7
          %v835 = vshll.u32 %v445, 16
          %v837 = vor.u32 %v834, %v835
          %v838 = vrot.slane %v834, 4
          %v840 = vshrl.u32 %v446, 16
          %v842 = vrot.slane %v840, 7
          %v843 = vshll.u32 %v446, 16
          %v845 = vor.u32 %v842, %v843
          %v846 = vrot.slane %v842, 4
          %v848 = vshrl.u32 %v447, 16
          %v850 = vrot.slane %v848, 7
          %v851 = vshll.u32 %v447, 16
          %v853 = vor.u32 %v850, %v851
          %v854 = vrot.slane %v850, 4
          %v856 = vshrl.u32 %v448, 16
          %v858 = vrot.slane %v856, 7
          %v859 = vshll.u32 %v448, 16
          %v861 = vor.u32 %v858, %v859
          %v862 = vrot.slane %v858, 4
          %v864 = vshrl.u32 %v449, 16
          %v866 = vrot.slane %v864, 7
          %v867 = vshll.u32 %v449, 16
          %v869 = vor.u32 %v866, %v867
          %v870 = vrot.slane %v866, 4
          %v872 = vshrl.u32 %v450, 16
          %v874 = vrot.slane %v872, 7
          %v875 = vshll.u32 %v450, 16
          %v877 = vor.u32 %v874, %v875
          %v878 = vrot.slane %v874, 4
          %v880 = vshrl.u32 %v451, 16
          %v882 = vrot.slane %v880, 7
          %v883 = vshll.u32 %v451, 16
          %v885 = vor.u32 %v882, %v883
          %v886 = vrot.slane %v882, 4
          %v888 = vshrl.u32 %v452, 16
          %v890 = vrot.slane %v888, 7
          %v891 = vshll.u32 %v452, 16
          %v893 = vor.u32 %v890, %v891
          %v894 = vrot.slane %v890, 4
          %v896 = vshrl.u32 %v453, 16
          %v898 = vrot.slane %v896, 7
          %v899 = vshll.u32 %v453, 16
          %v901 = vor.u32 %v898, %v899
          %v902 = vrot.slane %v898, 4
          %v904 = vshrl.u32 %v454, 16
          %v906 = vrot.slane %v904, 7
          %v907 = vshll.u32 %v454, 16
          %v909 = vor.u32 %v906, %v907
          %v910 = vrot.slane %v906, 4
          %v912 = vshrl.u32 %v455, 16
          %v914 = vrot.slane %v912, 7
          %v915 = vshll.u32 %v455, 16
          %v917 = vor.u32 %v914, %v915
          %v918 = vrot.slane %v914, 4
          %v920 = vshrl.u32 %v456, 16
          %v922 = vrot.slane %v920, 7
          %v923 = vshll.u32 %v456, 16
          %v925 = vor.u32 %v922, %v923
          %v926 = vrot.slane %v922, 4
          %v928 = vshrl.u32 %v457, 16
          %v930 = vrot.slane %v928, 7
          %v931 = vshll.u32 %v457, 16
          %v933 = vor.u32 %v930, %v931
          %v934 = vrot.slane %v930, 4
          %v936 = vshrl.u32 %v458, 16
          %v938 = vrot.slane %v936, 7
          %v939 = vshll.u32 %v458, 16
          %v941 = vor.u32 %v938, %v939
          %v942 = vrot.slane %v938, 4
          %v944 = vshrl.u32 %v459, 16
          %v946 = vrot.slane %v944, 7
          %v947 = vshll.u32 %v459, 16
          %v949 = vor.u32 %v946, %v947
          %v950 = vrot.slane %v946, 4
          %v952 = vshrl.u32 %v460, 16
          %v954 = vrot.slane %v952, 7
          %v955 = vshll.u32 %v460, 16
          %v957 = vor.u32 %v954, %v955
          %v958 = vrot.slane %v954, 4
          %v960 = vshrl.u32 %v461, 16
          %v962 = vrot.slane %v960, 7
          %v963 = vshll.u32 %v461, 16
          %v965 = vor.u32 %v962, %v963
          %v966 = vrot.slane %v962, 4
          %v968 = vshrl.u32 %v462, 16
          %v970 = vrot.slane %v968, 7
          %v971 = vshll.u32 %v462, 16
          %v973 = vor.u32 %v970, %v971
          %v974 = vrot.slane %v970, 4
          %s1103 = scalar_lea.vmem [#allocation2], 8
          %vm1104 = vcmask 1043456
          %vm1105 = vsmask.f32 7938
          %vm1106 = vmand %vm1104, %vm1105
          %v1107 = vld [vmem:[%s1103] sm:$0xf]
          %v1108 = vsel %vm1106, %v469, %v1107
          %1109 = vst [vmem:[%s1103] sm:$0xf] %v1108
          %vm1110 = vcmask 1040384
          %vm1111 = vsmask.f32 256
          %vm1112 = vmand %vm1110, %vm1111
          %v1113 = vld [vmem:[%s1103 + $0x4] sm:$0x1]
          %v1114 = vsel %vm1112, %v470, %v1113
          %1115 = vst [vmem:[%s1103 + $0x4] sm:$0x1] %v1114
          %v1116 = vld [vmem:[%s1103 + $0x8] sm:$0xf]
          %v1117 = vsel %vm1106, %v477, %v1116
          %1118 = vst [vmem:[%s1103 + $0x8] sm:$0xf] %v1117
          %v1119 = vld [vmem:[%s1103 + $0xc] sm:$0x1]
          %v1120 = vsel %vm1112, %v478, %v1119
          %1121 = vst [vmem:[%s1103 + $0xc] sm:$0x1] %v1120
          %v1122 = vld [vmem:[%s1103 + $0x10] sm:$0xf]
          %v1123 = vsel %vm1106, %v485, %v1122
          %1124 = vst [vmem:[%s1103 + $0x10] sm:$0xf] %v1123
          %v1125 = vld [vmem:[%s1103 + $0x14] sm:$0x1]
          %v1126 = vsel %vm1112, %v486, %v1125
          %1127 = vst [vmem:[%s1103 + $0x14] sm:$0x1] %v1126
          %v1128 = vld [vmem:[%s1103 + $0x18] sm:$0xf]
          %v1129 = vsel %vm1106, %v493, %v1128
          %1130 = vst [vmem:[%s1103 + $0x18] sm:$0xf] %v1129
          %v1131 = vld [vmem:[%s1103 + $0x1c] sm:$0x1]
          %v1132 = vsel %vm1112, %v494, %v1131
          %1133 = vst [vmem:[%s1103 + $0x1c] sm:$0x1] %v1132
          %v1134 = vld [vmem:[%s1103 + $0x20] sm:$0xf]
          %v1135 = vsel %vm1106, %v501, %v1134
          %1136 = vst [vmem:[%s1103 + $0x20] sm:$0xf] %v1135
          %v1137 = vld [vmem:[%s1103 + $0x24] sm:$0x1]
          %v1138 = vsel %vm1112, %v502, %v1137
          %1139 = vst [vmem:[%s1103 + $0x24] sm:$0x1] %v1138
          %v1140 = vld [vmem:[%s1103 + $0x28] sm:$0xf]
          %v1141 = vsel %vm1106, %v509, %v1140
          %1142 = vst [vmem:[%s1103 + $0x28] sm:$0xf] %v1141
          %v1143 = vld [vmem:[%s1103 + $0x2c] sm:$0x1]
          %v1144 = vsel %vm1112, %v510, %v1143
          %1145 = vst [vmem:[%s1103 + $0x2c] sm:$0x1] %v1144
          %v1146 = vld [vmem:[%s1103 + $0x30] sm:$0xf]
          %v1147 = vsel %vm1106, %v517, %v1146
          %1148 = vst [vmem:[%s1103 + $0x30] sm:$0xf] %v1147
          %v1149 = vld [vmem:[%s1103 + $0x34] sm:$0x1]
          %v1150 = vsel %vm1112, %v518, %v1149
          %1151 = vst [vmem:[%s1103 + $0x34] sm:$0x1] %v1150
          %v1152 = vld [vmem:[%s1103 + $0x38] sm:$0xf]
          %v1153 = vsel %vm1106, %v525, %v1152
          %1154 = vst [vmem:[%s1103 + $0x38] sm:$0xf] %v1153
          %v1155 = vld [vmem:[%s1103 + $0x3c] sm:$0x1]
          %v1156 = vsel %vm1112, %v526, %v1155
          %1157 = vst [vmem:[%s1103 + $0x3c] sm:$0x1] %v1156
          %v1158 = vld [vmem:[%s1103 + $0x50] sm:$0xf]
          %v1159 = vsel %vm1106, %v533, %v1158
          %1160 = vst [vmem:[%s1103 + $0x50] sm:$0xf] %v1159
          %v1161 = vld [vmem:[%s1103 + $0x54] sm:$0x1]
          %v1162 = vsel %vm1112, %v534, %v1161
          %1163 = vst [vmem:[%s1103 + $0x54] sm:$0x1] %v1162
          %v1164 = vld [vmem:[%s1103 + $0x58] sm:$0xf]
          %v1165 = vsel %vm1106, %v541, %v1164
          %1166 = vst [vmem:[%s1103 + $0x58] sm:$0xf] %v1165
          %v1167 = vld [vmem:[%s1103 + $0x5c] sm:$0x1]
          %v1168 = vsel %vm1112, %v542, %v1167
          %1169 = vst [vmem:[%s1103 + $0x5c] sm:$0x1] %v1168
          %v1170 = vld [vmem:[%s1103 + $0x60] sm:$0xf]
          %v1171 = vsel %vm1106, %v549, %v1170
          %1172 = vst [vmem:[%s1103 + $0x60] sm:$0xf] %v1171
          %v1173 = vld [vmem:[%s1103 + $0x64] sm:$0x1]
          %v1174 = vsel %vm1112, %v550, %v1173
          %1175 = vst [vmem:[%s1103 + $0x64] sm:$0x1] %v1174
          %v1176 = vld [vmem:[%s1103 + $0x68] sm:$0xf]
          %v1177 = vsel %vm1106, %v557, %v1176
          %1178 = vst [vmem:[%s1103 + $0x68] sm:$0xf] %v1177
          %v1179 = vld [vmem:[%s1103 + $0x6c] sm:$0x1]
          %v1180 = vsel %vm1112, %v558, %v1179
          %1181 = vst [vmem:[%s1103 + $0x6c] sm:$0x1] %v1180
          %v1182 = vld [vmem:[%s1103 + $0x70] sm:$0xf]
          %v1183 = vsel %vm1106, %v565, %v1182
          %1184 = vst [vmem:[%s1103 + $0x70] sm:$0xf] %v1183
          %v1185 = vld [vmem:[%s1103 + $0x74] sm:$0x1]
          %v1186 = vsel %vm1112, %v566, %v1185
          %1187 = vst [vmem:[%s1103 + $0x74] sm:$0x1] %v1186
          %v1188 = vld [vmem:[%s1103 + $0x78] sm:$0xf]
          %v1189 = vsel %vm1106, %v573, %v1188
          %1190 = vst [vmem:[%s1103 + $0x78] sm:$0xf] %v1189
          %v1191 = vld [vmem:[%s1103 + $0x7c] sm:$0x1]
          %v1192 = vsel %vm1112, %v574, %v1191
          %1193 = vst [vmem:[%s1103 + $0x7c] sm:$0x1] %v1192
          %v1194 = vld [vmem:[%s1103 + $0x80] sm:$0xf]
          %v1195 = vsel %vm1106, %v581, %v1194
          %1196 = vst [vmem:[%s1103 + $0x80] sm:$0xf] %v1195
          %v1197 = vld [vmem:[%s1103 + $0x84] sm:$0x1]
          %v1198 = vsel %vm1112, %v582, %v1197
          %1199 = vst [vmem:[%s1103 + $0x84] sm:$0x1] %v1198
          %v1200 = vld [vmem:[%s1103 + $0x88] sm:$0xf]
          %v1201 = vsel %vm1106, %v589, %v1200
          %1202 = vst [vmem:[%s1103 + $0x88] sm:$0xf] %v1201
          %v1203 = vld [vmem:[%s1103 + $0x8c] sm:$0x1]
          %v1204 = vsel %vm1112, %v590, %v1203
          %1205 = vst [vmem:[%s1103 + $0x8c] sm:$0x1] %v1204
          %v1206 = vld [vmem:[%s1103 + $0xa0] sm:$0xf]
          %v1207 = vsel %vm1106, %v597, %v1206
          %1208 = vst [vmem:[%s1103 + $0xa0] sm:$0xf] %v1207
          %v1209 = vld [vmem:[%s1103 + $0xa4] sm:$0x1]
          %v1210 = vsel %vm1112, %v598, %v1209
          %1211 = vst [vmem:[%s1103 + $0xa4] sm:$0x1] %v1210
          %v1212 = vld [vmem:[%s1103 + $0xa8] sm:$0xf]
          %v1213 = vsel %vm1106, %v605, %v1212
          %1214 = vst [vmem:[%s1103 + $0xa8] sm:$0xf] %v1213
          %v1215 = vld [vmem:[%s1103 + $0xac] sm:$0x1]
          %v1216 = vsel %vm1112, %v606, %v1215
          %1217 = vst [vmem:[%s1103 + $0xac] sm:$0x1] %v1216
          %v1218 = vld [vmem:[%s1103 + $0xb0] sm:$0xf]
          %v1219 = vsel %vm1106, %v613, %v1218
          %1220 = vst [vmem:[%s1103 + $0xb0] sm:$0xf] %v1219
          %v1221 = vld [vmem:[%s1103 + $0xb4] sm:$0x1]
          %v1222 = vsel %vm1112, %v614, %v1221
          %1223 = vst [vmem:[%s1103 + $0xb4] sm:$0x1] %v1222
          %v1224 = vld [vmem:[%s1103 + $0xb8] sm:$0xf]
          %v1225 = vsel %vm1106, %v621, %v1224
          %1226 = vst [vmem:[%s1103 + $0xb8] sm:$0xf] %v1225
          %v1227 = vld [vmem:[%s1103 + $0xbc] sm:$0x1]
          %v1228 = vsel %vm1112, %v622, %v1227
          %1229 = vst [vmem:[%s1103 + $0xbc] sm:$0x1] %v1228
          %v1230 = vld [vmem:[%s1103 + $0xc0] sm:$0xf]
          %v1231 = vsel %vm1106, %v629, %v1230
          %1232 = vst [vmem:[%s1103 + $0xc0] sm:$0xf] %v1231
          %v1233 = vld [vmem:[%s1103 + $0xc4] sm:$0x1]
          %v1234 = vsel %vm1112, %v630, %v1233
          %1235 = vst [vmem:[%s1103 + $0xc4] sm:$0x1] %v1234
          %v1236 = vld [vmem:[%s1103 + $0xc8] sm:$0xf]
          %v1237 = vsel %vm1106, %v637, %v1236
          %1238 = vst [vmem:[%s1103 + $0xc8] sm:$0xf] %v1237
          %v1239 = vld [vmem:[%s1103 + $0xcc] sm:$0x1]
          %v1240 = vsel %vm1112, %v638, %v1239
          %1241 = vst [vmem:[%s1103 + $0xcc] sm:$0x1] %v1240
          %v1242 = vld [vmem:[%s1103 + $0xd0] sm:$0xf]
          %v1243 = vsel %vm1106, %v645, %v1242
          %1244 = vst [vmem:[%s1103 + $0xd0] sm:$0xf] %v1243
          %v1245 = vld [vmem:[%s1103 + $0xd4] sm:$0x1]
          %v1246 = vsel %vm1112, %v646, %v1245
          %1247 = vst [vmem:[%s1103 + $0xd4] sm:$0x1] %v1246
          %v1248 = vld [vmem:[%s1103 + $0xd8] sm:$0xf]
          %v1249 = vsel %vm1106, %v653, %v1248
          %1250 = vst [vmem:[%s1103 + $0xd8] sm:$0xf] %v1249
          %v1251 = vld [vmem:[%s1103 + $0xdc] sm:$0x1]
          %v1252 = vsel %vm1112, %v654, %v1251
          %1253 = vst [vmem:[%s1103 + $0xdc] sm:$0x1] %v1252
          %v1254 = vld [vmem:[%s1103 + $0xf0] sm:$0xf]
          %v1255 = vsel %vm1106, %v661, %v1254
          %1256 = vst [vmem:[%s1103 + $0xf0] sm:$0xf] %v1255
          %v1257 = vld [vmem:[%s1103 + $0xf4] sm:$0x1]
          %v1258 = vsel %vm1112, %v662, %v1257
          %1259 = vst [vmem:[%s1103 + $0xf4] sm:$0x1] %v1258
          %v1260 = vld [vmem:[%s1103 + $0xf8] sm:$0xf]
          %v1261 = vsel %vm1106, %v669, %v1260
          %1262 = vst [vmem:[%s1103 + $0xf8] sm:$0xf] %v1261
          %v1263 = vld [vmem:[%s1103 + $0xfc] sm:$0x1]
          %v1264 = vsel %vm1112, %v670, %v1263
          %1265 = vst [vmem:[%s1103 + $0xfc] sm:$0x1] %v1264
          %v1266 = vld [vmem:[%s1103 + $0x100] sm:$0xf]
          %v1267 = vsel %vm1106, %v677, %v1266
          %1268 = vst [vmem:[%s1103 + $0x100] sm:$0xf] %v1267
          %v1269 = vld [vmem:[%s1103 + $0x104] sm:$0x1]
          %v1270 = vsel %vm1112, %v678, %v1269
          %1271 = vst [vmem:[%s1103 + $0x104] sm:$0x1] %v1270
          %v1272 = vld [vmem:[%s1103 + $0x108] sm:$0xf]
          %v1273 = vsel %vm1106, %v685, %v1272
          %1274 = vst [vmem:[%s1103 + $0x108] sm:$0xf] %v1273
          %v1275 = vld [vmem:[%s1103 + $0x10c] sm:$0x1]
          %v1276 = vsel %vm1112, %v686, %v1275
          %1277 = vst [vmem:[%s1103 + $0x10c] sm:$0x1] %v1276
          %v1278 = vld [vmem:[%s1103 + $0x110] sm:$0xf]
          %v1279 = vsel %vm1106, %v693, %v1278
          %1280 = vst [vmem:[%s1103 + $0x110] sm:$0xf] %v1279
          %v1281 = vld [vmem:[%s1103 + $0x114] sm:$0x1]
          %v1282 = vsel %vm1112, %v694, %v1281
          %1283 = vst [vmem:[%s1103 + $0x114] sm:$0x1] %v1282
          %v1284 = vld [vmem:[%s1103 + $0x118] sm:$0xf]
          %v1285 = vsel %vm1106, %v701, %v1284
          %1286 = vst [vmem:[%s1103 + $0x118] sm:$0xf] %v1285
          %v1287 = vld [vmem:[%s1103 + $0x11c] sm:$0x1]
          %v1288 = vsel %vm1112, %v702, %v1287
          %1289 = vst [vmem:[%s1103 + $0x11c] sm:$0x1] %v1288
          %v1290 = vld [vmem:[%s1103 + $0x120] sm:$0xf]
          %v1291 = vsel %vm1106, %v709, %v1290
          %1292 = vst [vmem:[%s1103 + $0x120] sm:$0xf] %v1291
          %v1293 = vld [vmem:[%s1103 + $0x124] sm:$0x1]
          %v1294 = vsel %vm1112, %v710, %v1293
          %1295 = vst [vmem:[%s1103 + $0x124] sm:$0x1] %v1294
          %v1296 = vld [vmem:[%s1103 + $0x128] sm:$0xf]
          %v1297 = vsel %vm1106, %v717, %v1296
          %1298 = vst [vmem:[%s1103 + $0x128] sm:$0xf] %v1297
          %v1299 = vld [vmem:[%s1103 + $0x12c] sm:$0x1]
          %v1300 = vsel %vm1112, %v718, %v1299
          %1301 = vst [vmem:[%s1103 + $0x12c] sm:$0x1] %v1300
          %v1302 = vld [vmem:[%s1103 + $0x140] sm:$0xf]
          %v1303 = vsel %vm1106, %v725, %v1302
          %1304 = vst [vmem:[%s1103 + $0x140] sm:$0xf] %v1303
          %v1305 = vld [vmem:[%s1103 + $0x144] sm:$0x1]
          %v1306 = vsel %vm1112, %v726, %v1305
          %1307 = vst [vmem:[%s1103 + $0x144] sm:$0x1] %v1306
          %v1308 = vld [vmem:[%s1103 + $0x148] sm:$0xf]
          %v1309 = vsel %vm1106, %v733, %v1308
          %1310 = vst [vmem:[%s1103 + $0x148] sm:$0xf] %v1309
          %v1311 = vld [vmem:[%s1103 + $0x14c] sm:$0x1]
          %v1312 = vsel %vm1112, %v734, %v1311
          %1313 = vst [vmem:[%s1103 + $0x14c] sm:$0x1] %v1312
          %v1314 = vld [vmem:[%s1103 + $0x150] sm:$0xf]
          %v1315 = vsel %vm1106, %v741, %v1314
          %1316 = vst [vmem:[%s1103 + $0x150] sm:$0xf] %v1315
          %v1317 = vld [vmem:[%s1103 + $0x154] sm:$0x1]
          %v1318 = vsel %vm1112, %v742, %v1317
          %1319 = vst [vmem:[%s1103 + $0x154] sm:$0x1] %v1318
          %v1320 = vld [vmem:[%s1103 + $0x158] sm:$0xf]
          %v1321 = vsel %vm1106, %v749, %v1320
          %1322 = vst [vmem:[%s1103 + $0x158] sm:$0xf] %v1321
          %v1323 = vld [vmem:[%s1103 + $0x15c] sm:$0x1]
          %v1324 = vsel %vm1112, %v750, %v1323
          %1325 = vst [vmem:[%s1103 + $0x15c] sm:$0x1] %v1324
          %v1326 = vld [vmem:[%s1103 + $0x160] sm:$0xf]
          %v1327 = vsel %vm1106, %v757, %v1326
          %1328 = vst [vmem:[%s1103 + $0x160] sm:$0xf] %v1327
          %v1329 = vld [vmem:[%s1103 + $0x164] sm:$0x1]
          %v1330 = vsel %vm1112, %v758, %v1329
          %1331 = vst [vmem:[%s1103 + $0x164] sm:$0x1] %v1330
          %v1332 = vld [vmem:[%s1103 + $0x168] sm:$0xf]
          %v1333 = vsel %vm1106, %v765, %v1332
          %1334 = vst [vmem:[%s1103 + $0x168] sm:$0xf] %v1333
          %v1335 = vld [vmem:[%s1103 + $0x16c] sm:$0x1]
          %v1336 = vsel %vm1112, %v766, %v1335
          %1337 = vst [vmem:[%s1103 + $0x16c] sm:$0x1] %v1336
          %v1338 = vld [vmem:[%s1103 + $0x170] sm:$0xf]
          %v1339 = vsel %vm1106, %v773, %v1338
          %1340 = vst [vmem:[%s1103 + $0x170] sm:$0xf] %v1339
          %v1341 = vld [vmem:[%s1103 + $0x174] sm:$0x1]
          %v1342 = vsel %vm1112, %v774, %v1341
          %1343 = vst [vmem:[%s1103 + $0x174] sm:$0x1] %v1342
          %v1344 = vld [vmem:[%s1103 + $0x178] sm:$0xf]
          %v1345 = vsel %vm1106, %v781, %v1344
          %1346 = vst [vmem:[%s1103 + $0x178] sm:$0xf] %v1345
          %v1347 = vld [vmem:[%s1103 + $0x17c] sm:$0x1]
          %v1348 = vsel %vm1112, %v782, %v1347
          %1349 = vst [vmem:[%s1103 + $0x17c] sm:$0x1] %v1348
          %v1350 = vld [vmem:[%s1103 + $0x190] sm:$0xf]
          %v1351 = vsel %vm1106, %v789, %v1350
          %1352 = vst [vmem:[%s1103 + $0x190] sm:$0xf] %v1351
          %v1353 = vld [vmem:[%s1103 + $0x194] sm:$0x1]
          %v1354 = vsel %vm1112, %v790, %v1353
          %1355 = vst [vmem:[%s1103 + $0x194] sm:$0x1] %v1354
          %v1356 = vld [vmem:[%s1103 + $0x198] sm:$0xf]
          %v1357 = vsel %vm1106, %v797, %v1356
          %1358 = vst [vmem:[%s1103 + $0x198] sm:$0xf] %v1357
          %v1359 = vld [vmem:[%s1103 + $0x19c] sm:$0x1]
          %v1360 = vsel %vm1112, %v798, %v1359
          %1361 = vst [vmem:[%s1103 + $0x19c] sm:$0x1] %v1360
          %v1362 = vld [vmem:[%s1103 + $0x1a0] sm:$0xf]
          %v1363 = vsel %vm1106, %v805, %v1362
          %1364 = vst [vmem:[%s1103 + $0x1a0] sm:$0xf] %v1363
          %v1365 = vld [vmem:[%s1103 + $0x1a4] sm:$0x1]
          %v1366 = vsel %vm1112, %v806, %v1365
          %1367 = vst [vmem:[%s1103 + $0x1a4] sm:$0x1] %v1366
          %v1368 = vld [vmem:[%s1103 + $0x1a8] sm:$0xf]
          %v1369 = vsel %vm1106, %v813, %v1368
          %1370 = vst [vmem:[%s1103 + $0x1a8] sm:$0xf] %v1369
          %v1371 = vld [vmem:[%s1103 + $0x1ac] sm:$0x1]
          %v1372 = vsel %vm1112, %v814, %v1371
          %1373 = vst [vmem:[%s1103 + $0x1ac] sm:$0x1] %v1372
          %v1374 = vld [vmem:[%s1103 + $0x1b0] sm:$0xf]
          %v1375 = vsel %vm1106, %v821, %v1374
          %1376 = vst [vmem:[%s1103 + $0x1b0] sm:$0xf] %v1375
          %v1377 = vld [vmem:[%s1103 + $0x1b4] sm:$0x1]
          %v1378 = vsel %vm1112, %v822, %v1377
          %1379 = vst [vmem:[%s1103 + $0x1b4] sm:$0x1] %v1378
          %v1380 = vld [vmem:[%s1103 + $0x1b8] sm:$0xf]
          %v1381 = vsel %vm1106, %v829, %v1380
          %1382 = vst [vmem:[%s1103 + $0x1b8] sm:$0xf] %v1381
          %v1383 = vld [vmem:[%s1103 + $0x1bc] sm:$0x1]
          %v1384 = vsel %vm1112, %v830, %v1383
          %1385 = vst [vmem:[%s1103 + $0x1bc] sm:$0x1] %v1384
          %v1386 = vld [vmem:[%s1103 + $0x1c0] sm:$0xf]
          %v1387 = vsel %vm1106, %v837, %v1386
          %1388 = vst [vmem:[%s1103 + $0x1c0] sm:$0xf] %v1387
          %v1389 = vld [vmem:[%s1103 + $0x1c4] sm:$0x1]
          %v1390 = vsel %vm1112, %v838, %v1389
          %1391 = vst [vmem:[%s1103 + $0x1c4] sm:$0x1] %v1390
          %v1392 = vld [vmem:[%s1103 + $0x1c8] sm:$0xf]
          %v1393 = vsel %vm1106, %v845, %v1392
          %1394 = vst [vmem:[%s1103 + $0x1c8] sm:$0xf] %v1393
          %v1395 = vld [vmem:[%s1103 + $0x1cc] sm:$0x1]
          %v1396 = vsel %vm1112, %v846, %v1395
          %1397 = vst [vmem:[%s1103 + $0x1cc] sm:$0x1] %v1396
          %v1398 = vld [vmem:[%s1103 + $0x1e0] sm:$0xf]
          %v1399 = vsel %vm1106, %v853, %v1398
          %1400 = vst [vmem:[%s1103 + $0x1e0] sm:$0xf] %v1399
          %v1401 = vld [vmem:[%s1103 + $0x1e4] sm:$0x1]
          %v1402 = vsel %vm1112, %v854, %v1401
          %1403 = vst [vmem:[%s1103 + $0x1e4] sm:$0x1] %v1402
          %v1404 = vld [vmem:[%s1103 + $0x1e8] sm:$0xf]
          %v1405 = vsel %vm1106, %v861, %v1404
          %1406 = vst [vmem:[%s1103 + $0x1e8] sm:$0xf] %v1405
          %v1407 = vld [vmem:[%s1103 + $0x1ec] sm:$0x1]
          %v1408 = vsel %vm1112, %v862, %v1407
          %1409 = vst [vmem:[%s1103 + $0x1ec] sm:$0x1] %v1408
          %v1410 = vld [vmem:[%s1103 + $0x1f0] sm:$0xf]
          %v1411 = vsel %vm1106, %v869, %v1410
          %1412 = vst [vmem:[%s1103 + $0x1f0] sm:$0xf] %v1411
          %v1413 = vld [vmem:[%s1103 + $0x1f4] sm:$0x1]
          %v1414 = vsel %vm1112, %v870, %v1413
          %1415 = vst [vmem:[%s1103 + $0x1f4] sm:$0x1] %v1414
          %v1416 = vld [vmem:[%s1103 + $0x1f8] sm:$0xf]
          %v1417 = vsel %vm1106, %v877, %v1416
          %1418 = vst [vmem:[%s1103 + $0x1f8] sm:$0xf] %v1417
          %v1419 = vld [vmem:[%s1103 + $0x1fc] sm:$0x1]
          %v1420 = vsel %vm1112, %v878, %v1419
          %1421 = vst [vmem:[%s1103 + $0x1fc] sm:$0x1] %v1420
          %v1422 = vld [vmem:[%s1103 + $0x200] sm:$0xf]
          %v1423 = vsel %vm1106, %v885, %v1422
          %1424 = vst [vmem:[%s1103 + $0x200] sm:$0xf] %v1423
          %v1425 = vld [vmem:[%s1103 + $0x204] sm:$0x1]
          %v1426 = vsel %vm1112, %v886, %v1425
          %1427 = vst [vmem:[%s1103 + $0x204] sm:$0x1] %v1426
          %v1428 = vld [vmem:[%s1103 + $0x208] sm:$0xf]
          %v1429 = vsel %vm1106, %v893, %v1428
          %1430 = vst [vmem:[%s1103 + $0x208] sm:$0xf] %v1429
          %v1431 = vld [vmem:[%s1103 + $0x20c] sm:$0x1]
          %v1432 = vsel %vm1112, %v894, %v1431
          %1433 = vst [vmem:[%s1103 + $0x20c] sm:$0x1] %v1432
          %v1434 = vld [vmem:[%s1103 + $0x210] sm:$0xf]
          %v1435 = vsel %vm1106, %v901, %v1434
          %1436 = vst [vmem:[%s1103 + $0x210] sm:$0xf] %v1435
          %v1437 = vld [vmem:[%s1103 + $0x214] sm:$0x1]
          %v1438 = vsel %vm1112, %v902, %v1437
          %1439 = vst [vmem:[%s1103 + $0x214] sm:$0x1] %v1438
          %v1440 = vld [vmem:[%s1103 + $0x218] sm:$0xf]
          %v1441 = vsel %vm1106, %v909, %v1440
          %1442 = vst [vmem:[%s1103 + $0x218] sm:$0xf] %v1441
          %v1443 = vld [vmem:[%s1103 + $0x21c] sm:$0x1]
          %v1444 = vsel %vm1112, %v910, %v1443
          %1445 = vst [vmem:[%s1103 + $0x21c] sm:$0x1] %v1444
          %v1446 = vld [vmem:[%s1103 + $0x230] sm:$0xf]
          %v1447 = vsel %vm1106, %v917, %v1446
          %1448 = vst [vmem:[%s1103 + $0x230] sm:$0xf] %v1447
          %v1449 = vld [vmem:[%s1103 + $0x234] sm:$0x1]
          %v1450 = vsel %vm1112, %v918, %v1449
          %1451 = vst [vmem:[%s1103 + $0x234] sm:$0x1] %v1450
          %v1452 = vld [vmem:[%s1103 + $0x238] sm:$0xf]
          %v1453 = vsel %vm1106, %v925, %v1452
          %1454 = vst [vmem:[%s1103 + $0x238] sm:$0xf] %v1453
          %v1455 = vld [vmem:[%s1103 + $0x23c] sm:$0x1]
          %v1456 = vsel %vm1112, %v926, %v1455
          %1457 = vst [vmem:[%s1103 + $0x23c] sm:$0x1] %v1456
          %v1458 = vld [vmem:[%s1103 + $0x240] sm:$0xf]
          %v1459 = vsel %vm1106, %v933, %v1458
          %1460 = vst [vmem:[%s1103 + $0x240] sm:$0xf] %v1459
          %v1461 = vld [vmem:[%s1103 + $0x244] sm:$0x1]
          %v1462 = vsel %vm1112, %v934, %v1461
          %1463 = vst [vmem:[%s1103 + $0x244] sm:$0x1] %v1462
          %v1464 = vld [vmem:[%s1103 + $0x248] sm:$0xf]
          %v1465 = vsel %vm1106, %v941, %v1464
          %1466 = vst [vmem:[%s1103 + $0x248] sm:$0xf] %v1465
          %v1467 = vld [vmem:[%s1103 + $0x24c] sm:$0x1]
          %v1468 = vsel %vm1112, %v942, %v1467
          %1469 = vst [vmem:[%s1103 + $0x24c] sm:$0x1] %v1468
          %v1470 = vld [vmem:[%s1103 + $0x250] sm:$0xf]
          %v1471 = vsel %vm1106, %v949, %v1470
          %1472 = vst [vmem:[%s1103 + $0x250] sm:$0xf] %v1471
          %v1473 = vld [vmem:[%s1103 + $0x254] sm:$0x1]
          %v1474 = vsel %vm1112, %v950, %v1473
          %1475 = vst [vmem:[%s1103 + $0x254] sm:$0x1] %v1474
          %v1476 = vld [vmem:[%s1103 + $0x258] sm:$0xf]
          %v1477 = vsel %vm1106, %v957, %v1476
          %1478 = vst [vmem:[%s1103 + $0x258] sm:$0xf] %v1477
          %v1479 = vld [vmem:[%s1103 + $0x25c] sm:$0x1]
          %v1480 = vsel %vm1112, %v958, %v1479
          %1481 = vst [vmem:[%s1103 + $0x25c] sm:$0x1] %v1480
          %v1482 = vld [vmem:[%s1103 + $0x260] sm:$0xf]
          %v1483 = vsel %vm1106, %v965, %v1482
          %1484 = vst [vmem:[%s1103 + $0x260] sm:$0xf] %v1483
          %v1485 = vld [vmem:[%s1103 + $0x264] sm:$0x1]
          %v1486 = vsel %vm1112, %v966, %v1485
          %1487 = vst [vmem:[%s1103 + $0x264] sm:$0x1] %v1486
          %v1488 = vld [vmem:[%s1103 + $0x268] sm:$0xf]
          %v1489 = vsel %vm1106, %v973, %v1488
          %1490 = vst [vmem:[%s1103 + $0x268] sm:$0xf] %v1489
          %v1491 = vld [vmem:[%s1103 + $0x26c] sm:$0x1]
          %v1492 = vsel %vm1112, %v974, %v1491
          %1493 = vst [vmem:[%s1103 + $0x26c] sm:$0x1] %v1492
        $region44: #{tpu_custom_call.1} parent=31 // pred_fallthru
          _
        %v1494 = vld [vmem:[#allocation2] sm:$0xf]
        %v1495 = vld [vmem:[#allocation2 + $0x4] sm:$0x1]
        %v1496 = vld [vmem:[#allocation2 + $0x8] sm:$0xf]
        %v1497 = vld [vmem:[#allocation2 + $0xc] sm:$0x1]
        %v1498 = vld [vmem:[#allocation2 + $0x10] sm:$0xf]
        %v1499 = vld [vmem:[#allocation2 + $0x14] sm:$0x1]
        %v1500 = vld [vmem:[#allocation2 + $0x18] sm:$0xf]
        %v1501 = vld [vmem:[#allocation2 + $0x1c] sm:$0x1]
        %v1502 = vld [vmem:[#allocation2 + $0x20] sm:$0xf]
        %v1503 = vld [vmem:[#allocation2 + $0x24] sm:$0x1]
        %v1504 = vld [vmem:[#allocation2 + $0x28] sm:$0xf]
        %v1505 = vld [vmem:[#allocation2 + $0x2c] sm:$0x1]
        %v1506 = vld [vmem:[#allocation2 + $0x30] sm:$0xf]
        %v1507 = vld [vmem:[#allocation2 + $0x34] sm:$0x1]
        %v1508 = vld [vmem:[#allocation2 + $0x38] sm:$0xf]
        %v1509 = vld [vmem:[#allocation2 + $0x3c] sm:$0x1]
        %v1510 = vld [vmem:[#allocation2 + $0x40] sm:$0xf]
        %v1511 = vld [vmem:[#allocation2 + $0x44] sm:$0x1]
        %v1512 = vld [vmem:[#allocation2 + $0x48] sm:$0xf]
        %v1513 = vld [vmem:[#allocation2 + $0x4c] sm:$0x1]
        %v1514 = vld [vmem:[#allocation2 + $0x50] sm:$0xf]
        %v1515 = vld [vmem:[#allocation2 + $0x54] sm:$0x1]
        %v1516 = vld [vmem:[#allocation2 + $0x58] sm:$0xf]
        %v1517 = vld [vmem:[#allocation2 + $0x5c] sm:$0x1]
        %v1518 = vld [vmem:[#allocation2 + $0x60] sm:$0xf]
        %v1519 = vld [vmem:[#allocation2 + $0x64] sm:$0x1]
        %v1520 = vld [vmem:[#allocation2 + $0x68] sm:$0xf]
        %v1521 = vld [vmem:[#allocation2 + $0x6c] sm:$0x1]
        %v1522 = vld [vmem:[#allocation2 + $0x70] sm:$0xf]
        %v1523 = vld [vmem:[#allocation2 + $0x74] sm:$0x1]
        %v1524 = vld [vmem:[#allocation2 + $0x78] sm:$0xf]
        %v1525 = vld [vmem:[#allocation2 + $0x7c] sm:$0x1]
        %v1526 = vld [vmem:[#allocation2 + $0x80] sm:$0xf]
        %v1527 = vld [vmem:[#allocation2 + $0x84] sm:$0x1]
        %v1528 = vld [vmem:[#allocation2 + $0x88] sm:$0xf]
        %v1529 = vld [vmem:[#allocation2 + $0x8c] sm:$0x1]
        %v1530 = vld [vmem:[#allocation2 + $0x90] sm:$0xf]
        %v1531 = vld [vmem:[#allocation2 + $0x94] sm:$0x1]
        %v1532 = vld [vmem:[#allocation2 + $0x98] sm:$0xf]
        %v1533 = vld [vmem:[#allocation2 + $0x9c] sm:$0x1]
        %v1534 = vld [vmem:[#allocation2 + $0xa0] sm:$0xf]
        %v1535 = vld [vmem:[#allocation2 + $0xa4] sm:$0x1]
        %v1536 = vld [vmem:[#allocation2 + $0xa8] sm:$0xf]
        %v1537 = vld [vmem:[#allocation2 + $0xac] sm:$0x1]
        %v1538 = vld [vmem:[#allocation2 + $0xb0] sm:$0xf]
        %v1539 = vld [vmem:[#allocation2 + $0xb4] sm:$0x1]
        %v1540 = vld [vmem:[#allocation2 + $0xb8] sm:$0xf]
        %v1541 = vld [vmem:[#allocation2 + $0xbc] sm:$0x1]
        %v1542 = vld [vmem:[#allocation2 + $0xc0] sm:$0xf]
        %v1543 = vld [vmem:[#allocation2 + $0xc4] sm:$0x1]
        %v1544 = vld [vmem:[#allocation2 + $0xc8] sm:$0xf]
        %v1545 = vld [vmem:[#allocation2 + $0xcc] sm:$0x1]
        %v1546 = vld [vmem:[#allocation2 + $0xd0] sm:$0xf]
        %v1547 = vld [vmem:[#allocation2 + $0xd4] sm:$0x1]
        %v1548 = vld [vmem:[#allocation2 + $0xd8] sm:$0xf]
        %v1549 = vld [vmem:[#allocation2 + $0xdc] sm:$0x1]
        %v1550 = vld [vmem:[#allocation2 + $0xe0] sm:$0xf]
        %v1551 = vld [vmem:[#allocation2 + $0xe4] sm:$0x1]
        %v1552 = vld [vmem:[#allocation2 + $0xe8] sm:$0xf]
        %v1553 = vld [vmem:[#allocation2 + $0xec] sm:$0x1]
        %v1554 = vld [vmem:[#allocation2 + $0xf0] sm:$0xf]
        %v1555 = vld [vmem:[#allocation2 + $0xf4] sm:$0x1]
        %v1556 = vld [vmem:[#allocation2 + $0xf8] sm:$0xf]
        %v1557 = vld [vmem:[#allocation2 + $0xfc] sm:$0x1]
        %v1558 = vld [vmem:[#allocation2 + $0x100] sm:$0xf]
        %v1559 = vld [vmem:[#allocation2 + $0x104] sm:$0x1]
        %v1560 = vld [vmem:[#allocation2 + $0x108] sm:$0xf]
        %v1561 = vld [vmem:[#allocation2 + $0x10c] sm:$0x1]
        %v1562 = vld [vmem:[#allocation2 + $0x110] sm:$0xf]
        %v1563 = vld [vmem:[#allocation2 + $0x114] sm:$0x1]
        %v1564 = vld [vmem:[#allocation2 + $0x118] sm:$0xf]
        %v1565 = vld [vmem:[#allocation2 + $0x11c] sm:$0x1]
        %v1566 = vld [vmem:[#allocation2 + $0x120] sm:$0xf]
        %v1567 = vld [vmem:[#allocation2 + $0x124] sm:$0x1]
        %v1568 = vld [vmem:[#allocation2 + $0x128] sm:$0xf]
        %v1569 = vld [vmem:[#allocation2 + $0x12c] sm:$0x1]
        %v1570 = vld [vmem:[#allocation2 + $0x130] sm:$0xf]
        %v1571 = vld [vmem:[#allocation2 + $0x134] sm:$0x1]
        %v1572 = vld [vmem:[#allocation2 + $0x138] sm:$0xf]
        %v1573 = vld [vmem:[#allocation2 + $0x13c] sm:$0x1]
        %v1574 = vld [vmem:[#allocation2 + $0x140] sm:$0xf]
        %v1575 = vld [vmem:[#allocation2 + $0x144] sm:$0x1]
        %v1576 = vld [vmem:[#allocation2 + $0x148] sm:$0xf]
        %v1577 = vld [vmem:[#allocation2 + $0x14c] sm:$0x1]
        %v1578 = vld [vmem:[#allocation2 + $0x150] sm:$0xf]
        %v1579 = vld [vmem:[#allocation2 + $0x154] sm:$0x1]
        %v1580 = vld [vmem:[#allocation2 + $0x158] sm:$0xf]
        %v1581 = vld [vmem:[#allocation2 + $0x15c] sm:$0x1]
        %v1582 = vld [vmem:[#allocation2 + $0x160] sm:$0xf]
        %v1583 = vld [vmem:[#allocation2 + $0x164] sm:$0x1]
        %v1584 = vld [vmem:[#allocation2 + $0x168] sm:$0xf]
        %v1585 = vld [vmem:[#allocation2 + $0x16c] sm:$0x1]
        %v1586 = vld [vmem:[#allocation2 + $0x170] sm:$0xf]
        %v1587 = vld [vmem:[#allocation2 + $0x174] sm:$0x1]
        %v1588 = vld [vmem:[#allocation2 + $0x178] sm:$0xf]
        %v1589 = vld [vmem:[#allocation2 + $0x17c] sm:$0x1]
        %v1590 = vld [vmem:[#allocation2 + $0x180] sm:$0xf]
        %v1591 = vld [vmem:[#allocation2 + $0x184] sm:$0x1]
        %v1592 = vld [vmem:[#allocation2 + $0x188] sm:$0xf]
        %v1593 = vld [vmem:[#allocation2 + $0x18c] sm:$0x1]
        %v1594 = vld [vmem:[#allocation2 + $0x190] sm:$0xf]
        %v1595 = vld [vmem:[#allocation2 + $0x194] sm:$0x1]
        %v1596 = vld [vmem:[#allocation2 + $0x198] sm:$0xf]
        %v1597 = vld [vmem:[#allocation2 + $0x19c] sm:$0x1]
        %v1598 = vld [vmem:[#allocation2 + $0x1a0] sm:$0xf]
        %v1599 = vld [vmem:[#allocation2 + $0x1a4] sm:$0x1]
        %v1600 = vld [vmem:[#allocation2 + $0x1a8] sm:$0xf]
        %v1601 = vld [vmem:[#allocation2 + $0x1ac] sm:$0x1]
        %v1602 = vld [vmem:[#allocation2 + $0x1b0] sm:$0xf]
        %v1603 = vld [vmem:[#allocation2 + $0x1b4] sm:$0x1]
        %v1604 = vld [vmem:[#allocation2 + $0x1b8] sm:$0xf]
        %v1605 = vld [vmem:[#allocation2 + $0x1bc] sm:$0x1]
        %v1606 = vld [vmem:[#allocation2 + $0x1c0] sm:$0xf]
        %v1607 = vld [vmem:[#allocation2 + $0x1c4] sm:$0x1]
        %v1608 = vld [vmem:[#allocation2 + $0x1c8] sm:$0xf]
        %v1609 = vld [vmem:[#allocation2 + $0x1cc] sm:$0x1]
        %v1610 = vld [vmem:[#allocation2 + $0x1d0] sm:$0xf]
        %v1611 = vld [vmem:[#allocation2 + $0x1d4] sm:$0x1]
        %v1612 = vld [vmem:[#allocation2 + $0x1d8] sm:$0xf]
        %v1613 = vld [vmem:[#allocation2 + $0x1dc] sm:$0x1]
        %v1614 = vld [vmem:[#allocation2 + $0x1e0] sm:$0xf]
        %v1615 = vld [vmem:[#allocation2 + $0x1e4] sm:$0x1]
        %v1616 = vld [vmem:[#allocation2 + $0x1e8] sm:$0xf]
        %v1617 = vld [vmem:[#allocation2 + $0x1ec] sm:$0x1]
        %v1618 = vld [vmem:[#allocation2 + $0x1f0] sm:$0xf]
        %v1619 = vld [vmem:[#allocation2 + $0x1f4] sm:$0x1]
        %v1620 = vld [vmem:[#allocation2 + $0x1f8] sm:$0xf]
        %v1621 = vld [vmem:[#allocation2 + $0x1fc] sm:$0x1]
        %v1622 = vld [vmem:[#allocation2 + $0x200] sm:$0xf]
        %v1623 = vld [vmem:[#allocation2 + $0x204] sm:$0x1]
        %v1624 = vld [vmem:[#allocation2 + $0x208] sm:$0xf]
        %v1625 = vld [vmem:[#allocation2 + $0x20c] sm:$0x1]
        %v1626 = vld [vmem:[#allocation2 + $0x210] sm:$0xf]
        %v1627 = vld [vmem:[#allocation2 + $0x214] sm:$0x1]
        %v1628 = vld [vmem:[#allocation2 + $0x218] sm:$0xf]
        %v1629 = vld [vmem:[#allocation2 + $0x21c] sm:$0x1]
        %v1630 = vld [vmem:[#allocation2 + $0x220] sm:$0xf]
        %v1631 = vld [vmem:[#allocation2 + $0x224] sm:$0x1]
        %v1632 = vld [vmem:[#allocation2 + $0x228] sm:$0xf]
        %v1633 = vld [vmem:[#allocation2 + $0x22c] sm:$0x1]
        %v1634 = vld [vmem:[#allocation2 + $0x230] sm:$0xf]
        %v1635 = vld [vmem:[#allocation2 + $0x234] sm:$0x1]
        %v1636 = vld [vmem:[#allocation2 + $0x238] sm:$0xf]
        %v1637 = vld [vmem:[#allocation2 + $0x23c] sm:$0x1]
        %v1638 = vld [vmem:[#allocation2 + $0x240] sm:$0xf]
        %v1639 = vld [vmem:[#allocation2 + $0x244] sm:$0x1]
        %v1640 = vld [vmem:[#allocation2 + $0x248] sm:$0xf]
        %v1641 = vld [vmem:[#allocation2 + $0x24c] sm:$0x1]
        %v1642 = vld [vmem:[#allocation2 + $0x250] sm:$0xf]
        %v1643 = vld [vmem:[#allocation2 + $0x254] sm:$0x1]
        %v1644 = vld [vmem:[#allocation2 + $0x258] sm:$0xf]
        %v1645 = vld [vmem:[#allocation2 + $0x25c] sm:$0x1]
        %v1646 = vld [vmem:[#allocation2 + $0x260] sm:$0xf]
        %v1647 = vld [vmem:[#allocation2 + $0x264] sm:$0x1]
        %v1648 = vld [vmem:[#allocation2 + $0x268] sm:$0xf]
        %v1649 = vld [vmem:[#allocation2 + $0x26c] sm:$0x1]
        %v1650 = vld [vmem:[#allocation2 + $0x270] sm:$0xf]
        %v1651 = vld [vmem:[#allocation2 + $0x274] sm:$0x1]
        %v1652 = vld [vmem:[#allocation2 + $0x278] sm:$0xf]
        %v1653 = vld [vmem:[#allocation2 + $0x27c] sm:$0x1]
        %v1654 = vld [vmem:[%s208] sm:$0xf]
        %v1655 = vld [vmem:[%s208 + $0x4] sm:$0xf]
        %v1656 = vld [vmem:[%s208 + $0x8] sm:$0xf]
        %v1657 = vld [vmem:[%s208 + $0xc] sm:$0xf]
        %v1658 = vld [vmem:[%s208 + $0x10] sm:$0xf]
        %v1659 = vld [vmem:[%s208 + $0x14] sm:$0xf]
        %v1660 = vld [vmem:[%s208 + $0x18] sm:$0xf]
        %v1661 = vld [vmem:[%s208 + $0x1c] sm:$0xf]
        %v1662 = vld [vmem:[%s208 + $0x20] sm:$0xf]
        %v1663 = vld [vmem:[%s208 + $0x24] sm:$0xf]
        %v1664 = vld [vmem:[%s208 + $0x28] sm:$0xf]
        %v1665 = vld [vmem:[%s208 + $0x2c] sm:$0xf]
        %v1666 = vld [vmem:[%s208 + $0x30] sm:$0xf]
        %v1667 = vld [vmem:[%s208 + $0x34] sm:$0xf]
        %v1668 = vld [vmem:[%s208 + $0x38] sm:$0xf]
        %v1669 = vld [vmem:[%s208 + $0x3c] sm:$0xf]
        %vm1670 = vsmask.f32 3328
        %vm1671 = vsmask.f32 7440
        %vm1672 = vmor %vm1670, %vm1671
        %v1674 = vshrl.u32 %v1494, 16
        %v1676 = vrot.slane %v1674, 4
        %v1677 = vshll.u32 %v1494, 16
        %v1679 = vrot.slane %v1677, 5
        %v1680 = vor.u32 %v1676, %v1679
        %v1681 = vrot.slane %v1680, 4
        %v1683 = vshll.u32 %v1495, 16
        %v1685 = vrot.slane %v1683, 5
        %v1686 = vsel %vm1672, %v1681, %v1685
        %v1688 = vshrl.u32 %v1496, 16
        %v1690 = vrot.slane %v1688, 4
        %v1691 = vshll.u32 %v1496, 16
        %v1693 = vrot.slane %v1691, 5
        %v1694 = vor.u32 %v1690, %v1693
        %v1695 = vrot.slane %v1694, 4
        %v1697 = vshll.u32 %v1497, 16
        %v1699 = vrot.slane %v1697, 5
        %v1700 = vsel %vm1672, %v1695, %v1699
        %v1702 = vshrl.u32 %v1498, 16
        %v1704 = vrot.slane %v1702, 4
        %v1705 = vshll.u32 %v1498, 16
        %v1707 = vrot.slane %v1705, 5
        %v1708 = vor.u32 %v1704, %v1707
        %v1709 = vrot.slane %v1708, 4
        %v1711 = vshll.u32 %v1499, 16
        %v1713 = vrot.slane %v1711, 5
        %v1714 = vsel %vm1672, %v1709, %v1713
        %v1716 = vshrl.u32 %v1500, 16
        %v1718 = vrot.slane %v1716, 4
        %v1719 = vshll.u32 %v1500, 16
        %v1721 = vrot.slane %v1719, 5
        %v1722 = vor.u32 %v1718, %v1721
        %v1723 = vrot.slane %v1722, 4
        %v1725 = vshll.u32 %v1501, 16
        %v1727 = vrot.slane %v1725, 5
        %v1728 = vsel %vm1672, %v1723, %v1727
        %v1730 = vshrl.u32 %v1502, 16
        %v1732 = vrot.slane %v1730, 4
        %v1733 = vshll.u32 %v1502, 16
        %v1735 = vrot.slane %v1733, 5
        %v1736 = vor.u32 %v1732, %v1735
        %v1737 = vrot.slane %v1736, 4
        %v1739 = vshll.u32 %v1503, 16
        %v1741 = vrot.slane %v1739, 5
        %v1742 = vsel %vm1672, %v1737, %v1741
        %v1744 = vshrl.u32 %v1504, 16
        %v1746 = vrot.slane %v1744, 4
        %v1747 = vshll.u32 %v1504, 16
        %v1749 = vrot.slane %v1747, 5
        %v1750 = vor.u32 %v1746, %v1749
        %v1751 = vrot.slane %v1750, 4
        %v1753 = vshll.u32 %v1505, 16
        %v1755 = vrot.slane %v1753, 5
        %v1756 = vsel %vm1672, %v1751, %v1755
        %v1758 = vshrl.u32 %v1506, 16
        %v1760 = vrot.slane %v1758, 4
        %v1761 = vshll.u32 %v1506, 16
        %v1763 = vrot.slane %v1761, 5
        %v1764 = vor.u32 %v1760, %v1763
        %v1765 = vrot.slane %v1764, 4
        %v1767 = vshll.u32 %v1507, 16
        %v1769 = vrot.slane %v1767, 5
        %v1770 = vsel %vm1672, %v1765, %v1769
        %v1772 = vshrl.u32 %v1508, 16
        %v1774 = vrot.slane %v1772, 4
        %v1775 = vshll.u32 %v1508, 16
        %v1777 = vrot.slane %v1775, 5
        %v1778 = vor.u32 %v1774, %v1777
        %v1779 = vrot.slane %v1778, 4
        %v1781 = vshll.u32 %v1509, 16
        %v1783 = vrot.slane %v1781, 5
        %v1784 = vsel %vm1672, %v1779, %v1783
        %v1786 = vshrl.u32 %v1514, 16
        %v1788 = vrot.slane %v1786, 4
        %v1789 = vshll.u32 %v1514, 16
        %v1791 = vrot.slane %v1789, 5
        %v1792 = vor.u32 %v1788, %v1791
        %v1793 = vrot.slane %v1792, 4
        %v1795 = vshll.u32 %v1515, 16
        %v1797 = vrot.slane %v1795, 5
        %v1798 = vsel %vm1672, %v1793, %v1797
        %v1800 = vshrl.u32 %v1516, 16
        %v1802 = vrot.slane %v1800, 4
        %v1803 = vshll.u32 %v1516, 16
        %v1805 = vrot.slane %v1803, 5
        %v1806 = vor.u32 %v1802, %v1805
        %v1807 = vrot.slane %v1806, 4
        %v1809 = vshll.u32 %v1517, 16
        %v1811 = vrot.slane %v1809, 5
        %v1812 = vsel %vm1672, %v1807, %v1811
        %v1814 = vshrl.u32 %v1518, 16
        %v1816 = vrot.slane %v1814, 4
        %v1817 = vshll.u32 %v1518, 16
        %v1819 = vrot.slane %v1817, 5
        %v1820 = vor.u32 %v1816, %v1819
        %v1821 = vrot.slane %v1820, 4
        %v1823 = vshll.u32 %v1519, 16
        %v1825 = vrot.slane %v1823, 5
        %v1826 = vsel %vm1672, %v1821, %v1825
        %v1828 = vshrl.u32 %v1520, 16
        %v1830 = vrot.slane %v1828, 4
        %v1831 = vshll.u32 %v1520, 16
        %v1833 = vrot.slane %v1831, 5
        %v1834 = vor.u32 %v1830, %v1833
        %v1835 = vrot.slane %v1834, 4
        %v1837 = vshll.u32 %v1521, 16
        %v1839 = vrot.slane %v1837, 5
        %v1840 = vsel %vm1672, %v1835, %v1839
        %v1842 = vshrl.u32 %v1522, 16
        %v1844 = vrot.slane %v1842, 4
        %v1845 = vshll.u32 %v1522, 16
        %v1847 = vrot.slane %v1845, 5
        %v1848 = vor.u32 %v1844, %v1847
        %v1849 = vrot.slane %v1848, 4
        %v1851 = vshll.u32 %v1523, 16
        %v1853 = vrot.slane %v1851, 5
        %v1854 = vsel %vm1672, %v1849, %v1853
        %v1856 = vshrl.u32 %v1524, 16
        %v1858 = vrot.slane %v1856, 4
        %v1859 = vshll.u32 %v1524, 16
        %v1861 = vrot.slane %v1859, 5
        %v1862 = vor.u32 %v1858, %v1861
        %v1863 = vrot.slane %v1862, 4
        %v1865 = vshll.u32 %v1525, 16
        %v1867 = vrot.slane %v1865, 5
        %v1868 = vsel %vm1672, %v1863, %v1867
        %v1870 = vshrl.u32 %v1526, 16
        %v1872 = vrot.slane %v1870, 4
        %v1873 = vshll.u32 %v1526, 16
        %v1875 = vrot.slane %v1873, 5
        %v1876 = vor.u32 %v1872, %v1875
        %v1877 = vrot.slane %v1876, 4
        %v1879 = vshll.u32 %v1527, 16
        %v1881 = vrot.slane %v1879, 5
        %v1882 = vsel %vm1672, %v1877, %v1881
        %v1884 = vshrl.u32 %v1528, 16
        %v1886 = vrot.slane %v1884, 4
        %v1887 = vshll.u32 %v1528, 16
        %v1889 = vrot.slane %v1887, 5
        %v1890 = vor.u32 %v1886, %v1889
        %v1891 = vrot.slane %v1890, 4
        %v1893 = vshll.u32 %v1529, 16
        %v1895 = vrot.slane %v1893, 5
        %v1896 = vsel %vm1672, %v1891, %v1895
        %v1898 = vshrl.u32 %v1534, 16
        %v1900 = vrot.slane %v1898, 4
        %v1901 = vshll.u32 %v1534, 16
        %v1903 = vrot.slane %v1901, 5
        %v1904 = vor.u32 %v1900, %v1903
        %v1905 = vrot.slane %v1904, 4
        %v1907 = vshll.u32 %v1535, 16
        %v1909 = vrot.slane %v1907, 5
        %v1910 = vsel %vm1672, %v1905, %v1909
        %v1912 = vshrl.u32 %v1536, 16
        %v1914 = vrot.slane %v1912, 4
        %v1915 = vshll.u32 %v1536, 16
        %v1917 = vrot.slane %v1915, 5
        %v1918 = vor.u32 %v1914, %v1917
        %v1919 = vrot.slane %v1918, 4
        %v1921 = vshll.u32 %v1537, 16
        %v1923 = vrot.slane %v1921, 5
        %v1924 = vsel %vm1672, %v1919, %v1923
        %v1926 = vshrl.u32 %v1538, 16
        %v1928 = vrot.slane %v1926, 4
        %v1929 = vshll.u32 %v1538, 16
        %v1931 = vrot.slane %v1929, 5
        %v1932 = vor.u32 %v1928, %v1931
        %v1933 = vrot.slane %v1932, 4
        %v1935 = vshll.u32 %v1539, 16
        %v1937 = vrot.slane %v1935, 5
        %v1938 = vsel %vm1672, %v1933, %v1937
        %v1940 = vshrl.u32 %v1540, 16
        %v1942 = vrot.slane %v1940, 4
        %v1943 = vshll.u32 %v1540, 16
        %v1945 = vrot.slane %v1943, 5
        %v1946 = vor.u32 %v1942, %v1945
        %v1947 = vrot.slane %v1946, 4
        %v1949 = vshll.u32 %v1541, 16
        %v1951 = vrot.slane %v1949, 5
        %v1952 = vsel %vm1672, %v1947, %v1951
        %v1954 = vshrl.u32 %v1542, 16
        %v1956 = vrot.slane %v1954, 4
        %v1957 = vshll.u32 %v1542, 16
        %v1959 = vrot.slane %v1957, 5
        %v1960 = vor.u32 %v1956, %v1959
        %v1961 = vrot.slane %v1960, 4
        %v1963 = vshll.u32 %v1543, 16
        %v1965 = vrot.slane %v1963, 5
        %v1966 = vsel %vm1672, %v1961, %v1965
        %v1968 = vshrl.u32 %v1544, 16
        %v1970 = vrot.slane %v1968, 4
        %v1971 = vshll.u32 %v1544, 16
        %v1973 = vrot.slane %v1971, 5
        %v1974 = vor.u32 %v1970, %v1973
        %v1975 = vrot.slane %v1974, 4
        %v1977 = vshll.u32 %v1545, 16
        %v1979 = vrot.slane %v1977, 5
        %v1980 = vsel %vm1672, %v1975, %v1979
        %v1982 = vshrl.u32 %v1546, 16
        %v1984 = vrot.slane %v1982, 4
        %v1985 = vshll.u32 %v1546, 16
        %v1987 = vrot.slane %v1985, 5
        %v1988 = vor.u32 %v1984, %v1987
        %v1989 = vrot.slane %v1988, 4
        %v1991 = vshll.u32 %v1547, 16
        %v1993 = vrot.slane %v1991, 5
        %v1994 = vsel %vm1672, %v1989, %v1993
        %v1996 = vshrl.u32 %v1548, 16
        %v1998 = vrot.slane %v1996, 4
        %v1999 = vshll.u32 %v1548, 16
        %v2001 = vrot.slane %v1999, 5
        %v2002 = vor.u32 %v1998, %v2001
        %v2003 = vrot.slane %v2002, 4
        %v2005 = vshll.u32 %v1549, 16
        %v2007 = vrot.slane %v2005, 5
        %v2008 = vsel %vm1672, %v2003, %v2007
        %v2010 = vshrl.u32 %v1554, 16
        %v2012 = vrot.slane %v2010, 4
        %v2013 = vshll.u32 %v1554, 16
        %v2015 = vrot.slane %v2013, 5
        %v2016 = vor.u32 %v2012, %v2015
        %v2017 = vrot.slane %v2016, 4
        %v2019 = vshll.u32 %v1555, 16
        %v2021 = vrot.slane %v2019, 5
        %v2022 = vsel %vm1672, %v2017, %v2021
        %v2024 = vshrl.u32 %v1556, 16
        %v2026 = vrot.slane %v2024, 4
        %v2027 = vshll.u32 %v1556, 16
        %v2029 = vrot.slane %v2027, 5
        %v2030 = vor.u32 %v2026, %v2029
        %v2031 = vrot.slane %v2030, 4
        %v2033 = vshll.u32 %v1557, 16
        %v2035 = vrot.slane %v2033, 5
        %v2036 = vsel %vm1672, %v2031, %v2035
        %v2038 = vshrl.u32 %v1558, 16
        %v2040 = vrot.slane %v2038, 4
        %v2041 = vshll.u32 %v1558, 16
        %v2043 = vrot.slane %v2041, 5
        %v2044 = vor.u32 %v2040, %v2043
        %v2045 = vrot.slane %v2044, 4
        %v2047 = vshll.u32 %v1559, 16
        %v2049 = vrot.slane %v2047, 5
        %v2050 = vsel %vm1672, %v2045, %v2049
        %v2052 = vshrl.u32 %v1560, 16
        %v2054 = vrot.slane %v2052, 4
        %v2055 = vshll.u32 %v1560, 16
        %v2057 = vrot.slane %v2055, 5
        %v2058 = vor.u32 %v2054, %v2057
        %v2059 = vrot.slane %v2058, 4
        %v2061 = vshll.u32 %v1561, 16
        %v2063 = vrot.slane %v2061, 5
        %v2064 = vsel %vm1672, %v2059, %v2063
        %v2066 = vshrl.u32 %v1562, 16
        %v2068 = vrot.slane %v2066, 4
        %v2069 = vshll.u32 %v1562, 16
        %v2071 = vrot.slane %v2069, 5
        %v2072 = vor.u32 %v2068, %v2071
        %v2073 = vrot.slane %v2072, 4
        %v2075 = vshll.u32 %v1563, 16
        %v2077 = vrot.slane %v2075, 5
        %v2078 = vsel %vm1672, %v2073, %v2077
        %v2080 = vshrl.u32 %v1564, 16
        %v2082 = vrot.slane %v2080, 4
        %v2083 = vshll.u32 %v1564, 16
        %v2085 = vrot.slane %v2083, 5
        %v2086 = vor.u32 %v2082, %v2085
        %v2087 = vrot.slane %v2086, 4
        %v2089 = vshll.u32 %v1565, 16
        %v2091 = vrot.slane %v2089, 5
        %v2092 = vsel %vm1672, %v2087, %v2091
        %v2094 = vshrl.u32 %v1566, 16
        %v2096 = vrot.slane %v2094, 4
        %v2097 = vshll.u32 %v1566, 16
        %v2099 = vrot.slane %v2097, 5
        %v2100 = vor.u32 %v2096, %v2099
        %v2101 = vrot.slane %v2100, 4
        %v2103 = vshll.u32 %v1567, 16
        %v2105 = vrot.slane %v2103, 5
        %v2106 = vsel %vm1672, %v2101, %v2105
        %v2108 = vshrl.u32 %v1568, 16
        %v2110 = vrot.slane %v2108, 4
        %v2111 = vshll.u32 %v1568, 16
        %v2113 = vrot.slane %v2111, 5
        %v2114 = vor.u32 %v2110, %v2113
        %v2115 = vrot.slane %v2114, 4
        %v2117 = vshll.u32 %v1569, 16
        %v2119 = vrot.slane %v2117, 5
        %v2120 = vsel %vm1672, %v2115, %v2119
        %v2122 = vshrl.u32 %v1574, 16
        %v2124 = vrot.slane %v2122, 4
        %v2125 = vshll.u32 %v1574, 16
        %v2127 = vrot.slane %v2125, 5
        %v2128 = vor.u32 %v2124, %v2127
        %v2129 = vrot.slane %v2128, 4
        %v2131 = vshll.u32 %v1575, 16
        %v2133 = vrot.slane %v2131, 5
        %v2134 = vsel %vm1672, %v2129, %v2133
        %v2136 = vshrl.u32 %v1576, 16
        %v2138 = vrot.slane %v2136, 4
        %v2139 = vshll.u32 %v1576, 16
        %v2141 = vrot.slane %v2139, 5
        %v2142 = vor.u32 %v2138, %v2141
        %v2143 = vrot.slane %v2142, 4
        %v2145 = vshll.u32 %v1577, 16
        %v2147 = vrot.slane %v2145, 5
        %v2148 = vsel %vm1672, %v2143, %v2147
        %v2150 = vshrl.u32 %v1578, 16
        %v2152 = vrot.slane %v2150, 4
        %v2153 = vshll.u32 %v1578, 16
        %v2155 = vrot.slane %v2153, 5
        %v2156 = vor.u32 %v2152, %v2155
        %v2157 = vrot.slane %v2156, 4
        %v2159 = vshll.u32 %v1579, 16
        %v2161 = vrot.slane %v2159, 5
        %v2162 = vsel %vm1672, %v2157, %v2161
        %v2164 = vshrl.u32 %v1580, 16
        %v2166 = vrot.slane %v2164, 4
        %v2167 = vshll.u32 %v1580, 16
        %v2169 = vrot.slane %v2167, 5
        %v2170 = vor.u32 %v2166, %v2169
        %v2171 = vrot.slane %v2170, 4
        %v2173 = vshll.u32 %v1581, 16
        %v2175 = vrot.slane %v2173, 5
        %v2176 = vsel %vm1672, %v2171, %v2175
        %v2178 = vshrl.u32 %v1582, 16
        %v2180 = vrot.slane %v2178, 4
        %v2181 = vshll.u32 %v1582, 16
        %v2183 = vrot.slane %v2181, 5
        %v2184 = vor.u32 %v2180, %v2183
        %v2185 = vrot.slane %v2184, 4
        %v2187 = vshll.u32 %v1583, 16
        %v2189 = vrot.slane %v2187, 5
        %v2190 = vsel %vm1672, %v2185, %v2189
        %v2192 = vshrl.u32 %v1584, 16
        %v2194 = vrot.slane %v2192, 4
        %v2195 = vshll.u32 %v1584, 16
        %v2197 = vrot.slane %v2195, 5
        %v2198 = vor.u32 %v2194, %v2197
        %v2199 = vrot.slane %v2198, 4
        %v2201 = vshll.u32 %v1585, 16
        %v2203 = vrot.slane %v2201, 5
        %v2204 = vsel %vm1672, %v2199, %v2203
        %v2206 = vshrl.u32 %v1586, 16
        %v2208 = vrot.slane %v2206, 4
        %v2209 = vshll.u32 %v1586, 16
        %v2211 = vrot.slane %v2209, 5
        %v2212 = vor.u32 %v2208, %v2211
        %v2213 = vrot.slane %v2212, 4
        %v2215 = vshll.u32 %v1587, 16
        %v2217 = vrot.slane %v2215, 5
        %v2218 = vsel %vm1672, %v2213, %v2217
        %v2220 = vshrl.u32 %v1588, 16
        %v2222 = vrot.slane %v2220, 4
        %v2223 = vshll.u32 %v1588, 16
        %v2225 = vrot.slane %v2223, 5
        %v2226 = vor.u32 %v2222, %v2225
        %v2227 = vrot.slane %v2226, 4
        %v2229 = vshll.u32 %v1589, 16
        %v2231 = vrot.slane %v2229, 5
        %v2232 = vsel %vm1672, %v2227, %v2231
        %v2234 = vshrl.u32 %v1594, 16
        %v2236 = vrot.slane %v2234, 4
        %v2237 = vshll.u32 %v1594, 16
        %v2239 = vrot.slane %v2237, 5
        %v2240 = vor.u32 %v2236, %v2239
        %v2241 = vrot.slane %v2240, 4
        %v2243 = vshll.u32 %v1595, 16
        %v2245 = vrot.slane %v2243, 5
        %v2246 = vsel %vm1672, %v2241, %v2245
        %v2248 = vshrl.u32 %v1596, 16
        %v2250 = vrot.slane %v2248, 4
        %v2251 = vshll.u32 %v1596, 16
        %v2253 = vrot.slane %v2251, 5
        %v2254 = vor.u32 %v2250, %v2253
        %v2255 = vrot.slane %v2254, 4
        %v2257 = vshll.u32 %v1597, 16
        %v2259 = vrot.slane %v2257, 5
        %v2260 = vsel %vm1672, %v2255, %v2259
        %v2262 = vshrl.u32 %v1598, 16
        %v2264 = vrot.slane %v2262, 4
        %v2265 = vshll.u32 %v1598, 16
        %v2267 = vrot.slane %v2265, 5
        %v2268 = vor.u32 %v2264, %v2267
        %v2269 = vrot.slane %v2268, 4
        %v2271 = vshll.u32 %v1599, 16
        %v2273 = vrot.slane %v2271, 5
        %v2274 = vsel %vm1672, %v2269, %v2273
        %v2276 = vshrl.u32 %v1600, 16
        %v2278 = vrot.slane %v2276, 4
        %v2279 = vshll.u32 %v1600, 16
        %v2281 = vrot.slane %v2279, 5
        %v2282 = vor.u32 %v2278, %v2281
        %v2283 = vrot.slane %v2282, 4
        %v2285 = vshll.u32 %v1601, 16
        %v2287 = vrot.slane %v2285, 5
        %v2288 = vsel %vm1672, %v2283, %v2287
        %v2290 = vshrl.u32 %v1602, 16
        %v2292 = vrot.slane %v2290, 4
        %v2293 = vshll.u32 %v1602, 16
        %v2295 = vrot.slane %v2293, 5
        %v2296 = vor.u32 %v2292, %v2295
        %v2297 = vrot.slane %v2296, 4
        %v2299 = vshll.u32 %v1603, 16
        %v2301 = vrot.slane %v2299, 5
        %v2302 = vsel %vm1672, %v2297, %v2301
        %v2304 = vshrl.u32 %v1604, 16
        %v2306 = vrot.slane %v2304, 4
        %v2307 = vshll.u32 %v1604, 16
        %v2309 = vrot.slane %v2307, 5
        %v2310 = vor.u32 %v2306, %v2309
        %v2311 = vrot.slane %v2310, 4
        %v2313 = vshll.u32 %v1605, 16
        %v2315 = vrot.slane %v2313, 5
        %v2316 = vsel %vm1672, %v2311, %v2315
        %v2318 = vshrl.u32 %v1606, 16
        %v2320 = vrot.slane %v2318, 4
        %v2321 = vshll.u32 %v1606, 16
        %v2323 = vrot.slane %v2321, 5
        %v2324 = vor.u32 %v2320, %v2323
        %v2325 = vrot.slane %v2324, 4
        %v2327 = vshll.u32 %v1607, 16
        %v2329 = vrot.slane %v2327, 5
        %v2330 = vsel %vm1672, %v2325, %v2329
        %v2332 = vshrl.u32 %v1608, 16
        %v2334 = vrot.slane %v2332, 4
        %v2335 = vshll.u32 %v1608, 16
        %v2337 = vrot.slane %v2335, 5
        %v2338 = vor.u32 %v2334, %v2337
        %v2339 = vrot.slane %v2338, 4
        %v2341 = vshll.u32 %v1609, 16
        %v2343 = vrot.slane %v2341, 5
        %v2344 = vsel %vm1672, %v2339, %v2343
        %v2346 = vshrl.u32 %v1614, 16
        %v2348 = vrot.slane %v2346, 4
        %v2349 = vshll.u32 %v1614, 16
        %v2351 = vrot.slane %v2349, 5
        %v2352 = vor.u32 %v2348, %v2351
        %v2353 = vrot.slane %v2352, 4
        %v2355 = vshll.u32 %v1615, 16
        %v2357 = vrot.slane %v2355, 5
        %v2358 = vsel %vm1672, %v2353, %v2357
        %v2360 = vshrl.u32 %v1616, 16
        %v2362 = vrot.slane %v2360, 4
        %v2363 = vshll.u32 %v1616, 16
        %v2365 = vrot.slane %v2363, 5
        %v2366 = vor.u32 %v2362, %v2365
        %v2367 = vrot.slane %v2366, 4
        %v2369 = vshll.u32 %v1617, 16
        %v2371 = vrot.slane %v2369, 5
        %v2372 = vsel %vm1672, %v2367, %v2371
        %v2374 = vshrl.u32 %v1618, 16
        %v2376 = vrot.slane %v2374, 4
        %v2377 = vshll.u32 %v1618, 16
        %v2379 = vrot.slane %v2377, 5
        %v2380 = vor.u32 %v2376, %v2379
        %v2381 = vrot.slane %v2380, 4
        %v2383 = vshll.u32 %v1619, 16
        %v2385 = vrot.slane %v2383, 5
        %v2386 = vsel %vm1672, %v2381, %v2385
        %v2388 = vshrl.u32 %v1620, 16
        %v2390 = vrot.slane %v2388, 4
        %v2391 = vshll.u32 %v1620, 16
        %v2393 = vrot.slane %v2391, 5
        %v2394 = vor.u32 %v2390, %v2393
        %v2395 = vrot.slane %v2394, 4
        %v2397 = vshll.u32 %v1621, 16
        %v2399 = vrot.slane %v2397, 5
        %v2400 = vsel %vm1672, %v2395, %v2399
        %v2402 = vshrl.u32 %v1622, 16
        %v2404 = vrot.slane %v2402, 4
        %v2405 = vshll.u32 %v1622, 16
        %v2407 = vrot.slane %v2405, 5
        %v2408 = vor.u32 %v2404, %v2407
        %v2409 = vrot.slane %v2408, 4
        %v2411 = vshll.u32 %v1623, 16
        %v2413 = vrot.slane %v2411, 5
        %v2414 = vsel %vm1672, %v2409, %v2413
        %v2416 = vshrl.u32 %v1624, 16
        %v2418 = vrot.slane %v2416, 4
        %v2419 = vshll.u32 %v1624, 16
        %v2421 = vrot.slane %v2419, 5
        %v2422 = vor.u32 %v2418, %v2421
        %v2423 = vrot.slane %v2422, 4
        %v2425 = vshll.u32 %v1625, 16
        %v2427 = vrot.slane %v2425, 5
        %v2428 = vsel %vm1672, %v2423, %v2427
        %v2430 = vshrl.u32 %v1626, 16
        %v2432 = vrot.slane %v2430, 4
        %v2433 = vshll.u32 %v1626, 16
        %v2435 = vrot.slane %v2433, 5
        %v2436 = vor.u32 %v2432, %v2435
        %v2437 = vrot.slane %v2436, 4
        %v2439 = vshll.u32 %v1627, 16
        %v2441 = vrot.slane %v2439, 5
        %v2442 = vsel %vm1672, %v2437, %v2441
        %v2444 = vshrl.u32 %v1628, 16
        %v2446 = vrot.slane %v2444, 4
        %v2447 = vshll.u32 %v1628, 16
        %v2449 = vrot.slane %v2447, 5
        %v2450 = vor.u32 %v2446, %v2449
        %v2451 = vrot.slane %v2450, 4
        %v2453 = vshll.u32 %v1629, 16
        %v2455 = vrot.slane %v2453, 5
        %v2456 = vsel %vm1672, %v2451, %v2455
        %v2458 = vshrl.u32 %v1634, 16
        %v2460 = vrot.slane %v2458, 4
        %v2461 = vshll.u32 %v1634, 16
        %v2463 = vrot.slane %v2461, 5
        %v2464 = vor.u32 %v2460, %v2463
        %v2465 = vrot.slane %v2464, 4
        %v2467 = vshll.u32 %v1635, 16
        %v2469 = vrot.slane %v2467, 5
        %v2470 = vsel %vm1672, %v2465, %v2469
        %v2472 = vshrl.u32 %v1636, 16
        %v2474 = vrot.slane %v2472, 4
        %v2475 = vshll.u32 %v1636, 16
        %v2477 = vrot.slane %v2475, 5
        %v2478 = vor.u32 %v2474, %v2477
        %v2479 = vrot.slane %v2478, 4
        %v2481 = vshll.u32 %v1637, 16
        %v2483 = vrot.slane %v2481, 5
        %v2484 = vsel %vm1672, %v2479, %v2483
        %v2486 = vshrl.u32 %v1638, 16
        %v2488 = vrot.slane %v2486, 4
        %v2489 = vshll.u32 %v1638, 16
        %v2491 = vrot.slane %v2489, 5
        %v2492 = vor.u32 %v2488, %v2491
        %v2493 = vrot.slane %v2492, 4
        %v2495 = vshll.u32 %v1639, 16
        %v2497 = vrot.slane %v2495, 5
        %v2498 = vsel %vm1672, %v2493, %v2497
        %v2500 = vshrl.u32 %v1640, 16
        %v2502 = vrot.slane %v2500, 4
        %v2503 = vshll.u32 %v1640, 16
        %v2505 = vrot.slane %v2503, 5
        %v2506 = vor.u32 %v2502, %v2505
        %v2507 = vrot.slane %v2506, 4
        %v2509 = vshll.u32 %v1641, 16
        %v2511 = vrot.slane %v2509, 5
        %v2512 = vsel %vm1672, %v2507, %v2511
        %v2514 = vshrl.u32 %v1642, 16
        %v2516 = vrot.slane %v2514, 4
        %v2517 = vshll.u32 %v1642, 16
        %v2519 = vrot.slane %v2517, 5
        %v2520 = vor.u32 %v2516, %v2519
        %v2521 = vrot.slane %v2520, 4
        %v2523 = vshll.u32 %v1643, 16
        %v2525 = vrot.slane %v2523, 5
        %v2526 = vsel %vm1672, %v2521, %v2525
        %v2528 = vshrl.u32 %v1644, 16
        %v2530 = vrot.slane %v2528, 4
        %v2531 = vshll.u32 %v1644, 16
        %v2533 = vrot.slane %v2531, 5
        %v2534 = vor.u32 %v2530, %v2533
        %v2535 = vrot.slane %v2534, 4
        %v2537 = vshll.u32 %v1645, 16
        %v2539 = vrot.slane %v2537, 5
        %v2540 = vsel %vm1672, %v2535, %v2539
        %v2542 = vshrl.u32 %v1646, 16
        %v2544 = vrot.slane %v2542, 4
        %v2545 = vshll.u32 %v1646, 16
        %v2547 = vrot.slane %v2545, 5
        %v2548 = vor.u32 %v2544, %v2547
        %v2549 = vrot.slane %v2548, 4
        %v2551 = vshll.u32 %v1647, 16
        %v2553 = vrot.slane %v2551, 5
        %v2554 = vsel %vm1672, %v2549, %v2553
        %v2556 = vshrl.u32 %v1648, 16
        %v2558 = vrot.slane %v2556, 4
        %v2559 = vshll.u32 %v1648, 16
        %v2561 = vrot.slane %v2559, 5
        %v2562 = vor.u32 %v2558, %v2561
        %v2563 = vrot.slane %v2562, 4
        %v2565 = vshll.u32 %v1649, 16
        %v2567 = vrot.slane %v2565, 5
        %v2568 = vsel %vm1672, %v2563, %v2567
        %s2569 = scalar_lea.vmem %s208, 64 [#allocation6]
        %v2570 = vld [vmem:[%s2569] sm:$0xf]
        %v2571 = vld [vmem:[%s2569 + $0x4] sm:$0xf]
        %v2572 = vld [vmem:[%s2569 + $0x8] sm:$0xf]
        %v2573 = vld [vmem:[%s2569 + $0xc] sm:$0xf]
        %v2574 = vld [vmem:[%s2569 + $0x10] sm:$0xf]
        %v2575 = vld [vmem:[%s2569 + $0x14] sm:$0xf]
        %v2576 = vld [vmem:[%s2569 + $0x18] sm:$0xf]
        %v2577 = vld [vmem:[%s2569 + $0x1c] sm:$0xf]
        %v2578 = vld [vmem:[%s2569 + $0x20] sm:$0xf]
        %v2579 = vld [vmem:[%s2569 + $0x24] sm:$0xf]
        %v2580 = vld [vmem:[%s2569 + $0x28] sm:$0xf]
        %v2581 = vld [vmem:[%s2569 + $0x2c] sm:$0xf]
        %v2582 = vld [vmem:[%s2569 + $0x30] sm:$0xf]
        %v2583 = vld [vmem:[%s2569 + $0x34] sm:$0xf]
        %v2584 = vld [vmem:[%s2569 + $0x38] sm:$0xf]
        %v2585 = vld [vmem:[%s2569 + $0x3c] sm:$0xf]
        %v2586 = vunpack.c.l.b16 %v1686
        %v2587 = vunpack.c.l.b16 %v1700
        %v2588 = vunpack.c.l.b16 %v1714
        %v2589 = vunpack.c.l.b16 %v1728
        %v2590 = vunpack.c.l.b16 %v1742
        %v2591 = vunpack.c.l.b16 %v1756
        %v2592 = vunpack.c.l.b16 %v1770
        %v2593 = vunpack.c.l.b16 %v1784
        %v2594 = vunpack.c.l.b16 %v1798
        %v2595 = vunpack.c.l.b16 %v1812
        %v2596 = vunpack.c.l.b16 %v1826
        %v2597 = vunpack.c.l.b16 %v1840
        %v2598 = vunpack.c.l.b16 %v1854
        %v2599 = vunpack.c.l.b16 %v1868
        %v2600 = vunpack.c.l.b16 %v1882
        %v2601 = vunpack.c.l.b16 %v1896
        %v2602 = vunpack.c.l.b16 %v1910
        %v2603 = vunpack.c.l.b16 %v1924
        %v2604 = vunpack.c.l.b16 %v1938
        %v2605 = vunpack.c.l.b16 %v1952
        %v2606 = vunpack.c.l.b16 %v1966
        %v2607 = vunpack.c.l.b16 %v1980
        %v2608 = vunpack.c.l.b16 %v1994
        %v2609 = vunpack.c.l.b16 %v2008
        %v2610 = vunpack.c.l.b16 %v2022
        %v2611 = vunpack.c.l.b16 %v2036
        %v2612 = vunpack.c.l.b16 %v2050
        %v2613 = vunpack.c.l.b16 %v2064
        %v2614 = vunpack.c.l.b16 %v2078
        %v2615 = vunpack.c.l.b16 %v2092
        %v2616 = vunpack.c.l.b16 %v2106
        %v2617 = vunpack.c.l.b16 %v2120
        %v2618 = vunpack.c.l.b16 %v2134
        %v2619 = vunpack.c.l.b16 %v2148
        %v2620 = vunpack.c.l.b16 %v2162
        %v2621 = vunpack.c.l.b16 %v2176
        %v2622 = vunpack.c.l.b16 %v2190
        %v2623 = vunpack.c.l.b16 %v2204
        %v2624 = vunpack.c.l.b16 %v2218
        %v2625 = vunpack.c.l.b16 %v2232
        %v2626 = vunpack.c.l.b16 %v2246
        %v2627 = vunpack.c.l.b16 %v2260
        %v2628 = vunpack.c.l.b16 %v2274
        %v2629 = vunpack.c.l.b16 %v2288
        %v2630 = vunpack.c.l.b16 %v2302
        %v2631 = vunpack.c.l.b16 %v2316
        %v2632 = vunpack.c.l.b16 %v2330
        %v2633 = vunpack.c.l.b16 %v2344
        %v2634 = vunpack.c.l.b16 %v2358
        %v2635 = vunpack.c.l.b16 %v2372
        %v2636 = vunpack.c.l.b16 %v2386
        %v2637 = vunpack.c.l.b16 %v2400
        %v2638 = vunpack.c.l.b16 %v2414
        %v2639 = vunpack.c.l.b16 %v2428
        %v2640 = vunpack.c.l.b16 %v2442
        %v2641 = vunpack.c.l.b16 %v2456
        %v2642 = vunpack.c.l.b16 %v2470
        %v2643 = vunpack.c.l.b16 %v2484
        %v2644 = vunpack.c.l.b16 %v2498
        %v2645 = vunpack.c.l.b16 %v2512
        %v2646 = vunpack.c.l.b16 %v2526
        %v2647 = vunpack.c.l.b16 %v2540
        %v2648 = vunpack.c.l.b16 %v2554
        %v2649 = vunpack.c.l.b16 %v2568
        %v2650 = vpack.c.b16 %v2587, %v2586
        %v2651 = vpack.c.b16 %v2589, %v2588
        %v2652 = vpack.c.b16 %v2591, %v2590
        %v2653 = vpack.c.b16 %v2593, %v2592
        %v2654 = vpack.c.b16 %v2595, %v2594
        %v2655 = vpack.c.b16 %v2597, %v2596
        %v2656 = vpack.c.b16 %v2599, %v2598
        %v2657 = vpack.c.b16 %v2601, %v2600
        %v2658 = vpack.c.b16 %v2603, %v2602
        %v2659 = vpack.c.b16 %v2605, %v2604
        %v2660 = vpack.c.b16 %v2607, %v2606
        %v2661 = vpack.c.b16 %v2609, %v2608
        %v2662 = vpack.c.b16 %v2611, %v2610
        %v2663 = vpack.c.b16 %v2613, %v2612
        %v2664 = vpack.c.b16 %v2615, %v2614
        %v2665 = vpack.c.b16 %v2617, %v2616
        %v2666 = vpack.c.b16 %v2619, %v2618
        %v2667 = vpack.c.b16 %v2621, %v2620
        %v2668 = vpack.c.b16 %v2623, %v2622
        %v2669 = vpack.c.b16 %v2625, %v2624
        %v2670 = vpack.c.b16 %v2627, %v2626
        %v2671 = vpack.c.b16 %v2629, %v2628
        %v2672 = vpack.c.b16 %v2631, %v2630
        %v2673 = vpack.c.b16 %v2633, %v2632
        %v2674 = vpack.c.b16 %v2635, %v2634
        %v2675 = vpack.c.b16 %v2637, %v2636
        %v2676 = vpack.c.b16 %v2639, %v2638
        %v2677 = vpack.c.b16 %v2641, %v2640
        %v2678 = vpack.c.b16 %v2643, %v2642
        %v2679 = vpack.c.b16 %v2645, %v2644
        %v2680 = vpack.c.b16 %v2647, %v2646
        %v2681 = vpack.c.b16 %v2649, %v2648
        %v2730 = vunpack.c.l.b16 %v2570
        %v2731 = vunpack.c.l.b16 %v2571
        %v2732 = vunpack.c.l.b16 %v2572
        %v2733 = vunpack.c.l.b16 %v2573
        %v2734 = vunpack.c.l.b16 %v2574
        %v2735 = vunpack.c.l.b16 %v2575
        %v2736 = vunpack.c.l.b16 %v2576
        %v2737 = vunpack.c.l.b16 %v2577
        %v2738 = vunpack.c.l.b16 %v2578
        %v2739 = vunpack.c.l.b16 %v2579
        %v2740 = vunpack.c.l.b16 %v2580
        %v2741 = vunpack.c.l.b16 %v2581
        %v2742 = vunpack.c.l.b16 %v2582
        %v2743 = vunpack.c.l.b16 %v2583
        %v2744 = vunpack.c.l.b16 %v2584
        %v2745 = vunpack.c.l.b16 %v2585
        %v2746 = vpack.c.b16 %v2731, %v2730
        %v2747 = vpack.c.b16 %v2733, %v2732
        %v2748 = vpack.c.b16 %v2735, %v2734
        %v2749 = vpack.c.b16 %v2737, %v2736
        %v2750 = vpack.c.b16 %v2739, %v2738
        %v2751 = vpack.c.b16 %v2741, %v2740
        %v2752 = vpack.c.b16 %v2743, %v2742
        %v2753 = vpack.c.b16 %v2745, %v2744
        %2762 = vmatprep.subr.bf16.mxu0 0
        %2763 = vmatpush1.bf16.msra.mxu0 %v2746
        %2764 = vmatprep.subr.bf16.mxu0 0
        %2765 = vmatpush1.bf16.msra.mxu0 %v2747
        %2766 = vmatprep.subr.bf16.mxu0 0
        %2767 = vmatpush1.bf16.msra.mxu0 %v2748
        %2768 = vmatprep.subr.bf16.mxu0 0
        %2769 = vmatpush1.bf16.msra.mxu0 %v2749
        %2770 = vmatprep.subr.bf16.mxu0 0
        %2771 = vmatpush1.bf16.msra.mxu0 %v2750
        %2772 = vmatprep.subr.bf16.mxu0 0
        %2773 = vmatpush1.bf16.msra.mxu0 %v2751
        %2774 = vmatprep.subr.bf16.mxu0 0
        %2775 = vmatpush1.bf16.msra.mxu0 %v2752
        %2776 = vmatprep.subr.bf16.mxu0 0
        %2777 = vmatpush1.bf16.msra.mxu0 %v2753
        %2778 = vmatprep.subr.bf16.mxu0 0
        %2779 = vmatpush1.bf16.msra.mxu0 0
        %2780 = vmatprep.subr.bf16.mxu0 0
        %2781 = vmatpush1.bf16.msra.mxu0 0
        %2782 = vmatprep.subr.bf16.mxu0 0
        %2783 = vmatpush1.bf16.msra.mxu0 0
        %2784 = vmatprep.subr.bf16.mxu0 0
        %2785 = vmatpush1.bf16.msra.mxu0 0
        %2786 = vmatprep.subr.bf16.mxu0 0
        %2787 = vmatpush1.bf16.msra.mxu0 0
        %2788 = vmatprep.subr.bf16.mxu0 0
        %2789 = vmatpush1.bf16.msra.mxu0 0
        %2790 = vmatprep.subr.bf16.mxu0 0
        %2791 = vmatpush1.bf16.msra.mxu0 0
        %2792 = vmatprep.subr.bf16.mxu0 0
        %2793 = vmatpush1.bf16.msra.mxu0 0
        %2794 = vmatprep.mubr.bf16.mxu0 0
        %2795 = vmatmul.mubr.bf16.gmra.mrb[0].mxu0 %v2650
        %v2796 = vpop.f32.mrb[0].mxu0
        %v2797 = vadd.f32 0.0, %v2796
        %v2798 = vpop.f32.mrb[0].mxu0
        %v2799 = vpop.f32.mrb[0].mxu0
        %v2800 = vadd.f32 0.0, %v2799
        %v2801 = vpop.f32.mrb[0].mxu0
        %2802 = vmatprep.mubr.bf16.mxu0 0
        %2803 = vmatmul.mubr.bf16.gmra.mrb[0].mxu0 %v2651
        %v2804 = vpop.f32.mrb[0].mxu0
        %v2805 = vadd.f32 0.0, %v2804
        %v2806 = vpop.f32.mrb[0].mxu0
        %v2807 = vpop.f32.mrb[0].mxu0
        %v2808 = vadd.f32 0.0, %v2807
        %v2809 = vpop.f32.mrb[0].mxu0
        %2810 = vmatprep.mubr.bf16.mxu0 0
        %2811 = vmatmul.mubr.bf16.gmra.mrb[0].mxu0 %v2652
        %v2812 = vpop.f32.mrb[0].mxu0
        %v2813 = vadd.f32 0.0, %v2812
        %v2814 = vpop.f32.mrb[0].mxu0
        %v2815 = vpop.f32.mrb[0].mxu0
        %v2816 = vadd.f32 0.0, %v2815
        %v2817 = vpop.f32.mrb[0].mxu0
        %2818 = vmatprep.mubr.bf16.mxu0 0
        %2819 = vmatmul.mubr.bf16.gmra.mrb[0].mxu0 %v2653
        %v2820 = vpop.f32.mrb[0].mxu0
        %v2821 = vadd.f32 0.0, %v2820
        %v2822 = vpop.f32.mrb[0].mxu0
        %v2823 = vpop.f32.mrb[0].mxu0
        %v2824 = vadd.f32 0.0, %v2823
        %v2825 = vpop.f32.mrb[0].mxu0
        %2826 = vmatprep.mubr.bf16.mxu0 0
        %2827 = vmatmul.mubr.bf16.gmra.mrb[0].mxu0 %v2654
        %v2828 = vpop.f32.mrb[0].mxu0
        %v2829 = vadd.f32 0.0, %v2828
        %v2830 = vpop.f32.mrb[0].mxu0
        %v2831 = vpop.f32.mrb[0].mxu0
        %v2832 = vadd.f32 0.0, %v2831
        %v2833 = vpop.f32.mrb[0].mxu0
        %2834 = vmatprep.mubr.bf16.mxu0 0
        %2835 = vmatmul.mubr.bf16.gmra.mrb[0].mxu0 %v2655
        %v2836 = vpop.f32.mrb[0].mxu0
        %v2837 = vadd.f32 0.0, %v2836
        %v2838 = vpop.f32.mrb[0].mxu0
        %v2839 = vpop.f32.mrb[0].mxu0
        %v2840 = vadd.f32 0.0, %v2839
        %v2841 = vpop.f32.mrb[0].mxu0
        %2842 = vmatprep.mubr.bf16.mxu0 0
        %2843 = vmatmul.mubr.bf16.gmra.mrb[0].mxu0 %v2656
        %v2844 = vpop.f32.mrb[0].mxu0
        %v2845 = vadd.f32 0.0, %v2844
        %v2846 = vpop.f32.mrb[0].mxu0
        %v2847 = vpop.f32.mrb[0].mxu0
        %v2848 = vadd.f32 0.0, %v2847
        %v2849 = vpop.f32.mrb[0].mxu0
        %2850 = vmatprep.mubr.bf16.mxu0 0
        %2851 = vmatmul.mubr.bf16.gmra.mrb[0].mxu0 %v2657
        %v2852 = vpop.f32.mrb[0].mxu0
        %v2853 = vadd.f32 0.0, %v2852
        %v2854 = vpop.f32.mrb[0].mxu0
        %v2855 = vpop.f32.mrb[0].mxu0
        %v2856 = vadd.f32 0.0, %v2855
        %v2857 = vpop.f32.mrb[0].mxu0
        %2858 = vmatprep.mubr.bf16.mxu0 0
        %2859 = vmatmul.mubr.bf16.gmra.mrb[0].mxu0 %v2658
        %v2860 = vpop.f32.mrb[0].mxu0
        %v2861 = vadd.f32 0.0, %v2860
        %v2862 = vpop.f32.mrb[0].mxu0
        %v2863 = vpop.f32.mrb[0].mxu0
        %v2864 = vadd.f32 0.0, %v2863
        %v2865 = vpop.f32.mrb[0].mxu0
        %2866 = vmatprep.mubr.bf16.mxu0 0
        %2867 = vmatmul.mubr.bf16.gmra.mrb[0].mxu0 %v2659
        %v2868 = vpop.f32.mrb[0].mxu0
        %v2869 = vadd.f32 0.0, %v2868
        %v2870 = vpop.f32.mrb[0].mxu0
        %v2871 = vpop.f32.mrb[0].mxu0
        %v2872 = vadd.f32 0.0, %v2871
        %v2873 = vpop.f32.mrb[0].mxu0
        %2874 = vmatprep.mubr.bf16.mxu0 0
        %2875 = vmatmul.mubr.bf16.gmra.mrb[0].mxu0 %v2660
        %v2876 = vpop.f32.mrb[0].mxu0
        %v2877 = vadd.f32 0.0, %v2876
        %v2878 = vpop.f32.mrb[0].mxu0
        %v2879 = vpop.f32.mrb[0].mxu0
        %v2880 = vadd.f32 0.0, %v2879
        %v2881 = vpop.f32.mrb[0].mxu0
        %2882 = vmatprep.mubr.bf16.mxu0 0
        %2883 = vmatmul.mubr.bf16.gmra.mrb[0].mxu0 %v2661
        %v2884 = vpop.f32.mrb[0].mxu0
        %v2885 = vadd.f32 0.0, %v2884
        %v2886 = vpop.f32.mrb[0].mxu0
        %v2887 = vpop.f32.mrb[0].mxu0
        %v2888 = vadd.f32 0.0, %v2887
        %v2889 = vpop.f32.mrb[0].mxu0
        %2890 = vmatprep.mubr.bf16.mxu0 0
        %2891 = vmatmul.mubr.bf16.gmra.mrb[0].mxu0 %v2662
        %v2892 = vpop.f32.mrb[0].mxu0
        %v2893 = vadd.f32 0.0, %v2892
        %v2894 = vpop.f32.mrb[0].mxu0
        %v2895 = vpop.f32.mrb[0].mxu0
        %v2896 = vadd.f32 0.0, %v2895
        %v2897 = vpop.f32.mrb[0].mxu0
        %2898 = vmatprep.mubr.bf16.mxu0 0
        %2899 = vmatmul.mubr.bf16.gmra.mrb[0].mxu0 %v2663
        %v2900 = vpop.f32.mrb[0].mxu0
        %v2901 = vadd.f32 0.0, %v2900
        %v2902 = vpop.f32.mrb[0].mxu0
        %v2903 = vpop.f32.mrb[0].mxu0
        %v2904 = vadd.f32 0.0, %v2903
        %v2905 = vpop.f32.mrb[0].mxu0
        %2906 = vmatprep.mubr.bf16.mxu0 0
        %2907 = vmatmul.mubr.bf16.gmra.mrb[0].mxu0 %v2664
        %v2908 = vpop.f32.mrb[0].mxu0
        %v2909 = vadd.f32 0.0, %v2908
        %v2910 = vpop.f32.mrb[0].mxu0
        %v2911 = vpop.f32.mrb[0].mxu0
        %v2912 = vadd.f32 0.0, %v2911
        %v2913 = vpop.f32.mrb[0].mxu0
        %2914 = vmatprep.mubr.bf16.mxu0 0
        %2915 = vmatmul.mubr.bf16.gmra.mrb[0].mxu0 %v2665
        %v2916 = vpop.f32.mrb[0].mxu0
        %v2917 = vadd.f32 0.0, %v2916
        %v2918 = vpop.f32.mrb[0].mxu0
        %v2919 = vpop.f32.mrb[0].mxu0
        %v2920 = vadd.f32 0.0, %v2919
        %v2921 = vpop.f32.mrb[0].mxu0
        %2922 = vmatprep.mubr.bf16.mxu0 0
        %2923 = vmatmul.mubr.bf16.gmra.mrb[0].mxu0 %v2666
        %v2924 = vpop.f32.mrb[0].mxu0
        %v2925 = vadd.f32 0.0, %v2924
        %v2926 = vpop.f32.mrb[0].mxu0
        %v2927 = vpop.f32.mrb[0].mxu0
        %v2928 = vadd.f32 0.0, %v2927
        %v2929 = vpop.f32.mrb[0].mxu0
        %2930 = vmatprep.mubr.bf16.mxu0 0
        %2931 = vmatmul.mubr.bf16.gmra.mrb[0].mxu0 %v2667
        %v2932 = vpop.f32.mrb[0].mxu0
        %v2933 = vadd.f32 0.0, %v2932
        %v2934 = vpop.f32.mrb[0].mxu0
        %v2935 = vpop.f32.mrb[0].mxu0
        %v2936 = vadd.f32 0.0, %v2935
        %v2937 = vpop.f32.mrb[0].mxu0
        %2938 = vmatprep.mubr.bf16.mxu0 0
        %2939 = vmatmul.mubr.bf16.gmra.mrb[0].mxu0 %v2668
        %v2940 = vpop.f32.mrb[0].mxu0
        %v2941 = vadd.f32 0.0, %v2940
        %v2942 = vpop.f32.mrb[0].mxu0
        %v2943 = vpop.f32.mrb[0].mxu0
        %v2944 = vadd.f32 0.0, %v2943
        %v2945 = vpop.f32.mrb[0].mxu0
        %2946 = vmatprep.mubr.bf16.mxu0 0
        %2947 = vmatmul.mubr.bf16.gmra.mrb[0].mxu0 %v2669
        %v2948 = vpop.f32.mrb[0].mxu0
        %v2949 = vadd.f32 0.0, %v2948
        %v2950 = vpop.f32.mrb[0].mxu0
        %v2951 = vpop.f32.mrb[0].mxu0
        %v2952 = vadd.f32 0.0, %v2951
        %v2953 = vpop.f32.mrb[0].mxu0
        %2954 = vmatprep.mubr.bf16.mxu0 0
        %2955 = vmatmul.mubr.bf16.gmra.mrb[0].mxu0 %v2670
        %v2956 = vpop.f32.mrb[0].mxu0
        %v2957 = vadd.f32 0.0, %v2956
        %v2958 = vpop.f32.mrb[0].mxu0
        %v2959 = vpop.f32.mrb[0].mxu0
        %v2960 = vadd.f32 0.0, %v2959
        %v2961 = vpop.f32.mrb[0].mxu0
        %2962 = vmatprep.mubr.bf16.mxu0 0
        %2963 = vmatmul.mubr.bf16.gmra.mrb[0].mxu0 %v2671
        %v2964 = vpop.f32.mrb[0].mxu0
        %v2965 = vadd.f32 0.0, %v2964
        %v2966 = vpop.f32.mrb[0].mxu0
        %v2967 = vpop.f32.mrb[0].mxu0
        %v2968 = vadd.f32 0.0, %v2967
        %v2969 = vpop.f32.mrb[0].mxu0
        %2970 = vmatprep.mubr.bf16.mxu0 0
        %2971 = vmatmul.mubr.bf16.gmra.mrb[0].mxu0 %v2672
        %v2972 = vpop.f32.mrb[0].mxu0
        %v2973 = vadd.f32 0.0, %v2972
        %v2974 = vpop.f32.mrb[0].mxu0
        %v2975 = vpop.f32.mrb[0].mxu0
        %v2976 = vadd.f32 0.0, %v2975
        %v2977 = vpop.f32.mrb[0].mxu0
        %2978 = vmatprep.mubr.bf16.mxu0 0
        %2979 = vmatmul.mubr.bf16.gmra.mrb[0].mxu0 %v2673
        %v2980 = vpop.f32.mrb[0].mxu0
        %v2981 = vadd.f32 0.0, %v2980
        %v2982 = vpop.f32.mrb[0].mxu0
        %v2983 = vpop.f32.mrb[0].mxu0
        %v2984 = vadd.f32 0.0, %v2983
        %v2985 = vpop.f32.mrb[0].mxu0
        %2986 = vmatprep.mubr.bf16.mxu0 0
        %2987 = vmatmul.mubr.bf16.gmra.mrb[0].mxu0 %v2674
        %v2988 = vpop.f32.mrb[0].mxu0
        %v2989 = vadd.f32 0.0, %v2988
        %v2990 = vpop.f32.mrb[0].mxu0
        %v2991 = vpop.f32.mrb[0].mxu0
        %v2992 = vadd.f32 0.0, %v2991
        %v2993 = vpop.f32.mrb[0].mxu0
        %2994 = vmatprep.mubr.bf16.mxu0 0
        %2995 = vmatmul.mubr.bf16.gmra.mrb[0].mxu0 %v2675
        %v2996 = vpop.f32.mrb[0].mxu0
        %v2997 = vadd.f32 0.0, %v2996
        %v2998 = vpop.f32.mrb[0].mxu0
        %v2999 = vpop.f32.mrb[0].mxu0
        %v3000 = vadd.f32 0.0, %v2999
        %v3001 = vpop.f32.mrb[0].mxu0
        %3002 = vmatprep.mubr.bf16.mxu0 0
        %3003 = vmatmul.mubr.bf16.gmra.mrb[0].mxu0 %v2676
        %v3004 = vpop.f32.mrb[0].mxu0
        %v3005 = vadd.f32 0.0, %v3004
        %v3006 = vpop.f32.mrb[0].mxu0
        %v3007 = vpop.f32.mrb[0].mxu0
        %v3008 = vadd.f32 0.0, %v3007
        %v3009 = vpop.f32.mrb[0].mxu0
        %3010 = vmatprep.mubr.bf16.mxu0 0
        %3011 = vmatmul.mubr.bf16.gmra.mrb[0].mxu0 %v2677
        %v3012 = vpop.f32.mrb[0].mxu0
        %v3013 = vadd.f32 0.0, %v3012
        %v3014 = vpop.f32.mrb[0].mxu0
        %v3015 = vpop.f32.mrb[0].mxu0
        %v3016 = vadd.f32 0.0, %v3015
        %v3017 = vpop.f32.mrb[0].mxu0
        %3018 = vmatprep.mubr.bf16.mxu0 0
        %3019 = vmatmul.mubr.bf16.gmra.mrb[0].mxu0 %v2678
        %v3020 = vpop.f32.mrb[0].mxu0
        %v3021 = vadd.f32 0.0, %v3020
        %v3022 = vpop.f32.mrb[0].mxu0
        %v3023 = vpop.f32.mrb[0].mxu0
        %v3024 = vadd.f32 0.0, %v3023
        %v3025 = vpop.f32.mrb[0].mxu0
        %3026 = vmatprep.mubr.bf16.mxu0 0
        %3027 = vmatmul.mubr.bf16.gmra.mrb[0].mxu0 %v2679
        %v3028 = vpop.f32.mrb[0].mxu0
        %v3029 = vadd.f32 0.0, %v3028
        %v3030 = vpop.f32.mrb[0].mxu0
        %v3031 = vpop.f32.mrb[0].mxu0
        %v3032 = vadd.f32 0.0, %v3031
        %v3033 = vpop.f32.mrb[0].mxu0
        %3034 = vmatprep.mubr.bf16.mxu0 0
        %3035 = vmatmul.mubr.bf16.gmra.mrb[0].mxu0 %v2680
        %v3036 = vpop.f32.mrb[0].mxu0
        %v3037 = vadd.f32 0.0, %v3036
        %v3038 = vpop.f32.mrb[0].mxu0
        %v3039 = vpop.f32.mrb[0].mxu0
        %v3040 = vadd.f32 0.0, %v3039
        %v3041 = vpop.f32.mrb[0].mxu0
        %3042 = vmatprep.mubr.bf16.mxu0 0
        %3043 = vmatmul.mubr.bf16.gmra.mrb[0].mxu0 %v2681
        %v3044 = vpop.f32.mrb[0].mxu0
        %v3045 = vadd.f32 0.0, %v3044
        %v3046 = vpop.f32.mrb[0].mxu0
        %v3047 = vpop.f32.mrb[0].mxu0
        %v3048 = vadd.f32 0.0, %v3047
        %v3049 = vpop.f32.mrb[0].mxu0
        %3050 = vdwg.mxu0
        %v3115 = vunpack.c.l.b16 %v1494
        %v3116 = vunpack.c.l.b16 %v1496
        %v3117 = vunpack.c.l.b16 %v1498
        %v3118 = vunpack.c.l.b16 %v1500
        %v3119 = vunpack.c.l.b16 %v1502
        %v3120 = vunpack.c.l.b16 %v1504
        %v3121 = vunpack.c.l.b16 %v1506
        %v3122 = vunpack.c.l.b16 %v1508
        %v3123 = vunpack.c.l.b16 %v1514
        %v3124 = vunpack.c.l.b16 %v1516
        %v3125 = vunpack.c.l.b16 %v1518
        %v3126 = vunpack.c.l.b16 %v1520
        %v3127 = vunpack.c.l.b16 %v1522
        %v3128 = vunpack.c.l.b16 %v1524
        %v3129 = vunpack.c.l.b16 %v1526
        %v3130 = vunpack.c.l.b16 %v1528
        %v3131 = vunpack.c.l.b16 %v1534
        %v3132 = vunpack.c.l.b16 %v1536
        %v3133 = vunpack.c.l.b16 %v1538
        %v3134 = vunpack.c.l.b16 %v1540
        %v3135 = vunpack.c.l.b16 %v1542
        %v3136 = vunpack.c.l.b16 %v1544
        %v3137 = vunpack.c.l.b16 %v1546
        %v3138 = vunpack.c.l.b16 %v1548
        %v3139 = vunpack.c.l.b16 %v1554
        %v3140 = vunpack.c.l.b16 %v1556
        %v3141 = vunpack.c.l.b16 %v1558
        %v3142 = vunpack.c.l.b16 %v1560
        %v3143 = vunpack.c.l.b16 %v1562
        %v3144 = vunpack.c.l.b16 %v1564
        %v3145 = vunpack.c.l.b16 %v1566
        %v3146 = vunpack.c.l.b16 %v1568
        %v3147 = vunpack.c.l.b16 %v1574
        %v3148 = vunpack.c.l.b16 %v1576
        %v3149 = vunpack.c.l.b16 %v1578
        %v3150 = vunpack.c.l.b16 %v1580
        %v3151 = vunpack.c.l.b16 %v1582
        %v3152 = vunpack.c.l.b16 %v1584
        %v3153 = vunpack.c.l.b16 %v1586
        %v3154 = vunpack.c.l.b16 %v1588
        %v3155 = vunpack.c.l.b16 %v1594
        %v3156 = vunpack.c.l.b16 %v1596
        %v3157 = vunpack.c.l.b16 %v1598
        %v3158 = vunpack.c.l.b16 %v1600
        %v3159 = vunpack.c.l.b16 %v1602
        %v3160 = vunpack.c.l.b16 %v1604
        %v3161 = vunpack.c.l.b16 %v1606
        %v3162 = vunpack.c.l.b16 %v1608
        %v3163 = vunpack.c.l.b16 %v1614
        %v3164 = vunpack.c.l.b16 %v1616
        %v3165 = vunpack.c.l.b16 %v1618
        %v3166 = vunpack.c.l.b16 %v1620
        %v3167 = vunpack.c.l.b16 %v1622
        %v3168 = vunpack.c.l.b16 %v1624
        %v3169 = vunpack.c.l.b16 %v1626
        %v3170 = vunpack.c.l.b16 %v1628
        %v3171 = vunpack.c.l.b16 %v1634
        %v3172 = vunpack.c.l.b16 %v1636
        %v3173 = vunpack.c.l.b16 %v1638
        %v3174 = vunpack.c.l.b16 %v1640
        %v3175 = vunpack.c.l.b16 %v1642
        %v3176 = vunpack.c.l.b16 %v1644
        %v3177 = vunpack.c.l.b16 %v1646
        %v3178 = vunpack.c.l.b16 %v1648
        %v3179 = vpack.c.b16 %v3116, %v3115
        %v3180 = vpack.c.b16 %v3118, %v3117
        %v3181 = vpack.c.b16 %v3120, %v3119
        %v3182 = vpack.c.b16 %v3122, %v3121
        %v3183 = vpack.c.b16 %v3124, %v3123
        %v3184 = vpack.c.b16 %v3126, %v3125
        %v3185 = vpack.c.b16 %v3128, %v3127
        %v3186 = vpack.c.b16 %v3130, %v3129
        %v3187 = vpack.c.b16 %v3132, %v3131
        %v3188 = vpack.c.b16 %v3134, %v3133
        %v3189 = vpack.c.b16 %v3136, %v3135
        %v3190 = vpack.c.b16 %v3138, %v3137
        %v3191 = vpack.c.b16 %v3140, %v3139
        %v3192 = vpack.c.b16 %v3142, %v3141
        %v3193 = vpack.c.b16 %v3144, %v3143
        %v3194 = vpack.c.b16 %v3146, %v3145
        %v3195 = vpack.c.b16 %v3148, %v3147
        %v3196 = vpack.c.b16 %v3150, %v3149
        %v3197 = vpack.c.b16 %v3152, %v3151
        %v3198 = vpack.c.b16 %v3154, %v3153
        %v3199 = vpack.c.b16 %v3156, %v3155
        %v3200 = vpack.c.b16 %v3158, %v3157
        %v3201 = vpack.c.b16 %v3160, %v3159
        %v3202 = vpack.c.b16 %v3162, %v3161
        %v3203 = vpack.c.b16 %v3164, %v3163
        %v3204 = vpack.c.b16 %v3166, %v3165
        %v3205 = vpack.c.b16 %v3168, %v3167
        %v3206 = vpack.c.b16 %v3170, %v3169
        %v3207 = vpack.c.b16 %v3172, %v3171
        %v3208 = vpack.c.b16 %v3174, %v3173
        %v3209 = vpack.c.b16 %v3176, %v3175
        %v3210 = vpack.c.b16 %v3178, %v3177
        %v3259 = vunpack.c.l.b16 %v1654
        %v3260 = vunpack.c.l.b16 %v1655
        %v3261 = vunpack.c.l.b16 %v1656
        %v3262 = vunpack.c.l.b16 %v1657
        %v3263 = vunpack.c.l.b16 %v1658
        %v3264 = vunpack.c.l.b16 %v1659
        %v3265 = vunpack.c.l.b16 %v1660
        %v3266 = vunpack.c.l.b16 %v1661
        %v3267 = vunpack.c.l.b16 %v1662
        %v3268 = vunpack.c.l.b16 %v1663
        %v3269 = vunpack.c.l.b16 %v1664
        %v3270 = vunpack.c.l.b16 %v1665
        %v3271 = vunpack.c.l.b16 %v1666
        %v3272 = vunpack.c.l.b16 %v1667
        %v3273 = vunpack.c.l.b16 %v1668
        %v3274 = vunpack.c.l.b16 %v1669
        %v3275 = vpack.c.b16 %v3260, %v3259
        %v3276 = vpack.c.b16 %v3262, %v3261
        %v3277 = vpack.c.b16 %v3264, %v3263
        %v3278 = vpack.c.b16 %v3266, %v3265
        %v3279 = vpack.c.b16 %v3268, %v3267
        %v3280 = vpack.c.b16 %v3270, %v3269
        %v3281 = vpack.c.b16 %v3272, %v3271
        %v3282 = vpack.c.b16 %v3274, %v3273
        %3291 = vmatprep.subr.bf16.mxu0 0
        %3292 = vmatpush1.bf16.msra.mxu0 %v3275
        %3293 = vmatprep.subr.bf16.mxu0 0
        %3294 = vmatpush1.bf16.msra.mxu0 %v3276
        %3295 = vmatprep.subr.bf16.mxu0 0
        %3296 = vmatpush1.bf16.msra.mxu0 %v3277
        %3297 = vmatprep.subr.bf16.mxu0 0
        %3298 = vmatpush1.bf16.msra.mxu0 %v3278
        %3299 = vmatprep.subr.bf16.mxu0 0
        %3300 = vmatpush1.bf16.msra.mxu0 %v3279
        %3301 = vmatprep.subr.bf16.mxu0 0
        %3302 = vmatpush1.bf16.msra.mxu0 %v3280
        %3303 = vmatprep.subr.bf16.mxu0 0
        %3304 = vmatpush1.bf16.msra.mxu0 %v3281
        %3305 = vmatprep.subr.bf16.mxu0 0
        %3306 = vmatpush1.bf16.msra.mxu0 %v3282
        %3307 = vmatprep.subr.bf16.mxu0 0
        %3308 = vmatpush1.bf16.msra.mxu0 0
        %3309 = vmatprep.subr.bf16.mxu0 0
        %3310 = vmatpush1.bf16.msra.mxu0 0
        %3311 = vmatprep.subr.bf16.mxu0 0
        %3312 = vmatpush1.bf16.msra.mxu0 0
        %3313 = vmatprep.subr.bf16.mxu0 0
        %3314 = vmatpush1.bf16.msra.mxu0 0
        %3315 = vmatprep.subr.bf16.mxu0 0
        %3316 = vmatpush1.bf16.msra.mxu0 0
        %3317 = vmatprep.subr.bf16.mxu0 0
        %3318 = vmatpush1.bf16.msra.mxu0 0
        %3319 = vmatprep.subr.bf16.mxu0 0
        %3320 = vmatpush1.bf16.msra.mxu0 0
        %3321 = vmatprep.subr.bf16.mxu0 0
        %3322 = vmatpush1.bf16.msra.mxu0 0
        %3323 = vmatprep.mubr.bf16.mxu0 0
        %3324 = vmatmul.mubr.bf16.gmra.mrb[0].mxu0 %v3179
        %v3325 = vpop.f32.mrb[0].mxu0
        %v3326 = vadd.f32 %v2797, %v3325
        %v3327 = vpop.f32.mrb[0].mxu0
        %v3328 = vpop.f32.mrb[0].mxu0
        %v3329 = vadd.f32 %v2800, %v3328
        %v3330 = vpop.f32.mrb[0].mxu0
        %3331 = vmatprep.mubr.bf16.mxu0 0
        %3332 = vmatmul.mubr.bf16.gmra.mrb[0].mxu0 %v3180
        %v3333 = vpop.f32.mrb[0].mxu0
        %v3334 = vadd.f32 %v2805, %v3333
        %v3335 = vpop.f32.mrb[0].mxu0
        %v3336 = vpop.f32.mrb[0].mxu0
        %v3337 = vadd.f32 %v2808, %v3336
        %v3338 = vpop.f32.mrb[0].mxu0
        %3339 = vmatprep.mubr.bf16.mxu0 0
        %3340 = vmatmul.mubr.bf16.gmra.mrb[0].mxu0 %v3181
        %v3341 = vpop.f32.mrb[0].mxu0
        %v3342 = vadd.f32 %v2813, %v3341
        %v3343 = vpop.f32.mrb[0].mxu0
        %v3344 = vpop.f32.mrb[0].mxu0
        %v3345 = vadd.f32 %v2816, %v3344
        %v3346 = vpop.f32.mrb[0].mxu0
        %3347 = vmatprep.mubr.bf16.mxu0 0
        %3348 = vmatmul.mubr.bf16.gmra.mrb[0].mxu0 %v3182
        %v3349 = vpop.f32.mrb[0].mxu0
        %v3350 = vadd.f32 %v2821, %v3349
        %v3351 = vpop.f32.mrb[0].mxu0
        %v3352 = vpop.f32.mrb[0].mxu0
        %v3353 = vadd.f32 %v2824, %v3352
        %v3354 = vpop.f32.mrb[0].mxu0
        %3355 = vmatprep.mubr.bf16.mxu0 0
        %3356 = vmatmul.mubr.bf16.gmra.mrb[0].mxu0 %v3183
        %v3357 = vpop.f32.mrb[0].mxu0
        %v3358 = vadd.f32 %v2829, %v3357
        %v3359 = vpop.f32.mrb[0].mxu0
        %v3360 = vpop.f32.mrb[0].mxu0
        %v3361 = vadd.f32 %v2832, %v3360
        %v3362 = vpop.f32.mrb[0].mxu0
        %3363 = vmatprep.mubr.bf16.mxu0 0
        %3364 = vmatmul.mubr.bf16.gmra.mrb[0].mxu0 %v3184
        %v3365 = vpop.f32.mrb[0].mxu0
        %v3366 = vadd.f32 %v2837, %v3365
        %v3367 = vpop.f32.mrb[0].mxu0
        %v3368 = vpop.f32.mrb[0].mxu0
        %v3369 = vadd.f32 %v2840, %v3368
        %v3370 = vpop.f32.mrb[0].mxu0
        %3371 = vmatprep.mubr.bf16.mxu0 0
        %3372 = vmatmul.mubr.bf16.gmra.mrb[0].mxu0 %v3185
        %v3373 = vpop.f32.mrb[0].mxu0
        %v3374 = vadd.f32 %v2845, %v3373
        %v3375 = vpop.f32.mrb[0].mxu0
        %v3376 = vpop.f32.mrb[0].mxu0
        %v3377 = vadd.f32 %v2848, %v3376
        %v3378 = vpop.f32.mrb[0].mxu0
        %3379 = vmatprep.mubr.bf16.mxu0 0
        %3380 = vmatmul.mubr.bf16.gmra.mrb[0].mxu0 %v3186
        %v3381 = vpop.f32.mrb[0].mxu0
        %v3382 = vadd.f32 %v2853, %v3381
        %v3383 = vpop.f32.mrb[0].mxu0
        %v3384 = vpop.f32.mrb[0].mxu0
        %v3385 = vadd.f32 %v2856, %v3384
        %v3386 = vpop.f32.mrb[0].mxu0
        %3387 = vmatprep.mubr.bf16.mxu0 0
        %3388 = vmatmul.mubr.bf16.gmra.mrb[0].mxu0 %v3187
        %v3389 = vpop.f32.mrb[0].mxu0
        %v3390 = vadd.f32 %v2861, %v3389
        %v3391 = vpop.f32.mrb[0].mxu0
        %v3392 = vpop.f32.mrb[0].mxu0
        %v3393 = vadd.f32 %v2864, %v3392
        %v3394 = vpop.f32.mrb[0].mxu0
        %3395 = vmatprep.mubr.bf16.mxu0 0
        %3396 = vmatmul.mubr.bf16.gmra.mrb[0].mxu0 %v3188
        %v3397 = vpop.f32.mrb[0].mxu0
        %v3398 = vadd.f32 %v2869, %v3397
        %v3399 = vpop.f32.mrb[0].mxu0
        %v3400 = vpop.f32.mrb[0].mxu0
        %v3401 = vadd.f32 %v2872, %v3400
        %v3402 = vpop.f32.mrb[0].mxu0
        %3403 = vmatprep.mubr.bf16.mxu0 0
        %3404 = vmatmul.mubr.bf16.gmra.mrb[0].mxu0 %v3189
        %v3405 = vpop.f32.mrb[0].mxu0
        %v3406 = vadd.f32 %v2877, %v3405
        %v3407 = vpop.f32.mrb[0].mxu0
        %v3408 = vpop.f32.mrb[0].mxu0
        %v3409 = vadd.f32 %v2880, %v3408
        %v3410 = vpop.f32.mrb[0].mxu0
        %3411 = vmatprep.mubr.bf16.mxu0 0
        %3412 = vmatmul.mubr.bf16.gmra.mrb[0].mxu0 %v3190
        %v3413 = vpop.f32.mrb[0].mxu0
        %v3414 = vadd.f32 %v2885, %v3413
        %v3415 = vpop.f32.mrb[0].mxu0
        %v3416 = vpop.f32.mrb[0].mxu0
        %v3417 = vadd.f32 %v2888, %v3416
        %v3418 = vpop.f32.mrb[0].mxu0
        %3419 = vmatprep.mubr.bf16.mxu0 0
        %3420 = vmatmul.mubr.bf16.gmra.mrb[0].mxu0 %v3191
        %v3421 = vpop.f32.mrb[0].mxu0
        %v3422 = vadd.f32 %v2893, %v3421
        %v3423 = vpop.f32.mrb[0].mxu0
        %v3424 = vpop.f32.mrb[0].mxu0
        %v3425 = vadd.f32 %v2896, %v3424
        %v3426 = vpop.f32.mrb[0].mxu0
        %3427 = vmatprep.mubr.bf16.mxu0 0
        %3428 = vmatmul.mubr.bf16.gmra.mrb[0].mxu0 %v3192
        %v3429 = vpop.f32.mrb[0].mxu0
        %v3430 = vadd.f32 %v2901, %v3429
        %v3431 = vpop.f32.mrb[0].mxu0
        %v3432 = vpop.f32.mrb[0].mxu0
        %v3433 = vadd.f32 %v2904, %v3432
        %v3434 = vpop.f32.mrb[0].mxu0
        %3435 = vmatprep.mubr.bf16.mxu0 0
        %3436 = vmatmul.mubr.bf16.gmra.mrb[0].mxu0 %v3193
        %v3437 = vpop.f32.mrb[0].mxu0
        %v3438 = vadd.f32 %v2909, %v3437
        %v3439 = vpop.f32.mrb[0].mxu0
        %v3440 = vpop.f32.mrb[0].mxu0
        %v3441 = vadd.f32 %v2912, %v3440
        %v3442 = vpop.f32.mrb[0].mxu0
        %3443 = vmatprep.mubr.bf16.mxu0 0
        %3444 = vmatmul.mubr.bf16.gmra.mrb[0].mxu0 %v3194
        %v3445 = vpop.f32.mrb[0].mxu0
        %v3446 = vadd.f32 %v2917, %v3445
        %v3447 = vpop.f32.mrb[0].mxu0
        %v3448 = vpop.f32.mrb[0].mxu0
        %v3449 = vadd.f32 %v2920, %v3448
        %v3450 = vpop.f32.mrb[0].mxu0
        %3451 = vmatprep.mubr.bf16.mxu0 0
        %3452 = vmatmul.mubr.bf16.gmra.mrb[0].mxu0 %v3195
        %v3453 = vpop.f32.mrb[0].mxu0
        %v3454 = vadd.f32 %v2925, %v3453
        %v3455 = vpop.f32.mrb[0].mxu0
        %v3456 = vpop.f32.mrb[0].mxu0
        %v3457 = vadd.f32 %v2928, %v3456
        %v3458 = vpop.f32.mrb[0].mxu0
        %3459 = vmatprep.mubr.bf16.mxu0 0
        %3460 = vmatmul.mubr.bf16.gmra.mrb[0].mxu0 %v3196
        %v3461 = vpop.f32.mrb[0].mxu0
        %v3462 = vadd.f32 %v2933, %v3461
        %v3463 = vpop.f32.mrb[0].mxu0
        %v3464 = vpop.f32.mrb[0].mxu0
        %v3465 = vadd.f32 %v2936, %v3464
        %v3466 = vpop.f32.mrb[0].mxu0
        %3467 = vmatprep.mubr.bf16.mxu0 0
        %3468 = vmatmul.mubr.bf16.gmra.mrb[0].mxu0 %v3197
        %v3469 = vpop.f32.mrb[0].mxu0
        %v3470 = vadd.f32 %v2941, %v3469
        %v3471 = vpop.f32.mrb[0].mxu0
        %v3472 = vpop.f32.mrb[0].mxu0
        %v3473 = vadd.f32 %v2944, %v3472
        %v3474 = vpop.f32.mrb[0].mxu0
        %3475 = vmatprep.mubr.bf16.mxu0 0
        %3476 = vmatmul.mubr.bf16.gmra.mrb[0].mxu0 %v3198
        %v3477 = vpop.f32.mrb[0].mxu0
        %v3478 = vadd.f32 %v2949, %v3477
        %v3479 = vpop.f32.mrb[0].mxu0
        %v3480 = vpop.f32.mrb[0].mxu0
        %v3481 = vadd.f32 %v2952, %v3480
        %v3482 = vpop.f32.mrb[0].mxu0
        %3483 = vmatprep.mubr.bf16.mxu0 0
        %3484 = vmatmul.mubr.bf16.gmra.mrb[0].mxu0 %v3199
        %v3485 = vpop.f32.mrb[0].mxu0
        %v3486 = vadd.f32 %v2957, %v3485
        %v3487 = vpop.f32.mrb[0].mxu0
        %v3488 = vpop.f32.mrb[0].mxu0
        %v3489 = vadd.f32 %v2960, %v3488
        %v3490 = vpop.f32.mrb[0].mxu0
        %3491 = vmatprep.mubr.bf16.mxu0 0
        %3492 = vmatmul.mubr.bf16.gmra.mrb[0].mxu0 %v3200
        %v3493 = vpop.f32.mrb[0].mxu0
        %v3494 = vadd.f32 %v2965, %v3493
        %v3495 = vpop.f32.mrb[0].mxu0
        %v3496 = vpop.f32.mrb[0].mxu0
        %v3497 = vadd.f32 %v2968, %v3496
        %v3498 = vpop.f32.mrb[0].mxu0
        %3499 = vmatprep.mubr.bf16.mxu0 0
        %3500 = vmatmul.mubr.bf16.gmra.mrb[0].mxu0 %v3201
        %v3501 = vpop.f32.mrb[0].mxu0
        %v3502 = vadd.f32 %v2973, %v3501
        %v3503 = vpop.f32.mrb[0].mxu0
        %v3504 = vpop.f32.mrb[0].mxu0
        %v3505 = vadd.f32 %v2976, %v3504
        %v3506 = vpop.f32.mrb[0].mxu0
        %3507 = vmatprep.mubr.bf16.mxu0 0
        %3508 = vmatmul.mubr.bf16.gmra.mrb[0].mxu0 %v3202
        %v3509 = vpop.f32.mrb[0].mxu0
        %v3510 = vadd.f32 %v2981, %v3509
        %v3511 = vpop.f32.mrb[0].mxu0
        %v3512 = vpop.f32.mrb[0].mxu0
        %v3513 = vadd.f32 %v2984, %v3512
        %v3514 = vpop.f32.mrb[0].mxu0
        %3515 = vmatprep.mubr.bf16.mxu0 0
        %3516 = vmatmul.mubr.bf16.gmra.mrb[0].mxu0 %v3203
        %v3517 = vpop.f32.mrb[0].mxu0
        %v3518 = vadd.f32 %v2989, %v3517
        %v3519 = vpop.f32.mrb[0].mxu0
        %v3520 = vpop.f32.mrb[0].mxu0
        %v3521 = vadd.f32 %v2992, %v3520
        %v3522 = vpop.f32.mrb[0].mxu0
        %3523 = vmatprep.mubr.bf16.mxu0 0
        %3524 = vmatmul.mubr.bf16.gmra.mrb[0].mxu0 %v3204
        %v3525 = vpop.f32.mrb[0].mxu0
        %v3526 = vadd.f32 %v2997, %v3525
        %v3527 = vpop.f32.mrb[0].mxu0
        %v3528 = vpop.f32.mrb[0].mxu0
        %v3529 = vadd.f32 %v3000, %v3528
        %v3530 = vpop.f32.mrb[0].mxu0
        %3531 = vmatprep.mubr.bf16.mxu0 0
        %3532 = vmatmul.mubr.bf16.gmra.mrb[0].mxu0 %v3205
        %v3533 = vpop.f32.mrb[0].mxu0
        %v3534 = vadd.f32 %v3005, %v3533
        %v3535 = vpop.f32.mrb[0].mxu0
        %v3536 = vpop.f32.mrb[0].mxu0
        %v3537 = vadd.f32 %v3008, %v3536
        %v3538 = vpop.f32.mrb[0].mxu0
        %3539 = vmatprep.mubr.bf16.mxu0 0
        %3540 = vmatmul.mubr.bf16.gmra.mrb[0].mxu0 %v3206
        %v3541 = vpop.f32.mrb[0].mxu0
        %v3542 = vadd.f32 %v3013, %v3541
        %v3543 = vpop.f32.mrb[0].mxu0
        %v3544 = vpop.f32.mrb[0].mxu0
        %v3545 = vadd.f32 %v3016, %v3544
        %v3546 = vpop.f32.mrb[0].mxu0
        %3547 = vmatprep.mubr.bf16.mxu0 0
        %3548 = vmatmul.mubr.bf16.gmra.mrb[0].mxu0 %v3207
        %v3549 = vpop.f32.mrb[0].mxu0
        %v3550 = vadd.f32 %v3021, %v3549
        %v3551 = vpop.f32.mrb[0].mxu0
        %v3552 = vpop.f32.mrb[0].mxu0
        %v3553 = vadd.f32 %v3024, %v3552
        %v3554 = vpop.f32.mrb[0].mxu0
        %3555 = vmatprep.mubr.bf16.mxu0 0
        %3556 = vmatmul.mubr.bf16.gmra.mrb[0].mxu0 %v3208
        %v3557 = vpop.f32.mrb[0].mxu0
        %v3558 = vadd.f32 %v3029, %v3557
        %v3559 = vpop.f32.mrb[0].mxu0
        %v3560 = vpop.f32.mrb[0].mxu0
        %v3561 = vadd.f32 %v3032, %v3560
        %v3562 = vpop.f32.mrb[0].mxu0
        %3563 = vmatprep.mubr.bf16.mxu0 0
        %3564 = vmatmul.mubr.bf16.gmra.mrb[0].mxu0 %v3209
        %v3565 = vpop.f32.mrb[0].mxu0
        %v3566 = vadd.f32 %v3037, %v3565
        %v3567 = vpop.f32.mrb[0].mxu0
        %v3568 = vpop.f32.mrb[0].mxu0
        %v3569 = vadd.f32 %v3040, %v3568
        %v3570 = vpop.f32.mrb[0].mxu0
        %3571 = vmatprep.mubr.bf16.mxu0 0
        %3572 = vmatmul.mubr.bf16.gmra.mrb[0].mxu0 %v3210
        %v3573 = vpop.f32.mrb[0].mxu0
        %v3574 = vadd.f32 %v3045, %v3573
        %v3575 = vpop.f32.mrb[0].mxu0
        %v3576 = vpop.f32.mrb[0].mxu0
        %v3577 = vadd.f32 %v3048, %v3576
        %v3578 = vpop.f32.mrb[0].mxu0
        %3579 = vdwg.mxu0
        %vm3644 = vcmask 1042432
        %vm3645 = vcmask 1046532
        %vm3646 = vmor %vm3644, %vm3645
        %v3647 = vrot.slane %v1494, 5
        %v3648 = vrot.slane %v3647, 4
        %v3649 = vrot.slane %v1495, 5
        %v3650 = vsel %vm3646, %v3648, %v3649
        %v3651 = vrot.slane %v1496, 5
        %v3652 = vrot.slane %v3651, 4
        %v3653 = vrot.slane %v1497, 5
        %v3654 = vsel %vm3646, %v3652, %v3653
        %v3655 = vrot.slane %v1498, 5
        %v3656 = vrot.slane %v3655, 4
        %v3657 = vrot.slane %v1499, 5
        %v3658 = vsel %vm3646, %v3656, %v3657
        %v3659 = vrot.slane %v1500, 5
        %v3660 = vrot.slane %v3659, 4
        %v3661 = vrot.slane %v1501, 5
        %v3662 = vsel %vm3646, %v3660, %v3661
        %v3663 = vrot.slane %v1502, 5
        %v3664 = vrot.slane %v3663, 4
        %v3665 = vrot.slane %v1503, 5
        %v3666 = vsel %vm3646, %v3664, %v3665
        %v3667 = vrot.slane %v1504, 5
        %v3668 = vrot.slane %v3667, 4
        %v3669 = vrot.slane %v1505, 5
        %v3670 = vsel %vm3646, %v3668, %v3669
        %v3671 = vrot.slane %v1506, 5
        %v3672 = vrot.slane %v3671, 4
        %v3673 = vrot.slane %v1507, 5
        %v3674 = vsel %vm3646, %v3672, %v3673
        %v3675 = vrot.slane %v1508, 5
        %v3676 = vrot.slane %v3675, 4
        %v3677 = vrot.slane %v1509, 5
        %v3678 = vsel %vm3646, %v3676, %v3677
        %v3679 = vrot.slane %v1514, 5
        %v3680 = vrot.slane %v3679, 4
        %v3681 = vrot.slane %v1515, 5
        %v3682 = vsel %vm3646, %v3680, %v3681
        %v3683 = vrot.slane %v1516, 5
        %v3684 = vrot.slane %v3683, 4
        %v3685 = vrot.slane %v1517, 5
        %v3686 = vsel %vm3646, %v3684, %v3685
        %v3687 = vrot.slane %v1518, 5
        %v3688 = vrot.slane %v3687, 4
        %v3689 = vrot.slane %v1519, 5
        %v3690 = vsel %vm3646, %v3688, %v3689
        %v3691 = vrot.slane %v1520, 5
        %v3692 = vrot.slane %v3691, 4
        %v3693 = vrot.slane %v1521, 5
        %v3694 = vsel %vm3646, %v3692, %v3693
        %v3695 = vrot.slane %v1522, 5
        %v3696 = vrot.slane %v3695, 4
        %v3697 = vrot.slane %v1523, 5
        %v3698 = vsel %vm3646, %v3696, %v3697
        %v3699 = vrot.slane %v1524, 5
        %v3700 = vrot.slane %v3699, 4
        %v3701 = vrot.slane %v1525, 5
        %v3702 = vsel %vm3646, %v3700, %v3701
        %v3703 = vrot.slane %v1526, 5
        %v3704 = vrot.slane %v3703, 4
        %v3705 = vrot.slane %v1527, 5
        %v3706 = vsel %vm3646, %v3704, %v3705
        %v3707 = vrot.slane %v1528, 5
        %v3708 = vrot.slane %v3707, 4
        %v3709 = vrot.slane %v1529, 5
        %v3710 = vsel %vm3646, %v3708, %v3709
        %v3711 = vrot.slane %v1534, 5
        %v3712 = vrot.slane %v3711, 4
        %v3713 = vrot.slane %v1535, 5
        %v3714 = vsel %vm3646, %v3712, %v3713
        %v3715 = vrot.slane %v1536, 5
        %v3716 = vrot.slane %v3715, 4
        %v3717 = vrot.slane %v1537, 5
        %v3718 = vsel %vm3646, %v3716, %v3717
        %v3719 = vrot.slane %v1538, 5
        %v3720 = vrot.slane %v3719, 4
        %v3721 = vrot.slane %v1539, 5
        %v3722 = vsel %vm3646, %v3720, %v3721
        %v3723 = vrot.slane %v1540, 5
        %v3724 = vrot.slane %v3723, 4
        %v3725 = vrot.slane %v1541, 5
        %v3726 = vsel %vm3646, %v3724, %v3725
        %v3727 = vrot.slane %v1542, 5
        %v3728 = vrot.slane %v3727, 4
        %v3729 = vrot.slane %v1543, 5
        %v3730 = vsel %vm3646, %v3728, %v3729
        %v3731 = vrot.slane %v1544, 5
        %v3732 = vrot.slane %v3731, 4
        %v3733 = vrot.slane %v1545, 5
        %v3734 = vsel %vm3646, %v3732, %v3733
        %v3735 = vrot.slane %v1546, 5
        %v3736 = vrot.slane %v3735, 4
        %v3737 = vrot.slane %v1547, 5
        %v3738 = vsel %vm3646, %v3736, %v3737
        %v3739 = vrot.slane %v1548, 5
        %v3740 = vrot.slane %v3739, 4
        %v3741 = vrot.slane %v1549, 5
        %v3742 = vsel %vm3646, %v3740, %v3741
        %v3743 = vrot.slane %v1554, 5
        %v3744 = vrot.slane %v3743, 4
        %v3745 = vrot.slane %v1555, 5
        %v3746 = vsel %vm3646, %v3744, %v3745
        %v3747 = vrot.slane %v1556, 5
        %v3748 = vrot.slane %v3747, 4
        %v3749 = vrot.slane %v1557, 5
        %v3750 = vsel %vm3646, %v3748, %v3749
        %v3751 = vrot.slane %v1558, 5
        %v3752 = vrot.slane %v3751, 4
        %v3753 = vrot.slane %v1559, 5
        %v3754 = vsel %vm3646, %v3752, %v3753
        %v3755 = vrot.slane %v1560, 5
        %v3756 = vrot.slane %v3755, 4
        %v3757 = vrot.slane %v1561, 5
        %v3758 = vsel %vm3646, %v3756, %v3757
        %v3759 = vrot.slane %v1562, 5
        %v3760 = vrot.slane %v3759, 4
        %v3761 = vrot.slane %v1563, 5
        %v3762 = vsel %vm3646, %v3760, %v3761
        %v3763 = vrot.slane %v1564, 5
        %v3764 = vrot.slane %v3763, 4
        %v3765 = vrot.slane %v1565, 5
        %v3766 = vsel %vm3646, %v3764, %v3765
        %v3767 = vrot.slane %v1566, 5
        %v3768 = vrot.slane %v3767, 4
        %v3769 = vrot.slane %v1567, 5
        %v3770 = vsel %vm3646, %v3768, %v3769
        %v3771 = vrot.slane %v1568, 5
        %v3772 = vrot.slane %v3771, 4
        %v3773 = vrot.slane %v1569, 5
        %v3774 = vsel %vm3646, %v3772, %v3773
        %v3775 = vrot.slane %v1574, 5
        %v3776 = vrot.slane %v3775, 4
        %v3777 = vrot.slane %v1575, 5
        %v3778 = vsel %vm3646, %v3776, %v3777
        %v3779 = vrot.slane %v1576, 5
        %v3780 = vrot.slane %v3779, 4
        %v3781 = vrot.slane %v1577, 5
        %v3782 = vsel %vm3646, %v3780, %v3781
        %v3783 = vrot.slane %v1578, 5
        %v3784 = vrot.slane %v3783, 4
        %v3785 = vrot.slane %v1579, 5
        %v3786 = vsel %vm3646, %v3784, %v3785
        %v3787 = vrot.slane %v1580, 5
        %v3788 = vrot.slane %v3787, 4
        %v3789 = vrot.slane %v1581, 5
        %v3790 = vsel %vm3646, %v3788, %v3789
        %v3791 = vrot.slane %v1582, 5
        %v3792 = vrot.slane %v3791, 4
        %v3793 = vrot.slane %v1583, 5
        %v3794 = vsel %vm3646, %v3792, %v3793
        %v3795 = vrot.slane %v1584, 5
        %v3796 = vrot.slane %v3795, 4
        %v3797 = vrot.slane %v1585, 5
        %v3798 = vsel %vm3646, %v3796, %v3797
        %v3799 = vrot.slane %v1586, 5
        %v3800 = vrot.slane %v3799, 4
        %v3801 = vrot.slane %v1587, 5
        %v3802 = vsel %vm3646, %v3800, %v3801
        %v3803 = vrot.slane %v1588, 5
        %v3804 = vrot.slane %v3803, 4
        %v3805 = vrot.slane %v1589, 5
        %v3806 = vsel %vm3646, %v3804, %v3805
        %v3807 = vrot.slane %v1594, 5
        %v3808 = vrot.slane %v3807, 4
        %v3809 = vrot.slane %v1595, 5
        %v3810 = vsel %vm3646, %v3808, %v3809
        %v3811 = vrot.slane %v1596, 5
        %v3812 = vrot.slane %v3811, 4
        %v3813 = vrot.slane %v1597, 5
        %v3814 = vsel %vm3646, %v3812, %v3813
        %v3815 = vrot.slane %v1598, 5
        %v3816 = vrot.slane %v3815, 4
        %v3817 = vrot.slane %v1599, 5
        %v3818 = vsel %vm3646, %v3816, %v3817
        %v3819 = vrot.slane %v1600, 5
        %v3820 = vrot.slane %v3819, 4
        %v3821 = vrot.slane %v1601, 5
        %v3822 = vsel %vm3646, %v3820, %v3821
        %v3823 = vrot.slane %v1602, 5
        %v3824 = vrot.slane %v3823, 4
        %v3825 = vrot.slane %v1603, 5
        %v3826 = vsel %vm3646, %v3824, %v3825
        %v3827 = vrot.slane %v1604, 5
        %v3828 = vrot.slane %v3827, 4
        %v3829 = vrot.slane %v1605, 5
        %v3830 = vsel %vm3646, %v3828, %v3829
        %v3831 = vrot.slane %v1606, 5
        %v3832 = vrot.slane %v3831, 4
        %v3833 = vrot.slane %v1607, 5
        %v3834 = vsel %vm3646, %v3832, %v3833
        %v3835 = vrot.slane %v1608, 5
        %v3836 = vrot.slane %v3835, 4
        %v3837 = vrot.slane %v1609, 5
        %v3838 = vsel %vm3646, %v3836, %v3837
        %v3839 = vrot.slane %v1614, 5
        %v3840 = vrot.slane %v3839, 4
        %v3841 = vrot.slane %v1615, 5
        %v3842 = vsel %vm3646, %v3840, %v3841
        %v3843 = vrot.slane %v1616, 5
        %v3844 = vrot.slane %v3843, 4
        %v3845 = vrot.slane %v1617, 5
        %v3846 = vsel %vm3646, %v3844, %v3845
        %v3847 = vrot.slane %v1618, 5
        %v3848 = vrot.slane %v3847, 4
        %v3849 = vrot.slane %v1619, 5
        %v3850 = vsel %vm3646, %v3848, %v3849
        %v3851 = vrot.slane %v1620, 5
        %v3852 = vrot.slane %v3851, 4
        %v3853 = vrot.slane %v1621, 5
        %v3854 = vsel %vm3646, %v3852, %v3853
        %v3855 = vrot.slane %v1622, 5
        %v3856 = vrot.slane %v3855, 4
        %v3857 = vrot.slane %v1623, 5
        %v3858 = vsel %vm3646, %v3856, %v3857
        %v3859 = vrot.slane %v1624, 5
        %v3860 = vrot.slane %v3859, 4
        %v3861 = vrot.slane %v1625, 5
        %v3862 = vsel %vm3646, %v3860, %v3861
        %v3863 = vrot.slane %v1626, 5
        %v3864 = vrot.slane %v3863, 4
        %v3865 = vrot.slane %v1627, 5
        %v3866 = vsel %vm3646, %v3864, %v3865
        %v3867 = vrot.slane %v1628, 5
        %v3868 = vrot.slane %v3867, 4
        %v3869 = vrot.slane %v1629, 5
        %v3870 = vsel %vm3646, %v3868, %v3869
        %v3871 = vrot.slane %v1634, 5
        %v3872 = vrot.slane %v3871, 4
        %v3873 = vrot.slane %v1635, 5
        %v3874 = vsel %vm3646, %v3872, %v3873
        %v3875 = vrot.slane %v1636, 5
        %v3876 = vrot.slane %v3875, 4
        %v3877 = vrot.slane %v1637, 5
        %v3878 = vsel %vm3646, %v3876, %v3877
        %v3879 = vrot.slane %v1638, 5
        %v3880 = vrot.slane %v3879, 4
        %v3881 = vrot.slane %v1639, 5
        %v3882 = vsel %vm3646, %v3880, %v3881
        %v3883 = vrot.slane %v1640, 5
        %v3884 = vrot.slane %v3883, 4
        %v3885 = vrot.slane %v1641, 5
        %v3886 = vsel %vm3646, %v3884, %v3885
        %v3887 = vrot.slane %v1642, 5
        %v3888 = vrot.slane %v3887, 4
        %v3889 = vrot.slane %v1643, 5
        %v3890 = vsel %vm3646, %v3888, %v3889
        %v3891 = vrot.slane %v1644, 5
        %v3892 = vrot.slane %v3891, 4
        %v3893 = vrot.slane %v1645, 5
        %v3894 = vsel %vm3646, %v3892, %v3893
        %v3895 = vrot.slane %v1646, 5
        %v3896 = vrot.slane %v3895, 4
        %v3897 = vrot.slane %v1647, 5
        %v3898 = vsel %vm3646, %v3896, %v3897
        %v3899 = vrot.slane %v1648, 5
        %v3900 = vrot.slane %v3899, 4
        %v3901 = vrot.slane %v1649, 5
        %v3902 = vsel %vm3646, %v3900, %v3901
        %s3903 = scalar_lea.vmem %s208, 128 [#allocation6]
        %v3904 = vld [vmem:[%s3903] sm:$0xf]
        %v3905 = vld [vmem:[%s3903 + $0x4] sm:$0xf]
        %v3906 = vld [vmem:[%s3903 + $0x8] sm:$0xf]
        %v3907 = vld [vmem:[%s3903 + $0xc] sm:$0xf]
        %v3908 = vld [vmem:[%s3903 + $0x10] sm:$0xf]
        %v3909 = vld [vmem:[%s3903 + $0x14] sm:$0xf]
        %v3910 = vld [vmem:[%s3903 + $0x18] sm:$0xf]
        %v3911 = vld [vmem:[%s3903 + $0x1c] sm:$0xf]
        %v3912 = vld [vmem:[%s3903 + $0x20] sm:$0xf]
        %v3913 = vld [vmem:[%s3903 + $0x24] sm:$0xf]
        %v3914 = vld [vmem:[%s3903 + $0x28] sm:$0xf]
        %v3915 = vld [vmem:[%s3903 + $0x2c] sm:$0xf]
        %v3916 = vld [vmem:[%s3903 + $0x30] sm:$0xf]
        %v3917 = vld [vmem:[%s3903 + $0x34] sm:$0xf]
        %v3918 = vld [vmem:[%s3903 + $0x38] sm:$0xf]
        %v3919 = vld [vmem:[%s3903 + $0x3c] sm:$0xf]
        %v3920 = vunpack.c.l.b16 %v3650
        %v3921 = vunpack.c.l.b16 %v3654
        %v3922 = vunpack.c.l.b16 %v3658
        %v3923 = vunpack.c.l.b16 %v3662
        %v3924 = vunpack.c.l.b16 %v3666
        %v3925 = vunpack.c.l.b16 %v3670
        %v3926 = vunpack.c.l.b16 %v3674
        %v3927 = vunpack.c.l.b16 %v3678
        %v3928 = vunpack.c.l.b16 %v3682
        %v3929 = vunpack.c.l.b16 %v3686
        %v3930 = vunpack.c.l.b16 %v3690
        %v3931 = vunpack.c.l.b16 %v3694
        %v3932 = vunpack.c.l.b16 %v3698
        %v3933 = vunpack.c.l.b16 %v3702
        %v3934 = vunpack.c.l.b16 %v3706
        %v3935 = vunpack.c.l.b16 %v3710
        %v3936 = vunpack.c.l.b16 %v3714
        %v3937 = vunpack.c.l.b16 %v3718
        %v3938 = vunpack.c.l.b16 %v3722
        %v3939 = vunpack.c.l.b16 %v3726
        %v3940 = vunpack.c.l.b16 %v3730
        %v3941 = vunpack.c.l.b16 %v3734
        %v3942 = vunpack.c.l.b16 %v3738
        %v3943 = vunpack.c.l.b16 %v3742
        %v3944 = vunpack.c.l.b16 %v3746
        %v3945 = vunpack.c.l.b16 %v3750
        %v3946 = vunpack.c.l.b16 %v3754
        %v3947 = vunpack.c.l.b16 %v3758
        %v3948 = vunpack.c.l.b16 %v3762
        %v3949 = vunpack.c.l.b16 %v3766
        %v3950 = vunpack.c.l.b16 %v3770
        %v3951 = vunpack.c.l.b16 %v3774
        %v3952 = vunpack.c.l.b16 %v3778
        %v3953 = vunpack.c.l.b16 %v3782
        %v3954 = vunpack.c.l.b16 %v3786
        %v3955 = vunpack.c.l.b16 %v3790
        %v3956 = vunpack.c.l.b16 %v3794
        %v3957 = vunpack.c.l.b16 %v3798
        %v3958 = vunpack.c.l.b16 %v3802
        %v3959 = vunpack.c.l.b16 %v3806
        %v3960 = vunpack.c.l.b16 %v3810
        %v3961 = vunpack.c.l.b16 %v3814
        %v3962 = vunpack.c.l.b16 %v3818
        %v3963 = vunpack.c.l.b16 %v3822
        %v3964 = vunpack.c.l.b16 %v3826
        %v3965 = vunpack.c.l.b16 %v3830
        %v3966 = vunpack.c.l.b16 %v3834
        %v3967 = vunpack.c.l.b16 %v3838
        %v3968 = vunpack.c.l.b16 %v3842
        %v3969 = vunpack.c.l.b16 %v3846
        %v3970 = vunpack.c.l.b16 %v3850
        %v3971 = vunpack.c.l.b16 %v3854
        %v3972 = vunpack.c.l.b16 %v3858
        %v3973 = vunpack.c.l.b16 %v3862
        %v3974 = vunpack.c.l.b16 %v3866
        %v3975 = vunpack.c.l.b16 %v3870
        %v3976 = vunpack.c.l.b16 %v3874
        %v3977 = vunpack.c.l.b16 %v3878
        %v3978 = vunpack.c.l.b16 %v3882
        %v3979 = vunpack.c.l.b16 %v3886
        %v3980 = vunpack.c.l.b16 %v3890
        %v3981 = vunpack.c.l.b16 %v3894
        %v3982 = vunpack.c.l.b16 %v3898
        %v3983 = vunpack.c.l.b16 %v3902
        %v3984 = vpack.c.b16 %v3921, %v3920
        %v3985 = vpack.c.b16 %v3923, %v3922
        %v3986 = vpack.c.b16 %v3925, %v3924
        %v3987 = vpack.c.b16 %v3927, %v3926
        %v3988 = vpack.c.b16 %v3929, %v3928
        %v3989 = vpack.c.b16 %v3931, %v3930
        %v3990 = vpack.c.b16 %v3933, %v3932
        %v3991 = vpack.c.b16 %v3935, %v3934
        %v3992 = vpack.c.b16 %v3937, %v3936
        %v3993 = vpack.c.b16 %v3939, %v3938
        %v3994 = vpack.c.b16 %v3941, %v3940
        %v3995 = vpack.c.b16 %v3943, %v3942
        %v3996 = vpack.c.b16 %v3945, %v3944
        %v3997 = vpack.c.b16 %v3947, %v3946
        %v3998 = vpack.c.b16 %v3949, %v3948
        %v3999 = vpack.c.b16 %v3951, %v3950
        %v4000 = vpack.c.b16 %v3953, %v3952
        %v4001 = vpack.c.b16 %v3955, %v3954
        %v4002 = vpack.c.b16 %v3957, %v3956
        %v4003 = vpack.c.b16 %v3959, %v3958
        %v4004 = vpack.c.b16 %v3961, %v3960
        %v4005 = vpack.c.b16 %v3963, %v3962
        %v4006 = vpack.c.b16 %v3965, %v3964
        %v4007 = vpack.c.b16 %v3967, %v3966
        %v4008 = vpack.c.b16 %v3969, %v3968
        %v4009 = vpack.c.b16 %v3971, %v3970
        %v4010 = vpack.c.b16 %v3973, %v3972
        %v4011 = vpack.c.b16 %v3975, %v3974
        %v4012 = vpack.c.b16 %v3977, %v3976
        %v4013 = vpack.c.b16 %v3979, %v3978
        %v4014 = vpack.c.b16 %v3981, %v3980
        %v4015 = vpack.c.b16 %v3983, %v3982
        %v4064 = vunpack.c.l.b16 %v3904
        %v4065 = vunpack.c.l.b16 %v3905
        %v4066 = vunpack.c.l.b16 %v3906
        %v4067 = vunpack.c.l.b16 %v3907
        %v4068 = vunpack.c.l.b16 %v3908
        %v4069 = vunpack.c.l.b16 %v3909
        %v4070 = vunpack.c.l.b16 %v3910
        %v4071 = vunpack.c.l.b16 %v3911
        %v4072 = vunpack.c.l.b16 %v3912
        %v4073 = vunpack.c.l.b16 %v3913
        %v4074 = vunpack.c.l.b16 %v3914
        %v4075 = vunpack.c.l.b16 %v3915
        %v4076 = vunpack.c.l.b16 %v3916
        %v4077 = vunpack.c.l.b16 %v3917
        %v4078 = vunpack.c.l.b16 %v3918
        %v4079 = vunpack.c.l.b16 %v3919
        %v4080 = vpack.c.b16 %v4065, %v4064
        %v4081 = vpack.c.b16 %v4067, %v4066
        %v4082 = vpack.c.b16 %v4069, %v4068
        %v4083 = vpack.c.b16 %v4071, %v4070
        %v4084 = vpack.c.b16 %v4073, %v4072
        %v4085 = vpack.c.b16 %v4075, %v4074
        %v4086 = vpack.c.b16 %v4077, %v4076
        %v4087 = vpack.c.b16 %v4079, %v4078
        %4096 = vmatprep.subr.bf16.mxu0 0
        %4097 = vmatpush1.bf16.msra.mxu0 %v4080
        %4098 = vmatprep.subr.bf16.mxu0 0
        %4099 = vmatpush1.bf16.msra.mxu0 %v4081
        %4100 = vmatprep.subr.bf16.mxu0 0
        %4101 = vmatpush1.bf16.msra.mxu0 %v4082
        %4102 = vmatprep.subr.bf16.mxu0 0
        %4103 = vmatpush1.bf16.msra.mxu0 %v4083
        %4104 = vmatprep.subr.bf16.mxu0 0
        %4105 = vmatpush1.bf16.msra.mxu0 %v4084
        %4106 = vmatprep.subr.bf16.mxu0 0
        %4107 = vmatpush1.bf16.msra.mxu0 %v4085
        %4108 = vmatprep.subr.bf16.mxu0 0
        %4109 = vmatpush1.bf16.msra.mxu0 %v4086
        %4110 = vmatprep.subr.bf16.mxu0 0
        %4111 = vmatpush1.bf16.msra.mxu0 %v4087
        %4112 = vmatprep.subr.bf16.mxu0 0
        %4113 = vmatpush1.bf16.msra.mxu0 0
        %4114 = vmatprep.subr.bf16.mxu0 0
        %4115 = vmatpush1.bf16.msra.mxu0 0
        %4116 = vmatprep.subr.bf16.mxu0 0
        %4117 = vmatpush1.bf16.msra.mxu0 0
        %4118 = vmatprep.subr.bf16.mxu0 0
        %4119 = vmatpush1.bf16.msra.mxu0 0
        %4120 = vmatprep.subr.bf16.mxu0 0
        %4121 = vmatpush1.bf16.msra.mxu0 0
        %4122 = vmatprep.subr.bf16.mxu0 0
        %4123 = vmatpush1.bf16.msra.mxu0 0
        %4124 = vmatprep.subr.bf16.mxu0 0
        %4125 = vmatpush1.bf16.msra.mxu0 0
        %4126 = vmatprep.subr.bf16.mxu0 0
        %4127 = vmatpush1.bf16.msra.mxu0 0
        %4128 = vmatprep.mubr.bf16.mxu0 0
        %4129 = vmatmul.mubr.bf16.gmra.mrb[0].mxu0 %v3984
        %v4130 = vpop.f32.mrb[0].mxu0
        %v4131 = vadd.f32 0.0, %v4130
        %v4132 = vpop.f32.mrb[0].mxu0
        %v4133 = vpop.f32.mrb[0].mxu0
        %v4134 = vadd.f32 0.0, %v4133
        %v4135 = vpop.f32.mrb[0].mxu0
        %4136 = vmatprep.mubr.bf16.mxu0 0
        %4137 = vmatmul.mubr.bf16.gmra.mrb[0].mxu0 %v3985
        %v4138 = vpop.f32.mrb[0].mxu0
        %v4139 = vadd.f32 0.0, %v4138
        %v4140 = vpop.f32.mrb[0].mxu0
        %v4141 = vpop.f32.mrb[0].mxu0
        %v4142 = vadd.f32 0.0, %v4141
        %v4143 = vpop.f32.mrb[0].mxu0
        %4144 = vmatprep.mubr.bf16.mxu0 0
        %4145 = vmatmul.mubr.bf16.gmra.mrb[0].mxu0 %v3986
        %v4146 = vpop.f32.mrb[0].mxu0
        %v4147 = vadd.f32 0.0, %v4146
        %v4148 = vpop.f32.mrb[0].mxu0
        %v4149 = vpop.f32.mrb[0].mxu0
        %v4150 = vadd.f32 0.0, %v4149
        %v4151 = vpop.f32.mrb[0].mxu0
        %4152 = vmatprep.mubr.bf16.mxu0 0
        %4153 = vmatmul.mubr.bf16.gmra.mrb[0].mxu0 %v3987
        %v4154 = vpop.f32.mrb[0].mxu0
        %v4155 = vadd.f32 0.0, %v4154
        %v4156 = vpop.f32.mrb[0].mxu0
        %v4157 = vpop.f32.mrb[0].mxu0
        %v4158 = vadd.f32 0.0, %v4157
        %v4159 = vpop.f32.mrb[0].mxu0
        %4160 = vmatprep.mubr.bf16.mxu0 0
        %4161 = vmatmul.mubr.bf16.gmra.mrb[0].mxu0 %v3988
        %v4162 = vpop.f32.mrb[0].mxu0
        %v4163 = vadd.f32 0.0, %v4162
        %v4164 = vpop.f32.mrb[0].mxu0
        %v4165 = vpop.f32.mrb[0].mxu0
        %v4166 = vadd.f32 0.0, %v4165
        %v4167 = vpop.f32.mrb[0].mxu0
        %4168 = vmatprep.mubr.bf16.mxu0 0
        %4169 = vmatmul.mubr.bf16.gmra.mrb[0].mxu0 %v3989
        %v4170 = vpop.f32.mrb[0].mxu0
        %v4171 = vadd.f32 0.0, %v4170
        %v4172 = vpop.f32.mrb[0].mxu0
        %v4173 = vpop.f32.mrb[0].mxu0
        %v4174 = vadd.f32 0.0, %v4173
        %v4175 = vpop.f32.mrb[0].mxu0
        %4176 = vmatprep.mubr.bf16.mxu0 0
        %4177 = vmatmul.mubr.bf16.gmra.mrb[0].mxu0 %v3990
        %v4178 = vpop.f32.mrb[0].mxu0
        %v4179 = vadd.f32 0.0, %v4178
        %v4180 = vpop.f32.mrb[0].mxu0
        %v4181 = vpop.f32.mrb[0].mxu0
        %v4182 = vadd.f32 0.0, %v4181
        %v4183 = vpop.f32.mrb[0].mxu0
        %4184 = vmatprep.mubr.bf16.mxu0 0
        %4185 = vmatmul.mubr.bf16.gmra.mrb[0].mxu0 %v3991
        %v4186 = vpop.f32.mrb[0].mxu0
        %v4187 = vadd.f32 0.0, %v4186
        %v4188 = vpop.f32.mrb[0].mxu0
        %v4189 = vpop.f32.mrb[0].mxu0
        %v4190 = vadd.f32 0.0, %v4189
        %v4191 = vpop.f32.mrb[0].mxu0
        %4192 = vmatprep.mubr.bf16.mxu0 0
        %4193 = vmatmul.mubr.bf16.gmra.mrb[0].mxu0 %v3992
        %v4194 = vpop.f32.mrb[0].mxu0
        %v4195 = vadd.f32 0.0, %v4194
        %v4196 = vpop.f32.mrb[0].mxu0
        %v4197 = vpop.f32.mrb[0].mxu0
        %v4198 = vadd.f32 0.0, %v4197
        %v4199 = vpop.f32.mrb[0].mxu0
        %4200 = vmatprep.mubr.bf16.mxu0 0
        %4201 = vmatmul.mubr.bf16.gmra.mrb[0].mxu0 %v3993
        %v4202 = vpop.f32.mrb[0].mxu0
        %v4203 = vadd.f32 0.0, %v4202
        %v4204 = vpop.f32.mrb[0].mxu0
        %v4205 = vpop.f32.mrb[0].mxu0
        %v4206 = vadd.f32 0.0, %v4205
        %v4207 = vpop.f32.mrb[0].mxu0
        %4208 = vmatprep.mubr.bf16.mxu0 0
        %4209 = vmatmul.mubr.bf16.gmra.mrb[0].mxu0 %v3994
        %v4210 = vpop.f32.mrb[0].mxu0
        %v4211 = vadd.f32 0.0, %v4210
        %v4212 = vpop.f32.mrb[0].mxu0
        %v4213 = vpop.f32.mrb[0].mxu0
        %v4214 = vadd.f32 0.0, %v4213
        %v4215 = vpop.f32.mrb[0].mxu0
        %4216 = vmatprep.mubr.bf16.mxu0 0
        %4217 = vmatmul.mubr.bf16.gmra.mrb[0].mxu0 %v3995
        %v4218 = vpop.f32.mrb[0].mxu0
        %v4219 = vadd.f32 0.0, %v4218
        %v4220 = vpop.f32.mrb[0].mxu0
        %v4221 = vpop.f32.mrb[0].mxu0
        %v4222 = vadd.f32 0.0, %v4221
        %v4223 = vpop.f32.mrb[0].mxu0
        %4224 = vmatprep.mubr.bf16.mxu0 0
        %4225 = vmatmul.mubr.bf16.gmra.mrb[0].mxu0 %v3996
        %v4226 = vpop.f32.mrb[0].mxu0
        %v4227 = vadd.f32 0.0, %v4226
        %v4228 = vpop.f32.mrb[0].mxu0
        %v4229 = vpop.f32.mrb[0].mxu0
        %v4230 = vadd.f32 0.0, %v4229
        %v4231 = vpop.f32.mrb[0].mxu0
        %4232 = vmatprep.mubr.bf16.mxu0 0
        %4233 = vmatmul.mubr.bf16.gmra.mrb[0].mxu0 %v3997
        %v4234 = vpop.f32.mrb[0].mxu0
        %v4235 = vadd.f32 0.0, %v4234
        %v4236 = vpop.f32.mrb[0].mxu0
        %v4237 = vpop.f32.mrb[0].mxu0
        %v4238 = vadd.f32 0.0, %v4237
        %v4239 = vpop.f32.mrb[0].mxu0
        %4240 = vmatprep.mubr.bf16.mxu0 0
        %4241 = vmatmul.mubr.bf16.gmra.mrb[0].mxu0 %v3998
        %v4242 = vpop.f32.mrb[0].mxu0
        %v4243 = vadd.f32 0.0, %v4242
        %v4244 = vpop.f32.mrb[0].mxu0
        %v4245 = vpop.f32.mrb[0].mxu0
        %v4246 = vadd.f32 0.0, %v4245
        %v4247 = vpop.f32.mrb[0].mxu0
        %4248 = vmatprep.mubr.bf16.mxu0 0
        %4249 = vmatmul.mubr.bf16.gmra.mrb[0].mxu0 %v3999
        %v4250 = vpop.f32.mrb[0].mxu0
        %v4251 = vadd.f32 0.0, %v4250
        %v4252 = vpop.f32.mrb[0].mxu0
        %v4253 = vpop.f32.mrb[0].mxu0
        %v4254 = vadd.f32 0.0, %v4253
        %v4255 = vpop.f32.mrb[0].mxu0
        %4256 = vmatprep.mubr.bf16.mxu0 0
        %4257 = vmatmul.mubr.bf16.gmra.mrb[0].mxu0 %v4000
        %v4258 = vpop.f32.mrb[0].mxu0
        %v4259 = vadd.f32 0.0, %v4258
        %v4260 = vpop.f32.mrb[0].mxu0
        %v4261 = vpop.f32.mrb[0].mxu0
        %v4262 = vadd.f32 0.0, %v4261
        %v4263 = vpop.f32.mrb[0].mxu0
        %4264 = vmatprep.mubr.bf16.mxu0 0
        %4265 = vmatmul.mubr.bf16.gmra.mrb[0].mxu0 %v4001
        %v4266 = vpop.f32.mrb[0].mxu0
        %v4267 = vadd.f32 0.0, %v4266
        %v4268 = vpop.f32.mrb[0].mxu0
        %v4269 = vpop.f32.mrb[0].mxu0
        %v4270 = vadd.f32 0.0, %v4269
        %v4271 = vpop.f32.mrb[0].mxu0
        %4272 = vmatprep.mubr.bf16.mxu0 0
        %4273 = vmatmul.mubr.bf16.gmra.mrb[0].mxu0 %v4002
        %v4274 = vpop.f32.mrb[0].mxu0
        %v4275 = vadd.f32 0.0, %v4274
        %v4276 = vpop.f32.mrb[0].mxu0
        %v4277 = vpop.f32.mrb[0].mxu0
        %v4278 = vadd.f32 0.0, %v4277
        %v4279 = vpop.f32.mrb[0].mxu0
        %4280 = vmatprep.mubr.bf16.mxu0 0
        %4281 = vmatmul.mubr.bf16.gmra.mrb[0].mxu0 %v4003
        %v4282 = vpop.f32.mrb[0].mxu0
        %v4283 = vadd.f32 0.0, %v4282
        %v4284 = vpop.f32.mrb[0].mxu0
        %v4285 = vpop.f32.mrb[0].mxu0
        %v4286 = vadd.f32 0.0, %v4285
        %v4287 = vpop.f32.mrb[0].mxu0
        %4288 = vmatprep.mubr.bf16.mxu0 0
        %4289 = vmatmul.mubr.bf16.gmra.mrb[0].mxu0 %v4004
        %v4290 = vpop.f32.mrb[0].mxu0
        %v4291 = vadd.f32 0.0, %v4290
        %v4292 = vpop.f32.mrb[0].mxu0
        %v4293 = vpop.f32.mrb[0].mxu0
        %v4294 = vadd.f32 0.0, %v4293
        %v4295 = vpop.f32.mrb[0].mxu0
        %4296 = vmatprep.mubr.bf16.mxu0 0
        %4297 = vmatmul.mubr.bf16.gmra.mrb[0].mxu0 %v4005
        %v4298 = vpop.f32.mrb[0].mxu0
        %v4299 = vadd.f32 0.0, %v4298
        %v4300 = vpop.f32.mrb[0].mxu0
        %v4301 = vpop.f32.mrb[0].mxu0
        %v4302 = vadd.f32 0.0, %v4301
        %v4303 = vpop.f32.mrb[0].mxu0
        %4304 = vmatprep.mubr.bf16.mxu0 0
        %4305 = vmatmul.mubr.bf16.gmra.mrb[0].mxu0 %v4006
        %v4306 = vpop.f32.mrb[0].mxu0
        %v4307 = vadd.f32 0.0, %v4306
        %v4308 = vpop.f32.mrb[0].mxu0
        %v4309 = vpop.f32.mrb[0].mxu0
        %v4310 = vadd.f32 0.0, %v4309
        %v4311 = vpop.f32.mrb[0].mxu0
        %4312 = vmatprep.mubr.bf16.mxu0 0
        %4313 = vmatmul.mubr.bf16.gmra.mrb[0].mxu0 %v4007
        %v4314 = vpop.f32.mrb[0].mxu0
        %v4315 = vadd.f32 0.0, %v4314
        %v4316 = vpop.f32.mrb[0].mxu0
        %v4317 = vpop.f32.mrb[0].mxu0
        %v4318 = vadd.f32 0.0, %v4317
        %v4319 = vpop.f32.mrb[0].mxu0
        %4320 = vmatprep.mubr.bf16.mxu0 0
        %4321 = vmatmul.mubr.bf16.gmra.mrb[0].mxu0 %v4008
        %v4322 = vpop.f32.mrb[0].mxu0
        %v4323 = vadd.f32 0.0, %v4322
        %v4324 = vpop.f32.mrb[0].mxu0
        %v4325 = vpop.f32.mrb[0].mxu0
        %v4326 = vadd.f32 0.0, %v4325
        %v4327 = vpop.f32.mrb[0].mxu0
        %4328 = vmatprep.mubr.bf16.mxu0 0
        %4329 = vmatmul.mubr.bf16.gmra.mrb[0].mxu0 %v4009
        %v4330 = vpop.f32.mrb[0].mxu0
        %v4331 = vadd.f32 0.0, %v4330
        %v4332 = vpop.f32.mrb[0].mxu0
        %v4333 = vpop.f32.mrb[0].mxu0
        %v4334 = vadd.f32 0.0, %v4333
        %v4335 = vpop.f32.mrb[0].mxu0
        %4336 = vmatprep.mubr.bf16.mxu0 0
        %4337 = vmatmul.mubr.bf16.gmra.mrb[0].mxu0 %v4010
        %v4338 = vpop.f32.mrb[0].mxu0
        %v4339 = vadd.f32 0.0, %v4338
        %v4340 = vpop.f32.mrb[0].mxu0
        %v4341 = vpop.f32.mrb[0].mxu0
        %v4342 = vadd.f32 0.0, %v4341
        %v4343 = vpop.f32.mrb[0].mxu0
        %4344 = vmatprep.mubr.bf16.mxu0 0
        %4345 = vmatmul.mubr.bf16.gmra.mrb[0].mxu0 %v4011
        %v4346 = vpop.f32.mrb[0].mxu0
        %v4347 = vadd.f32 0.0, %v4346
        %v4348 = vpop.f32.mrb[0].mxu0
        %v4349 = vpop.f32.mrb[0].mxu0
        %v4350 = vadd.f32 0.0, %v4349
        %v4351 = vpop.f32.mrb[0].mxu0
        %4352 = vmatprep.mubr.bf16.mxu0 0
        %4353 = vmatmul.mubr.bf16.gmra.mrb[0].mxu0 %v4012
        %v4354 = vpop.f32.mrb[0].mxu0
        %v4355 = vadd.f32 0.0, %v4354
        %v4356 = vpop.f32.mrb[0].mxu0
        %v4357 = vpop.f32.mrb[0].mxu0
        %v4358 = vadd.f32 0.0, %v4357
        %v4359 = vpop.f32.mrb[0].mxu0
        %4360 = vmatprep.mubr.bf16.mxu0 0
        %4361 = vmatmul.mubr.bf16.gmra.mrb[0].mxu0 %v4013
        %v4362 = vpop.f32.mrb[0].mxu0
        %v4363 = vadd.f32 0.0, %v4362
        %v4364 = vpop.f32.mrb[0].mxu0
        %v4365 = vpop.f32.mrb[0].mxu0
        %v4366 = vadd.f32 0.0, %v4365
        %v4367 = vpop.f32.mrb[0].mxu0
        %4368 = vmatprep.mubr.bf16.mxu0 0
        %4369 = vmatmul.mubr.bf16.gmra.mrb[0].mxu0 %v4014
        %v4370 = vpop.f32.mrb[0].mxu0
        %v4371 = vadd.f32 0.0, %v4370
        %v4372 = vpop.f32.mrb[0].mxu0
        %v4373 = vpop.f32.mrb[0].mxu0
        %v4374 = vadd.f32 0.0, %v4373
        %v4375 = vpop.f32.mrb[0].mxu0
        %4376 = vmatprep.mubr.bf16.mxu0 0
        %4377 = vmatmul.mubr.bf16.gmra.mrb[0].mxu0 %v4015
        %v4378 = vpop.f32.mrb[0].mxu0
        %v4379 = vadd.f32 0.0, %v4378
        %v4380 = vpop.f32.mrb[0].mxu0
        %v4381 = vpop.f32.mrb[0].mxu0
        %v4382 = vadd.f32 0.0, %v4381
        %v4383 = vpop.f32.mrb[0].mxu0
        %4384 = vdwg.mxu0
        %v4385 = vadd.f32 %v3326, %v4131
        %v4386 = vadd.f32 %v3329, %v4134
        %v4387 = vadd.f32 %v3334, %v4139
        %v4388 = vadd.f32 %v3337, %v4142
        %v4389 = vadd.f32 %v3342, %v4147
        %v4390 = vadd.f32 %v3345, %v4150
        %v4391 = vadd.f32 %v3350, %v4155
        %v4392 = vadd.f32 %v3353, %v4158
        %v4393 = vadd.f32 %v3358, %v4163
        %v4394 = vadd.f32 %v3361, %v4166
        %v4395 = vadd.f32 %v3366, %v4171
        %v4396 = vadd.f32 %v3369, %v4174
        %v4397 = vadd.f32 %v3374, %v4179
        %v4398 = vadd.f32 %v3377, %v4182
        %v4399 = vadd.f32 %v3382, %v4187
        %v4400 = vadd.f32 %v3385, %v4190
        %v4401 = vadd.f32 %v3390, %v4195
        %v4402 = vadd.f32 %v3393, %v4198
        %v4403 = vadd.f32 %v3398, %v4203
        %v4404 = vadd.f32 %v3401, %v4206
        %v4405 = vadd.f32 %v3406, %v4211
        %v4406 = vadd.f32 %v3409, %v4214
        %v4407 = vadd.f32 %v3414, %v4219
        %v4408 = vadd.f32 %v3417, %v4222
        %v4409 = vadd.f32 %v3422, %v4227
        %v4410 = vadd.f32 %v3425, %v4230
        %v4411 = vadd.f32 %v3430, %v4235
        %v4412 = vadd.f32 %v3433, %v4238
        %v4413 = vadd.f32 %v3438, %v4243
        %v4414 = vadd.f32 %v3441, %v4246
        %v4415 = vadd.f32 %v3446, %v4251
        %v4416 = vadd.f32 %v3449, %v4254
        %v4417 = vadd.f32 %v3454, %v4259
        %v4418 = vadd.f32 %v3457, %v4262
        %v4419 = vadd.f32 %v3462, %v4267
        %v4420 = vadd.f32 %v3465, %v4270
        %v4421 = vadd.f32 %v3470, %v4275
        %v4422 = vadd.f32 %v3473, %v4278
        %v4423 = vadd.f32 %v3478, %v4283
        %v4424 = vadd.f32 %v3481, %v4286
        %v4425 = vadd.f32 %v3486, %v4291
        %v4426 = vadd.f32 %v3489, %v4294
        %v4427 = vadd.f32 %v3494, %v4299
        %v4428 = vadd.f32 %v3497, %v4302
        %v4429 = vadd.f32 %v3502, %v4307
        %v4430 = vadd.f32 %v3505, %v4310
        %v4431 = vadd.f32 %v3510, %v4315
        %v4432 = vadd.f32 %v3513, %v4318
        %v4433 = vadd.f32 %v3518, %v4323
        %v4434 = vadd.f32 %v3521, %v4326
        %v4435 = vadd.f32 %v3526, %v4331
        %v4436 = vadd.f32 %v3529, %v4334
        %v4437 = vadd.f32 %v3534, %v4339
        %v4438 = vadd.f32 %v3537, %v4342
        %v4439 = vadd.f32 %v3542, %v4347
        %v4440 = vadd.f32 %v3545, %v4350
        %v4441 = vadd.f32 %v3550, %v4355
        %v4442 = vadd.f32 %v3553, %v4358
        %v4443 = vadd.f32 %v3558, %v4363
        %v4444 = vadd.f32 %v3561, %v4366
        %v4445 = vadd.f32 %v3566, %v4371
        %v4446 = vadd.f32 %v3569, %v4374
        %v4447 = vadd.f32 %v3574, %v4379
        %v4448 = vadd.f32 %v3577, %v4382
        %s4449 = scalar_lea.vmem %s208, 192 [#allocation6]
        %v4450 = vld [vmem:[%s4449] sm:$0xf]
        %v4451 = vld [vmem:[%s4449 + $0x4] sm:$0xf]
        %v4452 = vld [vmem:[%s4449 + $0x8] sm:$0xf]
        %v4453 = vld [vmem:[%s4449 + $0xc] sm:$0xf]
        %v4454 = vld [vmem:[%s4449 + $0x10] sm:$0xf]
        %v4455 = vld [vmem:[%s4449 + $0x14] sm:$0xf]
        %v4456 = vld [vmem:[%s4449 + $0x18] sm:$0xf]
        %v4457 = vld [vmem:[%s4449 + $0x1c] sm:$0xf]
        %v4458 = vld [vmem:[%s4449 + $0x20] sm:$0xf]
        %v4459 = vld [vmem:[%s4449 + $0x24] sm:$0xf]
        %v4460 = vld [vmem:[%s4449 + $0x28] sm:$0xf]
        %v4461 = vld [vmem:[%s4449 + $0x2c] sm:$0xf]
        %v4462 = vld [vmem:[%s4449 + $0x30] sm:$0xf]
        %v4463 = vld [vmem:[%s4449 + $0x34] sm:$0xf]
        %v4464 = vld [vmem:[%s4449 + $0x38] sm:$0xf]
        %v4465 = vld [vmem:[%s4449 + $0x3c] sm:$0xf]
        %v4474 = vunpack.c.l.b16 %v1510
        %v4475 = vunpack.c.l.b16 %v1530
        %v4476 = vunpack.c.l.b16 %v1550
        %v4477 = vunpack.c.l.b16 %v1570
        %v4478 = vunpack.c.l.b16 %v1590
        %v4479 = vunpack.c.l.b16 %v1610
        %v4480 = vunpack.c.l.b16 %v1630
        %v4481 = vunpack.c.l.b16 %v1650
        %v4482 = vpack.c.b16 %v3117, %v3116
        %v4483 = vpack.c.b16 %v3119, %v3118
        %v4484 = vpack.c.b16 %v3121, %v3120
        %v4485 = vpack.c.b16 %v4474, %v3122
        %v4486 = vpack.c.b16 %v3125, %v3124
        %v4487 = vpack.c.b16 %v3127, %v3126
        %v4488 = vpack.c.b16 %v3129, %v3128
        %v4489 = vpack.c.b16 %v4475, %v3130
        %v4490 = vpack.c.b16 %v3133, %v3132
        %v4491 = vpack.c.b16 %v3135, %v3134
        %v4492 = vpack.c.b16 %v3137, %v3136
        %v4493 = vpack.c.b16 %v4476, %v3138
        %v4494 = vpack.c.b16 %v3141, %v3140
        %v4495 = vpack.c.b16 %v3143, %v3142
        %v4496 = vpack.c.b16 %v3145, %v3144
        %v4497 = vpack.c.b16 %v4477, %v3146
        %v4498 = vpack.c.b16 %v3149, %v3148
        %v4499 = vpack.c.b16 %v3151, %v3150
        %v4500 = vpack.c.b16 %v3153, %v3152
        %v4501 = vpack.c.b16 %v4478, %v3154
        %v4502 = vpack.c.b16 %v3157, %v3156
        %v4503 = vpack.c.b16 %v3159, %v3158
        %v4504 = vpack.c.b16 %v3161, %v3160
        %v4505 = vpack.c.b16 %v4479, %v3162
        %v4506 = vpack.c.b16 %v3165, %v3164
        %v4507 = vpack.c.b16 %v3167, %v3166
        %v4508 = vpack.c.b16 %v3169, %v3168
        %v4509 = vpack.c.b16 %v4480, %v3170
        %v4510 = vpack.c.b16 %v3173, %v3172
        %v4511 = vpack.c.b16 %v3175, %v3174
        %v4512 = vpack.c.b16 %v3177, %v3176
        %v4513 = vpack.c.b16 %v4481, %v3178
        %v4562 = vunpack.c.l.b16 %v4450
        %v4563 = vunpack.c.l.b16 %v4451
        %v4564 = vunpack.c.l.b16 %v4452
        %v4565 = vunpack.c.l.b16 %v4453
        %v4566 = vunpack.c.l.b16 %v4454
        %v4567 = vunpack.c.l.b16 %v4455
        %v4568 = vunpack.c.l.b16 %v4456
        %v4569 = vunpack.c.l.b16 %v4457
        %v4570 = vunpack.c.l.b16 %v4458
        %v4571 = vunpack.c.l.b16 %v4459
        %v4572 = vunpack.c.l.b16 %v4460
        %v4573 = vunpack.c.l.b16 %v4461
        %v4574 = vunpack.c.l.b16 %v4462
        %v4575 = vunpack.c.l.b16 %v4463
        %v4576 = vunpack.c.l.b16 %v4464
        %v4577 = vunpack.c.l.b16 %v4465
        %v4578 = vpack.c.b16 %v4563, %v4562
        %v4579 = vpack.c.b16 %v4565, %v4564
        %v4580 = vpack.c.b16 %v4567, %v4566
        %v4581 = vpack.c.b16 %v4569, %v4568
        %v4582 = vpack.c.b16 %v4571, %v4570
        %v4583 = vpack.c.b16 %v4573, %v4572
        %v4584 = vpack.c.b16 %v4575, %v4574
        %v4585 = vpack.c.b16 %v4577, %v4576
        %4594 = vmatprep.subr.bf16.mxu0 0
        %4595 = vmatpush1.bf16.msra.mxu0 %v4578
        %4596 = vmatprep.subr.bf16.mxu0 0
        %4597 = vmatpush1.bf16.msra.mxu0 %v4579
        %4598 = vmatprep.subr.bf16.mxu0 0
        %4599 = vmatpush1.bf16.msra.mxu0 %v4580
        %4600 = vmatprep.subr.bf16.mxu0 0
        %4601 = vmatpush1.bf16.msra.mxu0 %v4581
        %4602 = vmatprep.subr.bf16.mxu0 0
        %4603 = vmatpush1.bf16.msra.mxu0 %v4582
        %4604 = vmatprep.subr.bf16.mxu0 0
        %4605 = vmatpush1.bf16.msra.mxu0 %v4583
        %4606 = vmatprep.subr.bf16.mxu0 0
        %4607 = vmatpush1.bf16.msra.mxu0 %v4584
        %4608 = vmatprep.subr.bf16.mxu0 0
        %4609 = vmatpush1.bf16.msra.mxu0 %v4585
        %4610 = vmatprep.subr.bf16.mxu0 0
        %4611 = vmatpush1.bf16.msra.mxu0 0
        %4612 = vmatprep.subr.bf16.mxu0 0
        %4613 = vmatpush1.bf16.msra.mxu0 0
        %4614 = vmatprep.subr.bf16.mxu0 0
        %4615 = vmatpush1.bf16.msra.mxu0 0
        %4616 = vmatprep.subr.bf16.mxu0 0
        %4617 = vmatpush1.bf16.msra.mxu0 0
        %4618 = vmatprep.subr.bf16.mxu0 0
        %4619 = vmatpush1.bf16.msra.mxu0 0
        %4620 = vmatprep.subr.bf16.mxu0 0
        %4621 = vmatpush1.bf16.msra.mxu0 0
        %4622 = vmatprep.subr.bf16.mxu0 0
        %4623 = vmatpush1.bf16.msra.mxu0 0
        %4624 = vmatprep.subr.bf16.mxu0 0
        %4625 = vmatpush1.bf16.msra.mxu0 0
        %4626 = vmatprep.mubr.bf16.mxu0 0
        %4627 = vmatmul.mubr.bf16.gmra.mrb[0].mxu0 %v4482
        %v4628 = vpop.f32.mrb[0].mxu0
        %v4629 = vadd.f32 0.0, %v4628
        %v4630 = vpop.f32.mrb[0].mxu0
        %v4631 = vpop.f32.mrb[0].mxu0
        %v4632 = vadd.f32 0.0, %v4631
        %v4633 = vpop.f32.mrb[0].mxu0
        %4634 = vmatprep.mubr.bf16.mxu0 0
        %4635 = vmatmul.mubr.bf16.gmra.mrb[0].mxu0 %v4483
        %v4636 = vpop.f32.mrb[0].mxu0
        %v4637 = vadd.f32 0.0, %v4636
        %v4638 = vpop.f32.mrb[0].mxu0
        %v4639 = vpop.f32.mrb[0].mxu0
        %v4640 = vadd.f32 0.0, %v4639
        %v4641 = vpop.f32.mrb[0].mxu0
        %4642 = vmatprep.mubr.bf16.mxu0 0
        %4643 = vmatmul.mubr.bf16.gmra.mrb[0].mxu0 %v4484
        %v4644 = vpop.f32.mrb[0].mxu0
        %v4645 = vadd.f32 0.0, %v4644
        %v4646 = vpop.f32.mrb[0].mxu0
        %v4647 = vpop.f32.mrb[0].mxu0
        %v4648 = vadd.f32 0.0, %v4647
        %v4649 = vpop.f32.mrb[0].mxu0
        %4650 = vmatprep.mubr.bf16.mxu0 0
        %4651 = vmatmul.mubr.bf16.gmra.mrb[0].mxu0 %v4485
        %v4652 = vpop.f32.mrb[0].mxu0
        %v4653 = vadd.f32 0.0, %v4652
        %v4654 = vpop.f32.mrb[0].mxu0
        %v4655 = vpop.f32.mrb[0].mxu0
        %v4656 = vadd.f32 0.0, %v4655
        %v4657 = vpop.f32.mrb[0].mxu0
        %4658 = vmatprep.mubr.bf16.mxu0 0
        %4659 = vmatmul.mubr.bf16.gmra.mrb[0].mxu0 %v4486
        %v4660 = vpop.f32.mrb[0].mxu0
        %v4661 = vadd.f32 0.0, %v4660
        %v4662 = vpop.f32.mrb[0].mxu0
        %v4663 = vpop.f32.mrb[0].mxu0
        %v4664 = vadd.f32 0.0, %v4663
        %v4665 = vpop.f32.mrb[0].mxu0
        %4666 = vmatprep.mubr.bf16.mxu0 0
        %4667 = vmatmul.mubr.bf16.gmra.mrb[0].mxu0 %v4487
        %v4668 = vpop.f32.mrb[0].mxu0
        %v4669 = vadd.f32 0.0, %v4668
        %v4670 = vpop.f32.mrb[0].mxu0
        %v4671 = vpop.f32.mrb[0].mxu0
        %v4672 = vadd.f32 0.0, %v4671
        %v4673 = vpop.f32.mrb[0].mxu0
        %4674 = vmatprep.mubr.bf16.mxu0 0
        %4675 = vmatmul.mubr.bf16.gmra.mrb[0].mxu0 %v4488
        %v4676 = vpop.f32.mrb[0].mxu0
        %v4677 = vadd.f32 0.0, %v4676
        %v4678 = vpop.f32.mrb[0].mxu0
        %v4679 = vpop.f32.mrb[0].mxu0
        %v4680 = vadd.f32 0.0, %v4679
        %v4681 = vpop.f32.mrb[0].mxu0
        %4682 = vmatprep.mubr.bf16.mxu0 0
        %4683 = vmatmul.mubr.bf16.gmra.mrb[0].mxu0 %v4489
        %v4684 = vpop.f32.mrb[0].mxu0
        %v4685 = vadd.f32 0.0, %v4684
        %v4686 = vpop.f32.mrb[0].mxu0
        %v4687 = vpop.f32.mrb[0].mxu0
        %v4688 = vadd.f32 0.0, %v4687
        %v4689 = vpop.f32.mrb[0].mxu0
        %4690 = vmatprep.mubr.bf16.mxu0 0
        %4691 = vmatmul.mubr.bf16.gmra.mrb[0].mxu0 %v4490
        %v4692 = vpop.f32.mrb[0].mxu0
        %v4693 = vadd.f32 0.0, %v4692
        %v4694 = vpop.f32.mrb[0].mxu0
        %v4695 = vpop.f32.mrb[0].mxu0
        %v4696 = vadd.f32 0.0, %v4695
        %v4697 = vpop.f32.mrb[0].mxu0
        %4698 = vmatprep.mubr.bf16.mxu0 0
        %4699 = vmatmul.mubr.bf16.gmra.mrb[0].mxu0 %v4491
        %v4700 = vpop.f32.mrb[0].mxu0
        %v4701 = vadd.f32 0.0, %v4700
        %v4702 = vpop.f32.mrb[0].mxu0
        %v4703 = vpop.f32.mrb[0].mxu0
        %v4704 = vadd.f32 0.0, %v4703
        %v4705 = vpop.f32.mrb[0].mxu0
        %4706 = vmatprep.mubr.bf16.mxu0 0
        %4707 = vmatmul.mubr.bf16.gmra.mrb[0].mxu0 %v4492
        %v4708 = vpop.f32.mrb[0].mxu0
        %v4709 = vadd.f32 0.0, %v4708
        %v4710 = vpop.f32.mrb[0].mxu0
        %v4711 = vpop.f32.mrb[0].mxu0
        %v4712 = vadd.f32 0.0, %v4711
        %v4713 = vpop.f32.mrb[0].mxu0
        %4714 = vmatprep.mubr.bf16.mxu0 0
        %4715 = vmatmul.mubr.bf16.gmra.mrb[0].mxu0 %v4493
        %v4716 = vpop.f32.mrb[0].mxu0
        %v4717 = vadd.f32 0.0, %v4716
        %v4718 = vpop.f32.mrb[0].mxu0
        %v4719 = vpop.f32.mrb[0].mxu0
        %v4720 = vadd.f32 0.0, %v4719
        %v4721 = vpop.f32.mrb[0].mxu0
        %4722 = vmatprep.mubr.bf16.mxu0 0
        %4723 = vmatmul.mubr.bf16.gmra.mrb[0].mxu0 %v4494
        %v4724 = vpop.f32.mrb[0].mxu0
        %v4725 = vadd.f32 0.0, %v4724
        %v4726 = vpop.f32.mrb[0].mxu0
        %v4727 = vpop.f32.mrb[0].mxu0
        %v4728 = vadd.f32 0.0, %v4727
        %v4729 = vpop.f32.mrb[0].mxu0
        %4730 = vmatprep.mubr.bf16.mxu0 0
        %4731 = vmatmul.mubr.bf16.gmra.mrb[0].mxu0 %v4495
        %v4732 = vpop.f32.mrb[0].mxu0
        %v4733 = vadd.f32 0.0, %v4732
        %v4734 = vpop.f32.mrb[0].mxu0
        %v4735 = vpop.f32.mrb[0].mxu0
        %v4736 = vadd.f32 0.0, %v4735
        %v4737 = vpop.f32.mrb[0].mxu0
        %4738 = vmatprep.mubr.bf16.mxu0 0
        %4739 = vmatmul.mubr.bf16.gmra.mrb[0].mxu0 %v4496
        %v4740 = vpop.f32.mrb[0].mxu0
        %v4741 = vadd.f32 0.0, %v4740
        %v4742 = vpop.f32.mrb[0].mxu0
        %v4743 = vpop.f32.mrb[0].mxu0
        %v4744 = vadd.f32 0.0, %v4743
        %v4745 = vpop.f32.mrb[0].mxu0
        %4746 = vmatprep.mubr.bf16.mxu0 0
        %4747 = vmatmul.mubr.bf16.gmra.mrb[0].mxu0 %v4497
        %v4748 = vpop.f32.mrb[0].mxu0
        %v4749 = vadd.f32 0.0, %v4748
        %v4750 = vpop.f32.mrb[0].mxu0
        %v4751 = vpop.f32.mrb[0].mxu0
        %v4752 = vadd.f32 0.0, %v4751
        %v4753 = vpop.f32.mrb[0].mxu0
        %4754 = vmatprep.mubr.bf16.mxu0 0
        %4755 = vmatmul.mubr.bf16.gmra.mrb[0].mxu0 %v4498
        %v4756 = vpop.f32.mrb[0].mxu0
        %v4757 = vadd.f32 0.0, %v4756
        %v4758 = vpop.f32.mrb[0].mxu0
        %v4759 = vpop.f32.mrb[0].mxu0
        %v4760 = vadd.f32 0.0, %v4759
        %v4761 = vpop.f32.mrb[0].mxu0
        %4762 = vmatprep.mubr.bf16.mxu0 0
        %4763 = vmatmul.mubr.bf16.gmra.mrb[0].mxu0 %v4499
        %v4764 = vpop.f32.mrb[0].mxu0
        %v4765 = vadd.f32 0.0, %v4764
        %v4766 = vpop.f32.mrb[0].mxu0
        %v4767 = vpop.f32.mrb[0].mxu0
        %v4768 = vadd.f32 0.0, %v4767
        %v4769 = vpop.f32.mrb[0].mxu0
        %4770 = vmatprep.mubr.bf16.mxu0 0
        %4771 = vmatmul.mubr.bf16.gmra.mrb[0].mxu0 %v4500
        %v4772 = vpop.f32.mrb[0].mxu0
        %v4773 = vadd.f32 0.0, %v4772
        %v4774 = vpop.f32.mrb[0].mxu0
        %v4775 = vpop.f32.mrb[0].mxu0
        %v4776 = vadd.f32 0.0, %v4775
        %v4777 = vpop.f32.mrb[0].mxu0
        %4778 = vmatprep.mubr.bf16.mxu0 0
        %4779 = vmatmul.mubr.bf16.gmra.mrb[0].mxu0 %v4501
        %v4780 = vpop.f32.mrb[0].mxu0
        %v4781 = vadd.f32 0.0, %v4780
        %v4782 = vpop.f32.mrb[0].mxu0
        %v4783 = vpop.f32.mrb[0].mxu0
        %v4784 = vadd.f32 0.0, %v4783
        %v4785 = vpop.f32.mrb[0].mxu0
        %4786 = vmatprep.mubr.bf16.mxu0 0
        %4787 = vmatmul.mubr.bf16.gmra.mrb[0].mxu0 %v4502
        %v4788 = vpop.f32.mrb[0].mxu0
        %v4789 = vadd.f32 0.0, %v4788
        %v4790 = vpop.f32.mrb[0].mxu0
        %v4791 = vpop.f32.mrb[0].mxu0
        %v4792 = vadd.f32 0.0, %v4791
        %v4793 = vpop.f32.mrb[0].mxu0
        %4794 = vmatprep.mubr.bf16.mxu0 0
        %4795 = vmatmul.mubr.bf16.gmra.mrb[0].mxu0 %v4503
        %v4796 = vpop.f32.mrb[0].mxu0
        %v4797 = vadd.f32 0.0, %v4796
        %v4798 = vpop.f32.mrb[0].mxu0
        %v4799 = vpop.f32.mrb[0].mxu0
        %v4800 = vadd.f32 0.0, %v4799
        %v4801 = vpop.f32.mrb[0].mxu0
        %4802 = vmatprep.mubr.bf16.mxu0 0
        %4803 = vmatmul.mubr.bf16.gmra.mrb[0].mxu0 %v4504
        %v4804 = vpop.f32.mrb[0].mxu0
        %v4805 = vadd.f32 0.0, %v4804
        %v4806 = vpop.f32.mrb[0].mxu0
        %v4807 = vpop.f32.mrb[0].mxu0
        %v4808 = vadd.f32 0.0, %v4807
        %v4809 = vpop.f32.mrb[0].mxu0
        %4810 = vmatprep.mubr.bf16.mxu0 0
        %4811 = vmatmul.mubr.bf16.gmra.mrb[0].mxu0 %v4505
        %v4812 = vpop.f32.mrb[0].mxu0
        %v4813 = vadd.f32 0.0, %v4812
        %v4814 = vpop.f32.mrb[0].mxu0
        %v4815 = vpop.f32.mrb[0].mxu0
        %v4816 = vadd.f32 0.0, %v4815
        %v4817 = vpop.f32.mrb[0].mxu0
        %4818 = vmatprep.mubr.bf16.mxu0 0
        %4819 = vmatmul.mubr.bf16.gmra.mrb[0].mxu0 %v4506
        %v4820 = vpop.f32.mrb[0].mxu0
        %v4821 = vadd.f32 0.0, %v4820
        %v4822 = vpop.f32.mrb[0].mxu0
        %v4823 = vpop.f32.mrb[0].mxu0
        %v4824 = vadd.f32 0.0, %v4823
        %v4825 = vpop.f32.mrb[0].mxu0
        %4826 = vmatprep.mubr.bf16.mxu0 0
        %4827 = vmatmul.mubr.bf16.gmra.mrb[0].mxu0 %v4507
        %v4828 = vpop.f32.mrb[0].mxu0
        %v4829 = vadd.f32 0.0, %v4828
        %v4830 = vpop.f32.mrb[0].mxu0
        %v4831 = vpop.f32.mrb[0].mxu0
        %v4832 = vadd.f32 0.0, %v4831
        %v4833 = vpop.f32.mrb[0].mxu0
        %4834 = vmatprep.mubr.bf16.mxu0 0
        %4835 = vmatmul.mubr.bf16.gmra.mrb[0].mxu0 %v4508
        %v4836 = vpop.f32.mrb[0].mxu0
        %v4837 = vadd.f32 0.0, %v4836
        %v4838 = vpop.f32.mrb[0].mxu0
        %v4839 = vpop.f32.mrb[0].mxu0
        %v4840 = vadd.f32 0.0, %v4839
        %v4841 = vpop.f32.mrb[0].mxu0
        %4842 = vmatprep.mubr.bf16.mxu0 0
        %4843 = vmatmul.mubr.bf16.gmra.mrb[0].mxu0 %v4509
        %v4844 = vpop.f32.mrb[0].mxu0
        %v4845 = vadd.f32 0.0, %v4844
        %v4846 = vpop.f32.mrb[0].mxu0
        %v4847 = vpop.f32.mrb[0].mxu0
        %v4848 = vadd.f32 0.0, %v4847
        %v4849 = vpop.f32.mrb[0].mxu0
        %4850 = vmatprep.mubr.bf16.mxu0 0
        %4851 = vmatmul.mubr.bf16.gmra.mrb[0].mxu0 %v4510
        %v4852 = vpop.f32.mrb[0].mxu0
        %v4853 = vadd.f32 0.0, %v4852
        %v4854 = vpop.f32.mrb[0].mxu0
        %v4855 = vpop.f32.mrb[0].mxu0
        %v4856 = vadd.f32 0.0, %v4855
        %v4857 = vpop.f32.mrb[0].mxu0
        %4858 = vmatprep.mubr.bf16.mxu0 0
        %4859 = vmatmul.mubr.bf16.gmra.mrb[0].mxu0 %v4511
        %v4860 = vpop.f32.mrb[0].mxu0
        %v4861 = vadd.f32 0.0, %v4860
        %v4862 = vpop.f32.mrb[0].mxu0
        %v4863 = vpop.f32.mrb[0].mxu0
        %v4864 = vadd.f32 0.0, %v4863
        %v4865 = vpop.f32.mrb[0].mxu0
        %4866 = vmatprep.mubr.bf16.mxu0 0
        %4867 = vmatmul.mubr.bf16.gmra.mrb[0].mxu0 %v4512
        %v4868 = vpop.f32.mrb[0].mxu0
        %v4869 = vadd.f32 0.0, %v4868
        %v4870 = vpop.f32.mrb[0].mxu0
        %v4871 = vpop.f32.mrb[0].mxu0
        %v4872 = vadd.f32 0.0, %v4871
        %v4873 = vpop.f32.mrb[0].mxu0
        %4874 = vmatprep.mubr.bf16.mxu0 0
        %4875 = vmatmul.mubr.bf16.gmra.mrb[0].mxu0 %v4513
        %v4876 = vpop.f32.mrb[0].mxu0
        %v4877 = vadd.f32 0.0, %v4876
        %v4878 = vpop.f32.mrb[0].mxu0
        %v4879 = vpop.f32.mrb[0].mxu0
        %v4880 = vadd.f32 0.0, %v4879
        %v4881 = vpop.f32.mrb[0].mxu0
        %4882 = vdwg.mxu0
        %v4883 = vadd.f32 %v4385, %v4629
        %v4884 = vadd.f32 %v4386, %v4632
        %v4885 = vadd.f32 %v4387, %v4637
        %v4886 = vadd.f32 %v4388, %v4640
        %v4887 = vadd.f32 %v4389, %v4645
        %v4888 = vadd.f32 %v4390, %v4648
        %v4889 = vadd.f32 %v4391, %v4653
        %v4890 = vadd.f32 %v4392, %v4656
        %v4891 = vadd.f32 %v4393, %v4661
        %v4892 = vadd.f32 %v4394, %v4664
        %v4893 = vadd.f32 %v4395, %v4669
        %v4894 = vadd.f32 %v4396, %v4672
        %v4895 = vadd.f32 %v4397, %v4677
        %v4896 = vadd.f32 %v4398, %v4680
        %v4897 = vadd.f32 %v4399, %v4685
        %v4898 = vadd.f32 %v4400, %v4688
        %v4899 = vadd.f32 %v4401, %v4693
        %v4900 = vadd.f32 %v4402, %v4696
        %v4901 = vadd.f32 %v4403, %v4701
        %v4902 = vadd.f32 %v4404, %v4704
        %v4903 = vadd.f32 %v4405, %v4709
        %v4904 = vadd.f32 %v4406, %v4712
        %v4905 = vadd.f32 %v4407, %v4717
        %v4906 = vadd.f32 %v4408, %v4720
        %v4907 = vadd.f32 %v4409, %v4725
        %v4908 = vadd.f32 %v4410, %v4728
        %v4909 = vadd.f32 %v4411, %v4733
        %v4910 = vadd.f32 %v4412, %v4736
        %v4911 = vadd.f32 %v4413, %v4741
        %v4912 = vadd.f32 %v4414, %v4744
        %v4913 = vadd.f32 %v4415, %v4749
        %v4914 = vadd.f32 %v4416, %v4752
        %v4915 = vadd.f32 %v4417, %v4757
        %v4916 = vadd.f32 %v4418, %v4760
        %v4917 = vadd.f32 %v4419, %v4765
        %v4918 = vadd.f32 %v4420, %v4768
        %v4919 = vadd.f32 %v4421, %v4773
        %v4920 = vadd.f32 %v4422, %v4776
        %v4921 = vadd.f32 %v4423, %v4781
        %v4922 = vadd.f32 %v4424, %v4784
        %v4923 = vadd.f32 %v4425, %v4789
        %v4924 = vadd.f32 %v4426, %v4792
        %v4925 = vadd.f32 %v4427, %v4797
        %v4926 = vadd.f32 %v4428, %v4800
        %v4927 = vadd.f32 %v4429, %v4805
        %v4928 = vadd.f32 %v4430, %v4808
        %v4929 = vadd.f32 %v4431, %v4813
        %v4930 = vadd.f32 %v4432, %v4816
        %v4931 = vadd.f32 %v4433, %v4821
        %v4932 = vadd.f32 %v4434, %v4824
        %v4933 = vadd.f32 %v4435, %v4829
        %v4934 = vadd.f32 %v4436, %v4832
        %v4935 = vadd.f32 %v4437, %v4837
        %v4936 = vadd.f32 %v4438, %v4840
        %v4937 = vadd.f32 %v4439, %v4845
        %v4938 = vadd.f32 %v4440, %v4848
        %v4939 = vadd.f32 %v4441, %v4853
        %v4940 = vadd.f32 %v4442, %v4856
        %v4941 = vadd.f32 %v4443, %v4861
        %v4942 = vadd.f32 %v4444, %v4864
        %v4943 = vadd.f32 %v4445, %v4869
        %v4944 = vadd.f32 %v4446, %v4872
        %v4945 = vadd.f32 %v4447, %v4877
        %v4946 = vadd.f32 %v4448, %v4880
        %v4948 = vshrl.u32 %v1510, 16
        %v4950 = vrot.slane %v4948, 4
        %v4951 = vshll.u32 %v1510, 16
        %v4953 = vrot.slane %v4951, 5
        %v4954 = vor.u32 %v4950, %v4953
        %v4955 = vrot.slane %v4954, 4
        %v4957 = vshll.u32 %v1511, 16
        %v4959 = vrot.slane %v4957, 5
        %v4960 = vsel %vm1672, %v4955, %v4959
        %v4962 = vshrl.u32 %v1530, 16
        %v4964 = vrot.slane %v4962, 4
        %v4965 = vshll.u32 %v1530, 16
        %v4967 = vrot.slane %v4965, 5
        %v4968 = vor.u32 %v4964, %v4967
        %v4969 = vrot.slane %v4968, 4
        %v4971 = vshll.u32 %v1531, 16
        %v4973 = vrot.slane %v4971, 5
        %v4974 = vsel %vm1672, %v4969, %v4973
        %v4976 = vshrl.u32 %v1550, 16
        %v4978 = vrot.slane %v4976, 4
        %v4979 = vshll.u32 %v1550, 16
        %v4981 = vrot.slane %v4979, 5
        %v4982 = vor.u32 %v4978, %v4981
        %v4983 = vrot.slane %v4982, 4
        %v4985 = vshll.u32 %v1551, 16
        %v4987 = vrot.slane %v4985, 5
        %v4988 = vsel %vm1672, %v4983, %v4987
        %v4990 = vshrl.u32 %v1570, 16
        %v4992 = vrot.slane %v4990, 4
        %v4993 = vshll.u32 %v1570, 16
        %v4995 = vrot.slane %v4993, 5
        %v4996 = vor.u32 %v4992, %v4995
        %v4997 = vrot.slane %v4996, 4
        %v4999 = vshll.u32 %v1571, 16
        %v5001 = vrot.slane %v4999, 5
        %v5002 = vsel %vm1672, %v4997, %v5001
        %v5004 = vshrl.u32 %v1590, 16
        %v5006 = vrot.slane %v5004, 4
        %v5007 = vshll.u32 %v1590, 16
        %v5009 = vrot.slane %v5007, 5
        %v5010 = vor.u32 %v5006, %v5009
        %v5011 = vrot.slane %v5010, 4
        %v5013 = vshll.u32 %v1591, 16
        %v5015 = vrot.slane %v5013, 5
        %v5016 = vsel %vm1672, %v5011, %v5015
        %v5018 = vshrl.u32 %v1610, 16
        %v5020 = vrot.slane %v5018, 4
        %v5021 = vshll.u32 %v1610, 16
        %v5023 = vrot.slane %v5021, 5
        %v5024 = vor.u32 %v5020, %v5023
        %v5025 = vrot.slane %v5024, 4
        %v5027 = vshll.u32 %v1611, 16
        %v5029 = vrot.slane %v5027, 5
        %v5030 = vsel %vm1672, %v5025, %v5029
        %v5032 = vshrl.u32 %v1630, 16
        %v5034 = vrot.slane %v5032, 4
        %v5035 = vshll.u32 %v1630, 16
        %v5037 = vrot.slane %v5035, 5
        %v5038 = vor.u32 %v5034, %v5037
        %v5039 = vrot.slane %v5038, 4
        %v5041 = vshll.u32 %v1631, 16
        %v5043 = vrot.slane %v5041, 5
        %v5044 = vsel %vm1672, %v5039, %v5043
        %v5046 = vshrl.u32 %v1650, 16
        %v5048 = vrot.slane %v5046, 4
        %v5049 = vshll.u32 %v1650, 16
        %v5051 = vrot.slane %v5049, 5
        %v5052 = vor.u32 %v5048, %v5051
        %v5053 = vrot.slane %v5052, 4
        %v5055 = vshll.u32 %v1651, 16
        %v5057 = vrot.slane %v5055, 5
        %v5058 = vsel %vm1672, %v5053, %v5057
        %s5059 = scalar_lea.vmem %s208, 256 [#allocation6]
        %v5060 = vld [vmem:[%s5059] sm:$0xf]
        %v5061 = vld [vmem:[%s5059 + $0x4] sm:$0xf]
        %v5062 = vld [vmem:[%s5059 + $0x8] sm:$0xf]
        %v5063 = vld [vmem:[%s5059 + $0xc] sm:$0xf]
        %v5064 = vld [vmem:[%s5059 + $0x10] sm:$0xf]
        %v5065 = vld [vmem:[%s5059 + $0x14] sm:$0xf]
        %v5066 = vld [vmem:[%s5059 + $0x18] sm:$0xf]
        %v5067 = vld [vmem:[%s5059 + $0x1c] sm:$0xf]
        %v5068 = vld [vmem:[%s5059 + $0x20] sm:$0xf]
        %v5069 = vld [vmem:[%s5059 + $0x24] sm:$0xf]
        %v5070 = vld [vmem:[%s5059 + $0x28] sm:$0xf]
        %v5071 = vld [vmem:[%s5059 + $0x2c] sm:$0xf]
        %v5072 = vld [vmem:[%s5059 + $0x30] sm:$0xf]
        %v5073 = vld [vmem:[%s5059 + $0x34] sm:$0xf]
        %v5074 = vld [vmem:[%s5059 + $0x38] sm:$0xf]
        %v5075 = vld [vmem:[%s5059 + $0x3c] sm:$0xf]
        %v5076 = vunpack.c.l.b16 %v4960
        %v5077 = vunpack.c.l.b16 %v4974
        %v5078 = vunpack.c.l.b16 %v4988
        %v5079 = vunpack.c.l.b16 %v5002
        %v5080 = vunpack.c.l.b16 %v5016
        %v5081 = vunpack.c.l.b16 %v5030
        %v5082 = vunpack.c.l.b16 %v5044
        %v5083 = vunpack.c.l.b16 %v5058
        %v5084 = vpack.c.b16 %v2588, %v2587
        %v5085 = vpack.c.b16 %v2590, %v2589
        %v5086 = vpack.c.b16 %v2592, %v2591
        %v5087 = vpack.c.b16 %v5076, %v2593
        %v5088 = vpack.c.b16 %v2596, %v2595
        %v5089 = vpack.c.b16 %v2598, %v2597
        %v5090 = vpack.c.b16 %v2600, %v2599
        %v5091 = vpack.c.b16 %v5077, %v2601
        %v5092 = vpack.c.b16 %v2604, %v2603
        %v5093 = vpack.c.b16 %v2606, %v2605
        %v5094 = vpack.c.b16 %v2608, %v2607
        %v5095 = vpack.c.b16 %v5078, %v2609
        %v5096 = vpack.c.b16 %v2612, %v2611
        %v5097 = vpack.c.b16 %v2614, %v2613
        %v5098 = vpack.c.b16 %v2616, %v2615
        %v5099 = vpack.c.b16 %v5079, %v2617
        %v5100 = vpack.c.b16 %v2620, %v2619
        %v5101 = vpack.c.b16 %v2622, %v2621
        %v5102 = vpack.c.b16 %v2624, %v2623
        %v5103 = vpack.c.b16 %v5080, %v2625
        %v5104 = vpack.c.b16 %v2628, %v2627
        %v5105 = vpack.c.b16 %v2630, %v2629
        %v5106 = vpack.c.b16 %v2632, %v2631
        %v5107 = vpack.c.b16 %v5081, %v2633
        %v5108 = vpack.c.b16 %v2636, %v2635
        %v5109 = vpack.c.b16 %v2638, %v2637
        %v5110 = vpack.c.b16 %v2640, %v2639
        %v5111 = vpack.c.b16 %v5082, %v2641
        %v5112 = vpack.c.b16 %v2644, %v2643
        %v5113 = vpack.c.b16 %v2646, %v2645
        %v5114 = vpack.c.b16 %v2648, %v2647
        %v5115 = vpack.c.b16 %v5083, %v2649
        %v5164 = vunpack.c.l.b16 %v5060
        %v5165 = vunpack.c.l.b16 %v5061
        %v5166 = vunpack.c.l.b16 %v5062
        %v5167 = vunpack.c.l.b16 %v5063
        %v5168 = vunpack.c.l.b16 %v5064
        %v5169 = vunpack.c.l.b16 %v5065
        %v5170 = vunpack.c.l.b16 %v5066
        %v5171 = vunpack.c.l.b16 %v5067
        %v5172 = vunpack.c.l.b16 %v5068
        %v5173 = vunpack.c.l.b16 %v5069
        %v5174 = vunpack.c.l.b16 %v5070
        %v5175 = vunpack.c.l.b16 %v5071
        %v5176 = vunpack.c.l.b16 %v5072
        %v5177 = vunpack.c.l.b16 %v5073
        %v5178 = vunpack.c.l.b16 %v5074
        %v5179 = vunpack.c.l.b16 %v5075
        %v5180 = vpack.c.b16 %v5165, %v5164
        %v5181 = vpack.c.b16 %v5167, %v5166
        %v5182 = vpack.c.b16 %v5169, %v5168
        %v5183 = vpack.c.b16 %v5171, %v5170
        %v5184 = vpack.c.b16 %v5173, %v5172
        %v5185 = vpack.c.b16 %v5175, %v5174
        %v5186 = vpack.c.b16 %v5177, %v5176
        %v5187 = vpack.c.b16 %v5179, %v5178
        %5196 = vmatprep.subr.bf16.mxu0 0
        %5197 = vmatpush1.bf16.msra.mxu0 %v5180
        %5198 = vmatprep.subr.bf16.mxu0 0
        %5199 = vmatpush1.bf16.msra.mxu0 %v5181
        %5200 = vmatprep.subr.bf16.mxu0 0
        %5201 = vmatpush1.bf16.msra.mxu0 %v5182
        %5202 = vmatprep.subr.bf16.mxu0 0
        %5203 = vmatpush1.bf16.msra.mxu0 %v5183
        %5204 = vmatprep.subr.bf16.mxu0 0
        %5205 = vmatpush1.bf16.msra.mxu0 %v5184
        %5206 = vmatprep.subr.bf16.mxu0 0
        %5207 = vmatpush1.bf16.msra.mxu0 %v5185
        %5208 = vmatprep.subr.bf16.mxu0 0
        %5209 = vmatpush1.bf16.msra.mxu0 %v5186
        %5210 = vmatprep.subr.bf16.mxu0 0
        %5211 = vmatpush1.bf16.msra.mxu0 %v5187
        %5212 = vmatprep.subr.bf16.mxu0 0
        %5213 = vmatpush1.bf16.msra.mxu0 0
        %5214 = vmatprep.subr.bf16.mxu0 0
        %5215 = vmatpush1.bf16.msra.mxu0 0
        %5216 = vmatprep.subr.bf16.mxu0 0
        %5217 = vmatpush1.bf16.msra.mxu0 0
        %5218 = vmatprep.subr.bf16.mxu0 0
        %5219 = vmatpush1.bf16.msra.mxu0 0
        %5220 = vmatprep.subr.bf16.mxu0 0
        %5221 = vmatpush1.bf16.msra.mxu0 0
        %5222 = vmatprep.subr.bf16.mxu0 0
        %5223 = vmatpush1.bf16.msra.mxu0 0
        %5224 = vmatprep.subr.bf16.mxu0 0
        %5225 = vmatpush1.bf16.msra.mxu0 0
        %5226 = vmatprep.subr.bf16.mxu0 0
        %5227 = vmatpush1.bf16.msra.mxu0 0
        %5228 = vmatprep.mubr.bf16.mxu0 0
        %5229 = vmatmul.mubr.bf16.gmra.mrb[0].mxu0 %v5084
        %v5230 = vpop.f32.mrb[0].mxu0
        %v5231 = vadd.f32 0.0, %v5230
        %v5232 = vpop.f32.mrb[0].mxu0
        %v5233 = vpop.f32.mrb[0].mxu0
        %v5234 = vadd.f32 0.0, %v5233
        %v5235 = vpop.f32.mrb[0].mxu0
        %5236 = vmatprep.mubr.bf16.mxu0 0
        %5237 = vmatmul.mubr.bf16.gmra.mrb[0].mxu0 %v5085
        %v5238 = vpop.f32.mrb[0].mxu0
        %v5239 = vadd.f32 0.0, %v5238
        %v5240 = vpop.f32.mrb[0].mxu0
        %v5241 = vpop.f32.mrb[0].mxu0
        %v5242 = vadd.f32 0.0, %v5241
        %v5243 = vpop.f32.mrb[0].mxu0
        %5244 = vmatprep.mubr.bf16.mxu0 0
        %5245 = vmatmul.mubr.bf16.gmra.mrb[0].mxu0 %v5086
        %v5246 = vpop.f32.mrb[0].mxu0
        %v5247 = vadd.f32 0.0, %v5246
        %v5248 = vpop.f32.mrb[0].mxu0
        %v5249 = vpop.f32.mrb[0].mxu0
        %v5250 = vadd.f32 0.0, %v5249
        %v5251 = vpop.f32.mrb[0].mxu0
        %5252 = vmatprep.mubr.bf16.mxu0 0
        %5253 = vmatmul.mubr.bf16.gmra.mrb[0].mxu0 %v5087
        %v5254 = vpop.f32.mrb[0].mxu0
        %v5255 = vadd.f32 0.0, %v5254
        %v5256 = vpop.f32.mrb[0].mxu0
        %v5257 = vpop.f32.mrb[0].mxu0
        %v5258 = vadd.f32 0.0, %v5257
        %v5259 = vpop.f32.mrb[0].mxu0
        %5260 = vmatprep.mubr.bf16.mxu0 0
        %5261 = vmatmul.mubr.bf16.gmra.mrb[0].mxu0 %v5088
        %v5262 = vpop.f32.mrb[0].mxu0
        %v5263 = vadd.f32 0.0, %v5262
        %v5264 = vpop.f32.mrb[0].mxu0
        %v5265 = vpop.f32.mrb[0].mxu0
        %v5266 = vadd.f32 0.0, %v5265
        %v5267 = vpop.f32.mrb[0].mxu0
        %5268 = vmatprep.mubr.bf16.mxu0 0
        %5269 = vmatmul.mubr.bf16.gmra.mrb[0].mxu0 %v5089
        %v5270 = vpop.f32.mrb[0].mxu0
        %v5271 = vadd.f32 0.0, %v5270
        %v5272 = vpop.f32.mrb[0].mxu0
        %v5273 = vpop.f32.mrb[0].mxu0
        %v5274 = vadd.f32 0.0, %v5273
        %v5275 = vpop.f32.mrb[0].mxu0
        %5276 = vmatprep.mubr.bf16.mxu0 0
        %5277 = vmatmul.mubr.bf16.gmra.mrb[0].mxu0 %v5090
        %v5278 = vpop.f32.mrb[0].mxu0
        %v5279 = vadd.f32 0.0, %v5278
        %v5280 = vpop.f32.mrb[0].mxu0
        %v5281 = vpop.f32.mrb[0].mxu0
        %v5282 = vadd.f32 0.0, %v5281
        %v5283 = vpop.f32.mrb[0].mxu0
        %5284 = vmatprep.mubr.bf16.mxu0 0
        %5285 = vmatmul.mubr.bf16.gmra.mrb[0].mxu0 %v5091
        %v5286 = vpop.f32.mrb[0].mxu0
        %v5287 = vadd.f32 0.0, %v5286
        %v5288 = vpop.f32.mrb[0].mxu0
        %v5289 = vpop.f32.mrb[0].mxu0
        %v5290 = vadd.f32 0.0, %v5289
        %v5291 = vpop.f32.mrb[0].mxu0
        %5292 = vmatprep.mubr.bf16.mxu0 0
        %5293 = vmatmul.mubr.bf16.gmra.mrb[0].mxu0 %v5092
        %v5294 = vpop.f32.mrb[0].mxu0
        %v5295 = vadd.f32 0.0, %v5294
        %v5296 = vpop.f32.mrb[0].mxu0
        %v5297 = vpop.f32.mrb[0].mxu0
        %v5298 = vadd.f32 0.0, %v5297
        %v5299 = vpop.f32.mrb[0].mxu0
        %5300 = vmatprep.mubr.bf16.mxu0 0
        %5301 = vmatmul.mubr.bf16.gmra.mrb[0].mxu0 %v5093
        %v5302 = vpop.f32.mrb[0].mxu0
        %v5303 = vadd.f32 0.0, %v5302
        %v5304 = vpop.f32.mrb[0].mxu0
        %v5305 = vpop.f32.mrb[0].mxu0
        %v5306 = vadd.f32 0.0, %v5305
        %v5307 = vpop.f32.mrb[0].mxu0
        %5308 = vmatprep.mubr.bf16.mxu0 0
        %5309 = vmatmul.mubr.bf16.gmra.mrb[0].mxu0 %v5094
        %v5310 = vpop.f32.mrb[0].mxu0
        %v5311 = vadd.f32 0.0, %v5310
        %v5312 = vpop.f32.mrb[0].mxu0
        %v5313 = vpop.f32.mrb[0].mxu0
        %v5314 = vadd.f32 0.0, %v5313
        %v5315 = vpop.f32.mrb[0].mxu0
        %5316 = vmatprep.mubr.bf16.mxu0 0
        %5317 = vmatmul.mubr.bf16.gmra.mrb[0].mxu0 %v5095
        %v5318 = vpop.f32.mrb[0].mxu0
        %v5319 = vadd.f32 0.0, %v5318
        %v5320 = vpop.f32.mrb[0].mxu0
        %v5321 = vpop.f32.mrb[0].mxu0
        %v5322 = vadd.f32 0.0, %v5321
        %v5323 = vpop.f32.mrb[0].mxu0
        %5324 = vmatprep.mubr.bf16.mxu0 0
        %5325 = vmatmul.mubr.bf16.gmra.mrb[0].mxu0 %v5096
        %v5326 = vpop.f32.mrb[0].mxu0
        %v5327 = vadd.f32 0.0, %v5326
        %v5328 = vpop.f32.mrb[0].mxu0
        %v5329 = vpop.f32.mrb[0].mxu0
        %v5330 = vadd.f32 0.0, %v5329
        %v5331 = vpop.f32.mrb[0].mxu0
        %5332 = vmatprep.mubr.bf16.mxu0 0
        %5333 = vmatmul.mubr.bf16.gmra.mrb[0].mxu0 %v5097
        %v5334 = vpop.f32.mrb[0].mxu0
        %v5335 = vadd.f32 0.0, %v5334
        %v5336 = vpop.f32.mrb[0].mxu0
        %v5337 = vpop.f32.mrb[0].mxu0
        %v5338 = vadd.f32 0.0, %v5337
        %v5339 = vpop.f32.mrb[0].mxu0
        %5340 = vmatprep.mubr.bf16.mxu0 0
        %5341 = vmatmul.mubr.bf16.gmra.mrb[0].mxu0 %v5098
        %v5342 = vpop.f32.mrb[0].mxu0
        %v5343 = vadd.f32 0.0, %v5342
        %v5344 = vpop.f32.mrb[0].mxu0
        %v5345 = vpop.f32.mrb[0].mxu0
        %v5346 = vadd.f32 0.0, %v5345
        %v5347 = vpop.f32.mrb[0].mxu0
        %5348 = vmatprep.mubr.bf16.mxu0 0
        %5349 = vmatmul.mubr.bf16.gmra.mrb[0].mxu0 %v5099
        %v5350 = vpop.f32.mrb[0].mxu0
        %v5351 = vadd.f32 0.0, %v5350
        %v5352 = vpop.f32.mrb[0].mxu0
        %v5353 = vpop.f32.mrb[0].mxu0
        %v5354 = vadd.f32 0.0, %v5353
        %v5355 = vpop.f32.mrb[0].mxu0
        %5356 = vmatprep.mubr.bf16.mxu0 0
        %5357 = vmatmul.mubr.bf16.gmra.mrb[0].mxu0 %v5100
        %v5358 = vpop.f32.mrb[0].mxu0
        %v5359 = vadd.f32 0.0, %v5358
        %v5360 = vpop.f32.mrb[0].mxu0
        %v5361 = vpop.f32.mrb[0].mxu0
        %v5362 = vadd.f32 0.0, %v5361
        %v5363 = vpop.f32.mrb[0].mxu0
        %5364 = vmatprep.mubr.bf16.mxu0 0
        %5365 = vmatmul.mubr.bf16.gmra.mrb[0].mxu0 %v5101
        %v5366 = vpop.f32.mrb[0].mxu0
        %v5367 = vadd.f32 0.0, %v5366
        %v5368 = vpop.f32.mrb[0].mxu0
        %v5369 = vpop.f32.mrb[0].mxu0
        %v5370 = vadd.f32 0.0, %v5369
        %v5371 = vpop.f32.mrb[0].mxu0
        %5372 = vmatprep.mubr.bf16.mxu0 0
        %5373 = vmatmul.mubr.bf16.gmra.mrb[0].mxu0 %v5102
        %v5374 = vpop.f32.mrb[0].mxu0
        %v5375 = vadd.f32 0.0, %v5374
        %v5376 = vpop.f32.mrb[0].mxu0
        %v5377 = vpop.f32.mrb[0].mxu0
        %v5378 = vadd.f32 0.0, %v5377
        %v5379 = vpop.f32.mrb[0].mxu0
        %5380 = vmatprep.mubr.bf16.mxu0 0
        %5381 = vmatmul.mubr.bf16.gmra.mrb[0].mxu0 %v5103
        %v5382 = vpop.f32.mrb[0].mxu0
        %v5383 = vadd.f32 0.0, %v5382
        %v5384 = vpop.f32.mrb[0].mxu0
        %v5385 = vpop.f32.mrb[0].mxu0
        %v5386 = vadd.f32 0.0, %v5385
        %v5387 = vpop.f32.mrb[0].mxu0
        %5388 = vmatprep.mubr.bf16.mxu0 0
        %5389 = vmatmul.mubr.bf16.gmra.mrb[0].mxu0 %v5104
        %v5390 = vpop.f32.mrb[0].mxu0
        %v5391 = vadd.f32 0.0, %v5390
        %v5392 = vpop.f32.mrb[0].mxu0
        %v5393 = vpop.f32.mrb[0].mxu0
        %v5394 = vadd.f32 0.0, %v5393
        %v5395 = vpop.f32.mrb[0].mxu0
        %5396 = vmatprep.mubr.bf16.mxu0 0
        %5397 = vmatmul.mubr.bf16.gmra.mrb[0].mxu0 %v5105
        %v5398 = vpop.f32.mrb[0].mxu0
        %v5399 = vadd.f32 0.0, %v5398
        %v5400 = vpop.f32.mrb[0].mxu0
        %v5401 = vpop.f32.mrb[0].mxu0
        %v5402 = vadd.f32 0.0, %v5401
        %v5403 = vpop.f32.mrb[0].mxu0
        %5404 = vmatprep.mubr.bf16.mxu0 0
        %5405 = vmatmul.mubr.bf16.gmra.mrb[0].mxu0 %v5106
        %v5406 = vpop.f32.mrb[0].mxu0
        %v5407 = vadd.f32 0.0, %v5406
        %v5408 = vpop.f32.mrb[0].mxu0
        %v5409 = vpop.f32.mrb[0].mxu0
        %v5410 = vadd.f32 0.0, %v5409
        %v5411 = vpop.f32.mrb[0].mxu0
        %5412 = vmatprep.mubr.bf16.mxu0 0
        %5413 = vmatmul.mubr.bf16.gmra.mrb[0].mxu0 %v5107
        %v5414 = vpop.f32.mrb[0].mxu0
        %v5415 = vadd.f32 0.0, %v5414
        %v5416 = vpop.f32.mrb[0].mxu0
        %v5417 = vpop.f32.mrb[0].mxu0
        %v5418 = vadd.f32 0.0, %v5417
        %v5419 = vpop.f32.mrb[0].mxu0
        %5420 = vmatprep.mubr.bf16.mxu0 0
        %5421 = vmatmul.mubr.bf16.gmra.mrb[0].mxu0 %v5108
        %v5422 = vpop.f32.mrb[0].mxu0
        %v5423 = vadd.f32 0.0, %v5422
        %v5424 = vpop.f32.mrb[0].mxu0
        %v5425 = vpop.f32.mrb[0].mxu0
        %v5426 = vadd.f32 0.0, %v5425
        %v5427 = vpop.f32.mrb[0].mxu0
        %5428 = vmatprep.mubr.bf16.mxu0 0
        %5429 = vmatmul.mubr.bf16.gmra.mrb[0].mxu0 %v5109
        %v5430 = vpop.f32.mrb[0].mxu0
        %v5431 = vadd.f32 0.0, %v5430
        %v5432 = vpop.f32.mrb[0].mxu0
        %v5433 = vpop.f32.mrb[0].mxu0
        %v5434 = vadd.f32 0.0, %v5433
        %v5435 = vpop.f32.mrb[0].mxu0
        %5436 = vmatprep.mubr.bf16.mxu0 0
        %5437 = vmatmul.mubr.bf16.gmra.mrb[0].mxu0 %v5110
        %v5438 = vpop.f32.mrb[0].mxu0
        %v5439 = vadd.f32 0.0, %v5438
        %v5440 = vpop.f32.mrb[0].mxu0
        %v5441 = vpop.f32.mrb[0].mxu0
        %v5442 = vadd.f32 0.0, %v5441
        %v5443 = vpop.f32.mrb[0].mxu0
        %5444 = vmatprep.mubr.bf16.mxu0 0
        %5445 = vmatmul.mubr.bf16.gmra.mrb[0].mxu0 %v5111
        %v5446 = vpop.f32.mrb[0].mxu0
        %v5447 = vadd.f32 0.0, %v5446
        %v5448 = vpop.f32.mrb[0].mxu0
        %v5449 = vpop.f32.mrb[0].mxu0
        %v5450 = vadd.f32 0.0, %v5449
        %v5451 = vpop.f32.mrb[0].mxu0
        %5452 = vmatprep.mubr.bf16.mxu0 0
        %5453 = vmatmul.mubr.bf16.gmra.mrb[0].mxu0 %v5112
        %v5454 = vpop.f32.mrb[0].mxu0
        %v5455 = vadd.f32 0.0, %v5454
        %v5456 = vpop.f32.mrb[0].mxu0
        %v5457 = vpop.f32.mrb[0].mxu0
        %v5458 = vadd.f32 0.0, %v5457
        %v5459 = vpop.f32.mrb[0].mxu0
        %5460 = vmatprep.mubr.bf16.mxu0 0
        %5461 = vmatmul.mubr.bf16.gmra.mrb[0].mxu0 %v5113
        %v5462 = vpop.f32.mrb[0].mxu0
        %v5463 = vadd.f32 0.0, %v5462
        %v5464 = vpop.f32.mrb[0].mxu0
        %v5465 = vpop.f32.mrb[0].mxu0
        %v5466 = vadd.f32 0.0, %v5465
        %v5467 = vpop.f32.mrb[0].mxu0
        %5468 = vmatprep.mubr.bf16.mxu0 0
        %5469 = vmatmul.mubr.bf16.gmra.mrb[0].mxu0 %v5114
        %v5470 = vpop.f32.mrb[0].mxu0
        %v5471 = vadd.f32 0.0, %v5470
        %v5472 = vpop.f32.mrb[0].mxu0
        %v5473 = vpop.f32.mrb[0].mxu0
        %v5474 = vadd.f32 0.0, %v5473
        %v5475 = vpop.f32.mrb[0].mxu0
        %5476 = vmatprep.mubr.bf16.mxu0 0
        %5477 = vmatmul.mubr.bf16.gmra.mrb[0].mxu0 %v5115
        %v5478 = vpop.f32.mrb[0].mxu0
        %v5479 = vadd.f32 0.0, %v5478
        %v5480 = vpop.f32.mrb[0].mxu0
        %v5481 = vpop.f32.mrb[0].mxu0
        %v5482 = vadd.f32 0.0, %v5481
        %v5483 = vpop.f32.mrb[0].mxu0
        %5484 = vdwg.mxu0
        %v5485 = vadd.f32 %v4883, %v5231
        %v5486 = vadd.f32 %v4884, %v5234
        %v5487 = vadd.f32 %v4885, %v5239
        %v5488 = vadd.f32 %v4886, %v5242
        %v5489 = vadd.f32 %v4887, %v5247
        %v5490 = vadd.f32 %v4888, %v5250
        %v5491 = vadd.f32 %v4889, %v5255
        %v5492 = vadd.f32 %v4890, %v5258
        %v5493 = vadd.f32 %v4891, %v5263
        %v5494 = vadd.f32 %v4892, %v5266
        %v5495 = vadd.f32 %v4893, %v5271
        %v5496 = vadd.f32 %v4894, %v5274
        %v5497 = vadd.f32 %v4895, %v5279
        %v5498 = vadd.f32 %v4896, %v5282
        %v5499 = vadd.f32 %v4897, %v5287
        %v5500 = vadd.f32 %v4898, %v5290
        %v5501 = vadd.f32 %v4899, %v5295
        %v5502 = vadd.f32 %v4900, %v5298
        %v5503 = vadd.f32 %v4901, %v5303
        %v5504 = vadd.f32 %v4902, %v5306
        %v5505 = vadd.f32 %v4903, %v5311
        %v5506 = vadd.f32 %v4904, %v5314
        %v5507 = vadd.f32 %v4905, %v5319
        %v5508 = vadd.f32 %v4906, %v5322
        %v5509 = vadd.f32 %v4907, %v5327
        %v5510 = vadd.f32 %v4908, %v5330
        %v5511 = vadd.f32 %v4909, %v5335
        %v5512 = vadd.f32 %v4910, %v5338
        %v5513 = vadd.f32 %v4911, %v5343
        %v5514 = vadd.f32 %v4912, %v5346
        %v5515 = vadd.f32 %v4913, %v5351
        %v5516 = vadd.f32 %v4914, %v5354
        %v5517 = vadd.f32 %v4915, %v5359
        %v5518 = vadd.f32 %v4916, %v5362
        %v5519 = vadd.f32 %v4917, %v5367
        %v5520 = vadd.f32 %v4918, %v5370
        %v5521 = vadd.f32 %v4919, %v5375
        %v5522 = vadd.f32 %v4920, %v5378
        %v5523 = vadd.f32 %v4921, %v5383
        %v5524 = vadd.f32 %v4922, %v5386
        %v5525 = vadd.f32 %v4923, %v5391
        %v5526 = vadd.f32 %v4924, %v5394
        %v5527 = vadd.f32 %v4925, %v5399
        %v5528 = vadd.f32 %v4926, %v5402
        %v5529 = vadd.f32 %v4927, %v5407
        %v5530 = vadd.f32 %v4928, %v5410
        %v5531 = vadd.f32 %v4929, %v5415
        %v5532 = vadd.f32 %v4930, %v5418
        %v5533 = vadd.f32 %v4931, %v5423
        %v5534 = vadd.f32 %v4932, %v5426
        %v5535 = vadd.f32 %v4933, %v5431
        %v5536 = vadd.f32 %v4934, %v5434
        %v5537 = vadd.f32 %v4935, %v5439
        %v5538 = vadd.f32 %v4936, %v5442
        %v5539 = vadd.f32 %v4937, %v5447
        %v5540 = vadd.f32 %v4938, %v5450
        %v5541 = vadd.f32 %v4939, %v5455
        %v5542 = vadd.f32 %v4940, %v5458
        %v5543 = vadd.f32 %v4941, %v5463
        %v5544 = vadd.f32 %v4942, %v5466
        %v5545 = vadd.f32 %v4943, %v5471
        %v5546 = vadd.f32 %v4944, %v5474
        %v5547 = vadd.f32 %v4945, %v5479
        %v5548 = vadd.f32 %v4946, %v5482
        %v5557 = vrot.slane %v1510, 5
        %v5558 = vrot.slane %v5557, 4
        %v5559 = vrot.slane %v1511, 5
        %v5560 = vsel %vm3646, %v5558, %v5559
        %v5561 = vrot.slane %v1530, 5
        %v5562 = vrot.slane %v5561, 4
        %v5563 = vrot.slane %v1531, 5
        %v5564 = vsel %vm3646, %v5562, %v5563
        %v5565 = vrot.slane %v1550, 5
        %v5566 = vrot.slane %v5565, 4
        %v5567 = vrot.slane %v1551, 5
        %v5568 = vsel %vm3646, %v5566, %v5567
        %v5569 = vrot.slane %v1570, 5
        %v5570 = vrot.slane %v5569, 4
        %v5571 = vrot.slane %v1571, 5
        %v5572 = vsel %vm3646, %v5570, %v5571
        %v5573 = vrot.slane %v1590, 5
        %v5574 = vrot.slane %v5573, 4
        %v5575 = vrot.slane %v1591, 5
        %v5576 = vsel %vm3646, %v5574, %v5575
        %v5577 = vrot.slane %v1610, 5
        %v5578 = vrot.slane %v5577, 4
        %v5579 = vrot.slane %v1611, 5
        %v5580 = vsel %vm3646, %v5578, %v5579
        %v5581 = vrot.slane %v1630, 5
        %v5582 = vrot.slane %v5581, 4
        %v5583 = vrot.slane %v1631, 5
        %v5584 = vsel %vm3646, %v5582, %v5583
        %v5585 = vrot.slane %v1650, 5
        %v5586 = vrot.slane %v5585, 4
        %v5587 = vrot.slane %v1651, 5
        %v5588 = vsel %vm3646, %v5586, %v5587
        %s5589 = scalar_lea.vmem %s208, 320 [#allocation6]
        %v5590 = vld [vmem:[%s5589] sm:$0xf]
        %v5591 = vld [vmem:[%s5589 + $0x4] sm:$0xf]
        %v5592 = vld [vmem:[%s5589 + $0x8] sm:$0xf]
        %v5593 = vld [vmem:[%s5589 + $0xc] sm:$0xf]
        %v5594 = vld [vmem:[%s5589 + $0x10] sm:$0xf]
        %v5595 = vld [vmem:[%s5589 + $0x14] sm:$0xf]
        %v5596 = vld [vmem:[%s5589 + $0x18] sm:$0xf]
        %v5597 = vld [vmem:[%s5589 + $0x1c] sm:$0xf]
        %v5598 = vld [vmem:[%s5589 + $0x20] sm:$0xf]
        %v5599 = vld [vmem:[%s5589 + $0x24] sm:$0xf]
        %v5600 = vld [vmem:[%s5589 + $0x28] sm:$0xf]
        %v5601 = vld [vmem:[%s5589 + $0x2c] sm:$0xf]
        %v5602 = vld [vmem:[%s5589 + $0x30] sm:$0xf]
        %v5603 = vld [vmem:[%s5589 + $0x34] sm:$0xf]
        %v5604 = vld [vmem:[%s5589 + $0x38] sm:$0xf]
        %v5605 = vld [vmem:[%s5589 + $0x3c] sm:$0xf]
        %v5606 = vunpack.c.l.b16 %v5560
        %v5607 = vunpack.c.l.b16 %v5564
        %v5608 = vunpack.c.l.b16 %v5568
        %v5609 = vunpack.c.l.b16 %v5572
        %v5610 = vunpack.c.l.b16 %v5576
        %v5611 = vunpack.c.l.b16 %v5580
        %v5612 = vunpack.c.l.b16 %v5584
        %v5613 = vunpack.c.l.b16 %v5588
        %v5614 = vpack.c.b16 %v3922, %v3921
        %v5615 = vpack.c.b16 %v3924, %v3923
        %v5616 = vpack.c.b16 %v3926, %v3925
        %v5617 = vpack.c.b16 %v5606, %v3927
        %v5618 = vpack.c.b16 %v3930, %v3929
        %v5619 = vpack.c.b16 %v3932, %v3931
        %v5620 = vpack.c.b16 %v3934, %v3933
        %v5621 = vpack.c.b16 %v5607, %v3935
        %v5622 = vpack.c.b16 %v3938, %v3937
        %v5623 = vpack.c.b16 %v3940, %v3939
        %v5624 = vpack.c.b16 %v3942, %v3941
        %v5625 = vpack.c.b16 %v5608, %v3943
        %v5626 = vpack.c.b16 %v3946, %v3945
        %v5627 = vpack.c.b16 %v3948, %v3947
        %v5628 = vpack.c.b16 %v3950, %v3949
        %v5629 = vpack.c.b16 %v5609, %v3951
        %v5630 = vpack.c.b16 %v3954, %v3953
        %v5631 = vpack.c.b16 %v3956, %v3955
        %v5632 = vpack.c.b16 %v3958, %v3957
        %v5633 = vpack.c.b16 %v5610, %v3959
        %v5634 = vpack.c.b16 %v3962, %v3961
        %v5635 = vpack.c.b16 %v3964, %v3963
        %v5636 = vpack.c.b16 %v3966, %v3965
        %v5637 = vpack.c.b16 %v5611, %v3967
        %v5638 = vpack.c.b16 %v3970, %v3969
        %v5639 = vpack.c.b16 %v3972, %v3971
        %v5640 = vpack.c.b16 %v3974, %v3973
        %v5641 = vpack.c.b16 %v5612, %v3975
        %v5642 = vpack.c.b16 %v3978, %v3977
        %v5643 = vpack.c.b16 %v3980, %v3979
        %v5644 = vpack.c.b16 %v3982, %v3981
        %v5645 = vpack.c.b16 %v5613, %v3983
        %v5694 = vunpack.c.l.b16 %v5590
        %v5695 = vunpack.c.l.b16 %v5591
        %v5696 = vunpack.c.l.b16 %v5592
        %v5697 = vunpack.c.l.b16 %v5593
        %v5698 = vunpack.c.l.b16 %v5594
        %v5699 = vunpack.c.l.b16 %v5595
        %v5700 = vunpack.c.l.b16 %v5596
        %v5701 = vunpack.c.l.b16 %v5597
        %v5702 = vunpack.c.l.b16 %v5598
        %v5703 = vunpack.c.l.b16 %v5599
        %v5704 = vunpack.c.l.b16 %v5600
        %v5705 = vunpack.c.l.b16 %v5601
        %v5706 = vunpack.c.l.b16 %v5602
        %v5707 = vunpack.c.l.b16 %v5603
        %v5708 = vunpack.c.l.b16 %v5604
        %v5709 = vunpack.c.l.b16 %v5605
        %v5710 = vpack.c.b16 %v5695, %v5694
        %v5711 = vpack.c.b16 %v5697, %v5696
        %v5712 = vpack.c.b16 %v5699, %v5698
        %v5713 = vpack.c.b16 %v5701, %v5700
        %v5714 = vpack.c.b16 %v5703, %v5702
        %v5715 = vpack.c.b16 %v5705, %v5704
        %v5716 = vpack.c.b16 %v5707, %v5706
        %v5717 = vpack.c.b16 %v5709, %v5708
        %5726 = vmatprep.subr.bf16.mxu0 0
        %5727 = vmatpush1.bf16.msra.mxu0 %v5710
        %5728 = vmatprep.subr.bf16.mxu0 0
        %5729 = vmatpush1.bf16.msra.mxu0 %v5711
        %5730 = vmatprep.subr.bf16.mxu0 0
        %5731 = vmatpush1.bf16.msra.mxu0 %v5712
        %5732 = vmatprep.subr.bf16.mxu0 0
        %5733 = vmatpush1.bf16.msra.mxu0 %v5713
        %5734 = vmatprep.subr.bf16.mxu0 0
        %5735 = vmatpush1.bf16.msra.mxu0 %v5714
        %5736 = vmatprep.subr.bf16.mxu0 0
        %5737 = vmatpush1.bf16.msra.mxu0 %v5715
        %5738 = vmatprep.subr.bf16.mxu0 0
        %5739 = vmatpush1.bf16.msra.mxu0 %v5716
        %5740 = vmatprep.subr.bf16.mxu0 0
        %5741 = vmatpush1.bf16.msra.mxu0 %v5717
        %5742 = vmatprep.subr.bf16.mxu0 0
        %5743 = vmatpush1.bf16.msra.mxu0 0
        %5744 = vmatprep.subr.bf16.mxu0 0
        %5745 = vmatpush1.bf16.msra.mxu0 0
        %5746 = vmatprep.subr.bf16.mxu0 0
        %5747 = vmatpush1.bf16.msra.mxu0 0
        %5748 = vmatprep.subr.bf16.mxu0 0
        %5749 = vmatpush1.bf16.msra.mxu0 0
        %5750 = vmatprep.subr.bf16.mxu0 0
        %5751 = vmatpush1.bf16.msra.mxu0 0
        %5752 = vmatprep.subr.bf16.mxu0 0
        %5753 = vmatpush1.bf16.msra.mxu0 0
        %5754 = vmatprep.subr.bf16.mxu0 0
        %5755 = vmatpush1.bf16.msra.mxu0 0
        %5756 = vmatprep.subr.bf16.mxu0 0
        %5757 = vmatpush1.bf16.msra.mxu0 0
        %5758 = vmatprep.mubr.bf16.mxu0 0
        %5759 = vmatmul.mubr.bf16.gmra.mrb[0].mxu0 %v5614
        %v5760 = vpop.f32.mrb[0].mxu0
        %v5761 = vadd.f32 0.0, %v5760
        %v5762 = vpop.f32.mrb[0].mxu0
        %v5763 = vpop.f32.mrb[0].mxu0
        %v5764 = vadd.f32 0.0, %v5763
        %v5765 = vpop.f32.mrb[0].mxu0
        %5766 = vmatprep.mubr.bf16.mxu0 0
        %5767 = vmatmul.mubr.bf16.gmra.mrb[0].mxu0 %v5615
        %v5768 = vpop.f32.mrb[0].mxu0
        %v5769 = vadd.f32 0.0, %v5768
        %v5770 = vpop.f32.mrb[0].mxu0
        %v5771 = vpop.f32.mrb[0].mxu0
        %v5772 = vadd.f32 0.0, %v5771
        %v5773 = vpop.f32.mrb[0].mxu0
        %5774 = vmatprep.mubr.bf16.mxu0 0
        %5775 = vmatmul.mubr.bf16.gmra.mrb[0].mxu0 %v5616
        %v5776 = vpop.f32.mrb[0].mxu0
        %v5777 = vadd.f32 0.0, %v5776
        %v5778 = vpop.f32.mrb[0].mxu0
        %v5779 = vpop.f32.mrb[0].mxu0
        %v5780 = vadd.f32 0.0, %v5779
        %v5781 = vpop.f32.mrb[0].mxu0
        %5782 = vmatprep.mubr.bf16.mxu0 0
        %5783 = vmatmul.mubr.bf16.gmra.mrb[0].mxu0 %v5617
        %v5784 = vpop.f32.mrb[0].mxu0
        %v5785 = vadd.f32 0.0, %v5784
        %v5786 = vpop.f32.mrb[0].mxu0
        %v5787 = vpop.f32.mrb[0].mxu0
        %v5788 = vadd.f32 0.0, %v5787
        %v5789 = vpop.f32.mrb[0].mxu0
        %5790 = vmatprep.mubr.bf16.mxu0 0
        %5791 = vmatmul.mubr.bf16.gmra.mrb[0].mxu0 %v5618
        %v5792 = vpop.f32.mrb[0].mxu0
        %v5793 = vadd.f32 0.0, %v5792
        %v5794 = vpop.f32.mrb[0].mxu0
        %v5795 = vpop.f32.mrb[0].mxu0
        %v5796 = vadd.f32 0.0, %v5795
        %v5797 = vpop.f32.mrb[0].mxu0
        %5798 = vmatprep.mubr.bf16.mxu0 0
        %5799 = vmatmul.mubr.bf16.gmra.mrb[0].mxu0 %v5619
        %v5800 = vpop.f32.mrb[0].mxu0
        %v5801 = vadd.f32 0.0, %v5800
        %v5802 = vpop.f32.mrb[0].mxu0
        %v5803 = vpop.f32.mrb[0].mxu0
        %v5804 = vadd.f32 0.0, %v5803
        %v5805 = vpop.f32.mrb[0].mxu0
        %5806 = vmatprep.mubr.bf16.mxu0 0
        %5807 = vmatmul.mubr.bf16.gmra.mrb[0].mxu0 %v5620
        %v5808 = vpop.f32.mrb[0].mxu0
        %v5809 = vadd.f32 0.0, %v5808
        %v5810 = vpop.f32.mrb[0].mxu0
        %v5811 = vpop.f32.mrb[0].mxu0
        %v5812 = vadd.f32 0.0, %v5811
        %v5813 = vpop.f32.mrb[0].mxu0
        %5814 = vmatprep.mubr.bf16.mxu0 0
        %5815 = vmatmul.mubr.bf16.gmra.mrb[0].mxu0 %v5621
        %v5816 = vpop.f32.mrb[0].mxu0
        %v5817 = vadd.f32 0.0, %v5816
        %v5818 = vpop.f32.mrb[0].mxu0
        %v5819 = vpop.f32.mrb[0].mxu0
        %v5820 = vadd.f32 0.0, %v5819
        %v5821 = vpop.f32.mrb[0].mxu0
        %5822 = vmatprep.mubr.bf16.mxu0 0
        %5823 = vmatmul.mubr.bf16.gmra.mrb[0].mxu0 %v5622
        %v5824 = vpop.f32.mrb[0].mxu0
        %v5825 = vadd.f32 0.0, %v5824
        %v5826 = vpop.f32.mrb[0].mxu0
        %v5827 = vpop.f32.mrb[0].mxu0
        %v5828 = vadd.f32 0.0, %v5827
        %v5829 = vpop.f32.mrb[0].mxu0
        %5830 = vmatprep.mubr.bf16.mxu0 0
        %5831 = vmatmul.mubr.bf16.gmra.mrb[0].mxu0 %v5623
        %v5832 = vpop.f32.mrb[0].mxu0
        %v5833 = vadd.f32 0.0, %v5832
        %v5834 = vpop.f32.mrb[0].mxu0
        %v5835 = vpop.f32.mrb[0].mxu0
        %v5836 = vadd.f32 0.0, %v5835
        %v5837 = vpop.f32.mrb[0].mxu0
        %5838 = vmatprep.mubr.bf16.mxu0 0
        %5839 = vmatmul.mubr.bf16.gmra.mrb[0].mxu0 %v5624
        %v5840 = vpop.f32.mrb[0].mxu0
        %v5841 = vadd.f32 0.0, %v5840
        %v5842 = vpop.f32.mrb[0].mxu0
        %v5843 = vpop.f32.mrb[0].mxu0
        %v5844 = vadd.f32 0.0, %v5843
        %v5845 = vpop.f32.mrb[0].mxu0
        %5846 = vmatprep.mubr.bf16.mxu0 0
        %5847 = vmatmul.mubr.bf16.gmra.mrb[0].mxu0 %v5625
        %v5848 = vpop.f32.mrb[0].mxu0
        %v5849 = vadd.f32 0.0, %v5848
        %v5850 = vpop.f32.mrb[0].mxu0
        %v5851 = vpop.f32.mrb[0].mxu0
        %v5852 = vadd.f32 0.0, %v5851
        %v5853 = vpop.f32.mrb[0].mxu0
        %5854 = vmatprep.mubr.bf16.mxu0 0
        %5855 = vmatmul.mubr.bf16.gmra.mrb[0].mxu0 %v5626
        %v5856 = vpop.f32.mrb[0].mxu0
        %v5857 = vadd.f32 0.0, %v5856
        %v5858 = vpop.f32.mrb[0].mxu0
        %v5859 = vpop.f32.mrb[0].mxu0
        %v5860 = vadd.f32 0.0, %v5859
        %v5861 = vpop.f32.mrb[0].mxu0
        %5862 = vmatprep.mubr.bf16.mxu0 0
        %5863 = vmatmul.mubr.bf16.gmra.mrb[0].mxu0 %v5627
        %v5864 = vpop.f32.mrb[0].mxu0
        %v5865 = vadd.f32 0.0, %v5864
        %v5866 = vpop.f32.mrb[0].mxu0
        %v5867 = vpop.f32.mrb[0].mxu0
        %v5868 = vadd.f32 0.0, %v5867
        %v5869 = vpop.f32.mrb[0].mxu0
        %5870 = vmatprep.mubr.bf16.mxu0 0
        %5871 = vmatmul.mubr.bf16.gmra.mrb[0].mxu0 %v5628
        %v5872 = vpop.f32.mrb[0].mxu0
        %v5873 = vadd.f32 0.0, %v5872
        %v5874 = vpop.f32.mrb[0].mxu0
        %v5875 = vpop.f32.mrb[0].mxu0
        %v5876 = vadd.f32 0.0, %v5875
        %v5877 = vpop.f32.mrb[0].mxu0
        %5878 = vmatprep.mubr.bf16.mxu0 0
        %5879 = vmatmul.mubr.bf16.gmra.mrb[0].mxu0 %v5629
        %v5880 = vpop.f32.mrb[0].mxu0
        %v5881 = vadd.f32 0.0, %v5880
        %v5882 = vpop.f32.mrb[0].mxu0
        %v5883 = vpop.f32.mrb[0].mxu0
        %v5884 = vadd.f32 0.0, %v5883
        %v5885 = vpop.f32.mrb[0].mxu0
        %5886 = vmatprep.mubr.bf16.mxu0 0
        %5887 = vmatmul.mubr.bf16.gmra.mrb[0].mxu0 %v5630
        %v5888 = vpop.f32.mrb[0].mxu0
        %v5889 = vadd.f32 0.0, %v5888
        %v5890 = vpop.f32.mrb[0].mxu0
        %v5891 = vpop.f32.mrb[0].mxu0
        %v5892 = vadd.f32 0.0, %v5891
        %v5893 = vpop.f32.mrb[0].mxu0
        %5894 = vmatprep.mubr.bf16.mxu0 0
        %5895 = vmatmul.mubr.bf16.gmra.mrb[0].mxu0 %v5631
        %v5896 = vpop.f32.mrb[0].mxu0
        %v5897 = vadd.f32 0.0, %v5896
        %v5898 = vpop.f32.mrb[0].mxu0
        %v5899 = vpop.f32.mrb[0].mxu0
        %v5900 = vadd.f32 0.0, %v5899
        %v5901 = vpop.f32.mrb[0].mxu0
        %5902 = vmatprep.mubr.bf16.mxu0 0
        %5903 = vmatmul.mubr.bf16.gmra.mrb[0].mxu0 %v5632
        %v5904 = vpop.f32.mrb[0].mxu0
        %v5905 = vadd.f32 0.0, %v5904
        %v5906 = vpop.f32.mrb[0].mxu0
        %v5907 = vpop.f32.mrb[0].mxu0
        %v5908 = vadd.f32 0.0, %v5907
        %v5909 = vpop.f32.mrb[0].mxu0
        %5910 = vmatprep.mubr.bf16.mxu0 0
        %5911 = vmatmul.mubr.bf16.gmra.mrb[0].mxu0 %v5633
        %v5912 = vpop.f32.mrb[0].mxu0
        %v5913 = vadd.f32 0.0, %v5912
        %v5914 = vpop.f32.mrb[0].mxu0
        %v5915 = vpop.f32.mrb[0].mxu0
        %v5916 = vadd.f32 0.0, %v5915
        %v5917 = vpop.f32.mrb[0].mxu0
        %5918 = vmatprep.mubr.bf16.mxu0 0
        %5919 = vmatmul.mubr.bf16.gmra.mrb[0].mxu0 %v5634
        %v5920 = vpop.f32.mrb[0].mxu0
        %v5921 = vadd.f32 0.0, %v5920
        %v5922 = vpop.f32.mrb[0].mxu0
        %v5923 = vpop.f32.mrb[0].mxu0
        %v5924 = vadd.f32 0.0, %v5923
        %v5925 = vpop.f32.mrb[0].mxu0
        %5926 = vmatprep.mubr.bf16.mxu0 0
        %5927 = vmatmul.mubr.bf16.gmra.mrb[0].mxu0 %v5635
        %v5928 = vpop.f32.mrb[0].mxu0
        %v5929 = vadd.f32 0.0, %v5928
        %v5930 = vpop.f32.mrb[0].mxu0
        %v5931 = vpop.f32.mrb[0].mxu0
        %v5932 = vadd.f32 0.0, %v5931
        %v5933 = vpop.f32.mrb[0].mxu0
        %5934 = vmatprep.mubr.bf16.mxu0 0
        %5935 = vmatmul.mubr.bf16.gmra.mrb[0].mxu0 %v5636
        %v5936 = vpop.f32.mrb[0].mxu0
        %v5937 = vadd.f32 0.0, %v5936
        %v5938 = vpop.f32.mrb[0].mxu0
        %v5939 = vpop.f32.mrb[0].mxu0
        %v5940 = vadd.f32 0.0, %v5939
        %v5941 = vpop.f32.mrb[0].mxu0
        %5942 = vmatprep.mubr.bf16.mxu0 0
        %5943 = vmatmul.mubr.bf16.gmra.mrb[0].mxu0 %v5637
        %v5944 = vpop.f32.mrb[0].mxu0
        %v5945 = vadd.f32 0.0, %v5944
        %v5946 = vpop.f32.mrb[0].mxu0
        %v5947 = vpop.f32.mrb[0].mxu0
        %v5948 = vadd.f32 0.0, %v5947
        %v5949 = vpop.f32.mrb[0].mxu0
        %5950 = vmatprep.mubr.bf16.mxu0 0
        %5951 = vmatmul.mubr.bf16.gmra.mrb[0].mxu0 %v5638
        %v5952 = vpop.f32.mrb[0].mxu0
        %v5953 = vadd.f32 0.0, %v5952
        %v5954 = vpop.f32.mrb[0].mxu0
        %v5955 = vpop.f32.mrb[0].mxu0
        %v5956 = vadd.f32 0.0, %v5955
        %v5957 = vpop.f32.mrb[0].mxu0
        %5958 = vmatprep.mubr.bf16.mxu0 0
        %5959 = vmatmul.mubr.bf16.gmra.mrb[0].mxu0 %v5639
        %v5960 = vpop.f32.mrb[0].mxu0
        %v5961 = vadd.f32 0.0, %v5960
        %v5962 = vpop.f32.mrb[0].mxu0
        %v5963 = vpop.f32.mrb[0].mxu0
        %v5964 = vadd.f32 0.0, %v5963
        %v5965 = vpop.f32.mrb[0].mxu0
        %5966 = vmatprep.mubr.bf16.mxu0 0
        %5967 = vmatmul.mubr.bf16.gmra.mrb[0].mxu0 %v5640
        %v5968 = vpop.f32.mrb[0].mxu0
        %v5969 = vadd.f32 0.0, %v5968
        %v5970 = vpop.f32.mrb[0].mxu0
        %v5971 = vpop.f32.mrb[0].mxu0
        %v5972 = vadd.f32 0.0, %v5971
        %v5973 = vpop.f32.mrb[0].mxu0
        %5974 = vmatprep.mubr.bf16.mxu0 0
        %5975 = vmatmul.mubr.bf16.gmra.mrb[0].mxu0 %v5641
        %v5976 = vpop.f32.mrb[0].mxu0
        %v5977 = vadd.f32 0.0, %v5976
        %v5978 = vpop.f32.mrb[0].mxu0
        %v5979 = vpop.f32.mrb[0].mxu0
        %v5980 = vadd.f32 0.0, %v5979
        %v5981 = vpop.f32.mrb[0].mxu0
        %5982 = vmatprep.mubr.bf16.mxu0 0
        %5983 = vmatmul.mubr.bf16.gmra.mrb[0].mxu0 %v5642
        %v5984 = vpop.f32.mrb[0].mxu0
        %v5985 = vadd.f32 0.0, %v5984
        %v5986 = vpop.f32.mrb[0].mxu0
        %v5987 = vpop.f32.mrb[0].mxu0
        %v5988 = vadd.f32 0.0, %v5987
        %v5989 = vpop.f32.mrb[0].mxu0
        %5990 = vmatprep.mubr.bf16.mxu0 0
        %5991 = vmatmul.mubr.bf16.gmra.mrb[0].mxu0 %v5643
        %v5992 = vpop.f32.mrb[0].mxu0
        %v5993 = vadd.f32 0.0, %v5992
        %v5994 = vpop.f32.mrb[0].mxu0
        %v5995 = vpop.f32.mrb[0].mxu0
        %v5996 = vadd.f32 0.0, %v5995
        %v5997 = vpop.f32.mrb[0].mxu0
        %5998 = vmatprep.mubr.bf16.mxu0 0
        %5999 = vmatmul.mubr.bf16.gmra.mrb[0].mxu0 %v5644
        %v6000 = vpop.f32.mrb[0].mxu0
        %v6001 = vadd.f32 0.0, %v6000
        %v6002 = vpop.f32.mrb[0].mxu0
        %v6003 = vpop.f32.mrb[0].mxu0
        %v6004 = vadd.f32 0.0, %v6003
        %v6005 = vpop.f32.mrb[0].mxu0
        %6006 = vmatprep.mubr.bf16.mxu0 0
        %6007 = vmatmul.mubr.bf16.gmra.mrb[0].mxu0 %v5645
        %v6008 = vpop.f32.mrb[0].mxu0
        %v6009 = vadd.f32 0.0, %v6008
        %v6010 = vpop.f32.mrb[0].mxu0
        %v6011 = vpop.f32.mrb[0].mxu0
        %v6012 = vadd.f32 0.0, %v6011
        %v6013 = vpop.f32.mrb[0].mxu0
        %6014 = vdwg.mxu0
        %v6015 = vadd.f32 %v5485, %v5761
        %v6016 = vadd.f32 %v5486, %v5764
        %v6017 = vadd.f32 %v5487, %v5769
        %v6018 = vadd.f32 %v5488, %v5772
        %v6019 = vadd.f32 %v5489, %v5777
        %v6020 = vadd.f32 %v5490, %v5780
        %v6021 = vadd.f32 %v5491, %v5785
        %v6022 = vadd.f32 %v5492, %v5788
        %v6023 = vadd.f32 %v5493, %v5793
        %v6024 = vadd.f32 %v5494, %v5796
        %v6025 = vadd.f32 %v5495, %v5801
        %v6026 = vadd.f32 %v5496, %v5804
        %v6027 = vadd.f32 %v5497, %v5809
        %v6028 = vadd.f32 %v5498, %v5812
        %v6029 = vadd.f32 %v5499, %v5817
        %v6030 = vadd.f32 %v5500, %v5820
        %v6031 = vadd.f32 %v5501, %v5825
        %v6032 = vadd.f32 %v5502, %v5828
        %v6033 = vadd.f32 %v5503, %v5833
        %v6034 = vadd.f32 %v5504, %v5836
        %v6035 = vadd.f32 %v5505, %v5841
        %v6036 = vadd.f32 %v5506, %v5844
        %v6037 = vadd.f32 %v5507, %v5849
        %v6038 = vadd.f32 %v5508, %v5852
        %v6039 = vadd.f32 %v5509, %v5857
        %v6040 = vadd.f32 %v5510, %v5860
        %v6041 = vadd.f32 %v5511, %v5865
        %v6042 = vadd.f32 %v5512, %v5868
        %v6043 = vadd.f32 %v5513, %v5873
        %v6044 = vadd.f32 %v5514, %v5876
        %v6045 = vadd.f32 %v5515, %v5881
        %v6046 = vadd.f32 %v5516, %v5884
        %v6047 = vadd.f32 %v5517, %v5889
        %v6048 = vadd.f32 %v5518, %v5892
        %v6049 = vadd.f32 %v5519, %v5897
        %v6050 = vadd.f32 %v5520, %v5900
        %v6051 = vadd.f32 %v5521, %v5905
        %v6052 = vadd.f32 %v5522, %v5908
        %v6053 = vadd.f32 %v5523, %v5913
        %v6054 = vadd.f32 %v5524, %v5916
        %v6055 = vadd.f32 %v5525, %v5921
        %v6056 = vadd.f32 %v5526, %v5924
        %v6057 = vadd.f32 %v5527, %v5929
        %v6058 = vadd.f32 %v5528, %v5932
        %v6059 = vadd.f32 %v5529, %v5937
        %v6060 = vadd.f32 %v5530, %v5940
        %v6061 = vadd.f32 %v5531, %v5945
        %v6062 = vadd.f32 %v5532, %v5948
        %v6063 = vadd.f32 %v5533, %v5953
        %v6064 = vadd.f32 %v5534, %v5956
        %v6065 = vadd.f32 %v5535, %v5961
        %v6066 = vadd.f32 %v5536, %v5964
        %v6067 = vadd.f32 %v5537, %v5969
        %v6068 = vadd.f32 %v5538, %v5972
        %v6069 = vadd.f32 %v5539, %v5977
        %v6070 = vadd.f32 %v5540, %v5980
        %v6071 = vadd.f32 %v5541, %v5985
        %v6072 = vadd.f32 %v5542, %v5988
        %v6073 = vadd.f32 %v5543, %v5993
        %v6074 = vadd.f32 %v5544, %v5996
        %v6075 = vadd.f32 %v5545, %v6001
        %v6076 = vadd.f32 %v5546, %v6004
        %v6077 = vadd.f32 %v5547, %v6009
        %v6078 = vadd.f32 %v5548, %v6012
        %s6079 = scalar_lea.vmem %s208, 384 [#allocation6]
        %v6080 = vld [vmem:[%s6079] sm:$0xf]
        %v6081 = vld [vmem:[%s6079 + $0x4] sm:$0xf]
        %v6082 = vld [vmem:[%s6079 + $0x8] sm:$0xf]
        %v6083 = vld [vmem:[%s6079 + $0xc] sm:$0xf]
        %v6084 = vld [vmem:[%s6079 + $0x10] sm:$0xf]
        %v6085 = vld [vmem:[%s6079 + $0x14] sm:$0xf]
        %v6086 = vld [vmem:[%s6079 + $0x18] sm:$0xf]
        %v6087 = vld [vmem:[%s6079 + $0x1c] sm:$0xf]
        %v6088 = vld [vmem:[%s6079 + $0x20] sm:$0xf]
        %v6089 = vld [vmem:[%s6079 + $0x24] sm:$0xf]
        %v6090 = vld [vmem:[%s6079 + $0x28] sm:$0xf]
        %v6091 = vld [vmem:[%s6079 + $0x2c] sm:$0xf]
        %v6092 = vld [vmem:[%s6079 + $0x30] sm:$0xf]
        %v6093 = vld [vmem:[%s6079 + $0x34] sm:$0xf]
        %v6094 = vld [vmem:[%s6079 + $0x38] sm:$0xf]
        %v6095 = vld [vmem:[%s6079 + $0x3c] sm:$0xf]
        %v6104 = vunpack.c.l.b16 %v1512
        %v6105 = vunpack.c.l.b16 %v1532
        %v6106 = vunpack.c.l.b16 %v1552
        %v6107 = vunpack.c.l.b16 %v1572
        %v6108 = vunpack.c.l.b16 %v1592
        %v6109 = vunpack.c.l.b16 %v1612
        %v6110 = vunpack.c.l.b16 %v1632
        %v6111 = vunpack.c.l.b16 %v1652
        %v6112 = vpack.c.b16 %v6104, %v4474
        %v6113 = vpack.c.b16 %v6105, %v4475
        %v6114 = vpack.c.b16 %v6106, %v4476
        %v6115 = vpack.c.b16 %v6107, %v4477
        %v6116 = vpack.c.b16 %v6108, %v4478
        %v6117 = vpack.c.b16 %v6109, %v4479
        %v6118 = vpack.c.b16 %v6110, %v4480
        %v6119 = vpack.c.b16 %v6111, %v4481
        %v6144 = vunpack.c.l.b16 %v6080
        %v6145 = vunpack.c.l.b16 %v6081
        %v6146 = vunpack.c.l.b16 %v6082
        %v6147 = vunpack.c.l.b16 %v6083
        %v6148 = vunpack.c.l.b16 %v6084
        %v6149 = vunpack.c.l.b16 %v6085
        %v6150 = vunpack.c.l.b16 %v6086
        %v6151 = vunpack.c.l.b16 %v6087
        %v6152 = vunpack.c.l.b16 %v6088
        %v6153 = vunpack.c.l.b16 %v6089
        %v6154 = vunpack.c.l.b16 %v6090
        %v6155 = vunpack.c.l.b16 %v6091
        %v6156 = vunpack.c.l.b16 %v6092
        %v6157 = vunpack.c.l.b16 %v6093
        %v6158 = vunpack.c.l.b16 %v6094
        %v6159 = vunpack.c.l.b16 %v6095
        %v6160 = vpack.c.b16 %v6145, %v6144
        %v6161 = vpack.c.b16 %v6147, %v6146
        %v6162 = vpack.c.b16 %v6149, %v6148
        %v6163 = vpack.c.b16 %v6151, %v6150
        %v6164 = vpack.c.b16 %v6153, %v6152
        %v6165 = vpack.c.b16 %v6155, %v6154
        %v6166 = vpack.c.b16 %v6157, %v6156
        %v6167 = vpack.c.b16 %v6159, %v6158
        %6176 = vmatprep.subr.bf16.mxu0 0
        %6177 = vmatpush1.bf16.msra.mxu0 %v6160
        %6178 = vmatprep.subr.bf16.mxu0 0
        %6179 = vmatpush1.bf16.msra.mxu0 %v6161
        %6180 = vmatprep.subr.bf16.mxu0 0
        %6181 = vmatpush1.bf16.msra.mxu0 %v6162
        %6182 = vmatprep.subr.bf16.mxu0 0
        %6183 = vmatpush1.bf16.msra.mxu0 %v6163
        %6184 = vmatprep.subr.bf16.mxu0 0
        %6185 = vmatpush1.bf16.msra.mxu0 %v6164
        %6186 = vmatprep.subr.bf16.mxu0 0
        %6187 = vmatpush1.bf16.msra.mxu0 %v6165
        %6188 = vmatprep.subr.bf16.mxu0 0
        %6189 = vmatpush1.bf16.msra.mxu0 %v6166
        %6190 = vmatprep.subr.bf16.mxu0 0
        %6191 = vmatpush1.bf16.msra.mxu0 %v6167
        %6192 = vmatprep.subr.bf16.mxu0 0
        %6193 = vmatpush1.bf16.msra.mxu0 0
        %6194 = vmatprep.subr.bf16.mxu0 0
        %6195 = vmatpush1.bf16.msra.mxu0 0
        %6196 = vmatprep.subr.bf16.mxu0 0
        %6197 = vmatpush1.bf16.msra.mxu0 0
        %6198 = vmatprep.subr.bf16.mxu0 0
        %6199 = vmatpush1.bf16.msra.mxu0 0
        %6200 = vmatprep.subr.bf16.mxu0 0
        %6201 = vmatpush1.bf16.msra.mxu0 0
        %6202 = vmatprep.subr.bf16.mxu0 0
        %6203 = vmatpush1.bf16.msra.mxu0 0
        %6204 = vmatprep.subr.bf16.mxu0 0
        %6205 = vmatpush1.bf16.msra.mxu0 0
        %6206 = vmatprep.subr.bf16.mxu0 0
        %6207 = vmatpush1.bf16.msra.mxu0 0
        %6208 = vmatprep.mubr.bf16.mxu0 0
        %6209 = vmatmul.mubr.bf16.gmra.mrb[0].mxu0 %v3180
        %v6210 = vpop.f32.mrb[0].mxu0
        %v6211 = vadd.f32 0.0, %v6210
        %v6212 = vpop.f32.mrb[0].mxu0
        %v6213 = vpop.f32.mrb[0].mxu0
        %v6214 = vadd.f32 0.0, %v6213
        %v6215 = vpop.f32.mrb[0].mxu0
        %6216 = vmatprep.mubr.bf16.mxu0 0
        %6217 = vmatmul.mubr.bf16.gmra.mrb[0].mxu0 %v3181
        %v6218 = vpop.f32.mrb[0].mxu0
        %v6219 = vadd.f32 0.0, %v6218
        %v6220 = vpop.f32.mrb[0].mxu0
        %v6221 = vpop.f32.mrb[0].mxu0
        %v6222 = vadd.f32 0.0, %v6221
        %v6223 = vpop.f32.mrb[0].mxu0
        %6224 = vmatprep.mubr.bf16.mxu0 0
        %6225 = vmatmul.mubr.bf16.gmra.mrb[0].mxu0 %v3182
        %v6226 = vpop.f32.mrb[0].mxu0
        %v6227 = vadd.f32 0.0, %v6226
        %v6228 = vpop.f32.mrb[0].mxu0
        %v6229 = vpop.f32.mrb[0].mxu0
        %v6230 = vadd.f32 0.0, %v6229
        %v6231 = vpop.f32.mrb[0].mxu0
        %6232 = vmatprep.mubr.bf16.mxu0 0
        %6233 = vmatmul.mubr.bf16.gmra.mrb[0].mxu0 %v6112
        %v6234 = vpop.f32.mrb[0].mxu0
        %v6235 = vadd.f32 0.0, %v6234
        %v6236 = vpop.f32.mrb[0].mxu0
        %v6237 = vpop.f32.mrb[0].mxu0
        %v6238 = vadd.f32 0.0, %v6237
        %v6239 = vpop.f32.mrb[0].mxu0
        %6240 = vmatprep.mubr.bf16.mxu0 0
        %6241 = vmatmul.mubr.bf16.gmra.mrb[0].mxu0 %v3184
        %v6242 = vpop.f32.mrb[0].mxu0
        %v6243 = vadd.f32 0.0, %v6242
        %v6244 = vpop.f32.mrb[0].mxu0
        %v6245 = vpop.f32.mrb[0].mxu0
        %v6246 = vadd.f32 0.0, %v6245
        %v6247 = vpop.f32.mrb[0].mxu0
        %6248 = vmatprep.mubr.bf16.mxu0 0
        %6249 = vmatmul.mubr.bf16.gmra.mrb[0].mxu0 %v3185
        %v6250 = vpop.f32.mrb[0].mxu0
        %v6251 = vadd.f32 0.0, %v6250
        %v6252 = vpop.f32.mrb[0].mxu0
        %v6253 = vpop.f32.mrb[0].mxu0
        %v6254 = vadd.f32 0.0, %v6253
        %v6255 = vpop.f32.mrb[0].mxu0
        %6256 = vmatprep.mubr.bf16.mxu0 0
        %6257 = vmatmul.mubr.bf16.gmra.mrb[0].mxu0 %v3186
        %v6258 = vpop.f32.mrb[0].mxu0
        %v6259 = vadd.f32 0.0, %v6258
        %v6260 = vpop.f32.mrb[0].mxu0
        %v6261 = vpop.f32.mrb[0].mxu0
        %v6262 = vadd.f32 0.0, %v6261
        %v6263 = vpop.f32.mrb[0].mxu0
        %6264 = vmatprep.mubr.bf16.mxu0 0
        %6265 = vmatmul.mubr.bf16.gmra.mrb[0].mxu0 %v6113
        %v6266 = vpop.f32.mrb[0].mxu0
        %v6267 = vadd.f32 0.0, %v6266
        %v6268 = vpop.f32.mrb[0].mxu0
        %v6269 = vpop.f32.mrb[0].mxu0
        %v6270 = vadd.f32 0.0, %v6269
        %v6271 = vpop.f32.mrb[0].mxu0
        %6272 = vmatprep.mubr.bf16.mxu0 0
        %6273 = vmatmul.mubr.bf16.gmra.mrb[0].mxu0 %v3188
        %v6274 = vpop.f32.mrb[0].mxu0
        %v6275 = vadd.f32 0.0, %v6274
        %v6276 = vpop.f32.mrb[0].mxu0
        %v6277 = vpop.f32.mrb[0].mxu0
        %v6278 = vadd.f32 0.0, %v6277
        %v6279 = vpop.f32.mrb[0].mxu0
        %6280 = vmatprep.mubr.bf16.mxu0 0
        %6281 = vmatmul.mubr.bf16.gmra.mrb[0].mxu0 %v3189
        %v6282 = vpop.f32.mrb[0].mxu0
        %v6283 = vadd.f32 0.0, %v6282
        %v6284 = vpop.f32.mrb[0].mxu0
        %v6285 = vpop.f32.mrb[0].mxu0
        %v6286 = vadd.f32 0.0, %v6285
        %v6287 = vpop.f32.mrb[0].mxu0
        %6288 = vmatprep.mubr.bf16.mxu0 0
        %6289 = vmatmul.mubr.bf16.gmra.mrb[0].mxu0 %v3190
        %v6290 = vpop.f32.mrb[0].mxu0
        %v6291 = vadd.f32 0.0, %v6290
        %v6292 = vpop.f32.mrb[0].mxu0
        %v6293 = vpop.f32.mrb[0].mxu0
        %v6294 = vadd.f32 0.0, %v6293
        %v6295 = vpop.f32.mrb[0].mxu0
        %6296 = vmatprep.mubr.bf16.mxu0 0
        %6297 = vmatmul.mubr.bf16.gmra.mrb[0].mxu0 %v6114
        %v6298 = vpop.f32.mrb[0].mxu0
        %v6299 = vadd.f32 0.0, %v6298
        %v6300 = vpop.f32.mrb[0].mxu0
        %v6301 = vpop.f32.mrb[0].mxu0
        %v6302 = vadd.f32 0.0, %v6301
        %v6303 = vpop.f32.mrb[0].mxu0
        %6304 = vmatprep.mubr.bf16.mxu0 0
        %6305 = vmatmul.mubr.bf16.gmra.mrb[0].mxu0 %v3192
        %v6306 = vpop.f32.mrb[0].mxu0
        %v6307 = vadd.f32 0.0, %v6306
        %v6308 = vpop.f32.mrb[0].mxu0
        %v6309 = vpop.f32.mrb[0].mxu0
        %v6310 = vadd.f32 0.0, %v6309
        %v6311 = vpop.f32.mrb[0].mxu0
        %6312 = vmatprep.mubr.bf16.mxu0 0
        %6313 = vmatmul.mubr.bf16.gmra.mrb[0].mxu0 %v3193
        %v6314 = vpop.f32.mrb[0].mxu0
        %v6315 = vadd.f32 0.0, %v6314
        %v6316 = vpop.f32.mrb[0].mxu0
        %v6317 = vpop.f32.mrb[0].mxu0
        %v6318 = vadd.f32 0.0, %v6317
        %v6319 = vpop.f32.mrb[0].mxu0
        %6320 = vmatprep.mubr.bf16.mxu0 0
        %6321 = vmatmul.mubr.bf16.gmra.mrb[0].mxu0 %v3194
        %v6322 = vpop.f32.mrb[0].mxu0
        %v6323 = vadd.f32 0.0, %v6322
        %v6324 = vpop.f32.mrb[0].mxu0
        %v6325 = vpop.f32.mrb[0].mxu0
        %v6326 = vadd.f32 0.0, %v6325
        %v6327 = vpop.f32.mrb[0].mxu0
        %6328 = vmatprep.mubr.bf16.mxu0 0
        %6329 = vmatmul.mubr.bf16.gmra.mrb[0].mxu0 %v6115
        %v6330 = vpop.f32.mrb[0].mxu0
        %v6331 = vadd.f32 0.0, %v6330
        %v6332 = vpop.f32.mrb[0].mxu0
        %v6333 = vpop.f32.mrb[0].mxu0
        %v6334 = vadd.f32 0.0, %v6333
        %v6335 = vpop.f32.mrb[0].mxu0
        %6336 = vmatprep.mubr.bf16.mxu0 0
        %6337 = vmatmul.mubr.bf16.gmra.mrb[0].mxu0 %v3196
        %v6338 = vpop.f32.mrb[0].mxu0
        %v6339 = vadd.f32 0.0, %v6338
        %v6340 = vpop.f32.mrb[0].mxu0
        %v6341 = vpop.f32.mrb[0].mxu0
        %v6342 = vadd.f32 0.0, %v6341
        %v6343 = vpop.f32.mrb[0].mxu0
        %6344 = vmatprep.mubr.bf16.mxu0 0
        %6345 = vmatmul.mubr.bf16.gmra.mrb[0].mxu0 %v3197
        %v6346 = vpop.f32.mrb[0].mxu0
        %v6347 = vadd.f32 0.0, %v6346
        %v6348 = vpop.f32.mrb[0].mxu0
        %v6349 = vpop.f32.mrb[0].mxu0
        %v6350 = vadd.f32 0.0, %v6349
        %v6351 = vpop.f32.mrb[0].mxu0
        %6352 = vmatprep.mubr.bf16.mxu0 0
        %6353 = vmatmul.mubr.bf16.gmra.mrb[0].mxu0 %v3198
        %v6354 = vpop.f32.mrb[0].mxu0
        %v6355 = vadd.f32 0.0, %v6354
        %v6356 = vpop.f32.mrb[0].mxu0
        %v6357 = vpop.f32.mrb[0].mxu0
        %v6358 = vadd.f32 0.0, %v6357
        %v6359 = vpop.f32.mrb[0].mxu0
        %6360 = vmatprep.mubr.bf16.mxu0 0
        %6361 = vmatmul.mubr.bf16.gmra.mrb[0].mxu0 %v6116
        %v6362 = vpop.f32.mrb[0].mxu0
        %v6363 = vadd.f32 0.0, %v6362
        %v6364 = vpop.f32.mrb[0].mxu0
        %v6365 = vpop.f32.mrb[0].mxu0
        %v6366 = vadd.f32 0.0, %v6365
        %v6367 = vpop.f32.mrb[0].mxu0
        %6368 = vmatprep.mubr.bf16.mxu0 0
        %6369 = vmatmul.mubr.bf16.gmra.mrb[0].mxu0 %v3200
        %v6370 = vpop.f32.mrb[0].mxu0
        %v6371 = vadd.f32 0.0, %v6370
        %v6372 = vpop.f32.mrb[0].mxu0
        %v6373 = vpop.f32.mrb[0].mxu0
        %v6374 = vadd.f32 0.0, %v6373
        %v6375 = vpop.f32.mrb[0].mxu0
        %6376 = vmatprep.mubr.bf16.mxu0 0
        %6377 = vmatmul.mubr.bf16.gmra.mrb[0].mxu0 %v3201
        %v6378 = vpop.f32.mrb[0].mxu0
        %v6379 = vadd.f32 0.0, %v6378
        %v6380 = vpop.f32.mrb[0].mxu0
        %v6381 = vpop.f32.mrb[0].mxu0
        %v6382 = vadd.f32 0.0, %v6381
        %v6383 = vpop.f32.mrb[0].mxu0
        %6384 = vmatprep.mubr.bf16.mxu0 0
        %6385 = vmatmul.mubr.bf16.gmra.mrb[0].mxu0 %v3202
        %v6386 = vpop.f32.mrb[0].mxu0
        %v6387 = vadd.f32 0.0, %v6386
        %v6388 = vpop.f32.mrb[0].mxu0
        %v6389 = vpop.f32.mrb[0].mxu0
        %v6390 = vadd.f32 0.0, %v6389
        %v6391 = vpop.f32.mrb[0].mxu0
        %6392 = vmatprep.mubr.bf16.mxu0 0
        %6393 = vmatmul.mubr.bf16.gmra.mrb[0].mxu0 %v6117
        %v6394 = vpop.f32.mrb[0].mxu0
        %v6395 = vadd.f32 0.0, %v6394
        %v6396 = vpop.f32.mrb[0].mxu0
        %v6397 = vpop.f32.mrb[0].mxu0
        %v6398 = vadd.f32 0.0, %v6397
        %v6399 = vpop.f32.mrb[0].mxu0
        %6400 = vmatprep.mubr.bf16.mxu0 0
        %6401 = vmatmul.mubr.bf16.gmra.mrb[0].mxu0 %v3204
        %v6402 = vpop.f32.mrb[0].mxu0
        %v6403 = vadd.f32 0.0, %v6402
        %v6404 = vpop.f32.mrb[0].mxu0
        %v6405 = vpop.f32.mrb[0].mxu0
        %v6406 = vadd.f32 0.0, %v6405
        %v6407 = vpop.f32.mrb[0].mxu0
        %6408 = vmatprep.mubr.bf16.mxu0 0
        %6409 = vmatmul.mubr.bf16.gmra.mrb[0].mxu0 %v3205
        %v6410 = vpop.f32.mrb[0].mxu0
        %v6411 = vadd.f32 0.0, %v6410
        %v6412 = vpop.f32.mrb[0].mxu0
        %v6413 = vpop.f32.mrb[0].mxu0
        %v6414 = vadd.f32 0.0, %v6413
        %v6415 = vpop.f32.mrb[0].mxu0
        %6416 = vmatprep.mubr.bf16.mxu0 0
        %6417 = vmatmul.mubr.bf16.gmra.mrb[0].mxu0 %v3206
        %v6418 = vpop.f32.mrb[0].mxu0
        %v6419 = vadd.f32 0.0, %v6418
        %v6420 = vpop.f32.mrb[0].mxu0
        %v6421 = vpop.f32.mrb[0].mxu0
        %v6422 = vadd.f32 0.0, %v6421
        %v6423 = vpop.f32.mrb[0].mxu0
        %6424 = vmatprep.mubr.bf16.mxu0 0
        %6425 = vmatmul.mubr.bf16.gmra.mrb[0].mxu0 %v6118
        %v6426 = vpop.f32.mrb[0].mxu0
        %v6427 = vadd.f32 0.0, %v6426
        %v6428 = vpop.f32.mrb[0].mxu0
        %v6429 = vpop.f32.mrb[0].mxu0
        %v6430 = vadd.f32 0.0, %v6429
        %v6431 = vpop.f32.mrb[0].mxu0
        %6432 = vmatprep.mubr.bf16.mxu0 0
        %6433 = vmatmul.mubr.bf16.gmra.mrb[0].mxu0 %v3208
        %v6434 = vpop.f32.mrb[0].mxu0
        %v6435 = vadd.f32 0.0, %v6434
        %v6436 = vpop.f32.mrb[0].mxu0
        %v6437 = vpop.f32.mrb[0].mxu0
        %v6438 = vadd.f32 0.0, %v6437
        %v6439 = vpop.f32.mrb[0].mxu0
        %6440 = vmatprep.mubr.bf16.mxu0 0
        %6441 = vmatmul.mubr.bf16.gmra.mrb[0].mxu0 %v3209
        %v6442 = vpop.f32.mrb[0].mxu0
        %v6443 = vadd.f32 0.0, %v6442
        %v6444 = vpop.f32.mrb[0].mxu0
        %v6445 = vpop.f32.mrb[0].mxu0
        %v6446 = vadd.f32 0.0, %v6445
        %v6447 = vpop.f32.mrb[0].mxu0
        %6448 = vmatprep.mubr.bf16.mxu0 0
        %6449 = vmatmul.mubr.bf16.gmra.mrb[0].mxu0 %v3210
        %v6450 = vpop.f32.mrb[0].mxu0
        %v6451 = vadd.f32 0.0, %v6450
        %v6452 = vpop.f32.mrb[0].mxu0
        %v6453 = vpop.f32.mrb[0].mxu0
        %v6454 = vadd.f32 0.0, %v6453
        %v6455 = vpop.f32.mrb[0].mxu0
        %6456 = vmatprep.mubr.bf16.mxu0 0
        %6457 = vmatmul.mubr.bf16.gmra.mrb[0].mxu0 %v6119
        %v6458 = vpop.f32.mrb[0].mxu0
        %v6459 = vadd.f32 0.0, %v6458
        %v6460 = vpop.f32.mrb[0].mxu0
        %v6461 = vpop.f32.mrb[0].mxu0
        %v6462 = vadd.f32 0.0, %v6461
        %v6463 = vpop.f32.mrb[0].mxu0
        %6464 = vdwg.mxu0
        %v6465 = vadd.f32 %v6015, %v6211
        %v6466 = vadd.f32 %v6016, %v6214
        %v6467 = vadd.f32 %v6017, %v6219
        %v6468 = vadd.f32 %v6018, %v6222
        %v6469 = vadd.f32 %v6019, %v6227
        %v6470 = vadd.f32 %v6020, %v6230
        %v6471 = vadd.f32 %v6021, %v6235
        %v6472 = vadd.f32 %v6022, %v6238
        %v6473 = vadd.f32 %v6023, %v6243
        %v6474 = vadd.f32 %v6024, %v6246
        %v6475 = vadd.f32 %v6025, %v6251
        %v6476 = vadd.f32 %v6026, %v6254
        %v6477 = vadd.f32 %v6027, %v6259
        %v6478 = vadd.f32 %v6028, %v6262
        %v6479 = vadd.f32 %v6029, %v6267
        %v6480 = vadd.f32 %v6030, %v6270
        %v6481 = vadd.f32 %v6031, %v6275
        %v6482 = vadd.f32 %v6032, %v6278
        %v6483 = vadd.f32 %v6033, %v6283
        %v6484 = vadd.f32 %v6034, %v6286
        %v6485 = vadd.f32 %v6035, %v6291
        %v6486 = vadd.f32 %v6036, %v6294
        %v6487 = vadd.f32 %v6037, %v6299
        %v6488 = vadd.f32 %v6038, %v6302
        %v6489 = vadd.f32 %v6039, %v6307
        %v6490 = vadd.f32 %v6040, %v6310
        %v6491 = vadd.f32 %v6041, %v6315
        %v6492 = vadd.f32 %v6042, %v6318
        %v6493 = vadd.f32 %v6043, %v6323
        %v6494 = vadd.f32 %v6044, %v6326
        %v6495 = vadd.f32 %v6045, %v6331
        %v6496 = vadd.f32 %v6046, %v6334
        %v6497 = vadd.f32 %v6047, %v6339
        %v6498 = vadd.f32 %v6048, %v6342
        %v6499 = vadd.f32 %v6049, %v6347
        %v6500 = vadd.f32 %v6050, %v6350
        %v6501 = vadd.f32 %v6051, %v6355
        %v6502 = vadd.f32 %v6052, %v6358
        %v6503 = vadd.f32 %v6053, %v6363
        %v6504 = vadd.f32 %v6054, %v6366
        %v6505 = vadd.f32 %v6055, %v6371
        %v6506 = vadd.f32 %v6056, %v6374
        %v6507 = vadd.f32 %v6057, %v6379
        %v6508 = vadd.f32 %v6058, %v6382
        %v6509 = vadd.f32 %v6059, %v6387
        %v6510 = vadd.f32 %v6060, %v6390
        %v6511 = vadd.f32 %v6061, %v6395
        %v6512 = vadd.f32 %v6062, %v6398
        %v6513 = vadd.f32 %v6063, %v6403
        %v6514 = vadd.f32 %v6064, %v6406
        %v6515 = vadd.f32 %v6065, %v6411
        %v6516 = vadd.f32 %v6066, %v6414
        %v6517 = vadd.f32 %v6067, %v6419
        %v6518 = vadd.f32 %v6068, %v6422
        %v6519 = vadd.f32 %v6069, %v6427
        %v6520 = vadd.f32 %v6070, %v6430
        %v6521 = vadd.f32 %v6071, %v6435
        %v6522 = vadd.f32 %v6072, %v6438
        %v6523 = vadd.f32 %v6073, %v6443
        %v6524 = vadd.f32 %v6074, %v6446
        %v6525 = vadd.f32 %v6075, %v6451
        %v6526 = vadd.f32 %v6076, %v6454
        %v6527 = vadd.f32 %v6077, %v6459
        %v6528 = vadd.f32 %v6078, %v6462
        %v6530 = vshrl.u32 %v1512, 16
        %v6532 = vrot.slane %v6530, 4
        %v6533 = vshll.u32 %v1512, 16
        %v6535 = vrot.slane %v6533, 5
        %v6536 = vor.u32 %v6532, %v6535
        %v6537 = vrot.slane %v6536, 4
        %v6539 = vshll.u32 %v1513, 16
        %v6541 = vrot.slane %v6539, 5
        %v6542 = vsel %vm1672, %v6537, %v6541
        %v6544 = vshrl.u32 %v1532, 16
        %v6546 = vrot.slane %v6544, 4
        %v6547 = vshll.u32 %v1532, 16
        %v6549 = vrot.slane %v6547, 5
        %v6550 = vor.u32 %v6546, %v6549
        %v6551 = vrot.slane %v6550, 4
        %v6553 = vshll.u32 %v1533, 16
        %v6555 = vrot.slane %v6553, 5
        %v6556 = vsel %vm1672, %v6551, %v6555
        %v6558 = vshrl.u32 %v1552, 16
        %v6560 = vrot.slane %v6558, 4
        %v6561 = vshll.u32 %v1552, 16
        %v6563 = vrot.slane %v6561, 5
        %v6564 = vor.u32 %v6560, %v6563
        %v6565 = vrot.slane %v6564, 4
        %v6567 = vshll.u32 %v1553, 16
        %v6569 = vrot.slane %v6567, 5
        %v6570 = vsel %vm1672, %v6565, %v6569
        %v6572 = vshrl.u32 %v1572, 16
        %v6574 = vrot.slane %v6572, 4
        %v6575 = vshll.u32 %v1572, 16
        %v6577 = vrot.slane %v6575, 5
        %v6578 = vor.u32 %v6574, %v6577
        %v6579 = vrot.slane %v6578, 4
        %v6581 = vshll.u32 %v1573, 16
        %v6583 = vrot.slane %v6581, 5
        %v6584 = vsel %vm1672, %v6579, %v6583
        %v6586 = vshrl.u32 %v1592, 16
        %v6588 = vrot.slane %v6586, 4
        %v6589 = vshll.u32 %v1592, 16
        %v6591 = vrot.slane %v6589, 5
        %v6592 = vor.u32 %v6588, %v6591
        %v6593 = vrot.slane %v6592, 4
        %v6595 = vshll.u32 %v1593, 16
        %v6597 = vrot.slane %v6595, 5
        %v6598 = vsel %vm1672, %v6593, %v6597
        %v6600 = vshrl.u32 %v1612, 16
        %v6602 = vrot.slane %v6600, 4
        %v6603 = vshll.u32 %v1612, 16
        %v6605 = vrot.slane %v6603, 5
        %v6606 = vor.u32 %v6602, %v6605
        %v6607 = vrot.slane %v6606, 4
        %v6609 = vshll.u32 %v1613, 16
        %v6611 = vrot.slane %v6609, 5
        %v6612 = vsel %vm1672, %v6607, %v6611
        %v6614 = vshrl.u32 %v1632, 16
        %v6616 = vrot.slane %v6614, 4
        %v6617 = vshll.u32 %v1632, 16
        %v6619 = vrot.slane %v6617, 5
        %v6620 = vor.u32 %v6616, %v6619
        %v6621 = vrot.slane %v6620, 4
        %v6623 = vshll.u32 %v1633, 16
        %v6625 = vrot.slane %v6623, 5
        %v6626 = vsel %vm1672, %v6621, %v6625
        %v6628 = vshrl.u32 %v1652, 16
        %v6630 = vrot.slane %v6628, 4
        %v6631 = vshll.u32 %v1652, 16
        %v6633 = vrot.slane %v6631, 5
        %v6634 = vor.u32 %v6630, %v6633
        %v6635 = vrot.slane %v6634, 4
        %v6637 = vshll.u32 %v1653, 16
        %v6639 = vrot.slane %v6637, 5
        %v6640 = vsel %vm1672, %v6635, %v6639
        %s6641 = scalar_lea.vmem %s208, 448 [#allocation6]
        %v6642 = vld [vmem:[%s6641] sm:$0xf]
        %v6643 = vld [vmem:[%s6641 + $0x4] sm:$0xf]
        %v6644 = vld [vmem:[%s6641 + $0x8] sm:$0xf]
        %v6645 = vld [vmem:[%s6641 + $0xc] sm:$0xf]
        %v6646 = vld [vmem:[%s6641 + $0x10] sm:$0xf]
        %v6647 = vld [vmem:[%s6641 + $0x14] sm:$0xf]
        %v6648 = vld [vmem:[%s6641 + $0x18] sm:$0xf]
        %v6649 = vld [vmem:[%s6641 + $0x1c] sm:$0xf]
        %v6650 = vld [vmem:[%s6641 + $0x20] sm:$0xf]
        %v6651 = vld [vmem:[%s6641 + $0x24] sm:$0xf]
        %v6652 = vld [vmem:[%s6641 + $0x28] sm:$0xf]
        %v6653 = vld [vmem:[%s6641 + $0x2c] sm:$0xf]
        %v6654 = vld [vmem:[%s6641 + $0x30] sm:$0xf]
        %v6655 = vld [vmem:[%s6641 + $0x34] sm:$0xf]
        %v6656 = vld [vmem:[%s6641 + $0x38] sm:$0xf]
        %v6657 = vld [vmem:[%s6641 + $0x3c] sm:$0xf]
        %v6658 = vunpack.c.l.b16 %v6542
        %v6659 = vunpack.c.l.b16 %v6556
        %v6660 = vunpack.c.l.b16 %v6570
        %v6661 = vunpack.c.l.b16 %v6584
        %v6662 = vunpack.c.l.b16 %v6598
        %v6663 = vunpack.c.l.b16 %v6612
        %v6664 = vunpack.c.l.b16 %v6626
        %v6665 = vunpack.c.l.b16 %v6640
        %v6666 = vpack.c.b16 %v6658, %v5076
        %v6667 = vpack.c.b16 %v6659, %v5077
        %v6668 = vpack.c.b16 %v6660, %v5078
        %v6669 = vpack.c.b16 %v6661, %v5079
        %v6670 = vpack.c.b16 %v6662, %v5080
        %v6671 = vpack.c.b16 %v6663, %v5081
        %v6672 = vpack.c.b16 %v6664, %v5082
        %v6673 = vpack.c.b16 %v6665, %v5083
        %v6698 = vunpack.c.l.b16 %v6642
        %v6699 = vunpack.c.l.b16 %v6643
        %v6700 = vunpack.c.l.b16 %v6644
        %v6701 = vunpack.c.l.b16 %v6645
        %v6702 = vunpack.c.l.b16 %v6646
        %v6703 = vunpack.c.l.b16 %v6647
        %v6704 = vunpack.c.l.b16 %v6648
        %v6705 = vunpack.c.l.b16 %v6649
        %v6706 = vunpack.c.l.b16 %v6650
        %v6707 = vunpack.c.l.b16 %v6651
        %v6708 = vunpack.c.l.b16 %v6652
        %v6709 = vunpack.c.l.b16 %v6653
        %v6710 = vunpack.c.l.b16 %v6654
        %v6711 = vunpack.c.l.b16 %v6655
        %v6712 = vunpack.c.l.b16 %v6656
        %v6713 = vunpack.c.l.b16 %v6657
        %v6714 = vpack.c.b16 %v6699, %v6698
        %v6715 = vpack.c.b16 %v6701, %v6700
        %v6716 = vpack.c.b16 %v6703, %v6702
        %v6717 = vpack.c.b16 %v6705, %v6704
        %v6718 = vpack.c.b16 %v6707, %v6706
        %v6719 = vpack.c.b16 %v6709, %v6708
        %v6720 = vpack.c.b16 %v6711, %v6710
        %v6721 = vpack.c.b16 %v6713, %v6712
        %6730 = vmatprep.subr.bf16.mxu0 0
        %6731 = vmatpush1.bf16.msra.mxu0 %v6714
        %6732 = vmatprep.subr.bf16.mxu0 0
        %6733 = vmatpush1.bf16.msra.mxu0 %v6715
        %6734 = vmatprep.subr.bf16.mxu0 0
        %6735 = vmatpush1.bf16.msra.mxu0 %v6716
        %6736 = vmatprep.subr.bf16.mxu0 0
        %6737 = vmatpush1.bf16.msra.mxu0 %v6717
        %6738 = vmatprep.subr.bf16.mxu0 0
        %6739 = vmatpush1.bf16.msra.mxu0 %v6718
        %6740 = vmatprep.subr.bf16.mxu0 0
        %6741 = vmatpush1.bf16.msra.mxu0 %v6719
        %6742 = vmatprep.subr.bf16.mxu0 0
        %6743 = vmatpush1.bf16.msra.mxu0 %v6720
        %6744 = vmatprep.subr.bf16.mxu0 0
        %6745 = vmatpush1.bf16.msra.mxu0 %v6721
        %6746 = vmatprep.subr.bf16.mxu0 0
        %6747 = vmatpush1.bf16.msra.mxu0 0
        %6748 = vmatprep.subr.bf16.mxu0 0
        %6749 = vmatpush1.bf16.msra.mxu0 0
        %6750 = vmatprep.subr.bf16.mxu0 0
        %6751 = vmatpush1.bf16.msra.mxu0 0
        %6752 = vmatprep.subr.bf16.mxu0 0
        %6753 = vmatpush1.bf16.msra.mxu0 0
        %6754 = vmatprep.subr.bf16.mxu0 0
        %6755 = vmatpush1.bf16.msra.mxu0 0
        %6756 = vmatprep.subr.bf16.mxu0 0
        %6757 = vmatpush1.bf16.msra.mxu0 0
        %6758 = vmatprep.subr.bf16.mxu0 0
        %6759 = vmatpush1.bf16.msra.mxu0 0
        %6760 = vmatprep.subr.bf16.mxu0 0
        %6761 = vmatpush1.bf16.msra.mxu0 0
        %6762 = vmatprep.mubr.bf16.mxu0 0
        %6763 = vmatmul.mubr.bf16.gmra.mrb[0].mxu0 %v2651
        %v6764 = vpop.f32.mrb[0].mxu0
        %v6765 = vadd.f32 0.0, %v6764
        %v6766 = vpop.f32.mrb[0].mxu0
        %v6767 = vpop.f32.mrb[0].mxu0
        %v6768 = vadd.f32 0.0, %v6767
        %v6769 = vpop.f32.mrb[0].mxu0
        %6770 = vmatprep.mubr.bf16.mxu0 0
        %6771 = vmatmul.mubr.bf16.gmra.mrb[0].mxu0 %v2652
        %v6772 = vpop.f32.mrb[0].mxu0
        %v6773 = vadd.f32 0.0, %v6772
        %v6774 = vpop.f32.mrb[0].mxu0
        %v6775 = vpop.f32.mrb[0].mxu0
        %v6776 = vadd.f32 0.0, %v6775
        %v6777 = vpop.f32.mrb[0].mxu0
        %6778 = vmatprep.mubr.bf16.mxu0 0
        %6779 = vmatmul.mubr.bf16.gmra.mrb[0].mxu0 %v2653
        %v6780 = vpop.f32.mrb[0].mxu0
        %v6781 = vadd.f32 0.0, %v6780
        %v6782 = vpop.f32.mrb[0].mxu0
        %v6783 = vpop.f32.mrb[0].mxu0
        %v6784 = vadd.f32 0.0, %v6783
        %v6785 = vpop.f32.mrb[0].mxu0
        %6786 = vmatprep.mubr.bf16.mxu0 0
        %6787 = vmatmul.mubr.bf16.gmra.mrb[0].mxu0 %v6666
        %v6788 = vpop.f32.mrb[0].mxu0
        %v6789 = vadd.f32 0.0, %v6788
        %v6790 = vpop.f32.mrb[0].mxu0
        %v6791 = vpop.f32.mrb[0].mxu0
        %v6792 = vadd.f32 0.0, %v6791
        %v6793 = vpop.f32.mrb[0].mxu0
        %6794 = vmatprep.mubr.bf16.mxu0 0
        %6795 = vmatmul.mubr.bf16.gmra.mrb[0].mxu0 %v2655
        %v6796 = vpop.f32.mrb[0].mxu0
        %v6797 = vadd.f32 0.0, %v6796
        %v6798 = vpop.f32.mrb[0].mxu0
        %v6799 = vpop.f32.mrb[0].mxu0
        %v6800 = vadd.f32 0.0, %v6799
        %v6801 = vpop.f32.mrb[0].mxu0
        %6802 = vmatprep.mubr.bf16.mxu0 0
        %6803 = vmatmul.mubr.bf16.gmra.mrb[0].mxu0 %v2656
        %v6804 = vpop.f32.mrb[0].mxu0
        %v6805 = vadd.f32 0.0, %v6804
        %v6806 = vpop.f32.mrb[0].mxu0
        %v6807 = vpop.f32.mrb[0].mxu0
        %v6808 = vadd.f32 0.0, %v6807
        %v6809 = vpop.f32.mrb[0].mxu0
        %6810 = vmatprep.mubr.bf16.mxu0 0
        %6811 = vmatmul.mubr.bf16.gmra.mrb[0].mxu0 %v2657
        %v6812 = vpop.f32.mrb[0].mxu0
        %v6813 = vadd.f32 0.0, %v6812
        %v6814 = vpop.f32.mrb[0].mxu0
        %v6815 = vpop.f32.mrb[0].mxu0
        %v6816 = vadd.f32 0.0, %v6815
        %v6817 = vpop.f32.mrb[0].mxu0
        %6818 = vmatprep.mubr.bf16.mxu0 0
        %6819 = vmatmul.mubr.bf16.gmra.mrb[0].mxu0 %v6667
        %v6820 = vpop.f32.mrb[0].mxu0
        %v6821 = vadd.f32 0.0, %v6820
        %v6822 = vpop.f32.mrb[0].mxu0
        %v6823 = vpop.f32.mrb[0].mxu0
        %v6824 = vadd.f32 0.0, %v6823
        %v6825 = vpop.f32.mrb[0].mxu0
        %6826 = vmatprep.mubr.bf16.mxu0 0
        %6827 = vmatmul.mubr.bf16.gmra.mrb[0].mxu0 %v2659
        %v6828 = vpop.f32.mrb[0].mxu0
        %v6829 = vadd.f32 0.0, %v6828
        %v6830 = vpop.f32.mrb[0].mxu0
        %v6831 = vpop.f32.mrb[0].mxu0
        %v6832 = vadd.f32 0.0, %v6831
        %v6833 = vpop.f32.mrb[0].mxu0
        %6834 = vmatprep.mubr.bf16.mxu0 0
        %6835 = vmatmul.mubr.bf16.gmra.mrb[0].mxu0 %v2660
        %v6836 = vpop.f32.mrb[0].mxu0
        %v6837 = vadd.f32 0.0, %v6836
        %v6838 = vpop.f32.mrb[0].mxu0
        %v6839 = vpop.f32.mrb[0].mxu0
        %v6840 = vadd.f32 0.0, %v6839
        %v6841 = vpop.f32.mrb[0].mxu0
        %6842 = vmatprep.mubr.bf16.mxu0 0
        %6843 = vmatmul.mubr.bf16.gmra.mrb[0].mxu0 %v2661
        %v6844 = vpop.f32.mrb[0].mxu0
        %v6845 = vadd.f32 0.0, %v6844
        %v6846 = vpop.f32.mrb[0].mxu0
        %v6847 = vpop.f32.mrb[0].mxu0
        %v6848 = vadd.f32 0.0, %v6847
        %v6849 = vpop.f32.mrb[0].mxu0
        %6850 = vmatprep.mubr.bf16.mxu0 0
        %6851 = vmatmul.mubr.bf16.gmra.mrb[0].mxu0 %v6668
        %v6852 = vpop.f32.mrb[0].mxu0
        %v6853 = vadd.f32 0.0, %v6852
        %v6854 = vpop.f32.mrb[0].mxu0
        %v6855 = vpop.f32.mrb[0].mxu0
        %v6856 = vadd.f32 0.0, %v6855
        %v6857 = vpop.f32.mrb[0].mxu0
        %6858 = vmatprep.mubr.bf16.mxu0 0
        %6859 = vmatmul.mubr.bf16.gmra.mrb[0].mxu0 %v2663
        %v6860 = vpop.f32.mrb[0].mxu0
        %v6861 = vadd.f32 0.0, %v6860
        %v6862 = vpop.f32.mrb[0].mxu0
        %v6863 = vpop.f32.mrb[0].mxu0
        %v6864 = vadd.f32 0.0, %v6863
        %v6865 = vpop.f32.mrb[0].mxu0
        %6866 = vmatprep.mubr.bf16.mxu0 0
        %6867 = vmatmul.mubr.bf16.gmra.mrb[0].mxu0 %v2664
        %v6868 = vpop.f32.mrb[0].mxu0
        %v6869 = vadd.f32 0.0, %v6868
        %v6870 = vpop.f32.mrb[0].mxu0
        %v6871 = vpop.f32.mrb[0].mxu0
        %v6872 = vadd.f32 0.0, %v6871
        %v6873 = vpop.f32.mrb[0].mxu0
        %6874 = vmatprep.mubr.bf16.mxu0 0
        %6875 = vmatmul.mubr.bf16.gmra.mrb[0].mxu0 %v2665
        %v6876 = vpop.f32.mrb[0].mxu0
        %v6877 = vadd.f32 0.0, %v6876
        %v6878 = vpop.f32.mrb[0].mxu0
        %v6879 = vpop.f32.mrb[0].mxu0
        %v6880 = vadd.f32 0.0, %v6879
        %v6881 = vpop.f32.mrb[0].mxu0
        %6882 = vmatprep.mubr.bf16.mxu0 0
        %6883 = vmatmul.mubr.bf16.gmra.mrb[0].mxu0 %v6669
        %v6884 = vpop.f32.mrb[0].mxu0
        %v6885 = vadd.f32 0.0, %v6884
        %v6886 = vpop.f32.mrb[0].mxu0
        %v6887 = vpop.f32.mrb[0].mxu0
        %v6888 = vadd.f32 0.0, %v6887
        %v6889 = vpop.f32.mrb[0].mxu0
        %6890 = vmatprep.mubr.bf16.mxu0 0
        %6891 = vmatmul.mubr.bf16.gmra.mrb[0].mxu0 %v2667
        %v6892 = vpop.f32.mrb[0].mxu0
        %v6893 = vadd.f32 0.0, %v6892
        %v6894 = vpop.f32.mrb[0].mxu0
        %v6895 = vpop.f32.mrb[0].mxu0
        %v6896 = vadd.f32 0.0, %v6895
        %v6897 = vpop.f32.mrb[0].mxu0
        %6898 = vmatprep.mubr.bf16.mxu0 0
        %6899 = vmatmul.mubr.bf16.gmra.mrb[0].mxu0 %v2668
        %v6900 = vpop.f32.mrb[0].mxu0
        %v6901 = vadd.f32 0.0, %v6900
        %v6902 = vpop.f32.mrb[0].mxu0
        %v6903 = vpop.f32.mrb[0].mxu0
        %v6904 = vadd.f32 0.0, %v6903
        %v6905 = vpop.f32.mrb[0].mxu0
        %6906 = vmatprep.mubr.bf16.mxu0 0
        %6907 = vmatmul.mubr.bf16.gmra.mrb[0].mxu0 %v2669
        %v6908 = vpop.f32.mrb[0].mxu0
        %v6909 = vadd.f32 0.0, %v6908
        %v6910 = vpop.f32.mrb[0].mxu0
        %v6911 = vpop.f32.mrb[0].mxu0
        %v6912 = vadd.f32 0.0, %v6911
        %v6913 = vpop.f32.mrb[0].mxu0
        %6914 = vmatprep.mubr.bf16.mxu0 0
        %6915 = vmatmul.mubr.bf16.gmra.mrb[0].mxu0 %v6670
        %v6916 = vpop.f32.mrb[0].mxu0
        %v6917 = vadd.f32 0.0, %v6916
        %v6918 = vpop.f32.mrb[0].mxu0
        %v6919 = vpop.f32.mrb[0].mxu0
        %v6920 = vadd.f32 0.0, %v6919
        %v6921 = vpop.f32.mrb[0].mxu0
        %6922 = vmatprep.mubr.bf16.mxu0 0
        %6923 = vmatmul.mubr.bf16.gmra.mrb[0].mxu0 %v2671
        %v6924 = vpop.f32.mrb[0].mxu0
        %v6925 = vadd.f32 0.0, %v6924
        %v6926 = vpop.f32.mrb[0].mxu0
        %v6927 = vpop.f32.mrb[0].mxu0
        %v6928 = vadd.f32 0.0, %v6927
        %v6929 = vpop.f32.mrb[0].mxu0
        %6930 = vmatprep.mubr.bf16.mxu0 0
        %6931 = vmatmul.mubr.bf16.gmra.mrb[0].mxu0 %v2672
        %v6932 = vpop.f32.mrb[0].mxu0
        %v6933 = vadd.f32 0.0, %v6932
        %v6934 = vpop.f32.mrb[0].mxu0
        %v6935 = vpop.f32.mrb[0].mxu0
        %v6936 = vadd.f32 0.0, %v6935
        %v6937 = vpop.f32.mrb[0].mxu0
        %6938 = vmatprep.mubr.bf16.mxu0 0
        %6939 = vmatmul.mubr.bf16.gmra.mrb[0].mxu0 %v2673
        %v6940 = vpop.f32.mrb[0].mxu0
        %v6941 = vadd.f32 0.0, %v6940
        %v6942 = vpop.f32.mrb[0].mxu0
        %v6943 = vpop.f32.mrb[0].mxu0
        %v6944 = vadd.f32 0.0, %v6943
        %v6945 = vpop.f32.mrb[0].mxu0
        %6946 = vmatprep.mubr.bf16.mxu0 0
        %6947 = vmatmul.mubr.bf16.gmra.mrb[0].mxu0 %v6671
        %v6948 = vpop.f32.mrb[0].mxu0
        %v6949 = vadd.f32 0.0, %v6948
        %v6950 = vpop.f32.mrb[0].mxu0
        %v6951 = vpop.f32.mrb[0].mxu0
        %v6952 = vadd.f32 0.0, %v6951
        %v6953 = vpop.f32.mrb[0].mxu0
        %6954 = vmatprep.mubr.bf16.mxu0 0
        %6955 = vmatmul.mubr.bf16.gmra.mrb[0].mxu0 %v2675
        %v6956 = vpop.f32.mrb[0].mxu0
        %v6957 = vadd.f32 0.0, %v6956
        %v6958 = vpop.f32.mrb[0].mxu0
        %v6959 = vpop.f32.mrb[0].mxu0
        %v6960 = vadd.f32 0.0, %v6959
        %v6961 = vpop.f32.mrb[0].mxu0
        %6962 = vmatprep.mubr.bf16.mxu0 0
        %6963 = vmatmul.mubr.bf16.gmra.mrb[0].mxu0 %v2676
        %v6964 = vpop.f32.mrb[0].mxu0
        %v6965 = vadd.f32 0.0, %v6964
        %v6966 = vpop.f32.mrb[0].mxu0
        %v6967 = vpop.f32.mrb[0].mxu0
        %v6968 = vadd.f32 0.0, %v6967
        %v6969 = vpop.f32.mrb[0].mxu0
        %6970 = vmatprep.mubr.bf16.mxu0 0
        %6971 = vmatmul.mubr.bf16.gmra.mrb[0].mxu0 %v2677
        %v6972 = vpop.f32.mrb[0].mxu0
        %v6973 = vadd.f32 0.0, %v6972
        %v6974 = vpop.f32.mrb[0].mxu0
        %v6975 = vpop.f32.mrb[0].mxu0
        %v6976 = vadd.f32 0.0, %v6975
        %v6977 = vpop.f32.mrb[0].mxu0
        %6978 = vmatprep.mubr.bf16.mxu0 0
        %6979 = vmatmul.mubr.bf16.gmra.mrb[0].mxu0 %v6672
        %v6980 = vpop.f32.mrb[0].mxu0
        %v6981 = vadd.f32 0.0, %v6980
        %v6982 = vpop.f32.mrb[0].mxu0
        %v6983 = vpop.f32.mrb[0].mxu0
        %v6984 = vadd.f32 0.0, %v6983
        %v6985 = vpop.f32.mrb[0].mxu0
        %6986 = vmatprep.mubr.bf16.mxu0 0
        %6987 = vmatmul.mubr.bf16.gmra.mrb[0].mxu0 %v2679
        %v6988 = vpop.f32.mrb[0].mxu0
        %v6989 = vadd.f32 0.0, %v6988
        %v6990 = vpop.f32.mrb[0].mxu0
        %v6991 = vpop.f32.mrb[0].mxu0
        %v6992 = vadd.f32 0.0, %v6991
        %v6993 = vpop.f32.mrb[0].mxu0
        %6994 = vmatprep.mubr.bf16.mxu0 0
        %6995 = vmatmul.mubr.bf16.gmra.mrb[0].mxu0 %v2680
        %v6996 = vpop.f32.mrb[0].mxu0
        %v6997 = vadd.f32 0.0, %v6996
        %v6998 = vpop.f32.mrb[0].mxu0
        %v6999 = vpop.f32.mrb[0].mxu0
        %v7000 = vadd.f32 0.0, %v6999
        %v7001 = vpop.f32.mrb[0].mxu0
        %7002 = vmatprep.mubr.bf16.mxu0 0
        %7003 = vmatmul.mubr.bf16.gmra.mrb[0].mxu0 %v2681
        %v7004 = vpop.f32.mrb[0].mxu0
        %v7005 = vadd.f32 0.0, %v7004
        %v7006 = vpop.f32.mrb[0].mxu0
        %v7007 = vpop.f32.mrb[0].mxu0
        %v7008 = vadd.f32 0.0, %v7007
        %v7009 = vpop.f32.mrb[0].mxu0
        %7010 = vmatprep.mubr.bf16.mxu0 0
        %7011 = vmatmul.mubr.bf16.gmra.mrb[0].mxu0 %v6673
        %v7012 = vpop.f32.mrb[0].mxu0
        %v7013 = vadd.f32 0.0, %v7012
        %v7014 = vpop.f32.mrb[0].mxu0
        %v7015 = vpop.f32.mrb[0].mxu0
        %v7016 = vadd.f32 0.0, %v7015
        %v7017 = vpop.f32.mrb[0].mxu0
        %7018 = vdwg.mxu0
        %v7019 = vadd.f32 %v6465, %v6765
        %v7020 = vadd.f32 %v6466, %v6768
        %v7021 = vadd.f32 %v6467, %v6773
        %v7022 = vadd.f32 %v6468, %v6776
        %v7023 = vadd.f32 %v6469, %v6781
        %v7024 = vadd.f32 %v6470, %v6784
        %v7025 = vadd.f32 %v6471, %v6789
        %v7026 = vadd.f32 %v6472, %v6792
        %v7027 = vadd.f32 %v6473, %v6797
        %v7028 = vadd.f32 %v6474, %v6800
        %v7029 = vadd.f32 %v6475, %v6805
        %v7030 = vadd.f32 %v6476, %v6808
        %v7031 = vadd.f32 %v6477, %v6813
        %v7032 = vadd.f32 %v6478, %v6816
        %v7033 = vadd.f32 %v6479, %v6821
        %v7034 = vadd.f32 %v6480, %v6824
        %v7035 = vadd.f32 %v6481, %v6829
        %v7036 = vadd.f32 %v6482, %v6832
        %v7037 = vadd.f32 %v6483, %v6837
        %v7038 = vadd.f32 %v6484, %v6840
        %v7039 = vadd.f32 %v6485, %v6845
        %v7040 = vadd.f32 %v6486, %v6848
        %v7041 = vadd.f32 %v6487, %v6853
        %v7042 = vadd.f32 %v6488, %v6856
        %v7043 = vadd.f32 %v6489, %v6861
        %v7044 = vadd.f32 %v6490, %v6864
        %v7045 = vadd.f32 %v6491, %v6869
        %v7046 = vadd.f32 %v6492, %v6872
        %v7047 = vadd.f32 %v6493, %v6877
        %v7048 = vadd.f32 %v6494, %v6880
        %v7049 = vadd.f32 %v6495, %v6885
        %v7050 = vadd.f32 %v6496, %v6888
        %v7051 = vadd.f32 %v6497, %v6893
        %v7052 = vadd.f32 %v6498, %v6896
        %v7053 = vadd.f32 %v6499, %v6901
        %v7054 = vadd.f32 %v6500, %v6904
        %v7055 = vadd.f32 %v6501, %v6909
        %v7056 = vadd.f32 %v6502, %v6912
        %v7057 = vadd.f32 %v6503, %v6917
        %v7058 = vadd.f32 %v6504, %v6920
        %v7059 = vadd.f32 %v6505, %v6925
        %v7060 = vadd.f32 %v6506, %v6928
        %v7061 = vadd.f32 %v6507, %v6933
        %v7062 = vadd.f32 %v6508, %v6936
        %v7063 = vadd.f32 %v6509, %v6941
        %v7064 = vadd.f32 %v6510, %v6944
        %v7065 = vadd.f32 %v6511, %v6949
        %v7066 = vadd.f32 %v6512, %v6952
        %v7067 = vadd.f32 %v6513, %v6957
        %v7068 = vadd.f32 %v6514, %v6960
        %v7069 = vadd.f32 %v6515, %v6965
        %v7070 = vadd.f32 %v6516, %v6968
        %v7071 = vadd.f32 %v6517, %v6973
        %v7072 = vadd.f32 %v6518, %v6976
        %v7073 = vadd.f32 %v6519, %v6981
        %v7074 = vadd.f32 %v6520, %v6984
        %v7075 = vadd.f32 %v6521, %v6989
        %v7076 = vadd.f32 %v6522, %v6992
        %v7077 = vadd.f32 %v6523, %v6997
        %v7078 = vadd.f32 %v6524, %v7000
        %v7079 = vadd.f32 %v6525, %v7005
        %v7080 = vadd.f32 %v6526, %v7008
        %v7081 = vadd.f32 %v6527, %v7013
        %v7082 = vadd.f32 %v6528, %v7016
        %v7091 = vrot.slane %v1512, 5
        %v7092 = vrot.slane %v7091, 4
        %v7093 = vrot.slane %v1513, 5
        %v7094 = vsel %vm3646, %v7092, %v7093
        %v7095 = vrot.slane %v1532, 5
        %v7096 = vrot.slane %v7095, 4
        %v7097 = vrot.slane %v1533, 5
        %v7098 = vsel %vm3646, %v7096, %v7097
        %v7099 = vrot.slane %v1552, 5
        %v7100 = vrot.slane %v7099, 4
        %v7101 = vrot.slane %v1553, 5
        %v7102 = vsel %vm3646, %v7100, %v7101
        %v7103 = vrot.slane %v1572, 5
        %v7104 = vrot.slane %v7103, 4
        %v7105 = vrot.slane %v1573, 5
        %v7106 = vsel %vm3646, %v7104, %v7105
        %v7107 = vrot.slane %v1592, 5
        %v7108 = vrot.slane %v7107, 4
        %v7109 = vrot.slane %v1593, 5
        %v7110 = vsel %vm3646, %v7108, %v7109
        %v7111 = vrot.slane %v1612, 5
        %v7112 = vrot.slane %v7111, 4
        %v7113 = vrot.slane %v1613, 5
        %v7114 = vsel %vm3646, %v7112, %v7113
        %v7115 = vrot.slane %v1632, 5
        %v7116 = vrot.slane %v7115, 4
        %v7117 = vrot.slane %v1633, 5
        %v7118 = vsel %vm3646, %v7116, %v7117
        %v7119 = vrot.slane %v1652, 5
        %v7120 = vrot.slane %v7119, 4
        %v7121 = vrot.slane %v1653, 5
        %v7122 = vsel %vm3646, %v7120, %v7121
        %s7123 = scalar_lea.vmem %s208, 512 [#allocation6]
        %v7124 = vld [vmem:[%s7123] sm:$0xf]
        %v7125 = vld [vmem:[%s7123 + $0x4] sm:$0xf]
        %v7126 = vld [vmem:[%s7123 + $0x8] sm:$0xf]
        %v7127 = vld [vmem:[%s7123 + $0xc] sm:$0xf]
        %v7128 = vld [vmem:[%s7123 + $0x10] sm:$0xf]
        %v7129 = vld [vmem:[%s7123 + $0x14] sm:$0xf]
        %v7130 = vld [vmem:[%s7123 + $0x18] sm:$0xf]
        %v7131 = vld [vmem:[%s7123 + $0x1c] sm:$0xf]
        %v7132 = vld [vmem:[%s7123 + $0x20] sm:$0xf]
        %v7133 = vld [vmem:[%s7123 + $0x24] sm:$0xf]
        %v7134 = vld [vmem:[%s7123 + $0x28] sm:$0xf]
        %v7135 = vld [vmem:[%s7123 + $0x2c] sm:$0xf]
        %v7136 = vld [vmem:[%s7123 + $0x30] sm:$0xf]
        %v7137 = vld [vmem:[%s7123 + $0x34] sm:$0xf]
        %v7138 = vld [vmem:[%s7123 + $0x38] sm:$0xf]
        %v7139 = vld [vmem:[%s7123 + $0x3c] sm:$0xf]
        %v7140 = vunpack.c.l.b16 %v7094
        %v7141 = vunpack.c.l.b16 %v7098
        %v7142 = vunpack.c.l.b16 %v7102
        %v7143 = vunpack.c.l.b16 %v7106
        %v7144 = vunpack.c.l.b16 %v7110
        %v7145 = vunpack.c.l.b16 %v7114
        %v7146 = vunpack.c.l.b16 %v7118
        %v7147 = vunpack.c.l.b16 %v7122
        %v7148 = vpack.c.b16 %v7140, %v5606
        %v7149 = vpack.c.b16 %v7141, %v5607
        %v7150 = vpack.c.b16 %v7142, %v5608
        %v7151 = vpack.c.b16 %v7143, %v5609
        %v7152 = vpack.c.b16 %v7144, %v5610
        %v7153 = vpack.c.b16 %v7145, %v5611
        %v7154 = vpack.c.b16 %v7146, %v5612
        %v7155 = vpack.c.b16 %v7147, %v5613
        %v7180 = vunpack.c.l.b16 %v7124
        %v7181 = vunpack.c.l.b16 %v7125
        %v7182 = vunpack.c.l.b16 %v7126
        %v7183 = vunpack.c.l.b16 %v7127
        %v7184 = vunpack.c.l.b16 %v7128
        %v7185 = vunpack.c.l.b16 %v7129
        %v7186 = vunpack.c.l.b16 %v7130
        %v7187 = vunpack.c.l.b16 %v7131
        %v7188 = vunpack.c.l.b16 %v7132
        %v7189 = vunpack.c.l.b16 %v7133
        %v7190 = vunpack.c.l.b16 %v7134
        %v7191 = vunpack.c.l.b16 %v7135
        %v7192 = vunpack.c.l.b16 %v7136
        %v7193 = vunpack.c.l.b16 %v7137
        %v7194 = vunpack.c.l.b16 %v7138
        %v7195 = vunpack.c.l.b16 %v7139
        %v7196 = vpack.c.b16 %v7181, %v7180
        %v7197 = vpack.c.b16 %v7183, %v7182
        %v7198 = vpack.c.b16 %v7185, %v7184
        %v7199 = vpack.c.b16 %v7187, %v7186
        %v7200 = vpack.c.b16 %v7189, %v7188
        %v7201 = vpack.c.b16 %v7191, %v7190
        %v7202 = vpack.c.b16 %v7193, %v7192
        %v7203 = vpack.c.b16 %v7195, %v7194
        %7212 = vmatprep.subr.bf16.mxu0 0
        %7213 = vmatpush1.bf16.msra.mxu0 %v7196
        %7214 = vmatprep.subr.bf16.mxu0 0
        %7215 = vmatpush1.bf16.msra.mxu0 %v7197
        %7216 = vmatprep.subr.bf16.mxu0 0
        %7217 = vmatpush1.bf16.msra.mxu0 %v7198
        %7218 = vmatprep.subr.bf16.mxu0 0
        %7219 = vmatpush1.bf16.msra.mxu0 %v7199
        %7220 = vmatprep.subr.bf16.mxu0 0
        %7221 = vmatpush1.bf16.msra.mxu0 %v7200
        %7222 = vmatprep.subr.bf16.mxu0 0
        %7223 = vmatpush1.bf16.msra.mxu0 %v7201
        %7224 = vmatprep.subr.bf16.mxu0 0
        %7225 = vmatpush1.bf16.msra.mxu0 %v7202
        %7226 = vmatprep.subr.bf16.mxu0 0
        %7227 = vmatpush1.bf16.msra.mxu0 %v7203
        %7228 = vmatprep.subr.bf16.mxu0 0
        %7229 = vmatpush1.bf16.msra.mxu0 0
        %7230 = vmatprep.subr.bf16.mxu0 0
        %7231 = vmatpush1.bf16.msra.mxu0 0
        %7232 = vmatprep.subr.bf16.mxu0 0
        %7233 = vmatpush1.bf16.msra.mxu0 0
        %7234 = vmatprep.subr.bf16.mxu0 0
        %7235 = vmatpush1.bf16.msra.mxu0 0
        %7236 = vmatprep.subr.bf16.mxu0 0
        %7237 = vmatpush1.bf16.msra.mxu0 0
        %7238 = vmatprep.subr.bf16.mxu0 0
        %7239 = vmatpush1.bf16.msra.mxu0 0
        %7240 = vmatprep.subr.bf16.mxu0 0
        %7241 = vmatpush1.bf16.msra.mxu0 0
        %7242 = vmatprep.subr.bf16.mxu0 0
        %7243 = vmatpush1.bf16.msra.mxu0 0
        %7244 = vmatprep.mubr.bf16.mxu0 0
        %7245 = vmatmul.mubr.bf16.gmra.mrb[0].mxu0 %v3985
        %v7246 = vpop.f32.mrb[0].mxu0
        %v7247 = vadd.f32 0.0, %v7246
        %v7248 = vpop.f32.mrb[0].mxu0
        %v7249 = vpop.f32.mrb[0].mxu0
        %v7250 = vadd.f32 0.0, %v7249
        %v7251 = vpop.f32.mrb[0].mxu0
        %7252 = vmatprep.mubr.bf16.mxu0 0
        %7253 = vmatmul.mubr.bf16.gmra.mrb[0].mxu0 %v3986
        %v7254 = vpop.f32.mrb[0].mxu0
        %v7255 = vadd.f32 0.0, %v7254
        %v7256 = vpop.f32.mrb[0].mxu0
        %v7257 = vpop.f32.mrb[0].mxu0
        %v7258 = vadd.f32 0.0, %v7257
        %v7259 = vpop.f32.mrb[0].mxu0
        %7260 = vmatprep.mubr.bf16.mxu0 0
        %7261 = vmatmul.mubr.bf16.gmra.mrb[0].mxu0 %v3987
        %v7262 = vpop.f32.mrb[0].mxu0
        %v7263 = vadd.f32 0.0, %v7262
        %v7264 = vpop.f32.mrb[0].mxu0
        %v7265 = vpop.f32.mrb[0].mxu0
        %v7266 = vadd.f32 0.0, %v7265
        %v7267 = vpop.f32.mrb[0].mxu0
        %7268 = vmatprep.mubr.bf16.mxu0 0
        %7269 = vmatmul.mubr.bf16.gmra.mrb[0].mxu0 %v7148
        %v7270 = vpop.f32.mrb[0].mxu0
        %v7271 = vadd.f32 0.0, %v7270
        %v7272 = vpop.f32.mrb[0].mxu0
        %v7273 = vpop.f32.mrb[0].mxu0
        %v7274 = vadd.f32 0.0, %v7273
        %v7275 = vpop.f32.mrb[0].mxu0
        %7276 = vmatprep.mubr.bf16.mxu0 0
        %7277 = vmatmul.mubr.bf16.gmra.mrb[0].mxu0 %v3989
        %v7278 = vpop.f32.mrb[0].mxu0
        %v7279 = vadd.f32 0.0, %v7278
        %v7280 = vpop.f32.mrb[0].mxu0
        %v7281 = vpop.f32.mrb[0].mxu0
        %v7282 = vadd.f32 0.0, %v7281
        %v7283 = vpop.f32.mrb[0].mxu0
        %7284 = vmatprep.mubr.bf16.mxu0 0
        %7285 = vmatmul.mubr.bf16.gmra.mrb[0].mxu0 %v3990
        %v7286 = vpop.f32.mrb[0].mxu0
        %v7287 = vadd.f32 0.0, %v7286
        %v7288 = vpop.f32.mrb[0].mxu0
        %v7289 = vpop.f32.mrb[0].mxu0
        %v7290 = vadd.f32 0.0, %v7289
        %v7291 = vpop.f32.mrb[0].mxu0
        %7292 = vmatprep.mubr.bf16.mxu0 0
        %7293 = vmatmul.mubr.bf16.gmra.mrb[0].mxu0 %v3991
        %v7294 = vpop.f32.mrb[0].mxu0
        %v7295 = vadd.f32 0.0, %v7294
        %v7296 = vpop.f32.mrb[0].mxu0
        %v7297 = vpop.f32.mrb[0].mxu0
        %v7298 = vadd.f32 0.0, %v7297
        %v7299 = vpop.f32.mrb[0].mxu0
        %7300 = vmatprep.mubr.bf16.mxu0 0
        %7301 = vmatmul.mubr.bf16.gmra.mrb[0].mxu0 %v7149
        %v7302 = vpop.f32.mrb[0].mxu0
        %v7303 = vadd.f32 0.0, %v7302
        %v7304 = vpop.f32.mrb[0].mxu0
        %v7305 = vpop.f32.mrb[0].mxu0
        %v7306 = vadd.f32 0.0, %v7305
        %v7307 = vpop.f32.mrb[0].mxu0
        %7308 = vmatprep.mubr.bf16.mxu0 0
        %7309 = vmatmul.mubr.bf16.gmra.mrb[0].mxu0 %v3993
        %v7310 = vpop.f32.mrb[0].mxu0
        %v7311 = vadd.f32 0.0, %v7310
        %v7312 = vpop.f32.mrb[0].mxu0
        %v7313 = vpop.f32.mrb[0].mxu0
        %v7314 = vadd.f32 0.0, %v7313
        %v7315 = vpop.f32.mrb[0].mxu0
        %7316 = vmatprep.mubr.bf16.mxu0 0
        %7317 = vmatmul.mubr.bf16.gmra.mrb[0].mxu0 %v3994
        %v7318 = vpop.f32.mrb[0].mxu0
        %v7319 = vadd.f32 0.0, %v7318
        %v7320 = vpop.f32.mrb[0].mxu0
        %v7321 = vpop.f32.mrb[0].mxu0
        %v7322 = vadd.f32 0.0, %v7321
        %v7323 = vpop.f32.mrb[0].mxu0
        %7324 = vmatprep.mubr.bf16.mxu0 0
        %7325 = vmatmul.mubr.bf16.gmra.mrb[0].mxu0 %v3995
        %v7326 = vpop.f32.mrb[0].mxu0
        %v7327 = vadd.f32 0.0, %v7326
        %v7328 = vpop.f32.mrb[0].mxu0
        %v7329 = vpop.f32.mrb[0].mxu0
        %v7330 = vadd.f32 0.0, %v7329
        %v7331 = vpop.f32.mrb[0].mxu0
        %7332 = vmatprep.mubr.bf16.mxu0 0
        %7333 = vmatmul.mubr.bf16.gmra.mrb[0].mxu0 %v7150
        %v7334 = vpop.f32.mrb[0].mxu0
        %v7335 = vadd.f32 0.0, %v7334
        %v7336 = vpop.f32.mrb[0].mxu0
        %v7337 = vpop.f32.mrb[0].mxu0
        %v7338 = vadd.f32 0.0, %v7337
        %v7339 = vpop.f32.mrb[0].mxu0
        %7340 = vmatprep.mubr.bf16.mxu0 0
        %7341 = vmatmul.mubr.bf16.gmra.mrb[0].mxu0 %v3997
        %v7342 = vpop.f32.mrb[0].mxu0
        %v7343 = vadd.f32 0.0, %v7342
        %v7344 = vpop.f32.mrb[0].mxu0
        %v7345 = vpop.f32.mrb[0].mxu0
        %v7346 = vadd.f32 0.0, %v7345
        %v7347 = vpop.f32.mrb[0].mxu0
        %7348 = vmatprep.mubr.bf16.mxu0 0
        %7349 = vmatmul.mubr.bf16.gmra.mrb[0].mxu0 %v3998
        %v7350 = vpop.f32.mrb[0].mxu0
        %v7351 = vadd.f32 0.0, %v7350
        %v7352 = vpop.f32.mrb[0].mxu0
        %v7353 = vpop.f32.mrb[0].mxu0
        %v7354 = vadd.f32 0.0, %v7353
        %v7355 = vpop.f32.mrb[0].mxu0
        %7356 = vmatprep.mubr.bf16.mxu0 0
        %7357 = vmatmul.mubr.bf16.gmra.mrb[0].mxu0 %v3999
        %v7358 = vpop.f32.mrb[0].mxu0
        %v7359 = vadd.f32 0.0, %v7358
        %v7360 = vpop.f32.mrb[0].mxu0
        %v7361 = vpop.f32.mrb[0].mxu0
        %v7362 = vadd.f32 0.0, %v7361
        %v7363 = vpop.f32.mrb[0].mxu0
        %7364 = vmatprep.mubr.bf16.mxu0 0
        %7365 = vmatmul.mubr.bf16.gmra.mrb[0].mxu0 %v7151
        %v7366 = vpop.f32.mrb[0].mxu0
        %v7367 = vadd.f32 0.0, %v7366
        %v7368 = vpop.f32.mrb[0].mxu0
        %v7369 = vpop.f32.mrb[0].mxu0
        %v7370 = vadd.f32 0.0, %v7369
        %v7371 = vpop.f32.mrb[0].mxu0
        %7372 = vmatprep.mubr.bf16.mxu0 0
        %7373 = vmatmul.mubr.bf16.gmra.mrb[0].mxu0 %v4001
        %v7374 = vpop.f32.mrb[0].mxu0
        %v7375 = vadd.f32 0.0, %v7374
        %v7376 = vpop.f32.mrb[0].mxu0
        %v7377 = vpop.f32.mrb[0].mxu0
        %v7378 = vadd.f32 0.0, %v7377
        %v7379 = vpop.f32.mrb[0].mxu0
        %7380 = vmatprep.mubr.bf16.mxu0 0
        %7381 = vmatmul.mubr.bf16.gmra.mrb[0].mxu0 %v4002
        %v7382 = vpop.f32.mrb[0].mxu0
        %v7383 = vadd.f32 0.0, %v7382
        %v7384 = vpop.f32.mrb[0].mxu0
        %v7385 = vpop.f32.mrb[0].mxu0
        %v7386 = vadd.f32 0.0, %v7385
        %v7387 = vpop.f32.mrb[0].mxu0
        %7388 = vmatprep.mubr.bf16.mxu0 0
        %7389 = vmatmul.mubr.bf16.gmra.mrb[0].mxu0 %v4003
        %v7390 = vpop.f32.mrb[0].mxu0
        %v7391 = vadd.f32 0.0, %v7390
        %v7392 = vpop.f32.mrb[0].mxu0
        %v7393 = vpop.f32.mrb[0].mxu0
        %v7394 = vadd.f32 0.0, %v7393
        %v7395 = vpop.f32.mrb[0].mxu0
        %7396 = vmatprep.mubr.bf16.mxu0 0
        %7397 = vmatmul.mubr.bf16.gmra.mrb[0].mxu0 %v7152
        %v7398 = vpop.f32.mrb[0].mxu0
        %v7399 = vadd.f32 0.0, %v7398
        %v7400 = vpop.f32.mrb[0].mxu0
        %v7401 = vpop.f32.mrb[0].mxu0
        %v7402 = vadd.f32 0.0, %v7401
        %v7403 = vpop.f32.mrb[0].mxu0
        %7404 = vmatprep.mubr.bf16.mxu0 0
        %7405 = vmatmul.mubr.bf16.gmra.mrb[0].mxu0 %v4005
        %v7406 = vpop.f32.mrb[0].mxu0
        %v7407 = vadd.f32 0.0, %v7406
        %v7408 = vpop.f32.mrb[0].mxu0
        %v7409 = vpop.f32.mrb[0].mxu0
        %v7410 = vadd.f32 0.0, %v7409
        %v7411 = vpop.f32.mrb[0].mxu0
        %7412 = vmatprep.mubr.bf16.mxu0 0
        %7413 = vmatmul.mubr.bf16.gmra.mrb[0].mxu0 %v4006
        %v7414 = vpop.f32.mrb[0].mxu0
        %v7415 = vadd.f32 0.0, %v7414
        %v7416 = vpop.f32.mrb[0].mxu0
        %v7417 = vpop.f32.mrb[0].mxu0
        %v7418 = vadd.f32 0.0, %v7417
        %v7419 = vpop.f32.mrb[0].mxu0
        %7420 = vmatprep.mubr.bf16.mxu0 0
        %7421 = vmatmul.mubr.bf16.gmra.mrb[0].mxu0 %v4007
        %v7422 = vpop.f32.mrb[0].mxu0
        %v7423 = vadd.f32 0.0, %v7422
        %v7424 = vpop.f32.mrb[0].mxu0
        %v7425 = vpop.f32.mrb[0].mxu0
        %v7426 = vadd.f32 0.0, %v7425
        %v7427 = vpop.f32.mrb[0].mxu0
        %7428 = vmatprep.mubr.bf16.mxu0 0
        %7429 = vmatmul.mubr.bf16.gmra.mrb[0].mxu0 %v7153
        %v7430 = vpop.f32.mrb[0].mxu0
        %v7431 = vadd.f32 0.0, %v7430
        %v7432 = vpop.f32.mrb[0].mxu0
        %v7433 = vpop.f32.mrb[0].mxu0
        %v7434 = vadd.f32 0.0, %v7433
        %v7435 = vpop.f32.mrb[0].mxu0
        %7436 = vmatprep.mubr.bf16.mxu0 0
        %7437 = vmatmul.mubr.bf16.gmra.mrb[0].mxu0 %v4009
        %v7438 = vpop.f32.mrb[0].mxu0
        %v7439 = vadd.f32 0.0, %v7438
        %v7440 = vpop.f32.mrb[0].mxu0
        %v7441 = vpop.f32.mrb[0].mxu0
        %v7442 = vadd.f32 0.0, %v7441
        %v7443 = vpop.f32.mrb[0].mxu0
        %7444 = vmatprep.mubr.bf16.mxu0 0
        %7445 = vmatmul.mubr.bf16.gmra.mrb[0].mxu0 %v4010
        %v7446 = vpop.f32.mrb[0].mxu0
        %v7447 = vadd.f32 0.0, %v7446
        %v7448 = vpop.f32.mrb[0].mxu0
        %v7449 = vpop.f32.mrb[0].mxu0
        %v7450 = vadd.f32 0.0, %v7449
        %v7451 = vpop.f32.mrb[0].mxu0
        %7452 = vmatprep.mubr.bf16.mxu0 0
        %7453 = vmatmul.mubr.bf16.gmra.mrb[0].mxu0 %v4011
        %v7454 = vpop.f32.mrb[0].mxu0
        %v7455 = vadd.f32 0.0, %v7454
        %v7456 = vpop.f32.mrb[0].mxu0
        %v7457 = vpop.f32.mrb[0].mxu0
        %v7458 = vadd.f32 0.0, %v7457
        %v7459 = vpop.f32.mrb[0].mxu0
        %7460 = vmatprep.mubr.bf16.mxu0 0
        %7461 = vmatmul.mubr.bf16.gmra.mrb[0].mxu0 %v7154
        %v7462 = vpop.f32.mrb[0].mxu0
        %v7463 = vadd.f32 0.0, %v7462
        %v7464 = vpop.f32.mrb[0].mxu0
        %v7465 = vpop.f32.mrb[0].mxu0
        %v7466 = vadd.f32 0.0, %v7465
        %v7467 = vpop.f32.mrb[0].mxu0
        %7468 = vmatprep.mubr.bf16.mxu0 0
        %7469 = vmatmul.mubr.bf16.gmra.mrb[0].mxu0 %v4013
        %v7470 = vpop.f32.mrb[0].mxu0
        %v7471 = vadd.f32 0.0, %v7470
        %v7472 = vpop.f32.mrb[0].mxu0
        %v7473 = vpop.f32.mrb[0].mxu0
        %v7474 = vadd.f32 0.0, %v7473
        %v7475 = vpop.f32.mrb[0].mxu0
        %7476 = vmatprep.mubr.bf16.mxu0 0
        %7477 = vmatmul.mubr.bf16.gmra.mrb[0].mxu0 %v4014
        %v7478 = vpop.f32.mrb[0].mxu0
        %v7479 = vadd.f32 0.0, %v7478
        %v7480 = vpop.f32.mrb[0].mxu0
        %v7481 = vpop.f32.mrb[0].mxu0
        %v7482 = vadd.f32 0.0, %v7481
        %v7483 = vpop.f32.mrb[0].mxu0
        %7484 = vmatprep.mubr.bf16.mxu0 0
        %7485 = vmatmul.mubr.bf16.gmra.mrb[0].mxu0 %v4015
        %v7486 = vpop.f32.mrb[0].mxu0
        %v7487 = vadd.f32 0.0, %v7486
        %v7488 = vpop.f32.mrb[0].mxu0
        %v7489 = vpop.f32.mrb[0].mxu0
        %v7490 = vadd.f32 0.0, %v7489
        %v7491 = vpop.f32.mrb[0].mxu0
        %7492 = vmatprep.mubr.bf16.mxu0 0
        %7493 = vmatmul.mubr.bf16.gmra.mrb[0].mxu0 %v7155
        %v7494 = vpop.f32.mrb[0].mxu0
        %v7495 = vadd.f32 0.0, %v7494
        %v7496 = vpop.f32.mrb[0].mxu0
        %v7497 = vpop.f32.mrb[0].mxu0
        %v7498 = vadd.f32 0.0, %v7497
        %v7499 = vpop.f32.mrb[0].mxu0
        %7500 = vdwg.mxu0
        %v7501 = vadd.f32 %v7019, %v7247
        %v7502 = vadd.f32 %v7020, %v7250
        %v7503 = vadd.f32 %v7021, %v7255
        %v7504 = vadd.f32 %v7022, %v7258
        %v7505 = vadd.f32 %v7023, %v7263
        %v7506 = vadd.f32 %v7024, %v7266
        %v7507 = vadd.f32 %v7025, %v7271
        %v7508 = vadd.f32 %v7026, %v7274
        %v7509 = vadd.f32 %v7027, %v7279
        %v7510 = vadd.f32 %v7028, %v7282
        %v7511 = vadd.f32 %v7029, %v7287
        %v7512 = vadd.f32 %v7030, %v7290
        %v7513 = vadd.f32 %v7031, %v7295
        %v7514 = vadd.f32 %v7032, %v7298
        %v7515 = vadd.f32 %v7033, %v7303
        %v7516 = vadd.f32 %v7034, %v7306
        %v7517 = vadd.f32 %v7035, %v7311
        %v7518 = vadd.f32 %v7036, %v7314
        %v7519 = vadd.f32 %v7037, %v7319
        %v7520 = vadd.f32 %v7038, %v7322
        %v7521 = vadd.f32 %v7039, %v7327
        %v7522 = vadd.f32 %v7040, %v7330
        %v7523 = vadd.f32 %v7041, %v7335
        %v7524 = vadd.f32 %v7042, %v7338
        %v7525 = vadd.f32 %v7043, %v7343
        %v7526 = vadd.f32 %v7044, %v7346
        %v7527 = vadd.f32 %v7045, %v7351
        %v7528 = vadd.f32 %v7046, %v7354
        %v7529 = vadd.f32 %v7047, %v7359
        %v7530 = vadd.f32 %v7048, %v7362
        %v7531 = vadd.f32 %v7049, %v7367
        %v7532 = vadd.f32 %v7050, %v7370
        %v7533 = vadd.f32 %v7051, %v7375
        %v7534 = vadd.f32 %v7052, %v7378
        %v7535 = vadd.f32 %v7053, %v7383
        %v7536 = vadd.f32 %v7054, %v7386
        %v7537 = vadd.f32 %v7055, %v7391
        %v7538 = vadd.f32 %v7056, %v7394
        %v7539 = vadd.f32 %v7057, %v7399
        %v7540 = vadd.f32 %v7058, %v7402
        %v7541 = vadd.f32 %v7059, %v7407
        %v7542 = vadd.f32 %v7060, %v7410
        %v7543 = vadd.f32 %v7061, %v7415
        %v7544 = vadd.f32 %v7062, %v7418
        %v7545 = vadd.f32 %v7063, %v7423
        %v7546 = vadd.f32 %v7064, %v7426
        %v7547 = vadd.f32 %v7065, %v7431
        %v7548 = vadd.f32 %v7066, %v7434
        %v7549 = vadd.f32 %v7067, %v7439
        %v7550 = vadd.f32 %v7068, %v7442
        %v7551 = vadd.f32 %v7069, %v7447
        %v7552 = vadd.f32 %v7070, %v7450
        %v7553 = vadd.f32 %v7071, %v7455
        %v7554 = vadd.f32 %v7072, %v7458
        %v7555 = vadd.f32 %v7073, %v7463
        %v7556 = vadd.f32 %v7074, %v7466
        %v7557 = vadd.f32 %v7075, %v7471
        %v7558 = vadd.f32 %v7076, %v7474
        %v7559 = vadd.f32 %v7077, %v7479
        %v7560 = vadd.f32 %v7078, %v7482
        %v7561 = vadd.f32 %v7079, %v7487
        %v7562 = vadd.f32 %v7080, %v7490
        %v7563 = vadd.f32 %v7081, %v7495
        %v7564 = vadd.f32 %v7082, %v7498
        %v7565 = vld [vmem:[%s232] sm:$0x1]
        %v7567 = vlaneseq
        %v7568 = vshrl.u32 %v7567, 7
        %v7569 = vsub.s32 0, %v7568
        %v7570 = vrot.slane %v7565, %v7569
        %v7572 = vadd.f32 %v7501, %v7570
        %v7573 = vadd.f32 %v7502, %v7570
        %v7574 = vadd.f32 %v7503, %v7570
        %v7575 = vadd.f32 %v7504, %v7570
        %v7576 = vadd.f32 %v7505, %v7570
        %v7577 = vadd.f32 %v7506, %v7570
        %v7578 = vadd.f32 %v7507, %v7570
        %v7579 = vadd.f32 %v7508, %v7570
        %v7580 = vadd.f32 %v7509, %v7570
        %v7581 = vadd.f32 %v7510, %v7570
        %v7582 = vadd.f32 %v7511, %v7570
        %v7583 = vadd.f32 %v7512, %v7570
        %v7584 = vadd.f32 %v7513, %v7570
        %v7585 = vadd.f32 %v7514, %v7570
        %v7586 = vadd.f32 %v7515, %v7570
        %v7587 = vadd.f32 %v7516, %v7570
        %v7588 = vadd.f32 %v7517, %v7570
        %v7589 = vadd.f32 %v7518, %v7570
        %v7590 = vadd.f32 %v7519, %v7570
        %v7591 = vadd.f32 %v7520, %v7570
        %v7592 = vadd.f32 %v7521, %v7570
        %v7593 = vadd.f32 %v7522, %v7570
        %v7594 = vadd.f32 %v7523, %v7570
        %v7595 = vadd.f32 %v7524, %v7570
        %v7596 = vadd.f32 %v7525, %v7570
        %v7597 = vadd.f32 %v7526, %v7570
        %v7598 = vadd.f32 %v7527, %v7570
        %v7599 = vadd.f32 %v7528, %v7570
        %v7600 = vadd.f32 %v7529, %v7570
        %v7601 = vadd.f32 %v7530, %v7570
        %v7602 = vadd.f32 %v7531, %v7570
        %v7603 = vadd.f32 %v7532, %v7570
        %v7604 = vadd.f32 %v7533, %v7570
        %v7605 = vadd.f32 %v7534, %v7570
        %v7606 = vadd.f32 %v7535, %v7570
        %v7607 = vadd.f32 %v7536, %v7570
        %v7608 = vadd.f32 %v7537, %v7570
        %v7609 = vadd.f32 %v7538, %v7570
        %v7610 = vadd.f32 %v7539, %v7570
        %v7611 = vadd.f32 %v7540, %v7570
        %v7612 = vadd.f32 %v7541, %v7570
        %v7613 = vadd.f32 %v7542, %v7570
        %v7614 = vadd.f32 %v7543, %v7570
        %v7615 = vadd.f32 %v7544, %v7570
        %v7616 = vadd.f32 %v7545, %v7570
        %v7617 = vadd.f32 %v7546, %v7570
        %v7618 = vadd.f32 %v7547, %v7570
        %v7619 = vadd.f32 %v7548, %v7570
        %v7620 = vadd.f32 %v7549, %v7570
        %v7621 = vadd.f32 %v7550, %v7570
        %v7622 = vadd.f32 %v7551, %v7570
        %v7623 = vadd.f32 %v7552, %v7570
        %v7624 = vadd.f32 %v7553, %v7570
        %v7625 = vadd.f32 %v7554, %v7570
        %v7626 = vadd.f32 %v7555, %v7570
        %v7627 = vadd.f32 %v7556, %v7570
        %v7628 = vadd.f32 %v7557, %v7570
        %v7629 = vadd.f32 %v7558, %v7570
        %v7630 = vadd.f32 %v7559, %v7570
        %v7631 = vadd.f32 %v7560, %v7570
        %v7632 = vadd.f32 %v7561, %v7570
        %v7633 = vadd.f32 %v7562, %v7570
        %v7634 = vadd.f32 %v7563, %v7570
        %v7635 = vadd.f32 %v7564, %v7570
        %v7636 = vmax.f32 %v7572, 0.0
        %v7637 = vmax.f32 %v7573, 0.0
        %v7638 = vmax.f32 %v7574, 0.0
        %v7639 = vmax.f32 %v7575, 0.0
        %v7640 = vmax.f32 %v7576, 0.0
        %v7641 = vmax.f32 %v7577, 0.0
        %v7642 = vmax.f32 %v7578, 0.0
        %v7643 = vmax.f32 %v7579, 0.0
        %v7644 = vmax.f32 %v7580, 0.0
        %v7645 = vmax.f32 %v7581, 0.0
        %v7646 = vmax.f32 %v7582, 0.0
        %v7647 = vmax.f32 %v7583, 0.0
        %v7648 = vmax.f32 %v7584, 0.0
        %v7649 = vmax.f32 %v7585, 0.0
        %v7650 = vmax.f32 %v7586, 0.0
        %v7651 = vmax.f32 %v7587, 0.0
        %v7652 = vmax.f32 %v7588, 0.0
        %v7653 = vmax.f32 %v7589, 0.0
        %v7654 = vmax.f32 %v7590, 0.0
        %v7655 = vmax.f32 %v7591, 0.0
        %v7656 = vmax.f32 %v7592, 0.0
        %v7657 = vmax.f32 %v7593, 0.0
        %v7658 = vmax.f32 %v7594, 0.0
        %v7659 = vmax.f32 %v7595, 0.0
        %v7660 = vmax.f32 %v7596, 0.0
        %v7661 = vmax.f32 %v7597, 0.0
        %v7662 = vmax.f32 %v7598, 0.0
        %v7663 = vmax.f32 %v7599, 0.0
        %v7664 = vmax.f32 %v7600, 0.0
        %v7665 = vmax.f32 %v7601, 0.0
        %v7666 = vmax.f32 %v7602, 0.0
        %v7667 = vmax.f32 %v7603, 0.0
        %v7668 = vmax.f32 %v7604, 0.0
        %v7669 = vmax.f32 %v7605, 0.0
        %v7670 = vmax.f32 %v7606, 0.0
        %v7671 = vmax.f32 %v7607, 0.0
        %v7672 = vmax.f32 %v7608, 0.0
        %v7673 = vmax.f32 %v7609, 0.0
        %v7674 = vmax.f32 %v7610, 0.0
        %v7675 = vmax.f32 %v7611, 0.0
        %v7676 = vmax.f32 %v7612, 0.0
        %v7677 = vmax.f32 %v7613, 0.0
        %v7678 = vmax.f32 %v7614, 0.0
        %v7679 = vmax.f32 %v7615, 0.0
        %v7680 = vmax.f32 %v7616, 0.0
        %v7681 = vmax.f32 %v7617, 0.0
        %v7682 = vmax.f32 %v7618, 0.0
        %v7683 = vmax.f32 %v7619, 0.0
        %v7684 = vmax.f32 %v7620, 0.0
        %v7685 = vmax.f32 %v7621, 0.0
        %v7686 = vmax.f32 %v7622, 0.0
        %v7687 = vmax.f32 %v7623, 0.0
        %v7688 = vmax.f32 %v7624, 0.0
        %v7689 = vmax.f32 %v7625, 0.0
        %v7690 = vmax.f32 %v7626, 0.0
        %v7691 = vmax.f32 %v7627, 0.0
        %v7692 = vmax.f32 %v7628, 0.0
        %v7693 = vmax.f32 %v7629, 0.0
        %v7694 = vmax.f32 %v7630, 0.0
        %v7695 = vmax.f32 %v7631, 0.0
        %v7696 = vmax.f32 %v7632, 0.0
        %v7697 = vmax.f32 %v7633, 0.0
        %v7698 = vmax.f32 %v7634, 0.0
        %v7699 = vmax.f32 %v7635, 0.0
        %p7700 = scmp.lt.s32.totalorder %s24, 1
        // Predicated region
        $region45: #{tpu_custom_call.1} parent=31 // pred_check
          %p7701 = pneg %p7700
        $region46: #{tpu_custom_call.1} parent=31 // pred_check_branch
          %7703 = sbr.rel (%p7701) target = $region48
        $region47: #{tpu_custom_call.1} parent=31 // pred_region
          %v7704 = vpack.c.bf16 %v7636, %v7636
          %v7705 = vpack.c.bf16 %v7637, %v7637
          %v7706 = vpack.c.bf16 %v7638, %v7638
          %v7707 = vpack.c.bf16 %v7639, %v7639
          %v7708 = vpack.c.bf16 %v7640, %v7640
          %v7709 = vpack.c.bf16 %v7641, %v7641
          %v7710 = vpack.c.bf16 %v7642, %v7642
          %v7711 = vpack.c.bf16 %v7643, %v7643
          %v7712 = vpack.c.bf16 %v7644, %v7644
          %v7713 = vpack.c.bf16 %v7645, %v7645
          %v7714 = vpack.c.bf16 %v7646, %v7646
          %v7715 = vpack.c.bf16 %v7647, %v7647
          %v7716 = vpack.c.bf16 %v7648, %v7648
          %v7717 = vpack.c.bf16 %v7649, %v7649
          %v7718 = vpack.c.bf16 %v7650, %v7650
          %v7719 = vpack.c.bf16 %v7651, %v7651
          %v7720 = vpack.c.bf16 %v7652, %v7652
          %v7721 = vpack.c.bf16 %v7653, %v7653
          %v7722 = vpack.c.bf16 %v7654, %v7654
          %v7723 = vpack.c.bf16 %v7655, %v7655
          %v7724 = vpack.c.bf16 %v7656, %v7656
          %v7725 = vpack.c.bf16 %v7657, %v7657
          %v7726 = vpack.c.bf16 %v7658, %v7658
          %v7727 = vpack.c.bf16 %v7659, %v7659
          %v7728 = vpack.c.bf16 %v7660, %v7660
          %v7729 = vpack.c.bf16 %v7661, %v7661
          %v7730 = vpack.c.bf16 %v7662, %v7662
          %v7731 = vpack.c.bf16 %v7663, %v7663
          %v7732 = vpack.c.bf16 %v7664, %v7664
          %v7733 = vpack.c.bf16 %v7665, %v7665
          %v7734 = vpack.c.bf16 %v7666, %v7666
          %v7735 = vpack.c.bf16 %v7667, %v7667
          %v7736 = vpack.c.bf16 %v7668, %v7668
          %v7737 = vpack.c.bf16 %v7669, %v7669
          %v7738 = vpack.c.bf16 %v7670, %v7670
          %v7739 = vpack.c.bf16 %v7671, %v7671
          %v7740 = vpack.c.bf16 %v7672, %v7672
          %v7741 = vpack.c.bf16 %v7673, %v7673
          %v7742 = vpack.c.bf16 %v7674, %v7674
          %v7743 = vpack.c.bf16 %v7675, %v7675
          %v7744 = vpack.c.bf16 %v7676, %v7676
          %v7745 = vpack.c.bf16 %v7677, %v7677
          %v7746 = vpack.c.bf16 %v7678, %v7678
          %v7747 = vpack.c.bf16 %v7679, %v7679
          %v7748 = vpack.c.bf16 %v7680, %v7680
          %v7749 = vpack.c.bf16 %v7681, %v7681
          %v7750 = vpack.c.bf16 %v7682, %v7682
          %v7751 = vpack.c.bf16 %v7683, %v7683
          %v7752 = vpack.c.bf16 %v7684, %v7684
          %v7753 = vpack.c.bf16 %v7685, %v7685
          %v7754 = vpack.c.bf16 %v7686, %v7686
          %v7755 = vpack.c.bf16 %v7687, %v7687
          %v7756 = vpack.c.bf16 %v7688, %v7688
          %v7757 = vpack.c.bf16 %v7689, %v7689
          %v7758 = vpack.c.bf16 %v7690, %v7690
          %v7759 = vpack.c.bf16 %v7691, %v7691
          %v7760 = vpack.c.bf16 %v7692, %v7692
          %v7761 = vpack.c.bf16 %v7693, %v7693
          %v7762 = vpack.c.bf16 %v7694, %v7694
          %v7763 = vpack.c.bf16 %v7695, %v7695
          %v7764 = vpack.c.bf16 %v7696, %v7696
          %v7765 = vpack.c.bf16 %v7697, %v7697
          %v7766 = vpack.c.bf16 %v7698, %v7698
          %v7767 = vpack.c.bf16 %v7699, %v7699
          %v7832 = vunpack.c.l.b16 %v7704
          %v7833 = vunpack.c.l.b16 %v7705
          %v7834 = vunpack.c.l.b16 %v7706
          %v7835 = vunpack.c.l.b16 %v7707
          %v7836 = vunpack.c.l.b16 %v7708
          %v7837 = vunpack.c.l.b16 %v7709
          %v7838 = vunpack.c.l.b16 %v7710
          %v7839 = vunpack.c.l.b16 %v7711
          %v7840 = vunpack.c.l.b16 %v7712
          %v7841 = vunpack.c.l.b16 %v7713
          %v7842 = vunpack.c.l.b16 %v7714
          %v7843 = vunpack.c.l.b16 %v7715
          %v7844 = vunpack.c.l.b16 %v7716
          %v7845 = vunpack.c.l.b16 %v7717
          %v7846 = vunpack.c.l.b16 %v7718
          %v7847 = vunpack.c.l.b16 %v7719
          %v7848 = vunpack.c.l.b16 %v7720
          %v7849 = vunpack.c.l.b16 %v7721
          %v7850 = vunpack.c.l.b16 %v7722
          %v7851 = vunpack.c.l.b16 %v7723
          %v7852 = vunpack.c.l.b16 %v7724
          %v7853 = vunpack.c.l.b16 %v7725
          %v7854 = vunpack.c.l.b16 %v7726
          %v7855 = vunpack.c.l.b16 %v7727
          %v7856 = vunpack.c.l.b16 %v7728
          %v7857 = vunpack.c.l.b16 %v7729
          %v7858 = vunpack.c.l.b16 %v7730
          %v7859 = vunpack.c.l.b16 %v7731
          %v7860 = vunpack.c.l.b16 %v7732
          %v7861 = vunpack.c.l.b16 %v7733
          %v7862 = vunpack.c.l.b16 %v7734
          %v7863 = vunpack.c.l.b16 %v7735
          %v7864 = vunpack.c.l.b16 %v7736
          %v7865 = vunpack.c.l.b16 %v7737
          %v7866 = vunpack.c.l.b16 %v7738
          %v7867 = vunpack.c.l.b16 %v7739
          %v7868 = vunpack.c.l.b16 %v7740
          %v7869 = vunpack.c.l.b16 %v7741
          %v7870 = vunpack.c.l.b16 %v7742
          %v7871 = vunpack.c.l.b16 %v7743
          %v7872 = vunpack.c.l.b16 %v7744
          %v7873 = vunpack.c.l.b16 %v7745
          %v7874 = vunpack.c.l.b16 %v7746
          %v7875 = vunpack.c.l.b16 %v7747
          %v7876 = vunpack.c.l.b16 %v7748
          %v7877 = vunpack.c.l.b16 %v7749
          %v7878 = vunpack.c.l.b16 %v7750
          %v7879 = vunpack.c.l.b16 %v7751
          %v7880 = vunpack.c.l.b16 %v7752
          %v7881 = vunpack.c.l.b16 %v7753
          %v7882 = vunpack.c.l.b16 %v7754
          %v7883 = vunpack.c.l.b16 %v7755
          %v7884 = vunpack.c.l.b16 %v7756
          %v7885 = vunpack.c.l.b16 %v7757
          %v7886 = vunpack.c.l.b16 %v7758
          %v7887 = vunpack.c.l.b16 %v7759
          %v7888 = vunpack.c.l.b16 %v7760
          %v7889 = vunpack.c.l.b16 %v7761
          %v7890 = vunpack.c.l.b16 %v7762
          %v7891 = vunpack.c.l.b16 %v7763
          %v7892 = vunpack.c.l.b16 %v7764
          %v7893 = vunpack.c.l.b16 %v7765
          %v7894 = vunpack.c.l.b16 %v7766
          %v7895 = vunpack.c.l.b16 %v7767
          %v7896 = vpack.c.b16 %v7832, %v7832
          %v7897 = vpack.c.b16 %v7833, %v7833
          %v7898 = vpack.c.b16 %v7834, %v7834
          %v7899 = vpack.c.b16 %v7835, %v7835
          %v7900 = vpack.c.b16 %v7836, %v7836
          %v7901 = vpack.c.b16 %v7837, %v7837
          %v7902 = vpack.c.b16 %v7838, %v7838
          %v7903 = vpack.c.b16 %v7839, %v7839
          %v7904 = vpack.c.b16 %v7840, %v7840
          %v7905 = vpack.c.b16 %v7841, %v7841
          %v7906 = vpack.c.b16 %v7842, %v7842
          %v7907 = vpack.c.b16 %v7843, %v7843
          %v7908 = vpack.c.b16 %v7844, %v7844
          %v7909 = vpack.c.b16 %v7845, %v7845
          %v7910 = vpack.c.b16 %v7846, %v7846
          %v7911 = vpack.c.b16 %v7847, %v7847
          %v7912 = vpack.c.b16 %v7848, %v7848
          %v7913 = vpack.c.b16 %v7849, %v7849
          %v7914 = vpack.c.b16 %v7850, %v7850
          %v7915 = vpack.c.b16 %v7851, %v7851
          %v7916 = vpack.c.b16 %v7852, %v7852
          %v7917 = vpack.c.b16 %v7853, %v7853
          %v7918 = vpack.c.b16 %v7854, %v7854
          %v7919 = vpack.c.b16 %v7855, %v7855
          %v7920 = vpack.c.b16 %v7856, %v7856
          %v7921 = vpack.c.b16 %v7857, %v7857
          %v7922 = vpack.c.b16 %v7858, %v7858
          %v7923 = vpack.c.b16 %v7859, %v7859
          %v7924 = vpack.c.b16 %v7860, %v7860
          %v7925 = vpack.c.b16 %v7861, %v7861
          %v7926 = vpack.c.b16 %v7862, %v7862
          %v7927 = vpack.c.b16 %v7863, %v7863
          %v7928 = vpack.c.b16 %v7864, %v7864
          %v7929 = vpack.c.b16 %v7865, %v7865
          %v7930 = vpack.c.b16 %v7866, %v7866
          %v7931 = vpack.c.b16 %v7867, %v7867
          %v7932 = vpack.c.b16 %v7868, %v7868
          %v7933 = vpack.c.b16 %v7869, %v7869
          %v7934 = vpack.c.b16 %v7870, %v7870
          %v7935 = vpack.c.b16 %v7871, %v7871
          %v7936 = vpack.c.b16 %v7872, %v7872
          %v7937 = vpack.c.b16 %v7873, %v7873
          %v7938 = vpack.c.b16 %v7874, %v7874
          %v7939 = vpack.c.b16 %v7875, %v7875
          %v7940 = vpack.c.b16 %v7876, %v7876
          %v7941 = vpack.c.b16 %v7877, %v7877
          %v7942 = vpack.c.b16 %v7878, %v7878
          %v7943 = vpack.c.b16 %v7879, %v7879
          %v7944 = vpack.c.b16 %v7880, %v7880
          %v7945 = vpack.c.b16 %v7881, %v7881
          %v7946 = vpack.c.b16 %v7882, %v7882
          %v7947 = vpack.c.b16 %v7883, %v7883
          %v7948 = vpack.c.b16 %v7884, %v7884
          %v7949 = vpack.c.b16 %v7885, %v7885
          %v7950 = vpack.c.b16 %v7886, %v7886
          %v7951 = vpack.c.b16 %v7887, %v7887
          %v7952 = vpack.c.b16 %v7888, %v7888
          %v7953 = vpack.c.b16 %v7889, %v7889
          %v7954 = vpack.c.b16 %v7890, %v7890
          %v7955 = vpack.c.b16 %v7891, %v7891
          %v7956 = vpack.c.b16 %v7892, %v7892
          %v7957 = vpack.c.b16 %v7893, %v7893
          %v7958 = vpack.c.b16 %v7894, %v7894
          %v7959 = vpack.c.b16 %v7895, %v7895
          %v7961 = vshrl.u32 %v7896, 16
          %v7963 = vrot.slane %v7961, 7
          %v7964 = vshll.u32 %v7896, 16
          %v7966 = vor.u32 %v7963, %v7964
          %v7967 = vrot.slane %v7963, 4
          %v7969 = vshrl.u32 %v7897, 16
          %v7971 = vrot.slane %v7969, 7
          %v7972 = vshll.u32 %v7897, 16
          %v7974 = vor.u32 %v7971, %v7972
          %v7975 = vrot.slane %v7971, 4
          %v7977 = vshrl.u32 %v7898, 16
          %v7979 = vrot.slane %v7977, 7
          %v7980 = vshll.u32 %v7898, 16
          %v7982 = vor.u32 %v7979, %v7980
          %v7983 = vrot.slane %v7979, 4
          %v7985 = vshrl.u32 %v7899, 16
          %v7987 = vrot.slane %v7985, 7
          %v7988 = vshll.u32 %v7899, 16
          %v7990 = vor.u32 %v7987, %v7988
          %v7991 = vrot.slane %v7987, 4
          %v7993 = vshrl.u32 %v7900, 16
          %v7995 = vrot.slane %v7993, 7
          %v7996 = vshll.u32 %v7900, 16
          %v7998 = vor.u32 %v7995, %v7996
          %v7999 = vrot.slane %v7995, 4
          %v8001 = vshrl.u32 %v7901, 16
          %v8003 = vrot.slane %v8001, 7
          %v8004 = vshll.u32 %v7901, 16
          %v8006 = vor.u32 %v8003, %v8004
          %v8007 = vrot.slane %v8003, 4
          %v8009 = vshrl.u32 %v7902, 16
          %v8011 = vrot.slane %v8009, 7
          %v8012 = vshll.u32 %v7902, 16
          %v8014 = vor.u32 %v8011, %v8012
          %v8015 = vrot.slane %v8011, 4
          %v8017 = vshrl.u32 %v7903, 16
          %v8019 = vrot.slane %v8017, 7
          %v8020 = vshll.u32 %v7903, 16
          %v8022 = vor.u32 %v8019, %v8020
          %v8023 = vrot.slane %v8019, 4
          %v8025 = vshrl.u32 %v7904, 16
          %v8027 = vrot.slane %v8025, 7
          %v8028 = vshll.u32 %v7904, 16
          %v8030 = vor.u32 %v8027, %v8028
          %v8031 = vrot.slane %v8027, 4
          %v8033 = vshrl.u32 %v7905, 16
          %v8035 = vrot.slane %v8033, 7
          %v8036 = vshll.u32 %v7905, 16
          %v8038 = vor.u32 %v8035, %v8036
          %v8039 = vrot.slane %v8035, 4
          %v8041 = vshrl.u32 %v7906, 16
          %v8043 = vrot.slane %v8041, 7
          %v8044 = vshll.u32 %v7906, 16
          %v8046 = vor.u32 %v8043, %v8044
          %v8047 = vrot.slane %v8043, 4
          %v8049 = vshrl.u32 %v7907, 16
          %v8051 = vrot.slane %v8049, 7
          %v8052 = vshll.u32 %v7907, 16
          %v8054 = vor.u32 %v8051, %v8052
          %v8055 = vrot.slane %v8051, 4
          %v8057 = vshrl.u32 %v7908, 16
          %v8059 = vrot.slane %v8057, 7
          %v8060 = vshll.u32 %v7908, 16
          %v8062 = vor.u32 %v8059, %v8060
          %v8063 = vrot.slane %v8059, 4
          %v8065 = vshrl.u32 %v7909, 16
          %v8067 = vrot.slane %v8065, 7
          %v8068 = vshll.u32 %v7909, 16
          %v8070 = vor.u32 %v8067, %v8068
          %v8071 = vrot.slane %v8067, 4
          %v8073 = vshrl.u32 %v7910, 16
          %v8075 = vrot.slane %v8073, 7
          %v8076 = vshll.u32 %v7910, 16
          %v8078 = vor.u32 %v8075, %v8076
          %v8079 = vrot.slane %v8075, 4
          %v8081 = vshrl.u32 %v7911, 16
          %v8083 = vrot.slane %v8081, 7
          %v8084 = vshll.u32 %v7911, 16
          %v8086 = vor.u32 %v8083, %v8084
          %v8087 = vrot.slane %v8083, 4
          %v8089 = vshrl.u32 %v7912, 16
          %v8091 = vrot.slane %v8089, 7
          %v8092 = vshll.u32 %v7912, 16
          %v8094 = vor.u32 %v8091, %v8092
          %v8095 = vrot.slane %v8091, 4
          %v8097 = vshrl.u32 %v7913, 16
          %v8099 = vrot.slane %v8097, 7
          %v8100 = vshll.u32 %v7913, 16
          %v8102 = vor.u32 %v8099, %v8100
          %v8103 = vrot.slane %v8099, 4
          %v8105 = vshrl.u32 %v7914, 16
          %v8107 = vrot.slane %v8105, 7
          %v8108 = vshll.u32 %v7914, 16
          %v8110 = vor.u32 %v8107, %v8108
          %v8111 = vrot.slane %v8107, 4
          %v8113 = vshrl.u32 %v7915, 16
          %v8115 = vrot.slane %v8113, 7
          %v8116 = vshll.u32 %v7915, 16
          %v8118 = vor.u32 %v8115, %v8116
          %v8119 = vrot.slane %v8115, 4
          %v8121 = vshrl.u32 %v7916, 16
          %v8123 = vrot.slane %v8121, 7
          %v8124 = vshll.u32 %v7916, 16
          %v8126 = vor.u32 %v8123, %v8124
          %v8127 = vrot.slane %v8123, 4
          %v8129 = vshrl.u32 %v7917, 16
          %v8131 = vrot.slane %v8129, 7
          %v8132 = vshll.u32 %v7917, 16
          %v8134 = vor.u32 %v8131, %v8132
          %v8135 = vrot.slane %v8131, 4
          %v8137 = vshrl.u32 %v7918, 16
          %v8139 = vrot.slane %v8137, 7
          %v8140 = vshll.u32 %v7918, 16
          %v8142 = vor.u32 %v8139, %v8140
          %v8143 = vrot.slane %v8139, 4
          %v8145 = vshrl.u32 %v7919, 16
          %v8147 = vrot.slane %v8145, 7
          %v8148 = vshll.u32 %v7919, 16
          %v8150 = vor.u32 %v8147, %v8148
          %v8151 = vrot.slane %v8147, 4
          %v8153 = vshrl.u32 %v7920, 16
          %v8155 = vrot.slane %v8153, 7
          %v8156 = vshll.u32 %v7920, 16
          %v8158 = vor.u32 %v8155, %v8156
          %v8159 = vrot.slane %v8155, 4
          %v8161 = vshrl.u32 %v7921, 16
          %v8163 = vrot.slane %v8161, 7
          %v8164 = vshll.u32 %v7921, 16
          %v8166 = vor.u32 %v8163, %v8164
          %v8167 = vrot.slane %v8163, 4
          %v8169 = vshrl.u32 %v7922, 16
          %v8171 = vrot.slane %v8169, 7
          %v8172 = vshll.u32 %v7922, 16
          %v8174 = vor.u32 %v8171, %v8172
          %v8175 = vrot.slane %v8171, 4
          %v8177 = vshrl.u32 %v7923, 16
          %v8179 = vrot.slane %v8177, 7
          %v8180 = vshll.u32 %v7923, 16
          %v8182 = vor.u32 %v8179, %v8180
          %v8183 = vrot.slane %v8179, 4
          %v8185 = vshrl.u32 %v7924, 16
          %v8187 = vrot.slane %v8185, 7
          %v8188 = vshll.u32 %v7924, 16
          %v8190 = vor.u32 %v8187, %v8188
          %v8191 = vrot.slane %v8187, 4
          %v8193 = vshrl.u32 %v7925, 16
          %v8195 = vrot.slane %v8193, 7
          %v8196 = vshll.u32 %v7925, 16
          %v8198 = vor.u32 %v8195, %v8196
          %v8199 = vrot.slane %v8195, 4
          %v8201 = vshrl.u32 %v7926, 16
          %v8203 = vrot.slane %v8201, 7
          %v8204 = vshll.u32 %v7926, 16
          %v8206 = vor.u32 %v8203, %v8204
          %v8207 = vrot.slane %v8203, 4
          %v8209 = vshrl.u32 %v7927, 16
          %v8211 = vrot.slane %v8209, 7
          %v8212 = vshll.u32 %v7927, 16
          %v8214 = vor.u32 %v8211, %v8212
          %v8215 = vrot.slane %v8211, 4
          %v8217 = vshrl.u32 %v7928, 16
          %v8219 = vrot.slane %v8217, 7
          %v8220 = vshll.u32 %v7928, 16
          %v8222 = vor.u32 %v8219, %v8220
          %v8223 = vrot.slane %v8219, 4
          %v8225 = vshrl.u32 %v7929, 16
          %v8227 = vrot.slane %v8225, 7
          %v8228 = vshll.u32 %v7929, 16
          %v8230 = vor.u32 %v8227, %v8228
          %v8231 = vrot.slane %v8227, 4
          %v8233 = vshrl.u32 %v7930, 16
          %v8235 = vrot.slane %v8233, 7
          %v8236 = vshll.u32 %v7930, 16
          %v8238 = vor.u32 %v8235, %v8236
          %v8239 = vrot.slane %v8235, 4
          %v8241 = vshrl.u32 %v7931, 16
          %v8243 = vrot.slane %v8241, 7
          %v8244 = vshll.u32 %v7931, 16
          %v8246 = vor.u32 %v8243, %v8244
          %v8247 = vrot.slane %v8243, 4
          %v8249 = vshrl.u32 %v7932, 16
          %v8251 = vrot.slane %v8249, 7
          %v8252 = vshll.u32 %v7932, 16
          %v8254 = vor.u32 %v8251, %v8252
          %v8255 = vrot.slane %v8251, 4
          %v8257 = vshrl.u32 %v7933, 16
          %v8259 = vrot.slane %v8257, 7
          %v8260 = vshll.u32 %v7933, 16
          %v8262 = vor.u32 %v8259, %v8260
          %v8263 = vrot.slane %v8259, 4
          %v8265 = vshrl.u32 %v7934, 16
          %v8267 = vrot.slane %v8265, 7
          %v8268 = vshll.u32 %v7934, 16
          %v8270 = vor.u32 %v8267, %v8268
          %v8271 = vrot.slane %v8267, 4
          %v8273 = vshrl.u32 %v7935, 16
          %v8275 = vrot.slane %v8273, 7
          %v8276 = vshll.u32 %v7935, 16
          %v8278 = vor.u32 %v8275, %v8276
          %v8279 = vrot.slane %v8275, 4
          %v8281 = vshrl.u32 %v7936, 16
          %v8283 = vrot.slane %v8281, 7
          %v8284 = vshll.u32 %v7936, 16
          %v8286 = vor.u32 %v8283, %v8284
          %v8287 = vrot.slane %v8283, 4
          %v8289 = vshrl.u32 %v7937, 16
          %v8291 = vrot.slane %v8289, 7
          %v8292 = vshll.u32 %v7937, 16
          %v8294 = vor.u32 %v8291, %v8292
          %v8295 = vrot.slane %v8291, 4
          %v8297 = vshrl.u32 %v7938, 16
          %v8299 = vrot.slane %v8297, 7
          %v8300 = vshll.u32 %v7938, 16
          %v8302 = vor.u32 %v8299, %v8300
          %v8303 = vrot.slane %v8299, 4
          %v8305 = vshrl.u32 %v7939, 16
          %v8307 = vrot.slane %v8305, 7
          %v8308 = vshll.u32 %v7939, 16
          %v8310 = vor.u32 %v8307, %v8308
          %v8311 = vrot.slane %v8307, 4
          %v8313 = vshrl.u32 %v7940, 16
          %v8315 = vrot.slane %v8313, 7
          %v8316 = vshll.u32 %v7940, 16
          %v8318 = vor.u32 %v8315, %v8316
          %v8319 = vrot.slane %v8315, 4
          %v8321 = vshrl.u32 %v7941, 16
          %v8323 = vrot.slane %v8321, 7
          %v8324 = vshll.u32 %v7941, 16
          %v8326 = vor.u32 %v8323, %v8324
          %v8327 = vrot.slane %v8323, 4
          %v8329 = vshrl.u32 %v7942, 16
          %v8331 = vrot.slane %v8329, 7
          %v8332 = vshll.u32 %v7942, 16
          %v8334 = vor.u32 %v8331, %v8332
          %v8335 = vrot.slane %v8331, 4
          %v8337 = vshrl.u32 %v7943, 16
          %v8339 = vrot.slane %v8337, 7
          %v8340 = vshll.u32 %v7943, 16
          %v8342 = vor.u32 %v8339, %v8340
          %v8343 = vrot.slane %v8339, 4
          %v8345 = vshrl.u32 %v7944, 16
          %v8347 = vrot.slane %v8345, 7
          %v8348 = vshll.u32 %v7944, 16
          %v8350 = vor.u32 %v8347, %v8348
          %v8351 = vrot.slane %v8347, 4
          %v8353 = vshrl.u32 %v7945, 16
          %v8355 = vrot.slane %v8353, 7
          %v8356 = vshll.u32 %v7945, 16
          %v8358 = vor.u32 %v8355, %v8356
          %v8359 = vrot.slane %v8355, 4
          %v8361 = vshrl.u32 %v7946, 16
          %v8363 = vrot.slane %v8361, 7
          %v8364 = vshll.u32 %v7946, 16
          %v8366 = vor.u32 %v8363, %v8364
          %v8367 = vrot.slane %v8363, 4
          %v8369 = vshrl.u32 %v7947, 16
          %v8371 = vrot.slane %v8369, 7
          %v8372 = vshll.u32 %v7947, 16
          %v8374 = vor.u32 %v8371, %v8372
          %v8375 = vrot.slane %v8371, 4
          %v8377 = vshrl.u32 %v7948, 16
          %v8379 = vrot.slane %v8377, 7
          %v8380 = vshll.u32 %v7948, 16
          %v8382 = vor.u32 %v8379, %v8380
          %v8383 = vrot.slane %v8379, 4
          %v8385 = vshrl.u32 %v7949, 16
          %v8387 = vrot.slane %v8385, 7
          %v8388 = vshll.u32 %v7949, 16
          %v8390 = vor.u32 %v8387, %v8388
          %v8391 = vrot.slane %v8387, 4
          %v8393 = vshrl.u32 %v7950, 16
          %v8395 = vrot.slane %v8393, 7
          %v8396 = vshll.u32 %v7950, 16
          %v8398 = vor.u32 %v8395, %v8396
          %v8399 = vrot.slane %v8395, 4
          %v8401 = vshrl.u32 %v7951, 16
          %v8403 = vrot.slane %v8401, 7
          %v8404 = vshll.u32 %v7951, 16
          %v8406 = vor.u32 %v8403, %v8404
          %v8407 = vrot.slane %v8403, 4
          %v8409 = vshrl.u32 %v7952, 16
          %v8411 = vrot.slane %v8409, 7
          %v8412 = vshll.u32 %v7952, 16
          %v8414 = vor.u32 %v8411, %v8412
          %v8415 = vrot.slane %v8411, 4
          %v8417 = vshrl.u32 %v7953, 16
          %v8419 = vrot.slane %v8417, 7
          %v8420 = vshll.u32 %v7953, 16
          %v8422 = vor.u32 %v8419, %v8420
          %v8423 = vrot.slane %v8419, 4
          %v8425 = vshrl.u32 %v7954, 16
          %v8427 = vrot.slane %v8425, 7
          %v8428 = vshll.u32 %v7954, 16
          %v8430 = vor.u32 %v8427, %v8428
          %v8431 = vrot.slane %v8427, 4
          %v8433 = vshrl.u32 %v7955, 16
          %v8435 = vrot.slane %v8433, 7
          %v8436 = vshll.u32 %v7955, 16
          %v8438 = vor.u32 %v8435, %v8436
          %v8439 = vrot.slane %v8435, 4
          %v8441 = vshrl.u32 %v7956, 16
          %v8443 = vrot.slane %v8441, 7
          %v8444 = vshll.u32 %v7956, 16
          %v8446 = vor.u32 %v8443, %v8444
          %v8447 = vrot.slane %v8443, 4
          %v8449 = vshrl.u32 %v7957, 16
          %v8451 = vrot.slane %v8449, 7
          %v8452 = vshll.u32 %v7957, 16
          %v8454 = vor.u32 %v8451, %v8452
          %v8455 = vrot.slane %v8451, 4
          %v8457 = vshrl.u32 %v7958, 16
          %v8459 = vrot.slane %v8457, 7
          %v8460 = vshll.u32 %v7958, 16
          %v8462 = vor.u32 %v8459, %v8460
          %v8463 = vrot.slane %v8459, 4
          %v8465 = vshrl.u32 %v7959, 16
          %v8467 = vrot.slane %v8465, 7
          %v8468 = vshll.u32 %v7959, 16
          %v8470 = vor.u32 %v8467, %v8468
          %v8471 = vrot.slane %v8467, 4
          %s8600 = scalar_lea.vmem [#allocation2], 8
          %vm8601 = vcmask 1043456
          %vm8602 = vsmask.f32 7938
          %vm8603 = vmand %vm8601, %vm8602
          %v8604 = vld [vmem:[%s8600] sm:$0xf]
          %v8605 = vsel %vm8603, %v7966, %v8604
          %8606 = vst [vmem:[%s8600] sm:$0xf] %v8605
          %vm8607 = vcmask 1040384
          %vm8608 = vsmask.f32 256
          %vm8609 = vmand %vm8607, %vm8608
          %v8610 = vld [vmem:[%s8600 + $0x4] sm:$0x1]
          %v8611 = vsel %vm8609, %v7967, %v8610
          %8612 = vst [vmem:[%s8600 + $0x4] sm:$0x1] %v8611
          %v8613 = vld [vmem:[%s8600 + $0x8] sm:$0xf]
          %v8614 = vsel %vm8603, %v7974, %v8613
          %8615 = vst [vmem:[%s8600 + $0x8] sm:$0xf] %v8614
          %v8616 = vld [vmem:[%s8600 + $0xc] sm:$0x1]
          %v8617 = vsel %vm8609, %v7975, %v8616
          %8618 = vst [vmem:[%s8600 + $0xc] sm:$0x1] %v8617
          %v8619 = vld [vmem:[%s8600 + $0x10] sm:$0xf]
          %v8620 = vsel %vm8603, %v7982, %v8619
          %8621 = vst [vmem:[%s8600 + $0x10] sm:$0xf] %v8620
          %v8622 = vld [vmem:[%s8600 + $0x14] sm:$0x1]
          %v8623 = vsel %vm8609, %v7983, %v8622
          %8624 = vst [vmem:[%s8600 + $0x14] sm:$0x1] %v8623
          %v8625 = vld [vmem:[%s8600 + $0x18] sm:$0xf]
          %v8626 = vsel %vm8603, %v7990, %v8625
          %8627 = vst [vmem:[%s8600 + $0x18] sm:$0xf] %v8626
          %v8628 = vld [vmem:[%s8600 + $0x1c] sm:$0x1]
          %v8629 = vsel %vm8609, %v7991, %v8628
          %8630 = vst [vmem:[%s8600 + $0x1c] sm:$0x1] %v8629
          %v8631 = vld [vmem:[%s8600 + $0x20] sm:$0xf]
          %v8632 = vsel %vm8603, %v7998, %v8631
          %8633 = vst [vmem:[%s8600 + $0x20] sm:$0xf] %v8632
          %v8634 = vld [vmem:[%s8600 + $0x24] sm:$0x1]
          %v8635 = vsel %vm8609, %v7999, %v8634
          %8636 = vst [vmem:[%s8600 + $0x24] sm:$0x1] %v8635
          %v8637 = vld [vmem:[%s8600 + $0x28] sm:$0xf]
          %v8638 = vsel %vm8603, %v8006, %v8637
          %8639 = vst [vmem:[%s8600 + $0x28] sm:$0xf] %v8638
          %v8640 = vld [vmem:[%s8600 + $0x2c] sm:$0x1]
          %v8641 = vsel %vm8609, %v8007, %v8640
          %8642 = vst [vmem:[%s8600 + $0x2c] sm:$0x1] %v8641
          %v8643 = vld [vmem:[%s8600 + $0x30] sm:$0xf]
          %v8644 = vsel %vm8603, %v8014, %v8643
          %8645 = vst [vmem:[%s8600 + $0x30] sm:$0xf] %v8644
          %v8646 = vld [vmem:[%s8600 + $0x34] sm:$0x1]
          %v8647 = vsel %vm8609, %v8015, %v8646
          %8648 = vst [vmem:[%s8600 + $0x34] sm:$0x1] %v8647
          %v8649 = vld [vmem:[%s8600 + $0x38] sm:$0xf]
          %v8650 = vsel %vm8603, %v8022, %v8649
          %8651 = vst [vmem:[%s8600 + $0x38] sm:$0xf] %v8650
          %v8652 = vld [vmem:[%s8600 + $0x3c] sm:$0x1]
          %v8653 = vsel %vm8609, %v8023, %v8652
          %8654 = vst [vmem:[%s8600 + $0x3c] sm:$0x1] %v8653
          %v8655 = vld [vmem:[%s8600 + $0x50] sm:$0xf]
          %v8656 = vsel %vm8603, %v8030, %v8655
          %8657 = vst [vmem:[%s8600 + $0x50] sm:$0xf] %v8656
          %v8658 = vld [vmem:[%s8600 + $0x54] sm:$0x1]
          %v8659 = vsel %vm8609, %v8031, %v8658
          %8660 = vst [vmem:[%s8600 + $0x54] sm:$0x1] %v8659
          %v8661 = vld [vmem:[%s8600 + $0x58] sm:$0xf]
          %v8662 = vsel %vm8603, %v8038, %v8661
          %8663 = vst [vmem:[%s8600 + $0x58] sm:$0xf] %v8662
          %v8664 = vld [vmem:[%s8600 + $0x5c] sm:$0x1]
          %v8665 = vsel %vm8609, %v8039, %v8664
          %8666 = vst [vmem:[%s8600 + $0x5c] sm:$0x1] %v8665
          %v8667 = vld [vmem:[%s8600 + $0x60] sm:$0xf]
          %v8668 = vsel %vm8603, %v8046, %v8667
          %8669 = vst [vmem:[%s8600 + $0x60] sm:$0xf] %v8668
          %v8670 = vld [vmem:[%s8600 + $0x64] sm:$0x1]
          %v8671 = vsel %vm8609, %v8047, %v8670
          %8672 = vst [vmem:[%s8600 + $0x64] sm:$0x1] %v8671
          %v8673 = vld [vmem:[%s8600 + $0x68] sm:$0xf]
          %v8674 = vsel %vm8603, %v8054, %v8673
          %8675 = vst [vmem:[%s8600 + $0x68] sm:$0xf] %v8674
          %v8676 = vld [vmem:[%s8600 + $0x6c] sm:$0x1]
          %v8677 = vsel %vm8609, %v8055, %v8676
          %8678 = vst [vmem:[%s8600 + $0x6c] sm:$0x1] %v8677
          %v8679 = vld [vmem:[%s8600 + $0x70] sm:$0xf]
          %v8680 = vsel %vm8603, %v8062, %v8679
          %8681 = vst [vmem:[%s8600 + $0x70] sm:$0xf] %v8680
          %v8682 = vld [vmem:[%s8600 + $0x74] sm:$0x1]
          %v8683 = vsel %vm8609, %v8063, %v8682
          %8684 = vst [vmem:[%s8600 + $0x74] sm:$0x1] %v8683
          %v8685 = vld [vmem:[%s8600 + $0x78] sm:$0xf]
          %v8686 = vsel %vm8603, %v8070, %v8685
          %8687 = vst [vmem:[%s8600 + $0x78] sm:$0xf] %v8686
          %v8688 = vld [vmem:[%s8600 + $0x7c] sm:$0x1]
          %v8689 = vsel %vm8609, %v8071, %v8688
          %8690 = vst [vmem:[%s8600 + $0x7c] sm:$0x1] %v8689
          %v8691 = vld [vmem:[%s8600 + $0x80] sm:$0xf]
          %v8692 = vsel %vm8603, %v8078, %v8691
          %8693 = vst [vmem:[%s8600 + $0x80] sm:$0xf] %v8692
          %v8694 = vld [vmem:[%s8600 + $0x84] sm:$0x1]
          %v8695 = vsel %vm8609, %v8079, %v8694
          %8696 = vst [vmem:[%s8600 + $0x84] sm:$0x1] %v8695
          %v8697 = vld [vmem:[%s8600 + $0x88] sm:$0xf]
          %v8698 = vsel %vm8603, %v8086, %v8697
          %8699 = vst [vmem:[%s8600 + $0x88] sm:$0xf] %v8698
          %v8700 = vld [vmem:[%s8600 + $0x8c] sm:$0x1]
          %v8701 = vsel %vm8609, %v8087, %v8700
          %8702 = vst [vmem:[%s8600 + $0x8c] sm:$0x1] %v8701
          %v8703 = vld [vmem:[%s8600 + $0xa0] sm:$0xf]
          %v8704 = vsel %vm8603, %v8094, %v8703
          %8705 = vst [vmem:[%s8600 + $0xa0] sm:$0xf] %v8704
          %v8706 = vld [vmem:[%s8600 + $0xa4] sm:$0x1]
          %v8707 = vsel %vm8609, %v8095, %v8706
          %8708 = vst [vmem:[%s8600 + $0xa4] sm:$0x1] %v8707
          %v8709 = vld [vmem:[%s8600 + $0xa8] sm:$0xf]
          %v8710 = vsel %vm8603, %v8102, %v8709
          %8711 = vst [vmem:[%s8600 + $0xa8] sm:$0xf] %v8710
          %v8712 = vld [vmem:[%s8600 + $0xac] sm:$0x1]
          %v8713 = vsel %vm8609, %v8103, %v8712
          %8714 = vst [vmem:[%s8600 + $0xac] sm:$0x1] %v8713
          %v8715 = vld [vmem:[%s8600 + $0xb0] sm:$0xf]
          %v8716 = vsel %vm8603, %v8110, %v8715
          %8717 = vst [vmem:[%s8600 + $0xb0] sm:$0xf] %v8716
          %v8718 = vld [vmem:[%s8600 + $0xb4] sm:$0x1]
          %v8719 = vsel %vm8609, %v8111, %v8718
          %8720 = vst [vmem:[%s8600 + $0xb4] sm:$0x1] %v8719
          %v8721 = vld [vmem:[%s8600 + $0xb8] sm:$0xf]
          %v8722 = vsel %vm8603, %v8118, %v8721
          %8723 = vst [vmem:[%s8600 + $0xb8] sm:$0xf] %v8722
          %v8724 = vld [vmem:[%s8600 + $0xbc] sm:$0x1]
          %v8725 = vsel %vm8609, %v8119, %v8724
          %8726 = vst [vmem:[%s8600 + $0xbc] sm:$0x1] %v8725
          %v8727 = vld [vmem:[%s8600 + $0xc0] sm:$0xf]
          %v8728 = vsel %vm8603, %v8126, %v8727
          %8729 = vst [vmem:[%s8600 + $0xc0] sm:$0xf] %v8728
          %v8730 = vld [vmem:[%s8600 + $0xc4] sm:$0x1]
          %v8731 = vsel %vm8609, %v8127, %v8730
          %8732 = vst [vmem:[%s8600 + $0xc4] sm:$0x1] %v8731
          %v8733 = vld [vmem:[%s8600 + $0xc8] sm:$0xf]
          %v8734 = vsel %vm8603, %v8134, %v8733
          %8735 = vst [vmem:[%s8600 + $0xc8] sm:$0xf] %v8734
          %v8736 = vld [vmem:[%s8600 + $0xcc] sm:$0x1]
          %v8737 = vsel %vm8609, %v8135, %v8736
          %8738 = vst [vmem:[%s8600 + $0xcc] sm:$0x1] %v8737
          %v8739 = vld [vmem:[%s8600 + $0xd0] sm:$0xf]
          %v8740 = vsel %vm8603, %v8142, %v8739
          %8741 = vst [vmem:[%s8600 + $0xd0] sm:$0xf] %v8740
          %v8742 = vld [vmem:[%s8600 + $0xd4] sm:$0x1]
          %v8743 = vsel %vm8609, %v8143, %v8742
          %8744 = vst [vmem:[%s8600 + $0xd4] sm:$0x1] %v8743
          %v8745 = vld [vmem:[%s8600 + $0xd8] sm:$0xf]
          %v8746 = vsel %vm8603, %v8150, %v8745
          %8747 = vst [vmem:[%s8600 + $0xd8] sm:$0xf] %v8746
          %v8748 = vld [vmem:[%s8600 + $0xdc] sm:$0x1]
          %v8749 = vsel %vm8609, %v8151, %v8748
          %8750 = vst [vmem:[%s8600 + $0xdc] sm:$0x1] %v8749
          %v8751 = vld [vmem:[%s8600 + $0xf0] sm:$0xf]
          %v8752 = vsel %vm8603, %v8158, %v8751
          %8753 = vst [vmem:[%s8600 + $0xf0] sm:$0xf] %v8752
          %v8754 = vld [vmem:[%s8600 + $0xf4] sm:$0x1]
          %v8755 = vsel %vm8609, %v8159, %v8754
          %8756 = vst [vmem:[%s8600 + $0xf4] sm:$0x1] %v8755
          %v8757 = vld [vmem:[%s8600 + $0xf8] sm:$0xf]
          %v8758 = vsel %vm8603, %v8166, %v8757
          %8759 = vst [vmem:[%s8600 + $0xf8] sm:$0xf] %v8758
          %v8760 = vld [vmem:[%s8600 + $0xfc] sm:$0x1]
          %v8761 = vsel %vm8609, %v8167, %v8760
          %8762 = vst [vmem:[%s8600 + $0xfc] sm:$0x1] %v8761
          %v8763 = vld [vmem:[%s8600 + $0x100] sm:$0xf]
          %v8764 = vsel %vm8603, %v8174, %v8763
          %8765 = vst [vmem:[%s8600 + $0x100] sm:$0xf] %v8764
          %v8766 = vld [vmem:[%s8600 + $0x104] sm:$0x1]
          %v8767 = vsel %vm8609, %v8175, %v8766
          %8768 = vst [vmem:[%s8600 + $0x104] sm:$0x1] %v8767
          %v8769 = vld [vmem:[%s8600 + $0x108] sm:$0xf]
          %v8770 = vsel %vm8603, %v8182, %v8769
          %8771 = vst [vmem:[%s8600 + $0x108] sm:$0xf] %v8770
          %v8772 = vld [vmem:[%s8600 + $0x10c] sm:$0x1]
          %v8773 = vsel %vm8609, %v8183, %v8772
          %8774 = vst [vmem:[%s8600 + $0x10c] sm:$0x1] %v8773
          %v8775 = vld [vmem:[%s8600 + $0x110] sm:$0xf]
          %v8776 = vsel %vm8603, %v8190, %v8775
          %8777 = vst [vmem:[%s8600 + $0x110] sm:$0xf] %v8776
          %v8778 = vld [vmem:[%s8600 + $0x114] sm:$0x1]
          %v8779 = vsel %vm8609, %v8191, %v8778
          %8780 = vst [vmem:[%s8600 + $0x114] sm:$0x1] %v8779
          %v8781 = vld [vmem:[%s8600 + $0x118] sm:$0xf]
          %v8782 = vsel %vm8603, %v8198, %v8781
          %8783 = vst [vmem:[%s8600 + $0x118] sm:$0xf] %v8782
          %v8784 = vld [vmem:[%s8600 + $0x11c] sm:$0x1]
          %v8785 = vsel %vm8609, %v8199, %v8784
          %8786 = vst [vmem:[%s8600 + $0x11c] sm:$0x1] %v8785
          %v8787 = vld [vmem:[%s8600 + $0x120] sm:$0xf]
          %v8788 = vsel %vm8603, %v8206, %v8787
          %8789 = vst [vmem:[%s8600 + $0x120] sm:$0xf] %v8788
          %v8790 = vld [vmem:[%s8600 + $0x124] sm:$0x1]
          %v8791 = vsel %vm8609, %v8207, %v8790
          %8792 = vst [vmem:[%s8600 + $0x124] sm:$0x1] %v8791
          %v8793 = vld [vmem:[%s8600 + $0x128] sm:$0xf]
          %v8794 = vsel %vm8603, %v8214, %v8793
          %8795 = vst [vmem:[%s8600 + $0x128] sm:$0xf] %v8794
          %v8796 = vld [vmem:[%s8600 + $0x12c] sm:$0x1]
          %v8797 = vsel %vm8609, %v8215, %v8796
          %8798 = vst [vmem:[%s8600 + $0x12c] sm:$0x1] %v8797
          %v8799 = vld [vmem:[%s8600 + $0x140] sm:$0xf]
          %v8800 = vsel %vm8603, %v8222, %v8799
          %8801 = vst [vmem:[%s8600 + $0x140] sm:$0xf] %v8800
          %v8802 = vld [vmem:[%s8600 + $0x144] sm:$0x1]
          %v8803 = vsel %vm8609, %v8223, %v8802
          %8804 = vst [vmem:[%s8600 + $0x144] sm:$0x1] %v8803
          %v8805 = vld [vmem:[%s8600 + $0x148] sm:$0xf]
          %v8806 = vsel %vm8603, %v8230, %v8805
          %8807 = vst [vmem:[%s8600 + $0x148] sm:$0xf] %v8806
          %v8808 = vld [vmem:[%s8600 + $0x14c] sm:$0x1]
          %v8809 = vsel %vm8609, %v8231, %v8808
          %8810 = vst [vmem:[%s8600 + $0x14c] sm:$0x1] %v8809
          %v8811 = vld [vmem:[%s8600 + $0x150] sm:$0xf]
          %v8812 = vsel %vm8603, %v8238, %v8811
          %8813 = vst [vmem:[%s8600 + $0x150] sm:$0xf] %v8812
          %v8814 = vld [vmem:[%s8600 + $0x154] sm:$0x1]
          %v8815 = vsel %vm8609, %v8239, %v8814
          %8816 = vst [vmem:[%s8600 + $0x154] sm:$0x1] %v8815
          %v8817 = vld [vmem:[%s8600 + $0x158] sm:$0xf]
          %v8818 = vsel %vm8603, %v8246, %v8817
          %8819 = vst [vmem:[%s8600 + $0x158] sm:$0xf] %v8818
          %v8820 = vld [vmem:[%s8600 + $0x15c] sm:$0x1]
          %v8821 = vsel %vm8609, %v8247, %v8820
          %8822 = vst [vmem:[%s8600 + $0x15c] sm:$0x1] %v8821
          %v8823 = vld [vmem:[%s8600 + $0x160] sm:$0xf]
          %v8824 = vsel %vm8603, %v8254, %v8823
          %8825 = vst [vmem:[%s8600 + $0x160] sm:$0xf] %v8824
          %v8826 = vld [vmem:[%s8600 + $0x164] sm:$0x1]
          %v8827 = vsel %vm8609, %v8255, %v8826
          %8828 = vst [vmem:[%s8600 + $0x164] sm:$0x1] %v8827
          %v8829 = vld [vmem:[%s8600 + $0x168] sm:$0xf]
          %v8830 = vsel %vm8603, %v8262, %v8829
          %8831 = vst [vmem:[%s8600 + $0x168] sm:$0xf] %v8830
          %v8832 = vld [vmem:[%s8600 + $0x16c] sm:$0x1]
          %v8833 = vsel %vm8609, %v8263, %v8832
          %8834 = vst [vmem:[%s8600 + $0x16c] sm:$0x1] %v8833
          %v8835 = vld [vmem:[%s8600 + $0x170] sm:$0xf]
          %v8836 = vsel %vm8603, %v8270, %v8835
          %8837 = vst [vmem:[%s8600 + $0x170] sm:$0xf] %v8836
          %v8838 = vld [vmem:[%s8600 + $0x174] sm:$0x1]
          %v8839 = vsel %vm8609, %v8271, %v8838
          %8840 = vst [vmem:[%s8600 + $0x174] sm:$0x1] %v8839
          %v8841 = vld [vmem:[%s8600 + $0x178] sm:$0xf]
          %v8842 = vsel %vm8603, %v8278, %v8841
          %8843 = vst [vmem:[%s8600 + $0x178] sm:$0xf] %v8842
          %v8844 = vld [vmem:[%s8600 + $0x17c] sm:$0x1]
          %v8845 = vsel %vm8609, %v8279, %v8844
          %8846 = vst [vmem:[%s8600 + $0x17c] sm:$0x1] %v8845
          %v8847 = vld [vmem:[%s8600 + $0x190] sm:$0xf]
          %v8848 = vsel %vm8603, %v8286, %v8847
          %8849 = vst [vmem:[%s8600 + $0x190] sm:$0xf] %v8848
          %v8850 = vld [vmem:[%s8600 + $0x194] sm:$0x1]
          %v8851 = vsel %vm8609, %v8287, %v8850
          %8852 = vst [vmem:[%s8600 + $0x194] sm:$0x1] %v8851
          %v8853 = vld [vmem:[%s8600 + $0x198] sm:$0xf]
          %v8854 = vsel %vm8603, %v8294, %v8853
          %8855 = vst [vmem:[%s8600 + $0x198] sm:$0xf] %v8854
          %v8856 = vld [vmem:[%s8600 + $0x19c] sm:$0x1]
          %v8857 = vsel %vm8609, %v8295, %v8856
          %8858 = vst [vmem:[%s8600 + $0x19c] sm:$0x1] %v8857
          %v8859 = vld [vmem:[%s8600 + $0x1a0] sm:$0xf]
          %v8860 = vsel %vm8603, %v8302, %v8859
          %8861 = vst [vmem:[%s8600 + $0x1a0] sm:$0xf] %v8860
          %v8862 = vld [vmem:[%s8600 + $0x1a4] sm:$0x1]
          %v8863 = vsel %vm8609, %v8303, %v8862
          %8864 = vst [vmem:[%s8600 + $0x1a4] sm:$0x1] %v8863
          %v8865 = vld [vmem:[%s8600 + $0x1a8] sm:$0xf]
          %v8866 = vsel %vm8603, %v8310, %v8865
          %8867 = vst [vmem:[%s8600 + $0x1a8] sm:$0xf] %v8866
          %v8868 = vld [vmem:[%s8600 + $0x1ac] sm:$0x1]
          %v8869 = vsel %vm8609, %v8311, %v8868
          %8870 = vst [vmem:[%s8600 + $0x1ac] sm:$0x1] %v8869
          %v8871 = vld [vmem:[%s8600 + $0x1b0] sm:$0xf]
          %v8872 = vsel %vm8603, %v8318, %v8871
          %8873 = vst [vmem:[%s8600 + $0x1b0] sm:$0xf] %v8872
          %v8874 = vld [vmem:[%s8600 + $0x1b4] sm:$0x1]
          %v8875 = vsel %vm8609, %v8319, %v8874
          %8876 = vst [vmem:[%s8600 + $0x1b4] sm:$0x1] %v8875
          %v8877 = vld [vmem:[%s8600 + $0x1b8] sm:$0xf]
          %v8878 = vsel %vm8603, %v8326, %v8877
          %8879 = vst [vmem:[%s8600 + $0x1b8] sm:$0xf] %v8878
          %v8880 = vld [vmem:[%s8600 + $0x1bc] sm:$0x1]
          %v8881 = vsel %vm8609, %v8327, %v8880
          %8882 = vst [vmem:[%s8600 + $0x1bc] sm:$0x1] %v8881
          %v8883 = vld [vmem:[%s8600 + $0x1c0] sm:$0xf]
          %v8884 = vsel %vm8603, %v8334, %v8883
          %8885 = vst [vmem:[%s8600 + $0x1c0] sm:$0xf] %v8884
          %v8886 = vld [vmem:[%s8600 + $0x1c4] sm:$0x1]
          %v8887 = vsel %vm8609, %v8335, %v8886
          %8888 = vst [vmem:[%s8600 + $0x1c4] sm:$0x1] %v8887
          %v8889 = vld [vmem:[%s8600 + $0x1c8] sm:$0xf]
          %v8890 = vsel %vm8603, %v8342, %v8889
          %8891 = vst [vmem:[%s8600 + $0x1c8] sm:$0xf] %v8890
          %v8892 = vld [vmem:[%s8600 + $0x1cc] sm:$0x1]
          %v8893 = vsel %vm8609, %v8343, %v8892
          %8894 = vst [vmem:[%s8600 + $0x1cc] sm:$0x1] %v8893
          %v8895 = vld [vmem:[%s8600 + $0x1e0] sm:$0xf]
          %v8896 = vsel %vm8603, %v8350, %v8895
          %8897 = vst [vmem:[%s8600 + $0x1e0] sm:$0xf] %v8896
          %v8898 = vld [vmem:[%s8600 + $0x1e4] sm:$0x1]
          %v8899 = vsel %vm8609, %v8351, %v8898
          %8900 = vst [vmem:[%s8600 + $0x1e4] sm:$0x1] %v8899
          %v8901 = vld [vmem:[%s8600 + $0x1e8] sm:$0xf]
          %v8902 = vsel %vm8603, %v8358, %v8901
          %8903 = vst [vmem:[%s8600 + $0x1e8] sm:$0xf] %v8902
          %v8904 = vld [vmem:[%s8600 + $0x1ec] sm:$0x1]
          %v8905 = vsel %vm8609, %v8359, %v8904
          %8906 = vst [vmem:[%s8600 + $0x1ec] sm:$0x1] %v8905
          %v8907 = vld [vmem:[%s8600 + $0x1f0] sm:$0xf]
          %v8908 = vsel %vm8603, %v8366, %v8907
          %8909 = vst [vmem:[%s8600 + $0x1f0] sm:$0xf] %v8908
          %v8910 = vld [vmem:[%s8600 + $0x1f4] sm:$0x1]
          %v8911 = vsel %vm8609, %v8367, %v8910
          %8912 = vst [vmem:[%s8600 + $0x1f4] sm:$0x1] %v8911
          %v8913 = vld [vmem:[%s8600 + $0x1f8] sm:$0xf]
          %v8914 = vsel %vm8603, %v8374, %v8913
          %8915 = vst [vmem:[%s8600 + $0x1f8] sm:$0xf] %v8914
          %v8916 = vld [vmem:[%s8600 + $0x1fc] sm:$0x1]
          %v8917 = vsel %vm8609, %v8375, %v8916
          %8918 = vst [vmem:[%s8600 + $0x1fc] sm:$0x1] %v8917
          %v8919 = vld [vmem:[%s8600 + $0x200] sm:$0xf]
          %v8920 = vsel %vm8603, %v8382, %v8919
          %8921 = vst [vmem:[%s8600 + $0x200] sm:$0xf] %v8920
          %v8922 = vld [vmem:[%s8600 + $0x204] sm:$0x1]
          %v8923 = vsel %vm8609, %v8383, %v8922
          %8924 = vst [vmem:[%s8600 + $0x204] sm:$0x1] %v8923
          %v8925 = vld [vmem:[%s8600 + $0x208] sm:$0xf]
          %v8926 = vsel %vm8603, %v8390, %v8925
          %8927 = vst [vmem:[%s8600 + $0x208] sm:$0xf] %v8926
          %v8928 = vld [vmem:[%s8600 + $0x20c] sm:$0x1]
          %v8929 = vsel %vm8609, %v8391, %v8928
          %8930 = vst [vmem:[%s8600 + $0x20c] sm:$0x1] %v8929
          %v8931 = vld [vmem:[%s8600 + $0x210] sm:$0xf]
          %v8932 = vsel %vm8603, %v8398, %v8931
          %8933 = vst [vmem:[%s8600 + $0x210] sm:$0xf] %v8932
          %v8934 = vld [vmem:[%s8600 + $0x214] sm:$0x1]
          %v8935 = vsel %vm8609, %v8399, %v8934
          %8936 = vst [vmem:[%s8600 + $0x214] sm:$0x1] %v8935
          %v8937 = vld [vmem:[%s8600 + $0x218] sm:$0xf]
          %v8938 = vsel %vm8603, %v8406, %v8937
          %8939 = vst [vmem:[%s8600 + $0x218] sm:$0xf] %v8938
          %v8940 = vld [vmem:[%s8600 + $0x21c] sm:$0x1]
          %v8941 = vsel %vm8609, %v8407, %v8940
          %8942 = vst [vmem:[%s8600 + $0x21c] sm:$0x1] %v8941
          %v8943 = vld [vmem:[%s8600 + $0x230] sm:$0xf]
          %v8944 = vsel %vm8603, %v8414, %v8943
          %8945 = vst [vmem:[%s8600 + $0x230] sm:$0xf] %v8944
          %v8946 = vld [vmem:[%s8600 + $0x234] sm:$0x1]
          %v8947 = vsel %vm8609, %v8415, %v8946
          %8948 = vst [vmem:[%s8600 + $0x234] sm:$0x1] %v8947
          %v8949 = vld [vmem:[%s8600 + $0x238] sm:$0xf]
          %v8950 = vsel %vm8603, %v8422, %v8949
          %8951 = vst [vmem:[%s8600 + $0x238] sm:$0xf] %v8950
          %v8952 = vld [vmem:[%s8600 + $0x23c] sm:$0x1]
          %v8953 = vsel %vm8609, %v8423, %v8952
          %8954 = vst [vmem:[%s8600 + $0x23c] sm:$0x1] %v8953
          %v8955 = vld [vmem:[%s8600 + $0x240] sm:$0xf]
          %v8956 = vsel %vm8603, %v8430, %v8955
          %8957 = vst [vmem:[%s8600 + $0x240] sm:$0xf] %v8956
          %v8958 = vld [vmem:[%s8600 + $0x244] sm:$0x1]
          %v8959 = vsel %vm8609, %v8431, %v8958
          %8960 = vst [vmem:[%s8600 + $0x244] sm:$0x1] %v8959
          %v8961 = vld [vmem:[%s8600 + $0x248] sm:$0xf]
          %v8962 = vsel %vm8603, %v8438, %v8961
          %8963 = vst [vmem:[%s8600 + $0x248] sm:$0xf] %v8962
          %v8964 = vld [vmem:[%s8600 + $0x24c] sm:$0x1]
          %v8965 = vsel %vm8609, %v8439, %v8964
          %8966 = vst [vmem:[%s8600 + $0x24c] sm:$0x1] %v8965
          %v8967 = vld [vmem:[%s8600 + $0x250] sm:$0xf]
          %v8968 = vsel %vm8603, %v8446, %v8967
          %8969 = vst [vmem:[%s8600 + $0x250] sm:$0xf] %v8968
          %v8970 = vld [vmem:[%s8600 + $0x254] sm:$0x1]
          %v8971 = vsel %vm8609, %v8447, %v8970
          %8972 = vst [vmem:[%s8600 + $0x254] sm:$0x1] %v8971
          %v8973 = vld [vmem:[%s8600 + $0x258] sm:$0xf]
          %v8974 = vsel %vm8603, %v8454, %v8973
          %8975 = vst [vmem:[%s8600 + $0x258] sm:$0xf] %v8974
          %v8976 = vld [vmem:[%s8600 + $0x25c] sm:$0x1]
          %v8977 = vsel %vm8609, %v8455, %v8976
          %8978 = vst [vmem:[%s8600 + $0x25c] sm:$0x1] %v8977
          %v8979 = vld [vmem:[%s8600 + $0x260] sm:$0xf]
          %v8980 = vsel %vm8603, %v8462, %v8979
          %8981 = vst [vmem:[%s8600 + $0x260] sm:$0xf] %v8980
          %v8982 = vld [vmem:[%s8600 + $0x264] sm:$0x1]
          %v8983 = vsel %vm8609, %v8463, %v8982
          %8984 = vst [vmem:[%s8600 + $0x264] sm:$0x1] %v8983
          %v8985 = vld [vmem:[%s8600 + $0x268] sm:$0xf]
          %v8986 = vsel %vm8603, %v8470, %v8985
          %8987 = vst [vmem:[%s8600 + $0x268] sm:$0xf] %v8986
          %v8988 = vld [vmem:[%s8600 + $0x26c] sm:$0x1]
          %v8989 = vsel %vm8609, %v8471, %v8988
          %8990 = vst [vmem:[%s8600 + $0x26c] sm:$0x1] %v8989
        $region48: #{tpu_custom_call.1} parent=31 // pred_fallthru
          _
        %p8991 = scmp.eq.s32.totalorder %s24, 1
        // Predicated region
        $region49: #{tpu_custom_call.1} parent=31 // pred_check
          %p8992 = pneg %p8991
        $region50: #{tpu_custom_call.1} parent=31 // pred_check_branch
          %8994 = sbr.rel (%p8992) target = $region52
        $region51: #{tpu_custom_call.1} parent=31 // pred_region
          %v8995 = vpack.c.bf16 %v7637, %v7636
          %v8996 = vpack.c.bf16 %v7639, %v7638
          %v8997 = vpack.c.bf16 %v7641, %v7640
          %v8998 = vpack.c.bf16 %v7643, %v7642
          %v8999 = vpack.c.bf16 %v7645, %v7644
          %v9000 = vpack.c.bf16 %v7647, %v7646
          %v9001 = vpack.c.bf16 %v7649, %v7648
          %v9002 = vpack.c.bf16 %v7651, %v7650
          %v9003 = vpack.c.bf16 %v7653, %v7652
          %v9004 = vpack.c.bf16 %v7655, %v7654
          %v9005 = vpack.c.bf16 %v7657, %v7656
          %v9006 = vpack.c.bf16 %v7659, %v7658
          %v9007 = vpack.c.bf16 %v7661, %v7660
          %v9008 = vpack.c.bf16 %v7663, %v7662
          %v9009 = vpack.c.bf16 %v7665, %v7664
          %v9010 = vpack.c.bf16 %v7667, %v7666
          %v9011 = vpack.c.bf16 %v7669, %v7668
          %v9012 = vpack.c.bf16 %v7671, %v7670
          %v9013 = vpack.c.bf16 %v7673, %v7672
          %v9014 = vpack.c.bf16 %v7675, %v7674
          %v9015 = vpack.c.bf16 %v7677, %v7676
          %v9016 = vpack.c.bf16 %v7679, %v7678
          %v9017 = vpack.c.bf16 %v7681, %v7680
          %v9018 = vpack.c.bf16 %v7683, %v7682
          %v9019 = vpack.c.bf16 %v7685, %v7684
          %v9020 = vpack.c.bf16 %v7687, %v7686
          %v9021 = vpack.c.bf16 %v7689, %v7688
          %v9022 = vpack.c.bf16 %v7691, %v7690
          %v9023 = vpack.c.bf16 %v7693, %v7692
          %v9024 = vpack.c.bf16 %v7695, %v7694
          %v9025 = vpack.c.bf16 %v7697, %v7696
          %v9026 = vpack.c.bf16 %v7699, %v7698
          %v9059 = vunpack.c.l.b16 %v8995
          %v9060 = vunpack.c.h.b16 %v8995
          %v9061 = vunpack.c.l.b16 %v8996
          %v9062 = vunpack.c.h.b16 %v8996
          %v9063 = vunpack.c.l.b16 %v8997
          %v9064 = vunpack.c.h.b16 %v8997
          %v9065 = vunpack.c.l.b16 %v8998
          %v9066 = vunpack.c.h.b16 %v8998
          %v9067 = vunpack.c.l.b16 %v8999
          %v9068 = vunpack.c.h.b16 %v8999
          %v9069 = vunpack.c.l.b16 %v9000
          %v9070 = vunpack.c.h.b16 %v9000
          %v9071 = vunpack.c.l.b16 %v9001
          %v9072 = vunpack.c.h.b16 %v9001
          %v9073 = vunpack.c.l.b16 %v9002
          %v9074 = vunpack.c.h.b16 %v9002
          %v9075 = vunpack.c.l.b16 %v9003
          %v9076 = vunpack.c.h.b16 %v9003
          %v9077 = vunpack.c.l.b16 %v9004
          %v9078 = vunpack.c.h.b16 %v9004
          %v9079 = vunpack.c.l.b16 %v9005
          %v9080 = vunpack.c.h.b16 %v9005
          %v9081 = vunpack.c.l.b16 %v9006
          %v9082 = vunpack.c.h.b16 %v9006
          %v9083 = vunpack.c.l.b16 %v9007
          %v9084 = vunpack.c.h.b16 %v9007
          %v9085 = vunpack.c.l.b16 %v9008
          %v9086 = vunpack.c.h.b16 %v9008
          %v9087 = vunpack.c.l.b16 %v9009
          %v9088 = vunpack.c.h.b16 %v9009
          %v9089 = vunpack.c.l.b16 %v9010
          %v9090 = vunpack.c.h.b16 %v9010
          %v9091 = vunpack.c.l.b16 %v9011
          %v9092 = vunpack.c.h.b16 %v9011
          %v9093 = vunpack.c.l.b16 %v9012
          %v9094 = vunpack.c.h.b16 %v9012
          %v9095 = vunpack.c.l.b16 %v9013
          %v9096 = vunpack.c.h.b16 %v9013
          %v9097 = vunpack.c.l.b16 %v9014
          %v9098 = vunpack.c.h.b16 %v9014
          %v9099 = vunpack.c.l.b16 %v9015
          %v9100 = vunpack.c.h.b16 %v9015
          %v9101 = vunpack.c.l.b16 %v9016
          %v9102 = vunpack.c.h.b16 %v9016
          %v9103 = vunpack.c.l.b16 %v9017
          %v9104 = vunpack.c.h.b16 %v9017
          %v9105 = vunpack.c.l.b16 %v9018
          %v9106 = vunpack.c.h.b16 %v9018
          %v9107 = vunpack.c.l.b16 %v9019
          %v9108 = vunpack.c.h.b16 %v9019
          %v9109 = vunpack.c.l.b16 %v9020
          %v9110 = vunpack.c.h.b16 %v9020
          %v9111 = vunpack.c.l.b16 %v9021
          %v9112 = vunpack.c.h.b16 %v9021
          %v9113 = vunpack.c.l.b16 %v9022
          %v9114 = vunpack.c.h.b16 %v9022
          %v9115 = vunpack.c.l.b16 %v9023
          %v9116 = vunpack.c.h.b16 %v9023
          %v9117 = vunpack.c.l.b16 %v9024
          %v9118 = vunpack.c.h.b16 %v9024
          %v9119 = vunpack.c.l.b16 %v9025
          %v9120 = vunpack.c.h.b16 %v9025
          %v9121 = vunpack.c.l.b16 %v9026
          %v9122 = vunpack.c.h.b16 %v9026
          %v9123 = vpack.c.b16 %v9059, %v9059
          %v9124 = vpack.c.b16 %v9060, %v9060
          %v9125 = vpack.c.b16 %v9061, %v9061
          %v9126 = vpack.c.b16 %v9062, %v9062
          %v9127 = vpack.c.b16 %v9063, %v9063
          %v9128 = vpack.c.b16 %v9064, %v9064
          %v9129 = vpack.c.b16 %v9065, %v9065
          %v9130 = vpack.c.b16 %v9066, %v9066
          %v9131 = vpack.c.b16 %v9067, %v9067
          %v9132 = vpack.c.b16 %v9068, %v9068
          %v9133 = vpack.c.b16 %v9069, %v9069
          %v9134 = vpack.c.b16 %v9070, %v9070
          %v9135 = vpack.c.b16 %v9071, %v9071
          %v9136 = vpack.c.b16 %v9072, %v9072
          %v9137 = vpack.c.b16 %v9073, %v9073
          %v9138 = vpack.c.b16 %v9074, %v9074
          %v9139 = vpack.c.b16 %v9075, %v9075
          %v9140 = vpack.c.b16 %v9076, %v9076
          %v9141 = vpack.c.b16 %v9077, %v9077
          %v9142 = vpack.c.b16 %v9078, %v9078
          %v9143 = vpack.c.b16 %v9079, %v9079
          %v9144 = vpack.c.b16 %v9080, %v9080
          %v9145 = vpack.c.b16 %v9081, %v9081
          %v9146 = vpack.c.b16 %v9082, %v9082
          %v9147 = vpack.c.b16 %v9083, %v9083
          %v9148 = vpack.c.b16 %v9084, %v9084
          %v9149 = vpack.c.b16 %v9085, %v9085
          %v9150 = vpack.c.b16 %v9086, %v9086
          %v9151 = vpack.c.b16 %v9087, %v9087
          %v9152 = vpack.c.b16 %v9088, %v9088
          %v9153 = vpack.c.b16 %v9089, %v9089
          %v9154 = vpack.c.b16 %v9090, %v9090
          %v9155 = vpack.c.b16 %v9091, %v9091
          %v9156 = vpack.c.b16 %v9092, %v9092
          %v9157 = vpack.c.b16 %v9093, %v9093
          %v9158 = vpack.c.b16 %v9094, %v9094
          %v9159 = vpack.c.b16 %v9095, %v9095
          %v9160 = vpack.c.b16 %v9096, %v9096
          %v9161 = vpack.c.b16 %v9097, %v9097
          %v9162 = vpack.c.b16 %v9098, %v9098
          %v9163 = vpack.c.b16 %v9099, %v9099
          %v9164 = vpack.c.b16 %v9100, %v9100
          %v9165 = vpack.c.b16 %v9101, %v9101
          %v9166 = vpack.c.b16 %v9102, %v9102
          %v9167 = vpack.c.b16 %v9103, %v9103
          %v9168 = vpack.c.b16 %v9104, %v9104
          %v9169 = vpack.c.b16 %v9105, %v9105
          %v9170 = vpack.c.b16 %v9106, %v9106
          %v9171 = vpack.c.b16 %v9107, %v9107
          %v9172 = vpack.c.b16 %v9108, %v9108
          %v9173 = vpack.c.b16 %v9109, %v9109
          %v9174 = vpack.c.b16 %v9110, %v9110
          %v9175 = vpack.c.b16 %v9111, %v9111
          %v9176 = vpack.c.b16 %v9112, %v9112
          %v9177 = vpack.c.b16 %v9113, %v9113
          %v9178 = vpack.c.b16 %v9114, %v9114
          %v9179 = vpack.c.b16 %v9115, %v9115
          %v9180 = vpack.c.b16 %v9116, %v9116
          %v9181 = vpack.c.b16 %v9117, %v9117
          %v9182 = vpack.c.b16 %v9118, %v9118
          %v9183 = vpack.c.b16 %v9119, %v9119
          %v9184 = vpack.c.b16 %v9120, %v9120
          %v9185 = vpack.c.b16 %v9121, %v9121
          %v9186 = vpack.c.b16 %v9122, %v9122
          %9251 = vst [vmem:[#allocation8] sm:$0xf] %v9123
          %9252 = vst [vmem:[#allocation8 + $0x4] sm:$0xf] %v9124
          %9253 = vst [vmem:[#allocation8 + $0x8] sm:$0xf] %v9125
          %9254 = vst [vmem:[#allocation8 + $0xc] sm:$0xf] %v9126
          %9255 = vst [vmem:[#allocation8 + $0x10] sm:$0xf] %v9127
          %9256 = vst [vmem:[#allocation8 + $0x14] sm:$0xf] %v9128
          %9257 = vst [vmem:[#allocation8 + $0x18] sm:$0xf] %v9129
          %9258 = vst [vmem:[#allocation8 + $0x1c] sm:$0xf] %v9130
          %9259 = vst [vmem:[#allocation8 + $0x20] sm:$0xf] %v9131
          %9260 = vst [vmem:[#allocation8 + $0x24] sm:$0xf] %v9132
          %9261 = vst [vmem:[#allocation8 + $0x28] sm:$0xf] %v9133
          %9262 = vst [vmem:[#allocation8 + $0x2c] sm:$0xf] %v9134
          %9263 = vst [vmem:[#allocation8 + $0x30] sm:$0xf] %v9135
          %9264 = vst [vmem:[#allocation8 + $0x34] sm:$0xf] %v9136
          %9265 = vst [vmem:[#allocation8 + $0x38] sm:$0xf] %v9137
          %9266 = vst [vmem:[#allocation8 + $0x3c] sm:$0xf] %v9138
          %9267 = vst [vmem:[#allocation8 + $0x40] sm:$0xf] %v9139
          %9268 = vst [vmem:[#allocation8 + $0x44] sm:$0xf] %v9140
          %9269 = vst [vmem:[#allocation8 + $0x48] sm:$0xf] %v9141
          %9270 = vst [vmem:[#allocation8 + $0x4c] sm:$0xf] %v9142
          %9271 = vst [vmem:[#allocation8 + $0x50] sm:$0xf] %v9143
          %9272 = vst [vmem:[#allocation8 + $0x54] sm:$0xf] %v9144
          %9273 = vst [vmem:[#allocation8 + $0x58] sm:$0xf] %v9145
          %9274 = vst [vmem:[#allocation8 + $0x5c] sm:$0xf] %v9146
          %9275 = vst [vmem:[#allocation8 + $0x60] sm:$0xf] %v9147
          %9276 = vst [vmem:[#allocation8 + $0x64] sm:$0xf] %v9148
          %9277 = vst [vmem:[#allocation8 + $0x68] sm:$0xf] %v9149
          %9278 = vst [vmem:[#allocation8 + $0x6c] sm:$0xf] %v9150
          %9279 = vst [vmem:[#allocation8 + $0x70] sm:$0xf] %v9151
          %9280 = vst [vmem:[#allocation8 + $0x74] sm:$0xf] %v9152
          %9281 = vst [vmem:[#allocation8 + $0x78] sm:$0xf] %v9153
          %9282 = vst [vmem:[#allocation8 + $0x7c] sm:$0xf] %v9154
          %9283 = vst [vmem:[#allocation8 + $0x80] sm:$0xf] %v9155
          %9284 = vst [vmem:[#allocation8 + $0x84] sm:$0xf] %v9156
          %9285 = vst [vmem:[#allocation8 + $0x88] sm:$0xf] %v9157
          %9286 = vst [vmem:[#allocation8 + $0x8c] sm:$0xf] %v9158
          %9287 = vst [vmem:[#allocation8 + $0x90] sm:$0xf] %v9159
          %9288 = vst [vmem:[#allocation8 + $0x94] sm:$0xf] %v9160
          %9289 = vst [vmem:[#allocation8 + $0x98] sm:$0xf] %v9161
          %9290 = vst [vmem:[#allocation8 + $0x9c] sm:$0xf] %v9162
          %9291 = vst [vmem:[#allocation8 + $0xa0] sm:$0xf] %v9163
          %9292 = vst [vmem:[#allocation8 + $0xa4] sm:$0xf] %v9164
          %9293 = vst [vmem:[#allocation8 + $0xa8] sm:$0xf] %v9165
          %9294 = vst [vmem:[#allocation8 + $0xac] sm:$0xf] %v9166
          %9295 = vst [vmem:[#allocation8 + $0xb0] sm:$0xf] %v9167
          %9296 = vst [vmem:[#allocation8 + $0xb4] sm:$0xf] %v9168
          %9297 = vst [vmem:[#allocation8 + $0xb8] sm:$0xf] %v9169
          %9298 = vst [vmem:[#allocation8 + $0xbc] sm:$0xf] %v9170
          %9299 = vst [vmem:[#allocation8 + $0xc0] sm:$0xf] %v9171
          %9300 = vst [vmem:[#allocation8 + $0xc4] sm:$0xf] %v9172
          %9301 = vst [vmem:[#allocation8 + $0xc8] sm:$0xf] %v9173
          %9302 = vst [vmem:[#allocation8 + $0xcc] sm:$0xf] %v9174
          %9303 = vst [vmem:[#allocation8 + $0xd0] sm:$0xf] %v9175
          %9304 = vst [vmem:[#allocation8 + $0xd4] sm:$0xf] %v9176
          %9305 = vst [vmem:[#allocation8 + $0xd8] sm:$0xf] %v9177
          %9306 = vst [vmem:[#allocation8 + $0xdc] sm:$0xf] %v9178
          %9307 = vst [vmem:[#allocation8 + $0xe0] sm:$0xf] %v9179
          %9308 = vst [vmem:[#allocation8 + $0xe4] sm:$0xf] %v9180
          %9309 = vst [vmem:[#allocation8 + $0xe8] sm:$0xf] %v9181
          %9310 = vst [vmem:[#allocation8 + $0xec] sm:$0xf] %v9182
          %9311 = vst [vmem:[#allocation8 + $0xf0] sm:$0xf] %v9183
          %9312 = vst [vmem:[#allocation8 + $0xf4] sm:$0xf] %v9184
          %9313 = vst [vmem:[#allocation8 + $0xf8] sm:$0xf] %v9185
          %9314 = vst [vmem:[#allocation8 + $0xfc] sm:$0xf] %v9186
        $region52: #{tpu_custom_call.1} parent=31 // pred_fallthru
          _
        // Predicated region
        $region53: #{tpu_custom_call.1} parent=31 // pred_check
          %p9315 = pneg %p127
        $region54: #{tpu_custom_call.1} parent=31 // pred_check_branch
          %9317 = sbr.rel (%p9315) target = $region56
        $region55: #{tpu_custom_call.1} parent=31 // pred_region
          %s9318 = smul.u32 64, %s23
          %s9320 = ssub.s32 4096, 4096
          %9321 = vsyncadd [#allocation5], %s9320
          %s9322 = smul.addr %s9318, 64
          %s9323 = scalar_lea.hbm %s3, %s9322
          %s9324 = sshll.u32 [#allocation8], 4
          %s9325 = int_to_ptr.vmem [resolvable:$true] %s9324
          %9330 = dma.vmem_to_hbm [thread:$0]  %s9325, 4096, %s9323, [#allocation5], 64, 64, 4
        $region56: #{tpu_custom_call.1} parent=31 // pred_fallthru
          _
        // Predicated region
        $region57: #{tpu_custom_call.1} parent=31 // pred_check
          %p9331 = pneg %p127
        $region58: #{tpu_custom_call.1} parent=31 // pred_check_branch
          %9333 = sbr.rel (%p9331) target = $region60
        $region59: #{tpu_custom_call.1} parent=31 // pred_region
          %9334 = dma.done [#allocation5], 4096
        $region60: #{tpu_custom_call.1} parent=31 // pred_fallthru
          _
      $region32: #{tpu_custom_call.1} parent=5 // pred_fallthru
        _
      %p9335 = scmp.le.s32.totalorder 2, %s14
      // Predicated region
      $region61: #{tpu_custom_call.1} parent=5 // pred_check
        %p9336 = pneg %p9335
      $region62: #{tpu_custom_call.1} parent=5 // pred_check_branch
        %9338 = sbr.rel (%p9336) target = $region64
      $region63: #{tpu_custom_call.1} parent=5 // pred_region
        %s9339 = ssub.s32 %s14, 2
      $region64: #{tpu_custom_call.1} parent=5 // pred_fallthru
        _
    $region6: #{tpu_custom_call.1} parent=1 // loop_footer
      %s18 = sadd.s32 1, %s14
    $region7: #{tpu_custom_call.1} parent=1 // loop_footer_branch
      %13 = sbr.rel target = $region3
    $region8: #{tpu_custom_call.1} parent=1 // loop_exit
      _
    %9340 = vsyncpa [#allocation4], 1
    %s9341 = scalar_lea.sflag [#allocation4], 1
    %9342 = vsyncpa %s9341, 1
    %9343 = vsyncpa [#allocation7], 1
    %s9344 = scalar_lea.sflag [#allocation7], 1
    %9345 = vsyncpa %s9344, 1
    %9346 = vsyncpa [#allocation5], 1
    %s9347 = scalar_lea.sflag [#allocation5], 1
    %9348 = vsyncpa %s9347, 1

</llo_original>
